<compile_context>
chip_gen: v5e
topology: v5e:2x2
jax: 0.10.0
libtpu: 0.0.40
codegen_flags: <defaults>
</compile_context>

<pallas_src>
import functools

import jax
import jax.numpy as jnp
from jax.experimental import pallas as pl
from jax.experimental.pallas import tpu as pltpu


# ----------------------------------------------------------------------------
# Fused whole-network kernel (one grid step per batch image)
# ----------------------------------------------------------------------------
def _deepcnn_kernel(x0_ref, w0_ref, b0_ref, w1_ref, b1_ref,
                    wc1_ref, bc1_ref, wc3_ref, bc3_ref,
                    o_ref, pad1_ref, s2_ref, *,
                    W1, Hp1, Wp1, Hp2, Wp2, Ho, Wo):
    f32 = jnp.float32
    bf16 = jnp.bfloat16

    def silu(v):
        # EUP exp + approximate reciprocal (keeps the epilogue off the VALU).
        return v * pl.reciprocal(1.0 + jnp.exp(-v), approx=True)

    # ---- conv_stem (patches precomputed wrapper-side) + folded bn1 + SiLU,
    #      fused with the 1x1 "eff" conv + folded BN + SiLU.  The lane-sparse
    #      24-channel activation never leaves the kernel.
    y = jnp.dot(x0_ref[0], w0_ref[...], preferred_element_type=f32)   # (H1*W1, 24)
    y = silu(y + b0_ref[...])
    y = jnp.dot(y.astype(bf16), w1_ref[...], preferred_element_type=f32)  # (H1*W1, Ce)
    y = silu(y + b1_ref[...])

    # ---- pooling1: MaxPool2d((2,2),(2,1),(0,1)), written straight into the
    #      zero-padded conv1 input stored flat as ((Hp1+2)*(Wp1+2), Ce).
    Wpad1 = Wp1 + 2
    pad1_ref[...] = jnp.zeros_like(pad1_ref)
    for i in range(Hp1):
        ra = y[(2 * i) * W1:(2 * i) * W1 + W1, :]
        rb = y[(2 * i + 1) * W1:(2 * i + 1) * W1 + W1, :]
        r = jnp.maximum(ra, rb)                                  # height pool (W1, Ce)
        base = (i + 1) * Wpad1 + 1
        pad1_ref[base:base + 1, :] = r[0:1, :]                   # left -inf pad col
        pad1_ref[base + 1:base + W1, :] = jnp.maximum(r[:W1 - 1, :], r[1:, :])
        pad1_ref[base + W1:base + W1 + 1, :] = r[W1 - 1:W1, :]   # right -inf pad col

    # ---- conv1 (3x3, pad 1, 256->384) + folded BN + ReLU as 9 shifted matmuls
    #      over the flat padded grid (no materialized im2col).
    R1 = (Hp1 - 1) * Wpad1 + Wp1
    acc = None
    for t, (di, dj) in enumerate([(a, b) for a in range(3) for b in range(3)]):
        off = di * Wpad1 + dj
        lhs = pad1_ref[off:off + R1, :].astype(bf16)
        part = jnp.dot(lhs, wc1_ref[t], preferred_element_type=f32)
        acc = part if acc is None else acc + part
    y1 = jnp.maximum(acc + bc1_ref[...], 0.0)                    # (R1, C1), row stride Wpad1

    # ---- pooling2: same pool on the (Hp1, Wp1) grid -> flat (Hp2*Wp2, C1).
    for i in range(Hp2):
        ra = y1[(2 * i) * Wpad1:(2 * i) * Wpad1 + Wp1, :]
        rb = y1[(2 * i + 1) * Wpad1:(2 * i + 1) * Wpad1 + Wp1, :]
        r = jnp.maximum(ra, rb)                                  # (Wp1, C1)
        base = i * Wp2
        s2_ref[base:base + 1, :] = r[0:1, :]
        s2_ref[base + 1:base + Wp1, :] = jnp.maximum(r[:Wp1 - 1, :], r[1:, :])
        s2_ref[base + Wp1:base + Wp1 + 1, :] = r[Wp1 - 1:Wp1, :]

    # ---- conv3 (2x2, no pad, 384->384) + folded BN + ReLU as 4 shifted matmuls.
    R3 = (Ho - 1) * Wp2 + Wo
    acc3 = None
    for t, (di, dj) in enumerate([(a, b) for a in range(2) for b in range(2)]):
        off = di * Wp2 + dj
        lhs = s2_ref[off:off + R3, :].astype(bf16)
        part = jnp.dot(lhs, wc3_ref[t], preferred_element_type=f32)
        acc3 = part if acc3 is None else acc3 + part
    y3 = jnp.maximum(acc3 + bc3_ref[...], 0.0)                   # (R3, C3), row stride Wp2

    for h in range(Ho):
        o_ref[0, h * Wo:(h + 1) * Wo, :] = y3[h * Wp2:h * Wp2 + Wo, :]


# ----------------------------------------------------------------------------
# Wrapper-side preprocessing (BN folding, tiny stem im2col)
# ----------------------------------------------------------------------------
def _fold_conv_bn(w_oihw, conv_bias, bn):
    """Fold inference BatchNorm into the conv weight: returns per-tap slabs
    (kh*kw, Cin, Cout) in bf16 and a bias row (1, Cout) in f32."""
    Cout, Cin, kh, kw = w_oihw.shape
    wm = jnp.transpose(w_oihw, (2, 3, 1, 0)).reshape(kh * kw, Cin, Cout)
    b = conv_bias if conv_bias is not None else jnp.zeros((Cout,), jnp.float32)
    if bn is not None:
        gamma, beta, mean, var, eps = bn
        scale = gamma / jnp.sqrt(var + eps)
        bias = (b - mean) * scale + beta
    else:
        scale = jnp.ones((Cout,), jnp.float32)
        bias = b
    wm = (wm * scale[None, None, :]).astype(jnp.bfloat16)
    return wm, bias.reshape(1, Cout).astype(jnp.float32)


def _stem_im2col(x_nhwc, Ho, Wo):
    """3x3 / stride-2 / no-pad patches: (N,H,W,C) -> (N, Ho*Wo, 9*C).
    Tiny (C = nc = 4) so wrapper-side materialization is negligible."""
    cols = []
    for di in range(3):
        for dj in range(3):
            cols.append(x_nhwc[:, di:di + 2 * (Ho - 1) + 1:2,
                               dj:dj + 2 * (Wo - 1) + 1:2, :])
    p = jnp.stack(cols, axis=3)                    # (N, Ho, Wo, 9, C)
    N, C = x_nhwc.shape[0], x_nhwc.shape[3]
    return p.reshape(N, Ho * Wo, 9 * C)


# ----------------------------------------------------------------------------
# DeepCNN forward
# ----------------------------------------------------------------------------
def deep_cnn_forward(x_nchw, p):
    N, _, H, W = x_nchw.shape
    x = jnp.transpose(x_nchw, (0, 2, 3, 1))        # NCHW -> NHWC

    # Static spatial bookkeeping.
    H1, W1 = (H - 3) // 2 + 1, (W - 3) // 2 + 1    # conv_stem out
    Hp1, Wp1 = (H1 - 2) // 2 + 1, W1 + 1           # pooling1 out (== conv1 out)
    Hp2, Wp2 = (Hp1 - 2) // 2 + 1, Wp1 + 1         # pooling2 out
    Ho, Wo = Hp2 - 1, Wp2 - 1                      # conv3 out

    # Fold BN (inference, running stats) into weights / bias rows; bf16 weights.
    # TODO(synk): timm tf_efficientnetv2_s_in21ft1k pretrained `blocks` (6 MBConv
    # stages w/ SE) cannot be loaded offline; replaced with a single 1x1 conv
    # 24->256 + BN + SiLU stand-in (spatial stride kept at 1), as before.
    w0, b0 = _fold_conv_bn(p["stem_w"], None, p["bn1"])
    w0 = w0.reshape(-1, w0.shape[-1])                                   # (9*nc, 24)
    w1, b1 = _fold_conv_bn(p["eff_w"], None, p["eff_bn"])
    w1 = w1.reshape(-1, w1.shape[-1])                                   # (24, 256)
    wc1, bc1 = _fold_conv_bn(p["conv1_w"], p["conv1_b"], p["conv1_bn"])  # (9,256,384)
    wc3, bc3 = _fold_conv_bn(p["conv3_w"], p["conv3_b"], p["conv3_bn"])  # (4,384,384)
    Ce, C1, C3 = w1.shape[1], wc1.shape[2], wc3.shape[2]

    x0 = _stem_im2col(x, H1, W1).astype(jnp.bfloat16)                   # (N, H1*W1, 9*nc)

    kern = functools.partial(_deepcnn_kernel, W1=W1, Hp1=Hp1, Wp1=Wp1,
                             Hp2=Hp2, Wp2=Wp2, Ho=Ho, Wo=Wo)
    out = pl.pallas_call(
        kern,
        out_shape=jax.ShapeDtypeStruct((N, Ho * Wo, C3), jnp.float32),
        grid=(N,),
        in_specs=[
            pl.BlockSpec((1,) + x0.shape[1:], lambda n: (n, 0, 0)),
            pl.BlockSpec(w0.shape, lambda n: (0, 0)),
            pl.BlockSpec(b0.shape, lambda n: (0, 0)),
            pl.BlockSpec(w1.shape, lambda n: (0, 0)),
            pl.BlockSpec(b1.shape, lambda n: (0, 0)),
            pl.BlockSpec(wc1.shape, lambda n: (0, 0, 0)),
            pl.BlockSpec(bc1.shape, lambda n: (0, 0)),
            pl.BlockSpec(wc3.shape, lambda n: (0, 0, 0)),
            pl.BlockSpec(bc3.shape, lambda n: (0, 0)),
        ],
        out_specs=pl.BlockSpec((1, Ho * Wo, C3), lambda n: (n, 0, 0)),
        scratch_shapes=[
            pltpu.VMEM(((Hp1 + 2) * (Wp1 + 2), Ce), jnp.float32),   # padded conv1 input
            pltpu.VMEM((Hp2 * Wp2, C1), jnp.float32),               # pooling2 output
        ],
        compiler_params=pltpu.CompilerParams(
            dimension_semantics=("parallel",),
            vmem_limit_bytes=32 * 1024 * 1024,
        ),
    )(x0, w0, b0, w1, b1, wc1, bc1, wc3, bc3)

    out = out.reshape(N, Ho, Wo, C3)
    return jnp.transpose(out, (0, 3, 1, 2))        # NHWC -> NCHW
    # note: self.conv2 is defined in __init__ but never used in forward -> omitted.


# ----------------------------------------------------------------------------
# Deterministic parameter construction + demo
# ----------------------------------------------------------------------------
def _bn_params(key, c, eps):
    k1, k2, k3, k4 = jax.random.split(key, 4)
    gamma = 1.0 + 0.1 * jax.random.normal(k1, (c,), jnp.float32)
    beta = 0.1 * jax.random.normal(k2, (c,), jnp.float32)
    mean = 0.1 * jax.random.normal(k3, (c,), jnp.float32)
    var = 1.0 + 0.1 * jnp.abs(jax.random.normal(k4, (c,), jnp.float32))
    return (gamma, beta, mean, var, jnp.float32(eps))


if __name__ == "__main__":
    key = jax.random.PRNGKey(0)
    keys = jax.random.split(key, 12)
    nc = 4
    N, H, W = 2, 32, 32

    params = {
        "stem_w":  0.05 * jax.random.normal(keys[0], (24, nc, 3, 3), jnp.float32),
        "bn1":     _bn_params(keys[1], 24, 1e-3),
        "eff_w":   0.05 * jax.random.normal(keys[2], (256, 24, 1, 1), jnp.float32),
        "eff_bn":  _bn_params(keys[3], 256, 1e-3),
        "conv1_w": 0.05 * jax.random.normal(keys[4], (384, 256, 3, 3), jnp.float32),
        "conv1_b": 0.05 * jax.random.normal(keys[5], (384,), jnp.float32),
        "conv1_bn": _bn_params(keys[6], 384, 1e-5),
        "conv3_w": 0.05 * jax.random.normal(keys[7], (384, 384, 2, 2), jnp.float32),
        "conv3_b": 0.05 * jax.random.normal(keys[8], (384,), jnp.float32),
        "conv3_bn": _bn_params(keys[9], 384, 1e-5),
    }

    x = jax.random.normal(keys[10], (N, nc, H, W), jnp.float32)
    out = jax.jit(deep_cnn_forward)(x, params)
    out = jax.block_until_ready(out)
    assert out.shape == (N, 384, 2, 16), out.shape
    print("KERNEL_OK")
</pallas_src>

<mosaic_0001>
module attributes {stable_mosaic.version = 11 : i64} {
  func.func @_deepcnn_kernel(%arg0: i32, %arg1: memref<1x225x36xbf16, #tpu.memory_space<vmem>>, %arg2: memref<36x24xbf16, #tpu.memory_space<vmem>>, %arg3: memref<1x24xf32, #tpu.memory_space<vmem>>, %arg4: memref<24x256xbf16, #tpu.memory_space<vmem>>, %arg5: memref<1x256xf32, #tpu.memory_space<vmem>>, %arg6: memref<9x256x384xbf16, #tpu.memory_space<vmem>>, %arg7: memref<1x384xf32, #tpu.memory_space<vmem>>, %arg8: memref<4x384x384xbf16, #tpu.memory_space<vmem>>, %arg9: memref<1x384xf32, #tpu.memory_space<vmem>>, %arg10: memref<1x32x384xf32, #tpu.memory_space<vmem>>, %arg11: memref<162x256xf32, #tpu.memory_space<vmem>>, %arg12: memref<51x384xf32, #tpu.memory_space<vmem>>) attributes {dimension_semantics = [#tpu.dimension_semantics<parallel>], iteration_bounds = array<i64: 2>, scalar_prefetch = 0 : i64, scratch_operands = 2 : i64, tpu.core_type = #tpu.core_type<tc>, window_params = [{transform_indices = @transform_0, window_bounds = array<i64: 1, 225, 36>}, {pipeline_mode = #tpu.pipeline_mode<synchronous>, transform_indices = @transform_1, window_bounds = array<i64: 36, 24>}, {pipeline_mode = #tpu.pipeline_mode<synchronous>, transform_indices = @transform_2, window_bounds = array<i64: 1, 24>}, {pipeline_mode = #tpu.pipeline_mode<synchronous>, transform_indices = @transform_3, window_bounds = array<i64: 24, 256>}, {pipeline_mode = #tpu.pipeline_mode<synchronous>, transform_indices = @transform_4, window_bounds = array<i64: 1, 256>}, {pipeline_mode = #tpu.pipeline_mode<synchronous>, transform_indices = @transform_5, window_bounds = array<i64: 9, 256, 384>}, {pipeline_mode = #tpu.pipeline_mode<synchronous>, transform_indices = @transform_6, window_bounds = array<i64: 1, 384>}, {pipeline_mode = #tpu.pipeline_mode<synchronous>, transform_indices = @transform_7, window_bounds = array<i64: 4, 384, 384>}, {pipeline_mode = #tpu.pipeline_mode<synchronous>, transform_indices = @transform_8, window_bounds = array<i64: 1, 384>}, {transform_indices = @transform_9, window_bounds = array<i64: 1, 32, 384>}]} {
    %c0 = arith.constant 0 : index
    %c0_0 = arith.constant 0 : index
    %c0_1 = arith.constant 0 : index
    %0 = vector.load %arg1[%c0, %c0_0, %c0_1] : memref<1x225x36xbf16, #tpu.memory_space<vmem>>, vector<1x225x36xbf16>
    %1 = vector.shape_cast %0 : vector<1x225x36xbf16> to vector<225x36xbf16>
    %c0_2 = arith.constant 0 : index
    %c0_3 = arith.constant 0 : index
    %2 = vector.load %arg2[%c0_2, %c0_3] : memref<36x24xbf16, #tpu.memory_space<vmem>>, vector<36x24xbf16>
    %cst = arith.constant dense<0.000000e+00> : vector<225x24xf32>
    %3 = tpu.matmul %1, %2, %cst {dimension_numbers = #tpu.dot_dimension_numbers<[1], [0], [0], [1], [0, 0, 1, 1], [], []>} : vector<225x36xbf16>, vector<36x24xbf16>, vector<225x24xf32> -> vector<225x24xf32>
    %c0_4 = arith.constant 0 : index
    %c0_5 = arith.constant 0 : index
    %4 = vector.load %arg3[%c0_4, %c0_5] : memref<1x24xf32, #tpu.memory_space<vmem>>, vector<1x24xf32>
    %5 = vector.broadcast %4 : vector<1x24xf32> to vector<225x24xf32>
    %6 = arith.addf %3, %5 : vector<225x24xf32>
    %cst_6 = arith.constant 0.000000e+00 : f32
    %7 = vector.broadcast %cst_6 : f32 to vector<225x24xf32>
    %8 = arith.subf %7, %6 : vector<225x24xf32>
    %9 = math.exp %8 : vector<225x24xf32>
    %cst_7 = arith.constant 1.000000e+00 : f32
    %10 = vector.broadcast %cst_7 : f32 to vector<225x24xf32>
    %11 = arith.addf %10, %9 : vector<225x24xf32>
    %12 = tpu.reciprocal %11 {approx = true} : vector<225x24xf32> -> vector<225x24xf32>
    %13 = arith.mulf %6, %12 : vector<225x24xf32>
    %14 = arith.truncf %13 : vector<225x24xf32> to vector<225x24xbf16>
    %c0_8 = arith.constant 0 : index
    %c0_9 = arith.constant 0 : index
    %15 = vector.load %arg4[%c0_8, %c0_9] : memref<24x256xbf16, #tpu.memory_space<vmem>>, vector<24x256xbf16>
    %cst_10 = arith.constant dense<0.000000e+00> : vector<225x256xf32>
    %16 = tpu.matmul %14, %15, %cst_10 {dimension_numbers = #tpu.dot_dimension_numbers<[1], [0], [0], [1], [0, 0, 1, 1], [], []>} : vector<225x24xbf16>, vector<24x256xbf16>, vector<225x256xf32> -> vector<225x256xf32>
    %c0_11 = arith.constant 0 : index
    %c0_12 = arith.constant 0 : index
    %17 = vector.load %arg5[%c0_11, %c0_12] : memref<1x256xf32, #tpu.memory_space<vmem>>, vector<1x256xf32>
    %18 = vector.broadcast %17 : vector<1x256xf32> to vector<225x256xf32>
    %19 = arith.addf %16, %18 : vector<225x256xf32>
    %cst_13 = arith.constant 0.000000e+00 : f32
    %20 = vector.broadcast %cst_13 : f32 to vector<225x256xf32>
    %21 = arith.subf %20, %19 : vector<225x256xf32>
    %22 = math.exp %21 : vector<225x256xf32>
    %cst_14 = arith.constant 1.000000e+00 : f32
    %23 = vector.broadcast %cst_14 : f32 to vector<225x256xf32>
    %24 = arith.addf %23, %22 : vector<225x256xf32>
    %25 = tpu.reciprocal %24 {approx = true} : vector<225x256xf32> -> vector<225x256xf32>
    %26 = arith.mulf %19, %25 : vector<225x256xf32>
    %cst_15 = arith.constant 0.000000e+00 : f32
    %27 = vector.broadcast %cst_15 : f32 to vector<162x256xf32>
    %c0_16 = arith.constant 0 : index
    %c0_17 = arith.constant 0 : index
    %28 = vector.load %arg11[%c0_16, %c0_17] : memref<162x256xf32, #tpu.memory_space<vmem>>, vector<162x256xf32>
    tpu.vector_store %arg11[%c0_16, %c0_17], %27 {strides = array<i32>} : memref<162x256xf32, #tpu.memory_space<vmem>>, vector<162x256xf32>,
    %29 = vector.extract_strided_slice %26 {offsets = [0, 0], sizes = [15, 256], strides = [1, 1]} : vector<225x256xf32> to vector<15x256xf32>
    %30 = vector.extract_strided_slice %26 {offsets = [15, 0], sizes = [15, 256], strides = [1, 1]} : vector<225x256xf32> to vector<15x256xf32>
    %31 = arith.maximumf %29, %30 : vector<15x256xf32>
    %32 = vector.extract_strided_slice %31 {offsets = [0, 0], sizes = [1, 256], strides = [1, 1]} : vector<15x256xf32> to vector<1x256xf32>
    %c19 = arith.constant 19 : index
    %c0_18 = arith.constant 0 : index
    %33 = vector.load %arg11[%c19, %c0_18] : memref<162x256xf32, #tpu.memory_space<vmem>>, vector<1x256xf32>
    tpu.vector_store %arg11[%c19, %c0_18], %32 {strides = array<i32>} : memref<162x256xf32, #tpu.memory_space<vmem>>, vector<1x256xf32>,
    %34 = vector.extract_strided_slice %31 {offsets = [0, 0], sizes = [14, 256], strides = [1, 1]} : vector<15x256xf32> to vector<14x256xf32>
    %35 = vector.extract_strided_slice %31 {offsets = [1, 0], sizes = [14, 256], strides = [1, 1]} : vector<15x256xf32> to vector<14x256xf32>
    %36 = arith.maximumf %34, %35 : vector<14x256xf32>
    %c20 = arith.constant 20 : index
    %c0_19 = arith.constant 0 : index
    %37 = vector.load %arg11[%c20, %c0_19] : memref<162x256xf32, #tpu.memory_space<vmem>>, vector<14x256xf32>
    tpu.vector_store %arg11[%c20, %c0_19], %36 {strides = array<i32>} : memref<162x256xf32, #tpu.memory_space<vmem>>, vector<14x256xf32>,
    %38 = vector.extract_strided_slice %31 {offsets = [14, 0], sizes = [1, 256], strides = [1, 1]} : vector<15x256xf32> to vector<1x256xf32>
    %c34 = arith.constant 34 : index
    %c0_20 = arith.constant 0 : index
    %39 = vector.load %arg11[%c34, %c0_20] : memref<162x256xf32, #tpu.memory_space<vmem>>, vector<1x256xf32>
    tpu.vector_store %arg11[%c34, %c0_20], %38 {strides = array<i32>} : memref<162x256xf32, #tpu.memory_space<vmem>>, vector<1x256xf32>,
    %40 = vector.extract_strided_slice %26 {offsets = [30, 0], sizes = [15, 256], strides = [1, 1]} : vector<225x256xf32> to vector<15x256xf32>
    %41 = vector.extract_strided_slice %26 {offsets = [45, 0], sizes = [15, 256], strides = [1, 1]} : vector<225x256xf32> to vector<15x256xf32>
    %42 = arith.maximumf %40, %41 : vector<15x256xf32>
    %43 = vector.extract_strided_slice %42 {offsets = [0, 0], sizes = [1, 256], strides = [1, 1]} : vector<15x256xf32> to vector<1x256xf32>
    %c37 = arith.constant 37 : index
    %c0_21 = arith.constant 0 : index
    %44 = vector.load %arg11[%c37, %c0_21] : memref<162x256xf32, #tpu.memory_space<vmem>>, vector<1x256xf32>
    tpu.vector_store %arg11[%c37, %c0_21], %43 {strides = array<i32>} : memref<162x256xf32, #tpu.memory_space<vmem>>, vector<1x256xf32>,
    %45 = vector.extract_strided_slice %42 {offsets = [0, 0], sizes = [14, 256], strides = [1, 1]} : vector<15x256xf32> to vector<14x256xf32>
    %46 = vector.extract_strided_slice %42 {offsets = [1, 0], sizes = [14, 256], strides = [1, 1]} : vector<15x256xf32> to vector<14x256xf32>
    %47 = arith.maximumf %45, %46 : vector<14x256xf32>
    %c38 = arith.constant 38 : index
    %c0_22 = arith.constant 0 : index
    %48 = vector.load %arg11[%c38, %c0_22] : memref<162x256xf32, #tpu.memory_space<vmem>>, vector<14x256xf32>
    tpu.vector_store %arg11[%c38, %c0_22], %47 {strides = array<i32>} : memref<162x256xf32, #tpu.memory_space<vmem>>, vector<14x256xf32>,
    %49 = vector.extract_strided_slice %42 {offsets = [14, 0], sizes = [1, 256], strides = [1, 1]} : vector<15x256xf32> to vector<1x256xf32>
    %c52 = arith.constant 52 : index
    %c0_23 = arith.constant 0 : index
    %50 = vector.load %arg11[%c52, %c0_23] : memref<162x256xf32, #tpu.memory_space<vmem>>, vector<1x256xf32>
    tpu.vector_store %arg11[%c52, %c0_23], %49 {strides = array<i32>} : memref<162x256xf32, #tpu.memory_space<vmem>>, vector<1x256xf32>,
    %51 = vector.extract_strided_slice %26 {offsets = [60, 0], sizes = [15, 256], strides = [1, 1]} : vector<225x256xf32> to vector<15x256xf32>
    %52 = vector.extract_strided_slice %26 {offsets = [75, 0], sizes = [15, 256], strides = [1, 1]} : vector<225x256xf32> to vector<15x256xf32>
    %53 = arith.maximumf %51, %52 : vector<15x256xf32>
    %54 = vector.extract_strided_slice %53 {offsets = [0, 0], sizes = [1, 256], strides = [1, 1]} : vector<15x256xf32> to vector<1x256xf32>
    %c55 = arith.constant 55 : index
    %c0_24 = arith.constant 0 : index
    %55 = vector.load %arg11[%c55, %c0_24] : memref<162x256xf32, #tpu.memory_space<vmem>>, vector<1x256xf32>
    tpu.vector_store %arg11[%c55, %c0_24], %54 {strides = array<i32>} : memref<162x256xf32, #tpu.memory_space<vmem>>, vector<1x256xf32>,
    %56 = vector.extract_strided_slice %53 {offsets = [0, 0], sizes = [14, 256], strides = [1, 1]} : vector<15x256xf32> to vector<14x256xf32>
    %57 = vector.extract_strided_slice %53 {offsets = [1, 0], sizes = [14, 256], strides = [1, 1]} : vector<15x256xf32> to vector<14x256xf32>
    %58 = arith.maximumf %56, %57 : vector<14x256xf32>
    %c56 = arith.constant 56 : index
    %c0_25 = arith.constant 0 : index
    %59 = vector.load %arg11[%c56, %c0_25] : memref<162x256xf32, #tpu.memory_space<vmem>>, vector<14x256xf32>
    tpu.vector_store %arg11[%c56, %c0_25], %58 {strides = array<i32>} : memref<162x256xf32, #tpu.memory_space<vmem>>, vector<14x256xf32>,
    %60 = vector.extract_strided_slice %53 {offsets = [14, 0], sizes = [1, 256], strides = [1, 1]} : vector<15x256xf32> to vector<1x256xf32>
    %c70 = arith.constant 70 : index
    %c0_26 = arith.constant 0 : index
    %61 = vector.load %arg11[%c70, %c0_26] : memref<162x256xf32, #tpu.memory_space<vmem>>, vector<1x256xf32>
    tpu.vector_store %arg11[%c70, %c0_26], %60 {strides = array<i32>} : memref<162x256xf32, #tpu.memory_space<vmem>>, vector<1x256xf32>,
    %62 = vector.extract_strided_slice %26 {offsets = [90, 0], sizes = [15, 256], strides = [1, 1]} : vector<225x256xf32> to vector<15x256xf32>
    %63 = vector.extract_strided_slice %26 {offsets = [105, 0], sizes = [15, 256], strides = [1, 1]} : vector<225x256xf32> to vector<15x256xf32>
    %64 = arith.maximumf %62, %63 : vector<15x256xf32>
    %65 = vector.extract_strided_slice %64 {offsets = [0, 0], sizes = [1, 256], strides = [1, 1]} : vector<15x256xf32> to vector<1x256xf32>
    %c73 = arith.constant 73 : index
    %c0_27 = arith.constant 0 : index
    %66 = vector.load %arg11[%c73, %c0_27] : memref<162x256xf32, #tpu.memory_space<vmem>>, vector<1x256xf32>
    tpu.vector_store %arg11[%c73, %c0_27], %65 {strides = array<i32>} : memref<162x256xf32, #tpu.memory_space<vmem>>, vector<1x256xf32>,
    %67 = vector.extract_strided_slice %64 {offsets = [0, 0], sizes = [14, 256], strides = [1, 1]} : vector<15x256xf32> to vector<14x256xf32>
    %68 = vector.extract_strided_slice %64 {offsets = [1, 0], sizes = [14, 256], strides = [1, 1]} : vector<15x256xf32> to vector<14x256xf32>
    %69 = arith.maximumf %67, %68 : vector<14x256xf32>
    %c74 = arith.constant 74 : index
    %c0_28 = arith.constant 0 : index
    %70 = vector.load %arg11[%c74, %c0_28] : memref<162x256xf32, #tpu.memory_space<vmem>>, vector<14x256xf32>
    tpu.vector_store %arg11[%c74, %c0_28], %69 {strides = array<i32>} : memref<162x256xf32, #tpu.memory_space<vmem>>, vector<14x256xf32>,
    %71 = vector.extract_strided_slice %64 {offsets = [14, 0], sizes = [1, 256], strides = [1, 1]} : vector<15x256xf32> to vector<1x256xf32>
    %c88 = arith.constant 88 : index
    %c0_29 = arith.constant 0 : index
    %72 = vector.load %arg11[%c88, %c0_29] : memref<162x256xf32, #tpu.memory_space<vmem>>, vector<1x256xf32>
    tpu.vector_store %arg11[%c88, %c0_29], %71 {strides = array<i32>} : memref<162x256xf32, #tpu.memory_space<vmem>>, vector<1x256xf32>,
    %73 = vector.extract_strided_slice %26 {offsets = [120, 0], sizes = [15, 256], strides = [1, 1]} : vector<225x256xf32> to vector<15x256xf32>
    %74 = vector.extract_strided_slice %26 {offsets = [135, 0], sizes = [15, 256], strides = [1, 1]} : vector<225x256xf32> to vector<15x256xf32>
    %75 = arith.maximumf %73, %74 : vector<15x256xf32>
    %76 = vector.extract_strided_slice %75 {offsets = [0, 0], sizes = [1, 256], strides = [1, 1]} : vector<15x256xf32> to vector<1x256xf32>
    %c91 = arith.constant 91 : index
    %c0_30 = arith.constant 0 : index
    %77 = vector.load %arg11[%c91, %c0_30] : memref<162x256xf32, #tpu.memory_space<vmem>>, vector<1x256xf32>
    tpu.vector_store %arg11[%c91, %c0_30], %76 {strides = array<i32>} : memref<162x256xf32, #tpu.memory_space<vmem>>, vector<1x256xf32>,
    %78 = vector.extract_strided_slice %75 {offsets = [0, 0], sizes = [14, 256], strides = [1, 1]} : vector<15x256xf32> to vector<14x256xf32>
    %79 = vector.extract_strided_slice %75 {offsets = [1, 0], sizes = [14, 256], strides = [1, 1]} : vector<15x256xf32> to vector<14x256xf32>
    %80 = arith.maximumf %78, %79 : vector<14x256xf32>
    %c92 = arith.constant 92 : index
    %c0_31 = arith.constant 0 : index
    %81 = vector.load %arg11[%c92, %c0_31] : memref<162x256xf32, #tpu.memory_space<vmem>>, vector<14x256xf32>
    tpu.vector_store %arg11[%c92, %c0_31], %80 {strides = array<i32>} : memref<162x256xf32, #tpu.memory_space<vmem>>, vector<14x256xf32>,
    %82 = vector.extract_strided_slice %75 {offsets = [14, 0], sizes = [1, 256], strides = [1, 1]} : vector<15x256xf32> to vector<1x256xf32>
    %c106 = arith.constant 106 : index
    %c0_32 = arith.constant 0 : index
    %83 = vector.load %arg11[%c106, %c0_32] : memref<162x256xf32, #tpu.memory_space<vmem>>, vector<1x256xf32>
    tpu.vector_store %arg11[%c106, %c0_32], %82 {strides = array<i32>} : memref<162x256xf32, #tpu.memory_space<vmem>>, vector<1x256xf32>,
    %84 = vector.extract_strided_slice %26 {offsets = [150, 0], sizes = [15, 256], strides = [1, 1]} : vector<225x256xf32> to vector<15x256xf32>
    %85 = vector.extract_strided_slice %26 {offsets = [165, 0], sizes = [15, 256], strides = [1, 1]} : vector<225x256xf32> to vector<15x256xf32>
    %86 = arith.maximumf %84, %85 : vector<15x256xf32>
    %87 = vector.extract_strided_slice %86 {offsets = [0, 0], sizes = [1, 256], strides = [1, 1]} : vector<15x256xf32> to vector<1x256xf32>
    %c109 = arith.constant 109 : index
    %c0_33 = arith.constant 0 : index
    %88 = vector.load %arg11[%c109, %c0_33] : memref<162x256xf32, #tpu.memory_space<vmem>>, vector<1x256xf32>
    tpu.vector_store %arg11[%c109, %c0_33], %87 {strides = array<i32>} : memref<162x256xf32, #tpu.memory_space<vmem>>, vector<1x256xf32>,
    %89 = vector.extract_strided_slice %86 {offsets = [0, 0], sizes = [14, 256], strides = [1, 1]} : vector<15x256xf32> to vector<14x256xf32>
    %90 = vector.extract_strided_slice %86 {offsets = [1, 0], sizes = [14, 256], strides = [1, 1]} : vector<15x256xf32> to vector<14x256xf32>
    %91 = arith.maximumf %89, %90 : vector<14x256xf32>
    %c110 = arith.constant 110 : index
    %c0_34 = arith.constant 0 : index
    %92 = vector.load %arg11[%c110, %c0_34] : memref<162x256xf32, #tpu.memory_space<vmem>>, vector<14x256xf32>
    tpu.vector_store %arg11[%c110, %c0_34], %91 {strides = array<i32>} : memref<162x256xf32, #tpu.memory_space<vmem>>, vector<14x256xf32>,
    %93 = vector.extract_strided_slice %86 {offsets = [14, 0], sizes = [1, 256], strides = [1, 1]} : vector<15x256xf32> to vector<1x256xf32>
    %c124 = arith.constant 124 : index
    %c0_35 = arith.constant 0 : index
    %94 = vector.load %arg11[%c124, %c0_35] : memref<162x256xf32, #tpu.memory_space<vmem>>, vector<1x256xf32>
    tpu.vector_store %arg11[%c124, %c0_35], %93 {strides = array<i32>} : memref<162x256xf32, #tpu.memory_space<vmem>>, vector<1x256xf32>,
    %95 = vector.extract_strided_slice %26 {offsets = [180, 0], sizes = [15, 256], strides = [1, 1]} : vector<225x256xf32> to vector<15x256xf32>
    %96 = vector.extract_strided_slice %26 {offsets = [195, 0], sizes = [15, 256], strides = [1, 1]} : vector<225x256xf32> to vector<15x256xf32>
    %97 = arith.maximumf %95, %96 : vector<15x256xf32>
    %98 = vector.extract_strided_slice %97 {offsets = [0, 0], sizes = [1, 256], strides = [1, 1]} : vector<15x256xf32> to vector<1x256xf32>
    %c127 = arith.constant 127 : index
    %c0_36 = arith.constant 0 : index
    %99 = vector.load %arg11[%c127, %c0_36] : memref<162x256xf32, #tpu.memory_space<vmem>>, vector<1x256xf32>
    tpu.vector_store %arg11[%c127, %c0_36], %98 {strides = array<i32>} : memref<162x256xf32, #tpu.memory_space<vmem>>, vector<1x256xf32>,
    %100 = vector.extract_strided_slice %97 {offsets = [0, 0], sizes = [14, 256], strides = [1, 1]} : vector<15x256xf32> to vector<14x256xf32>
    %101 = vector.extract_strided_slice %97 {offsets = [1, 0], sizes = [14, 256], strides = [1, 1]} : vector<15x256xf32> to vector<14x256xf32>
    %102 = arith.maximumf %100, %101 : vector<14x256xf32>
    %c128 = arith.constant 128 : index
    %c0_37 = arith.constant 0 : index
    %103 = vector.load %arg11[%c128, %c0_37] : memref<162x256xf32, #tpu.memory_space<vmem>>, vector<14x256xf32>
    tpu.vector_store %arg11[%c128, %c0_37], %102 {strides = array<i32>} : memref<162x256xf32, #tpu.memory_space<vmem>>, vector<14x256xf32>,
    %104 = vector.extract_strided_slice %97 {offsets = [14, 0], sizes = [1, 256], strides = [1, 1]} : vector<15x256xf32> to vector<1x256xf32>
    %c142 = arith.constant 142 : index
    %c0_38 = arith.constant 0 : index
    %105 = vector.load %arg11[%c142, %c0_38] : memref<162x256xf32, #tpu.memory_space<vmem>>, vector<1x256xf32>
    tpu.vector_store %arg11[%c142, %c0_38], %104 {strides = array<i32>} : memref<162x256xf32, #tpu.memory_space<vmem>>, vector<1x256xf32>,
    %c0_39 = arith.constant 0 : index
    %c0_40 = arith.constant 0 : index
    %106 = vector.load %arg11[%c0_39, %c0_40] : memref<162x256xf32, #tpu.memory_space<vmem>>, vector<124x256xf32>
    %107 = arith.truncf %106 : vector<124x256xf32> to vector<124x256xbf16>
    %c0_41 = arith.constant 0 : index
    %c0_42 = arith.constant 0 : index
    %c0_43 = arith.constant 0 : index
    %108 = vector.load %arg6[%c0_41, %c0_42, %c0_43] : memref<9x256x384xbf16, #tpu.memory_space<vmem>>, vector<1x256x384xbf16>
    %109 = vector.shape_cast %108 : vector<1x256x384xbf16> to vector<256x384xbf16>
    %cst_44 = arith.constant dense<0.000000e+00> : vector<124x384xf32>
    %110 = tpu.matmul %107, %109, %cst_44 {dimension_numbers = #tpu.dot_dimension_numbers<[1], [0], [0], [1], [0, 0, 1, 1], [], []>} : vector<124x256xbf16>, vector<256x384xbf16>, vector<124x384xf32> -> vector<124x384xf32>
    %c1 = arith.constant 1 : index
    %c0_45 = arith.constant 0 : index
    %111 = vector.load %arg11[%c1, %c0_45] : memref<162x256xf32, #tpu.memory_space<vmem>>, vector<124x256xf32>
    %112 = arith.truncf %111 : vector<124x256xf32> to vector<124x256xbf16>
    %c1_46 = arith.constant 1 : index
    %c0_47 = arith.constant 0 : index
    %c0_48 = arith.constant 0 : index
    %113 = vector.load %arg6[%c1_46, %c0_47, %c0_48] : memref<9x256x384xbf16, #tpu.memory_space<vmem>>, vector<1x256x384xbf16>
    %114 = vector.shape_cast %113 : vector<1x256x384xbf16> to vector<256x384xbf16>
    %cst_49 = arith.constant dense<0.000000e+00> : vector<124x384xf32>
    %115 = tpu.matmul %112, %114, %cst_49 {dimension_numbers = #tpu.dot_dimension_numbers<[1], [0], [0], [1], [0, 0, 1, 1], [], []>} : vector<124x256xbf16>, vector<256x384xbf16>, vector<124x384xf32> -> vector<124x384xf32>
    %116 = arith.addf %110, %115 : vector<124x384xf32>
    %c2 = arith.constant 2 : index
    %c0_50 = arith.constant 0 : index
    %117 = vector.load %arg11[%c2, %c0_50] : memref<162x256xf32, #tpu.memory_space<vmem>>, vector<124x256xf32>
    %118 = arith.truncf %117 : vector<124x256xf32> to vector<124x256xbf16>
    %c2_51 = arith.constant 2 : index
    %c0_52 = arith.constant 0 : index
    %c0_53 = arith.constant 0 : index
    %119 = vector.load %arg6[%c2_51, %c0_52, %c0_53] : memref<9x256x384xbf16, #tpu.memory_space<vmem>>, vector<1x256x384xbf16>
    %120 = vector.shape_cast %119 : vector<1x256x384xbf16> to vector<256x384xbf16>
    %cst_54 = arith.constant dense<0.000000e+00> : vector<124x384xf32>
    %121 = tpu.matmul %118, %120, %cst_54 {dimension_numbers = #tpu.dot_dimension_numbers<[1], [0], [0], [1], [0, 0, 1, 1], [], []>} : vector<124x256xbf16>, vector<256x384xbf16>, vector<124x384xf32> -> vector<124x384xf32>
    %122 = arith.addf %116, %121 : vector<124x384xf32>
    %c18 = arith.constant 18 : index
    %c0_55 = arith.constant 0 : index
    %123 = vector.load %arg11[%c18, %c0_55] : memref<162x256xf32, #tpu.memory_space<vmem>>, vector<124x256xf32>
    %124 = arith.truncf %123 : vector<124x256xf32> to vector<124x256xbf16>
    %c3 = arith.constant 3 : index
    %c0_56 = arith.constant 0 : index
    %c0_57 = arith.constant 0 : index
    %125 = vector.load %arg6[%c3, %c0_56, %c0_57] : memref<9x256x384xbf16, #tpu.memory_space<vmem>>, vector<1x256x384xbf16>
    %126 = vector.shape_cast %125 : vector<1x256x384xbf16> to vector<256x384xbf16>
    %cst_58 = arith.constant dense<0.000000e+00> : vector<124x384xf32>
    %127 = tpu.matmul %124, %126, %cst_58 {dimension_numbers = #tpu.dot_dimension_numbers<[1], [0], [0], [1], [0, 0, 1, 1], [], []>} : vector<124x256xbf16>, vector<256x384xbf16>, vector<124x384xf32> -> vector<124x384xf32>
    %128 = arith.addf %122, %127 : vector<124x384xf32>
    %c19_59 = arith.constant 19 : index
    %c0_60 = arith.constant 0 : index
    %129 = vector.load %arg11[%c19_59, %c0_60] : memref<162x256xf32, #tpu.memory_space<vmem>>, vector<124x256xf32>
    %130 = arith.truncf %129 : vector<124x256xf32> to vector<124x256xbf16>
    %c4 = arith.constant 4 : index
    %c0_61 = arith.constant 0 : index
    %c0_62 = arith.constant 0 : index
    %131 = vector.load %arg6[%c4, %c0_61, %c0_62] : memref<9x256x384xbf16, #tpu.memory_space<vmem>>, vector<1x256x384xbf16>
    %132 = vector.shape_cast %131 : vector<1x256x384xbf16> to vector<256x384xbf16>
    %cst_63 = arith.constant dense<0.000000e+00> : vector<124x384xf32>
    %133 = tpu.matmul %130, %132, %cst_63 {dimension_numbers = #tpu.dot_dimension_numbers<[1], [0], [0], [1], [0, 0, 1, 1], [], []>} : vector<124x256xbf16>, vector<256x384xbf16>, vector<124x384xf32> -> vector<124x384xf32>
    %134 = arith.addf %128, %133 : vector<124x384xf32>
    %c20_64 = arith.constant 20 : index
    %c0_65 = arith.constant 0 : index
    %135 = vector.load %arg11[%c20_64, %c0_65] : memref<162x256xf32, #tpu.memory_space<vmem>>, vector<124x256xf32>
    %136 = arith.truncf %135 : vector<124x256xf32> to vector<124x256xbf16>
    %c5 = arith.constant 5 : index
    %c0_66 = arith.constant 0 : index
    %c0_67 = arith.constant 0 : index
    %137 = vector.load %arg6[%c5, %c0_66, %c0_67] : memref<9x256x384xbf16, #tpu.memory_space<vmem>>, vector<1x256x384xbf16>
    %138 = vector.shape_cast %137 : vector<1x256x384xbf16> to vector<256x384xbf16>
    %cst_68 = arith.constant dense<0.000000e+00> : vector<124x384xf32>
    %139 = tpu.matmul %136, %138, %cst_68 {dimension_numbers = #tpu.dot_dimension_numbers<[1], [0], [0], [1], [0, 0, 1, 1], [], []>} : vector<124x256xbf16>, vector<256x384xbf16>, vector<124x384xf32> -> vector<124x384xf32>
    %140 = arith.addf %134, %139 : vector<124x384xf32>
    %c36 = arith.constant 36 : index
    %c0_69 = arith.constant 0 : index
    %141 = vector.load %arg11[%c36, %c0_69] : memref<162x256xf32, #tpu.memory_space<vmem>>, vector<124x256xf32>
    %142 = arith.truncf %141 : vector<124x256xf32> to vector<124x256xbf16>
    %c6 = arith.constant 6 : index
    %c0_70 = arith.constant 0 : index
    %c0_71 = arith.constant 0 : index
    %143 = vector.load %arg6[%c6, %c0_70, %c0_71] : memref<9x256x384xbf16, #tpu.memory_space<vmem>>, vector<1x256x384xbf16>
    %144 = vector.shape_cast %143 : vector<1x256x384xbf16> to vector<256x384xbf16>
    %cst_72 = arith.constant dense<0.000000e+00> : vector<124x384xf32>
    %145 = tpu.matmul %142, %144, %cst_72 {dimension_numbers = #tpu.dot_dimension_numbers<[1], [0], [0], [1], [0, 0, 1, 1], [], []>} : vector<124x256xbf16>, vector<256x384xbf16>, vector<124x384xf32> -> vector<124x384xf32>
    %146 = arith.addf %140, %145 : vector<124x384xf32>
    %c37_73 = arith.constant 37 : index
    %c0_74 = arith.constant 0 : index
    %147 = vector.load %arg11[%c37_73, %c0_74] : memref<162x256xf32, #tpu.memory_space<vmem>>, vector<124x256xf32>
    %148 = arith.truncf %147 : vector<124x256xf32> to vector<124x256xbf16>
    %c7 = arith.constant 7 : index
    %c0_75 = arith.constant 0 : index
    %c0_76 = arith.constant 0 : index
    %149 = vector.load %arg6[%c7, %c0_75, %c0_76] : memref<9x256x384xbf16, #tpu.memory_space<vmem>>, vector<1x256x384xbf16>
    %150 = vector.shape_cast %149 : vector<1x256x384xbf16> to vector<256x384xbf16>
    %cst_77 = arith.constant dense<0.000000e+00> : vector<124x384xf32>
    %151 = tpu.matmul %148, %150, %cst_77 {dimension_numbers = #tpu.dot_dimension_numbers<[1], [0], [0], [1], [0, 0, 1, 1], [], []>} : vector<124x256xbf16>, vector<256x384xbf16>, vector<124x384xf32> -> vector<124x384xf32>
    %152 = arith.addf %146, %151 : vector<124x384xf32>
    %c38_78 = arith.constant 38 : index
    %c0_79 = arith.constant 0 : index
    %153 = vector.load %arg11[%c38_78, %c0_79] : memref<162x256xf32, #tpu.memory_space<vmem>>, vector<124x256xf32>
    %154 = arith.truncf %153 : vector<124x256xf32> to vector<124x256xbf16>
    %c8 = arith.constant 8 : index
    %c0_80 = arith.constant 0 : index
    %c0_81 = arith.constant 0 : index
    %155 = vector.load %arg6[%c8, %c0_80, %c0_81] : memref<9x256x384xbf16, #tpu.memory_space<vmem>>, vector<1x256x384xbf16>
    %156 = vector.shape_cast %155 : vector<1x256x384xbf16> to vector<256x384xbf16>
    %cst_82 = arith.constant dense<0.000000e+00> : vector<124x384xf32>
    %157 = tpu.matmul %154, %156, %cst_82 {dimension_numbers = #tpu.dot_dimension_numbers<[1], [0], [0], [1], [0, 0, 1, 1], [], []>} : vector<124x256xbf16>, vector<256x384xbf16>, vector<124x384xf32> -> vector<124x384xf32>
    %158 = arith.addf %152, %157 : vector<124x384xf32>
    %c0_83 = arith.constant 0 : index
    %c0_84 = arith.constant 0 : index
    %159 = vector.load %arg7[%c0_83, %c0_84] : memref<1x384xf32, #tpu.memory_space<vmem>>, vector<1x384xf32>
    %160 = vector.broadcast %159 : vector<1x384xf32> to vector<124x384xf32>
    %161 = arith.addf %158, %160 : vector<124x384xf32>
    %cst_85 = arith.constant 0.000000e+00 : f32
    %162 = vector.broadcast %cst_85 : f32 to vector<124x384xf32>
    %163 = arith.maximumf %161, %162 : vector<124x384xf32>
    %164 = vector.extract_strided_slice %163 {offsets = [0, 0], sizes = [16, 384], strides = [1, 1]} : vector<124x384xf32> to vector<16x384xf32>
    %165 = vector.extract_strided_slice %163 {offsets = [18, 0], sizes = [16, 384], strides = [1, 1]} : vector<124x384xf32> to vector<16x384xf32>
    %166 = arith.maximumf %164, %165 : vector<16x384xf32>
    %167 = vector.extract_strided_slice %166 {offsets = [0, 0], sizes = [1, 384], strides = [1, 1]} : vector<16x384xf32> to vector<1x384xf32>
    %c0_86 = arith.constant 0 : index
    %c0_87 = arith.constant 0 : index
    %168 = vector.load %arg12[%c0_86, %c0_87] : memref<51x384xf32, #tpu.memory_space<vmem>>, vector<1x384xf32>
    tpu.vector_store %arg12[%c0_86, %c0_87], %167 {strides = array<i32>} : memref<51x384xf32, #tpu.memory_space<vmem>>, vector<1x384xf32>,
    %169 = vector.extract_strided_slice %166 {offsets = [0, 0], sizes = [15, 384], strides = [1, 1]} : vector<16x384xf32> to vector<15x384xf32>
    %170 = vector.extract_strided_slice %166 {offsets = [1, 0], sizes = [15, 384], strides = [1, 1]} : vector<16x384xf32> to vector<15x384xf32>
    %171 = arith.maximumf %169, %170 : vector<15x384xf32>
    %c1_88 = arith.constant 1 : index
    %c0_89 = arith.constant 0 : index
    %172 = vector.load %arg12[%c1_88, %c0_89] : memref<51x384xf32, #tpu.memory_space<vmem>>, vector<15x384xf32>
    tpu.vector_store %arg12[%c1_88, %c0_89], %171 {strides = array<i32>} : memref<51x384xf32, #tpu.memory_space<vmem>>, vector<15x384xf32>,
    %173 = vector.extract_strided_slice %166 {offsets = [15, 0], sizes = [1, 384], strides = [1, 1]} : vector<16x384xf32> to vector<1x384xf32>
    %c16 = arith.constant 16 : index
    %c0_90 = arith.constant 0 : index
    %174 = vector.load %arg12[%c16, %c0_90] : memref<51x384xf32, #tpu.memory_space<vmem>>, vector<1x384xf32>
    tpu.vector_store %arg12[%c16, %c0_90], %173 {strides = array<i32>} : memref<51x384xf32, #tpu.memory_space<vmem>>, vector<1x384xf32>,
    %175 = vector.extract_strided_slice %163 {offsets = [36, 0], sizes = [16, 384], strides = [1, 1]} : vector<124x384xf32> to vector<16x384xf32>
    %176 = vector.extract_strided_slice %163 {offsets = [54, 0], sizes = [16, 384], strides = [1, 1]} : vector<124x384xf32> to vector<16x384xf32>
    %177 = arith.maximumf %175, %176 : vector<16x384xf32>
    %178 = vector.extract_strided_slice %177 {offsets = [0, 0], sizes = [1, 384], strides = [1, 1]} : vector<16x384xf32> to vector<1x384xf32>
    %c17 = arith.constant 17 : index
    %c0_91 = arith.constant 0 : index
    %179 = vector.load %arg12[%c17, %c0_91] : memref<51x384xf32, #tpu.memory_space<vmem>>, vector<1x384xf32>
    tpu.vector_store %arg12[%c17, %c0_91], %178 {strides = array<i32>} : memref<51x384xf32, #tpu.memory_space<vmem>>, vector<1x384xf32>,
    %180 = vector.extract_strided_slice %177 {offsets = [0, 0], sizes = [15, 384], strides = [1, 1]} : vector<16x384xf32> to vector<15x384xf32>
    %181 = vector.extract_strided_slice %177 {offsets = [1, 0], sizes = [15, 384], strides = [1, 1]} : vector<16x384xf32> to vector<15x384xf32>
    %182 = arith.maximumf %180, %181 : vector<15x384xf32>
    %c18_92 = arith.constant 18 : index
    %c0_93 = arith.constant 0 : index
    %183 = vector.load %arg12[%c18_92, %c0_93] : memref<51x384xf32, #tpu.memory_space<vmem>>, vector<15x384xf32>
    tpu.vector_store %arg12[%c18_92, %c0_93], %182 {strides = array<i32>} : memref<51x384xf32, #tpu.memory_space<vmem>>, vector<15x384xf32>,
    %184 = vector.extract_strided_slice %177 {offsets = [15, 0], sizes = [1, 384], strides = [1, 1]} : vector<16x384xf32> to vector<1x384xf32>
    %c33 = arith.constant 33 : index
    %c0_94 = arith.constant 0 : index
    %185 = vector.load %arg12[%c33, %c0_94] : memref<51x384xf32, #tpu.memory_space<vmem>>, vector<1x384xf32>
    tpu.vector_store %arg12[%c33, %c0_94], %184 {strides = array<i32>} : memref<51x384xf32, #tpu.memory_space<vmem>>, vector<1x384xf32>,
    %186 = vector.extract_strided_slice %163 {offsets = [72, 0], sizes = [16, 384], strides = [1, 1]} : vector<124x384xf32> to vector<16x384xf32>
    %187 = vector.extract_strided_slice %163 {offsets = [90, 0], sizes = [16, 384], strides = [1, 1]} : vector<124x384xf32> to vector<16x384xf32>
    %188 = arith.maximumf %186, %187 : vector<16x384xf32>
    %189 = vector.extract_strided_slice %188 {offsets = [0, 0], sizes = [1, 384], strides = [1, 1]} : vector<16x384xf32> to vector<1x384xf32>
    %c34_95 = arith.constant 34 : index
    %c0_96 = arith.constant 0 : index
    %190 = vector.load %arg12[%c34_95, %c0_96] : memref<51x384xf32, #tpu.memory_space<vmem>>, vector<1x384xf32>
    tpu.vector_store %arg12[%c34_95, %c0_96], %189 {strides = array<i32>} : memref<51x384xf32, #tpu.memory_space<vmem>>, vector<1x384xf32>,
    %191 = vector.extract_strided_slice %188 {offsets = [0, 0], sizes = [15, 384], strides = [1, 1]} : vector<16x384xf32> to vector<15x384xf32>
    %192 = vector.extract_strided_slice %188 {offsets = [1, 0], sizes = [15, 384], strides = [1, 1]} : vector<16x384xf32> to vector<15x384xf32>
    %193 = arith.maximumf %191, %192 : vector<15x384xf32>
    %c35 = arith.constant 35 : index
    %c0_97 = arith.constant 0 : index
    %194 = vector.load %arg12[%c35, %c0_97] : memref<51x384xf32, #tpu.memory_space<vmem>>, vector<15x384xf32>
    tpu.vector_store %arg12[%c35, %c0_97], %193 {strides = array<i32>} : memref<51x384xf32, #tpu.memory_space<vmem>>, vector<15x384xf32>,
    %195 = vector.extract_strided_slice %188 {offsets = [15, 0], sizes = [1, 384], strides = [1, 1]} : vector<16x384xf32> to vector<1x384xf32>
    %c50 = arith.constant 50 : index
    %c0_98 = arith.constant 0 : index
    %196 = vector.load %arg12[%c50, %c0_98] : memref<51x384xf32, #tpu.memory_space<vmem>>, vector<1x384xf32>
    tpu.vector_store %arg12[%c50, %c0_98], %195 {strides = array<i32>} : memref<51x384xf32, #tpu.memory_space<vmem>>, vector<1x384xf32>,
    %c0_99 = arith.constant 0 : index
    %c0_100 = arith.constant 0 : index
    %197 = vector.load %arg12[%c0_99, %c0_100] : memref<51x384xf32, #tpu.memory_space<vmem>>, vector<33x384xf32>
    %198 = arith.truncf %197 : vector<33x384xf32> to vector<33x384xbf16>
    %c0_101 = arith.constant 0 : index
    %c0_102 = arith.constant 0 : index
    %c0_103 = arith.constant 0 : index
    %199 = vector.load %arg8[%c0_101, %c0_102, %c0_103] : memref<4x384x384xbf16, #tpu.memory_space<vmem>>, vector<1x384x384xbf16>
    %200 = vector.shape_cast %199 : vector<1x384x384xbf16> to vector<384x384xbf16>
    %cst_104 = arith.constant dense<0.000000e+00> : vector<33x384xf32>
    %201 = tpu.matmul %198, %200, %cst_104 {dimension_numbers = #tpu.dot_dimension_numbers<[1], [0], [0], [1], [0, 0, 1, 1], [], []>} : vector<33x384xbf16>, vector<384x384xbf16>, vector<33x384xf32> -> vector<33x384xf32>
    %c1_105 = arith.constant 1 : index
    %c0_106 = arith.constant 0 : index
    %202 = vector.load %arg12[%c1_105, %c0_106] : memref<51x384xf32, #tpu.memory_space<vmem>>, vector<33x384xf32>
    %203 = arith.truncf %202 : vector<33x384xf32> to vector<33x384xbf16>
    %c1_107 = arith.constant 1 : index
    %c0_108 = arith.constant 0 : index
    %c0_109 = arith.constant 0 : index
    %204 = vector.load %arg8[%c1_107, %c0_108, %c0_109] : memref<4x384x384xbf16, #tpu.memory_space<vmem>>, vector<1x384x384xbf16>
    %205 = vector.shape_cast %204 : vector<1x384x384xbf16> to vector<384x384xbf16>
    %cst_110 = arith.constant dense<0.000000e+00> : vector<33x384xf32>
    %206 = tpu.matmul %203, %205, %cst_110 {dimension_numbers = #tpu.dot_dimension_numbers<[1], [0], [0], [1], [0, 0, 1, 1], [], []>} : vector<33x384xbf16>, vector<384x384xbf16>, vector<33x384xf32> -> vector<33x384xf32>
    %207 = arith.addf %201, %206 : vector<33x384xf32>
    %c17_111 = arith.constant 17 : index
    %c0_112 = arith.constant 0 : index
    %208 = vector.load %arg12[%c17_111, %c0_112] : memref<51x384xf32, #tpu.memory_space<vmem>>, vector<33x384xf32>
    %209 = arith.truncf %208 : vector<33x384xf32> to vector<33x384xbf16>
    %c2_113 = arith.constant 2 : index
    %c0_114 = arith.constant 0 : index
    %c0_115 = arith.constant 0 : index
    %210 = vector.load %arg8[%c2_113, %c0_114, %c0_115] : memref<4x384x384xbf16, #tpu.memory_space<vmem>>, vector<1x384x384xbf16>
    %211 = vector.shape_cast %210 : vector<1x384x384xbf16> to vector<384x384xbf16>
    %cst_116 = arith.constant dense<0.000000e+00> : vector<33x384xf32>
    %212 = tpu.matmul %209, %211, %cst_116 {dimension_numbers = #tpu.dot_dimension_numbers<[1], [0], [0], [1], [0, 0, 1, 1], [], []>} : vector<33x384xbf16>, vector<384x384xbf16>, vector<33x384xf32> -> vector<33x384xf32>
    %213 = arith.addf %207, %212 : vector<33x384xf32>
    %c18_117 = arith.constant 18 : index
    %c0_118 = arith.constant 0 : index
    %214 = vector.load %arg12[%c18_117, %c0_118] : memref<51x384xf32, #tpu.memory_space<vmem>>, vector<33x384xf32>
    %215 = arith.truncf %214 : vector<33x384xf32> to vector<33x384xbf16>
    %c3_119 = arith.constant 3 : index
    %c0_120 = arith.constant 0 : index
    %c0_121 = arith.constant 0 : index
    %216 = vector.load %arg8[%c3_119, %c0_120, %c0_121] : memref<4x384x384xbf16, #tpu.memory_space<vmem>>, vector<1x384x384xbf16>
    %217 = vector.shape_cast %216 : vector<1x384x384xbf16> to vector<384x384xbf16>
    %cst_122 = arith.constant dense<0.000000e+00> : vector<33x384xf32>
    %218 = tpu.matmul %215, %217, %cst_122 {dimension_numbers = #tpu.dot_dimension_numbers<[1], [0], [0], [1], [0, 0, 1, 1], [], []>} : vector<33x384xbf16>, vector<384x384xbf16>, vector<33x384xf32> -> vector<33x384xf32>
    %219 = arith.addf %213, %218 : vector<33x384xf32>
    %c0_123 = arith.constant 0 : index
    %c0_124 = arith.constant 0 : index
    %220 = vector.load %arg9[%c0_123, %c0_124] : memref<1x384xf32, #tpu.memory_space<vmem>>, vector<1x384xf32>
    %221 = vector.broadcast %220 : vector<1x384xf32> to vector<33x384xf32>
    %222 = arith.addf %219, %221 : vector<33x384xf32>
    %cst_125 = arith.constant 0.000000e+00 : f32
    %223 = vector.broadcast %cst_125 : f32 to vector<33x384xf32>
    %224 = arith.maximumf %222, %223 : vector<33x384xf32>
    %225 = vector.extract_strided_slice %224 {offsets = [0, 0], sizes = [16, 384], strides = [1, 1]} : vector<33x384xf32> to vector<16x384xf32>
    %c0_126 = arith.constant 0 : index
    %c0_127 = arith.constant 0 : index
    %c0_128 = arith.constant 0 : index
    %226 = vector.load %arg10[%c0_126, %c0_127, %c0_128] : memref<1x32x384xf32, #tpu.memory_space<vmem>>, vector<1x16x384xf32>
    %227 = vector.shape_cast %226 : vector<1x16x384xf32> to vector<16x384xf32>
    %228 = vector.shape_cast %225 : vector<16x384xf32> to vector<1x16x384xf32>
    tpu.vector_store %arg10[%c0_126, %c0_127, %c0_128], %228 {strides = array<i32>} : memref<1x32x384xf32, #tpu.memory_space<vmem>>, vector<1x16x384xf32>,
    %229 = vector.extract_strided_slice %224 {offsets = [17, 0], sizes = [16, 384], strides = [1, 1]} : vector<33x384xf32> to vector<16x384xf32>
    %c0_129 = arith.constant 0 : index
    %c16_130 = arith.constant 16 : index
    %c0_131 = arith.constant 0 : index
    %230 = vector.load %arg10[%c0_129, %c16_130, %c0_131] : memref<1x32x384xf32, #tpu.memory_space<vmem>>, vector<1x16x384xf32>
    %231 = vector.shape_cast %230 : vector<1x16x384xf32> to vector<16x384xf32>
    %232 = vector.shape_cast %229 : vector<16x384xf32> to vector<1x16x384xf32>
    tpu.vector_store %arg10[%c0_129, %c16_130, %c0_131], %232 {strides = array<i32>} : memref<1x32x384xf32, #tpu.memory_space<vmem>>, vector<1x16x384xf32>,
    return
  }
  func.func @transform_0(%arg0: i32) -> (i32, i32, i32) {
    %c0_i32 = arith.constant 0 : i32
    %c0_i32_0 = arith.constant 0 : i32
    %c0_i32_1 = arith.constant 0 : i32
    return %arg0, %c0_i32, %c0_i32_0 : i32, i32, i32
  }
  func.func @transform_1(%arg0: i32) -> (i32, i32) {
    %c0_i32 = arith.constant 0 : i32
    %c0_i32_0 = arith.constant 0 : i32
    %c0_i32_1 = arith.constant 0 : i32
    return %c0_i32, %c0_i32_0 : i32, i32
  }
  func.func @transform_2(%arg0: i32) -> (i32, i32) {
    %c0_i32 = arith.constant 0 : i32
    %c0_i32_0 = arith.constant 0 : i32
    %c0_i32_1 = arith.constant 0 : i32
    return %c0_i32, %c0_i32_0 : i32, i32
  }
  func.func @transform_3(%arg0: i32) -> (i32, i32) {
    %c0_i32 = arith.constant 0 : i32
    %c0_i32_0 = arith.constant 0 : i32
    %c0_i32_1 = arith.constant 0 : i32
    return %c0_i32, %c0_i32_0 : i32, i32
  }
  func.func @transform_4(%arg0: i32) -> (i32, i32) {
    %c0_i32 = arith.constant 0 : i32
    %c0_i32_0 = arith.constant 0 : i32
    %c0_i32_1 = arith.constant 0 : i32
    return %c0_i32, %c0_i32_0 : i32, i32
  }
  func.func @transform_5(%arg0: i32) -> (i32, i32, i32) {
    %c0_i32 = arith.constant 0 : i32
    %c0_i32_0 = arith.constant 0 : i32
    %c0_i32_1 = arith.constant 0 : i32
    %c0_i32_2 = arith.constant 0 : i32
    return %c0_i32, %c0_i32_0, %c0_i32_1 : i32, i32, i32
  }
  func.func @transform_6(%arg0: i32) -> (i32, i32) {
    %c0_i32 = arith.constant 0 : i32
    %c0_i32_0 = arith.constant 0 : i32
    %c0_i32_1 = arith.constant 0 : i32
    return %c0_i32, %c0_i32_0 : i32, i32
  }
  func.func @transform_7(%arg0: i32) -> (i32, i32, i32) {
    %c0_i32 = arith.constant 0 : i32
    %c0_i32_0 = arith.constant 0 : i32
    %c0_i32_1 = arith.constant 0 : i32
    %c0_i32_2 = arith.constant 0 : i32
    return %c0_i32, %c0_i32_0, %c0_i32_1 : i32, i32, i32
  }
  func.func @transform_8(%arg0: i32) -> (i32, i32) {
    %c0_i32 = arith.constant 0 : i32
    %c0_i32_0 = arith.constant 0 : i32
    %c0_i32_1 = arith.constant 0 : i32
    return %c0_i32, %c0_i32_0 : i32, i32
  }
  func.func @transform_9(%arg0: i32) -> (i32, i32, i32) {
    %c0_i32 = arith.constant 0 : i32
    %c0_i32_0 = arith.constant 0 : i32
    %c0_i32_1 = arith.constant 0 : i32
    return %arg0, %c0_i32, %c0_i32_0 : i32, i32, i32
  }
}

</mosaic_0001>

<llo_original>
// kernel: deep_cnn_forward.1
$region0: #{deep_cnn_forward.1}
  #allocation0 [shape = 'u32[]', space=smem, size = 0x4, offset = 0x4, fixed_abs, tag = 'smem constant byte address 0x4 - core index']
  #allocation1 [shape = 'u32[72,128]{1,0:T(1,128)}', space=vmem, size = 0x9000, scoped, tag = 'internal scratch']
  #allocation2 [shape = 'f32[162,256]{1,0:T(8,128)}', space=vmem, size = 0x2a000, scoped, tag = 'scratch operand']
  #allocation3 [shape = 'f32[51,384]{1,0:T(8,128)}', space=vmem, size = 0x15000, scoped, tag = 'scratch operand']
  %s0 = inlined_call_operand.vmem [shape: bf16[2,225,36], index: 0, kind: input, shape index: {}]
  %s1 = inlined_call_operand.vmem [shape: bf16[36,24], index: 1, kind: input, shape index: {}]
  %s2 = inlined_call_operand.vmem [shape: f32[1,24], index: 2, kind: input, shape index: {}]
  %s3 = inlined_call_operand.vmem [shape: bf16[24,256], index: 3, kind: input, shape index: {}]
  %s4 = inlined_call_operand.vmem [shape: f32[1,256], index: 4, kind: input, shape index: {}]
  %s5 = inlined_call_operand.vmem [shape: bf16[9,256,384], index: 5, kind: input, shape index: {}]
  %s6 = inlined_call_operand.vmem [shape: f32[1,384], index: 6, kind: input, shape index: {}]
  %s7 = inlined_call_operand.vmem [shape: bf16[4,384,384], index: 7, kind: input, shape index: {}]
  %s8 = inlined_call_operand.vmem [shape: f32[1,384], index: 8, kind: input, shape index: {}]
  %s9 = inlined_call_operand.hbm [shape: f32[2,32,384], index: 9, kind: output, shape index: {}]
  %s10 = sld [smem:[#allocation0]]
  $region69: #{deep_cnn_forward.1} parent=0
    _
  %s12 = ssub.s32 1, %s10
  %s13 = scalar_select 0, %s12, %s10
  $region1: #{deep_cnn_forward.1} parent=0
    #allocation4 [shape = 'u8[98304]{0}', space=vmem, size = 0x18000, scoped, tag = 'output window, operand 0']
    #allocation5 [shape = 's32[2]{0}', space=sflag, size = 0x8, scoped, tag = 'scoped memory for deep_cnn_forward.1']
    %14 = vsyncpa [#allocation5], 0
    %s15 = scalar_lea.sflag [#allocation5], 1
    %16 = vsyncpa %s15, 0
    loop: start=0, step=1, limit=4
    $region2: #{deep_cnn_forward.1} parent=1 // loop_pre_header
      _
    $region3: #{deep_cnn_forward.1} parent=1 // loop_header
      %s18 = sphi 0, %s22
      %p19 = scmp.ge.s32.totalorder %s18, 4
      %s28 = sphi 0, %s30
      %s31 = sphi 0, %s28
      %s32 = sphi 0, %s31
      %s48 = sphi 0, %s32
      %s52 = sphi 0, %s52
      %s54 = sphi 0, %s52
      %s55 = sphi 0, %s54
      %s69 = sphi 0, %s55
      %s73 = sphi 0, %s73
      %s75 = sphi 0, %s73
      %s76 = sphi 0, %s75
      %s90 = sphi 0, %s76
      %s94 = sphi 0, %s94
      %s96 = sphi 0, %s94
      %s97 = sphi 0, %s96
      %s111 = sphi 0, %s97
      %s115 = sphi 0, %s115
      %s117 = sphi 0, %s115
      %s118 = sphi 0, %s117
      %s132 = sphi 0, %s118
      %s136 = sphi 0, %s136
      %s138 = sphi 0, %s136
      %s139 = sphi 0, %s138
      %s153 = sphi 0, %s139
      %s157 = sphi 0, %s157
      %s159 = sphi 0, %s157
      %s160 = sphi 0, %s159
      %s174 = sphi 0, %s160
      %s178 = sphi 0, %s178
      %s180 = sphi 0, %s178
      %s181 = sphi 0, %s180
      %s195 = sphi 0, %s181
      %s199 = sphi 0, %s199
      %s201 = sphi 0, %s199
      %s202 = sphi 0, %s201
      %s216 = sphi 0, %s202
      %s222 = sphi 0, %s224
      %s225 = sphi 0, %s222
      %s226 = sphi 0, %s225
      %s242 = sphi 0, %s226
    $region4: #{deep_cnn_forward.1} parent=1 // loop_header_branch
      %21 = sbr.rel (%p19) target = $region8
    $region5: #{deep_cnn_forward.1} parent=1 // loop_body
      %s23 = ssub.s32 %s18, 1
      %s24 = ssub.s32 %s18, 2
      %s25 = sadd.s32 %s18, 1
      %s26 = ssub.s32 %s18, %s25
      %p27 = scmp.eq.s32.totalorder %s26, 0
      %s29 = sadd.s32 %s28, 1
      %s30 = scalar_select %p27, %s28, %s29
      %p33 = pneg %p27
      %p34 = scmp.eq.s32.totalorder %s18, 1
      %p35 = por %p33, %p34
      %p36 = scmp.ne.s32.totalorder %s28, %s31
      %p37 = scmp.eq.s32.totalorder %s18, 0
      %p38 = por %p36, %p37
      %p39 = scmp.ne.s32.totalorder %s28, %s31
      %p40 = scmp.eq.s32.totalorder %s23, 1
      %p41 = por %p39, %p40
      %p42 = scmp.ne.s32.totalorder %s31, %s32
      %p43 = scmp.eq.s32.totalorder %s23, 0
      %p44 = por %p42, %p43
      %p45 = scmp.ne.s32.totalorder %s31, %s32
      %p46 = scmp.eq.s32.totalorder %s24, 1
      %p47 = por %p45, %p46
      %p49 = scmp.ne.s32.totalorder %s32, %s48
      %p50 = scmp.eq.s32.totalorder %s24, 0
      %p51 = por %p49, %p50
      %s53 = sadd.s32 %s52, 1
      %p56 = scmp.eq.s32.totalorder %s18, 1
      %p57 = scmp.ne.s32.totalorder %s52, %s54
      %p58 = scmp.eq.s32.totalorder %s18, 0
      %p59 = por %p57, %p58
      %p60 = scmp.ne.s32.totalorder %s52, %s54
      %p61 = scmp.eq.s32.totalorder %s23, 1
      %p62 = por %p60, %p61
      %p63 = scmp.ne.s32.totalorder %s54, %s55
      %p64 = scmp.eq.s32.totalorder %s23, 0
      %p65 = por %p63, %p64
      %p66 = scmp.ne.s32.totalorder %s54, %s55
      %p67 = scmp.eq.s32.totalorder %s24, 1
      %p68 = por %p66, %p67
      %p70 = scmp.ne.s32.totalorder %s55, %s69
      %p71 = scmp.eq.s32.totalorder %s24, 0
      %p72 = por %p70, %p71
      %s74 = sadd.s32 %s73, 1
      %p77 = scmp.eq.s32.totalorder %s18, 1
      %p78 = scmp.ne.s32.totalorder %s73, %s75
      %p79 = scmp.eq.s32.totalorder %s18, 0
      %p80 = por %p78, %p79
      %p81 = scmp.ne.s32.totalorder %s73, %s75
      %p82 = scmp.eq.s32.totalorder %s23, 1
      %p83 = por %p81, %p82
      %p84 = scmp.ne.s32.totalorder %s75, %s76
      %p85 = scmp.eq.s32.totalorder %s23, 0
      %p86 = por %p84, %p85
      %p87 = scmp.ne.s32.totalorder %s75, %s76
      %p88 = scmp.eq.s32.totalorder %s24, 1
      %p89 = por %p87, %p88
      %p91 = scmp.ne.s32.totalorder %s76, %s90
      %p92 = scmp.eq.s32.totalorder %s24, 0
      %p93 = por %p91, %p92
      %s95 = sadd.s32 %s94, 1
      %p98 = scmp.eq.s32.totalorder %s18, 1
      %p99 = scmp.ne.s32.totalorder %s94, %s96
      %p100 = scmp.eq.s32.totalorder %s18, 0
      %p101 = por %p99, %p100
      %p102 = scmp.ne.s32.totalorder %s94, %s96
      %p103 = scmp.eq.s32.totalorder %s23, 1
      %p104 = por %p102, %p103
      %p105 = scmp.ne.s32.totalorder %s96, %s97
      %p106 = scmp.eq.s32.totalorder %s23, 0
      %p107 = por %p105, %p106
      %p108 = scmp.ne.s32.totalorder %s96, %s97
      %p109 = scmp.eq.s32.totalorder %s24, 1
      %p110 = por %p108, %p109
      %p112 = scmp.ne.s32.totalorder %s97, %s111
      %p113 = scmp.eq.s32.totalorder %s24, 0
      %p114 = por %p112, %p113
      %s116 = sadd.s32 %s115, 1
      %p119 = scmp.eq.s32.totalorder %s18, 1
      %p120 = scmp.ne.s32.totalorder %s115, %s117
      %p121 = scmp.eq.s32.totalorder %s18, 0
      %p122 = por %p120, %p121
      %p123 = scmp.ne.s32.totalorder %s115, %s117
      %p124 = scmp.eq.s32.totalorder %s23, 1
      %p125 = por %p123, %p124
      %p126 = scmp.ne.s32.totalorder %s117, %s118
      %p127 = scmp.eq.s32.totalorder %s23, 0
      %p128 = por %p126, %p127
      %p129 = scmp.ne.s32.totalorder %s117, %s118
      %p130 = scmp.eq.s32.totalorder %s24, 1
      %p131 = por %p129, %p130
      %p133 = scmp.ne.s32.totalorder %s118, %s132
      %p134 = scmp.eq.s32.totalorder %s24, 0
      %p135 = por %p133, %p134
      %s137 = sadd.s32 %s136, 1
      %p140 = scmp.eq.s32.totalorder %s18, 1
      %p141 = scmp.ne.s32.totalorder %s136, %s138
      %p142 = scmp.eq.s32.totalorder %s18, 0
      %p143 = por %p141, %p142
      %p144 = scmp.ne.s32.totalorder %s136, %s138
      %p145 = scmp.eq.s32.totalorder %s23, 1
      %p146 = por %p144, %p145
      %p147 = scmp.ne.s32.totalorder %s138, %s139
      %p148 = scmp.eq.s32.totalorder %s23, 0
      %p149 = por %p147, %p148
      %p150 = scmp.ne.s32.totalorder %s138, %s139
      %p151 = scmp.eq.s32.totalorder %s24, 1
      %p152 = por %p150, %p151
      %p154 = scmp.ne.s32.totalorder %s139, %s153
      %p155 = scmp.eq.s32.totalorder %s24, 0
      %p156 = por %p154, %p155
      %s158 = sadd.s32 %s157, 1
      %p161 = scmp.eq.s32.totalorder %s18, 1
      %p162 = scmp.ne.s32.totalorder %s157, %s159
      %p163 = scmp.eq.s32.totalorder %s18, 0
      %p164 = por %p162, %p163
      %p165 = scmp.ne.s32.totalorder %s157, %s159
      %p166 = scmp.eq.s32.totalorder %s23, 1
      %p167 = por %p165, %p166
      %p168 = scmp.ne.s32.totalorder %s159, %s160
      %p169 = scmp.eq.s32.totalorder %s23, 0
      %p170 = por %p168, %p169
      %p171 = scmp.ne.s32.totalorder %s159, %s160
      %p172 = scmp.eq.s32.totalorder %s24, 1
      %p173 = por %p171, %p172
      %p175 = scmp.ne.s32.totalorder %s160, %s174
      %p176 = scmp.eq.s32.totalorder %s24, 0
      %p177 = por %p175, %p176
      %s179 = sadd.s32 %s178, 1
      %p182 = scmp.eq.s32.totalorder %s18, 1
      %p183 = scmp.ne.s32.totalorder %s178, %s180
      %p184 = scmp.eq.s32.totalorder %s18, 0
      %p185 = por %p183, %p184
      %p186 = scmp.ne.s32.totalorder %s178, %s180
      %p187 = scmp.eq.s32.totalorder %s23, 1
      %p188 = por %p186, %p187
      %p189 = scmp.ne.s32.totalorder %s180, %s181
      %p190 = scmp.eq.s32.totalorder %s23, 0
      %p191 = por %p189, %p190
      %p192 = scmp.ne.s32.totalorder %s180, %s181
      %p193 = scmp.eq.s32.totalorder %s24, 1
      %p194 = por %p192, %p193
      %p196 = scmp.ne.s32.totalorder %s181, %s195
      %p197 = scmp.eq.s32.totalorder %s24, 0
      %p198 = por %p196, %p197
      %s200 = sadd.s32 %s199, 1
      %p203 = scmp.eq.s32.totalorder %s18, 1
      %p204 = scmp.ne.s32.totalorder %s199, %s201
      %p205 = scmp.eq.s32.totalorder %s18, 0
      %p206 = por %p204, %p205
      %p207 = scmp.ne.s32.totalorder %s199, %s201
      %p208 = scmp.eq.s32.totalorder %s23, 1
      %p209 = por %p207, %p208
      %p210 = scmp.ne.s32.totalorder %s201, %s202
      %p211 = scmp.eq.s32.totalorder %s23, 0
      %p212 = por %p210, %p211
      %p213 = scmp.ne.s32.totalorder %s201, %s202
      %p214 = scmp.eq.s32.totalorder %s24, 1
      %p215 = por %p213, %p214
      %p217 = scmp.ne.s32.totalorder %s202, %s216
      %p218 = scmp.eq.s32.totalorder %s24, 0
      %p219 = por %p217, %p218
      %s220 = ssub.s32 %s18, %s25
      %p221 = scmp.eq.s32.totalorder %s220, 0
      %s223 = sadd.s32 %s222, 1
      %s224 = scalar_select %p221, %s222, %s223
      %p227 = pneg %p221
      %p228 = scmp.eq.s32.totalorder %s18, 1
      %p229 = por %p227, %p228
      %p230 = scmp.ne.s32.totalorder %s222, %s225
      %p231 = scmp.eq.s32.totalorder %s18, 0
      %p232 = por %p230, %p231
      %p233 = scmp.ne.s32.totalorder %s222, %s225
      %p234 = scmp.eq.s32.totalorder %s23, 1
      %p235 = por %p233, %p234
      %p236 = scmp.ne.s32.totalorder %s225, %s226
      %p237 = scmp.eq.s32.totalorder %s23, 0
      %p238 = por %p236, %p237
      %p239 = scmp.ne.s32.totalorder %s225, %s226
      %p240 = scmp.eq.s32.totalorder %s24, 1
      %p241 = por %p239, %p240
      %p243 = scmp.ne.s32.totalorder %s226, %s242
      %p244 = scmp.eq.s32.totalorder %s24, 0
      %p245 = por %p243, %p244
      %p246 = scmp.le.s32.totalorder 1, %s18
      %p247 = scmp.lt.s32.totalorder %s18, 3
      %p248 = pnand %p246, %p247
      %p249 = pneg %p248
      // Predicated region
      $region9: #{deep_cnn_forward.1} parent=5 // pred_check
        _
      $region10: #{deep_cnn_forward.1} parent=5 // pred_check_branch
        %251 = sbr.rel (%p248) target = $region12
      $region11: #{deep_cnn_forward.1} parent=5 // pred_region
        %s252 = ssub.s32 %s18, 1
        // Predicated region
        $region13: #{deep_cnn_forward.1} parent=11 // pred_check
          %p253 = pneg %p65
        $region14: #{deep_cnn_forward.1} parent=11 // pred_check_branch
          %255 = sbr.rel (%p253) target = $region16
        $region15: #{deep_cnn_forward.1} parent=11 // pred_region
          _
        $region16: #{deep_cnn_forward.1} parent=11 // pred_fallthru
          _
        // Predicated region
        $region17: #{deep_cnn_forward.1} parent=11 // pred_check
          %p256 = pneg %p86
        $region18: #{deep_cnn_forward.1} parent=11 // pred_check_branch
          %258 = sbr.rel (%p256) target = $region20
        $region19: #{deep_cnn_forward.1} parent=11 // pred_region
          _
        $region20: #{deep_cnn_forward.1} parent=11 // pred_fallthru
          _
        // Predicated region
        $region21: #{deep_cnn_forward.1} parent=11 // pred_check
          %p259 = pneg %p107
        $region22: #{deep_cnn_forward.1} parent=11 // pred_check_branch
          %261 = sbr.rel (%p259) target = $region24
        $region23: #{deep_cnn_forward.1} parent=11 // pred_region
          _
        $region24: #{deep_cnn_forward.1} parent=11 // pred_fallthru
          _
        // Predicated region
        $region25: #{deep_cnn_forward.1} parent=11 // pred_check
          %p262 = pneg %p128
        $region26: #{deep_cnn_forward.1} parent=11 // pred_check_branch
          %264 = sbr.rel (%p262) target = $region28
        $region27: #{deep_cnn_forward.1} parent=11 // pred_region
          _
        $region28: #{deep_cnn_forward.1} parent=11 // pred_fallthru
          _
        // Predicated region
        $region29: #{deep_cnn_forward.1} parent=11 // pred_check
          %p265 = pneg %p149
        $region30: #{deep_cnn_forward.1} parent=11 // pred_check_branch
          %267 = sbr.rel (%p265) target = $region32
        $region31: #{deep_cnn_forward.1} parent=11 // pred_region
          _
        $region32: #{deep_cnn_forward.1} parent=11 // pred_fallthru
          _
        // Predicated region
        $region33: #{deep_cnn_forward.1} parent=11 // pred_check
          %p268 = pneg %p170
        $region34: #{deep_cnn_forward.1} parent=11 // pred_check_branch
          %270 = sbr.rel (%p268) target = $region36
        $region35: #{deep_cnn_forward.1} parent=11 // pred_region
          _
        $region36: #{deep_cnn_forward.1} parent=11 // pred_fallthru
          _
        // Predicated region
        $region37: #{deep_cnn_forward.1} parent=11 // pred_check
          %p271 = pneg %p191
        $region38: #{deep_cnn_forward.1} parent=11 // pred_check_branch
          %273 = sbr.rel (%p271) target = $region40
        $region39: #{deep_cnn_forward.1} parent=11 // pred_region
          _
        $region40: #{deep_cnn_forward.1} parent=11 // pred_fallthru
          _
        // Predicated region
        $region41: #{deep_cnn_forward.1} parent=11 // pred_check
          %p274 = pneg %p212
        $region42: #{deep_cnn_forward.1} parent=11 // pred_check_branch
          %276 = sbr.rel (%p274) target = $region44
        $region43: #{deep_cnn_forward.1} parent=11 // pred_region
          _
        $region44: #{deep_cnn_forward.1} parent=11 // pred_fallthru
          _
      $region12: #{deep_cnn_forward.1} parent=5 // pred_fallthru
        _
      %p277 = scmp.lt.s32.totalorder %s18, 2
      // Predicated region
      $region45: #{deep_cnn_forward.1} parent=5 // pred_check
        %p278 = pneg %p277
      $region46: #{deep_cnn_forward.1} parent=5 // pred_check_branch
        %280 = sbr.rel (%p278) target = $region48
      $region47: #{deep_cnn_forward.1} parent=5 // pred_region
        // Predicated region
        $region49: #{deep_cnn_forward.1} parent=47 // pred_check
          %p281 = pneg %p38
        $region50: #{deep_cnn_forward.1} parent=47 // pred_check_branch
          %283 = sbr.rel (%p281) target = $region52
        $region51: #{deep_cnn_forward.1} parent=47 // pred_region
          %p284 = scmp.lt.s32.totalorder %s18, 1
          %s285 = scalar_select %p284, %s18, 1
          %s286 = smul.addr %s285, 29
          %s287 = smul.addr %s286, 4
          %s288 = scalar_lea.vmem %s0, %s287
        $region52: #{deep_cnn_forward.1} parent=47 // pred_fallthru
          _
      $region48: #{deep_cnn_forward.1} parent=5 // pred_fallthru
        _
      %p289 = scmp.le.s32.totalorder 1, %s18
      %p290 = scmp.lt.s32.totalorder %s18, 3
      %p291 = pnand %p289, %p290
      %p292 = pneg %p291
      // Predicated region
      $region53: #{deep_cnn_forward.1} parent=5 // pred_check
        _
      $region54: #{deep_cnn_forward.1} parent=5 // pred_check_branch
        %294 = sbr.rel (%p291) target = $region56
      $region55: #{deep_cnn_forward.1} parent=5 // pred_region
        %s295 = ssub.s32 %s18, 1
        %p296 = scmp.lt.s32.totalorder %s23, 1
        %s297 = scalar_select %p296, %s23, 1
        %s298 = smul.addr %s297, 29
        %s299 = smul.addr %s298, 4
        %s300 = scalar_lea.vmem %s0, %s299
        %p301 = pneg %p44
        %p302 = pneg %p41
        %p303 = pneg %p65
        %p304 = pneg %p62
        %p305 = pneg %p86
        %p306 = pneg %p83
        %p307 = pneg %p107
        %p308 = pneg %p104
        %p309 = pneg %p128
        %p310 = pneg %p125
        %p311 = pneg %p149
        %p312 = pneg %p146
        %p313 = pneg %p170
        %p314 = pneg %p167
        %p315 = pneg %p191
        %p316 = pneg %p188
        %p317 = pneg %p212
        %p318 = pneg %p209
        %p319 = pneg %p238
        %p320 = pneg %p235
        %s321 = sand.u32 %s225, 1
        %s322 = scalar_lea.sflag [#allocation5], %s321
        %s323 = sand.u32 %s225, 1
        %s324 = smul.addr %s323, 96
        %s325 = scalar_lea.vmem [#allocation4], %s324
        %p326 = scmp.lt.s32.totalorder %s23, 1
        %s327 = scalar_select %p326, %s23, 1
        %s328 = smul.addr %s327, 29
        %s329 = smul.addr %s328, 4
        %s330 = scalar_lea.vmem %s0, %s329
        %v332 = vld [vmem:[%s330] sm:$0xf]
        %v333 = vld [vmem:[%s330 + $0x4] sm:$0xf]
        %v334 = vld [vmem:[%s330 + $0x8] sm:$0xf]
        %v335 = vld [vmem:[%s330 + $0xc] sm:$0xf]
        %v336 = vld [vmem:[%s330 + $0x10] sm:$0xf]
        %v337 = vld [vmem:[%s330 + $0x14] sm:$0xf]
        %v338 = vld [vmem:[%s330 + $0x18] sm:$0xf]
        %v339 = vld [vmem:[%s330 + $0x1c] sm:$0xf]
        %v340 = vld [vmem:[%s330 + $0x20] sm:$0xf]
        %v341 = vld [vmem:[%s330 + $0x24] sm:$0xf]
        %v342 = vld [vmem:[%s330 + $0x28] sm:$0xf]
        %v343 = vld [vmem:[%s330 + $0x2c] sm:$0xf]
        %v344 = vld [vmem:[%s330 + $0x30] sm:$0xf]
        %v345 = vld [vmem:[%s330 + $0x34] sm:$0xf]
        %v346 = vld [vmem:[%s330 + $0x38] sm:$0xf]
        %v347 = vld [vmem:[%s330 + $0x3c] sm:$0xf]
        %v348 = vld [vmem:[%s330 + $0x40] sm:$0xf]
        %v349 = vld [vmem:[%s330 + $0x44] sm:$0xf]
        %v350 = vld [vmem:[%s330 + $0x48] sm:$0xf]
        %v351 = vld [vmem:[%s330 + $0x4c] sm:$0xf]
        %v352 = vld [vmem:[%s330 + $0x50] sm:$0xf]
        %v353 = vld [vmem:[%s330 + $0x54] sm:$0xf]
        %v354 = vld [vmem:[%s330 + $0x58] sm:$0xf]
        %v355 = vld [vmem:[%s330 + $0x5c] sm:$0xf]
        %v356 = vld [vmem:[%s330 + $0x60] sm:$0xf]
        %v357 = vld [vmem:[%s330 + $0x64] sm:$0xf]
        %v358 = vld [vmem:[%s330 + $0x68] sm:$0xf]
        %v359 = vld [vmem:[%s330 + $0x6c] sm:$0xf]
        %v360 = vld [vmem:[%s330 + $0x70] sm:$0x1]
        %v361 = vld [vmem:[%s1] sm:$0xf]
        %v362 = vld [vmem:[%s1 + $0x4] sm:$0xf]
        %v363 = vld [vmem:[%s1 + $0x8] sm:$0xf]
        %v364 = vld [vmem:[%s1 + $0xc] sm:$0xf]
        %v365 = vld [vmem:[%s1 + $0x10] sm:$0x3]
        %v366 = vld [vmem:[%s2] sm:$0x1]
        %v368 = vperm.slane %v366, 0
        %v399 = vunpack.c.l.b16 %v332
        %v400 = vunpack.c.l.b16 %v333
        %v401 = vunpack.c.l.b16 %v334
        %v402 = vunpack.c.l.b16 %v335
        %v403 = vunpack.c.l.b16 %v336
        %v404 = vunpack.c.l.b16 %v337
        %v405 = vunpack.c.l.b16 %v338
        %v406 = vunpack.c.l.b16 %v339
        %v407 = vunpack.c.l.b16 %v340
        %v408 = vunpack.c.l.b16 %v341
        %v409 = vunpack.c.l.b16 %v342
        %v410 = vunpack.c.l.b16 %v343
        %v411 = vunpack.c.l.b16 %v344
        %v412 = vunpack.c.l.b16 %v345
        %v413 = vunpack.c.l.b16 %v346
        %v414 = vunpack.c.l.b16 %v347
        %v415 = vunpack.c.l.b16 %v348
        %v416 = vunpack.c.l.b16 %v349
        %v417 = vunpack.c.l.b16 %v350
        %v418 = vunpack.c.l.b16 %v351
        %v419 = vunpack.c.l.b16 %v352
        %v420 = vunpack.c.l.b16 %v353
        %v421 = vunpack.c.l.b16 %v354
        %v422 = vunpack.c.l.b16 %v355
        %v423 = vunpack.c.l.b16 %v356
        %v424 = vunpack.c.l.b16 %v357
        %v425 = vunpack.c.l.b16 %v358
        %v426 = vunpack.c.l.b16 %v359
        %v427 = vunpack.c.l.b16 %v360
        %v428 = vpack.c.b16 %v400, %v399
        %v429 = vpack.c.b16 %v402, %v401
        %v430 = vpack.c.b16 %v404, %v403
        %v431 = vpack.c.b16 %v406, %v405
        %v432 = vpack.c.b16 %v408, %v407
        %v433 = vpack.c.b16 %v410, %v409
        %v434 = vpack.c.b16 %v412, %v411
        %v435 = vpack.c.b16 %v414, %v413
        %v436 = vpack.c.b16 %v416, %v415
        %v437 = vpack.c.b16 %v418, %v417
        %v438 = vpack.c.b16 %v420, %v419
        %v439 = vpack.c.b16 %v422, %v421
        %v440 = vpack.c.b16 %v424, %v423
        %v441 = vpack.c.b16 %v426, %v425
        %v442 = vpack.c.b16 %v427, %v427
        %v448 = vunpack.c.l.b16 %v361
        %v449 = vunpack.c.l.b16 %v362
        %v450 = vunpack.c.l.b16 %v363
        %v451 = vunpack.c.l.b16 %v364
        %v452 = vunpack.c.l.b16 %v365
        %v453 = vpack.c.b16 %v449, %v448
        %v454 = vpack.c.b16 %v451, %v450
        %v455 = vpack.c.b16 %v452, %v452
        %vm458 = vcmask 293888
        %v460 = vsel %vm458, %v428, 0
        %v463 = vsel %vm458, %v429, 0
        %v466 = vsel %vm458, %v430, 0
        %v469 = vsel %vm458, %v431, 0
        %v472 = vsel %vm458, %v432, 0
        %v475 = vsel %vm458, %v433, 0
        %v478 = vsel %vm458, %v434, 0
        %v481 = vsel %vm458, %v435, 0
        %v484 = vsel %vm458, %v436, 0
        %v487 = vsel %vm458, %v437, 0
        %v490 = vsel %vm458, %v438, 0
        %v493 = vsel %vm458, %v439, 0
        %v496 = vsel %vm458, %v440, 0
        %v499 = vsel %vm458, %v441, 0
        %v502 = vsel %vm458, %v442, 0
        %vm504 = vcmask 1041408
        %v506 = vsel %vm504, %v455, 0
        %508 = vmatpush.bf16.msra.mxu0 0
        %509 = vmatpush.bf16.msra.mxu0 0
        %510 = vmatpush.bf16.msra.mxu0 0
        %511 = vmatpush.bf16.msra.mxu0 0
        %512 = vmatpush.bf16.msra.mxu0 0
        %513 = vmatpush.bf16.msra.mxu0 %v506
        %514 = vmatpush.bf16.msra.mxu0 %v454
        %515 = vmatpush.bf16.msra.mxu0 %v453
        %516 = vmatmul.bf16.gmra.mxu0 %v460
        %v517 = vpop.f32.mrf.mxu0
        %v518 = vadd.f32 %v368, %v517
        %v519 = vpop.f32.mrf.mxu0
        %v520 = vadd.f32 %v368, %v519
        %521 = vmatmul.bf16.gmra.mxu0 %v463
        %v522 = vpop.f32.mrf.mxu0
        %v523 = vadd.f32 %v368, %v522
        %v524 = vpop.f32.mrf.mxu0
        %v525 = vadd.f32 %v368, %v524
        %526 = vmatmul.bf16.gmra.mxu0 %v466
        %v527 = vpop.f32.mrf.mxu0
        %v528 = vadd.f32 %v368, %v527
        %v529 = vpop.f32.mrf.mxu0
        %v530 = vadd.f32 %v368, %v529
        %531 = vmatmul.bf16.gmra.mxu0 %v469
        %v532 = vpop.f32.mrf.mxu0
        %v533 = vadd.f32 %v368, %v532
        %v534 = vpop.f32.mrf.mxu0
        %v535 = vadd.f32 %v368, %v534
        %536 = vmatmul.bf16.gmra.mxu0 %v472
        %v537 = vpop.f32.mrf.mxu0
        %v538 = vadd.f32 %v368, %v537
        %v539 = vpop.f32.mrf.mxu0
        %v540 = vadd.f32 %v368, %v539
        %541 = vmatmul.bf16.gmra.mxu0 %v475
        %v542 = vpop.f32.mrf.mxu0
        %v543 = vadd.f32 %v368, %v542
        %v544 = vpop.f32.mrf.mxu0
        %v545 = vadd.f32 %v368, %v544
        %546 = vmatmul.bf16.gmra.mxu0 %v478
        %v547 = vpop.f32.mrf.mxu0
        %v548 = vadd.f32 %v368, %v547
        %v549 = vpop.f32.mrf.mxu0
        %v550 = vadd.f32 %v368, %v549
        %551 = vmatmul.bf16.gmra.mxu0 %v481
        %v552 = vpop.f32.mrf.mxu0
        %v553 = vadd.f32 %v368, %v552
        %v554 = vpop.f32.mrf.mxu0
        %v555 = vadd.f32 %v368, %v554
        %556 = vmatmul.bf16.gmra.mxu0 %v484
        %v557 = vpop.f32.mrf.mxu0
        %v558 = vadd.f32 %v368, %v557
        %v559 = vpop.f32.mrf.mxu0
        %v560 = vadd.f32 %v368, %v559
        %561 = vmatmul.bf16.gmra.mxu0 %v487
        %v562 = vpop.f32.mrf.mxu0
        %v563 = vadd.f32 %v368, %v562
        %v564 = vpop.f32.mrf.mxu0
        %v565 = vadd.f32 %v368, %v564
        %566 = vmatmul.bf16.gmra.mxu0 %v490
        %v567 = vpop.f32.mrf.mxu0
        %v568 = vadd.f32 %v368, %v567
        %v569 = vpop.f32.mrf.mxu0
        %v570 = vadd.f32 %v368, %v569
        %571 = vmatmul.bf16.gmra.mxu0 %v493
        %v572 = vpop.f32.mrf.mxu0
        %v573 = vadd.f32 %v368, %v572
        %v574 = vpop.f32.mrf.mxu0
        %v575 = vadd.f32 %v368, %v574
        %576 = vmatmul.bf16.gmra.mxu0 %v496
        %v577 = vpop.f32.mrf.mxu0
        %v578 = vadd.f32 %v368, %v577
        %v579 = vpop.f32.mrf.mxu0
        %v580 = vadd.f32 %v368, %v579
        %581 = vmatmul.bf16.gmra.mxu0 %v499
        %v582 = vpop.f32.mrf.mxu0
        %v583 = vadd.f32 %v368, %v582
        %v584 = vpop.f32.mrf.mxu0
        %v585 = vadd.f32 %v368, %v584
        %586 = vmatmul.bf16.gmra.mxu0 %v502
        %v587 = vpop.f32.mrf.mxu0
        %v588 = vadd.f32 %v368, %v587
        %v589 = vpop.f32.mrf.mxu0
        %590 = vdwg.mxu0
        %v591 = vsub.f32 0.0, %v518
        %v592 = vsub.f32 0.0, %v520
        %v593 = vsub.f32 0.0, %v523
        %v594 = vsub.f32 0.0, %v525
        %v595 = vsub.f32 0.0, %v528
        %v596 = vsub.f32 0.0, %v530
        %v597 = vsub.f32 0.0, %v533
        %v598 = vsub.f32 0.0, %v535
        %v599 = vsub.f32 0.0, %v538
        %v600 = vsub.f32 0.0, %v540
        %v601 = vsub.f32 0.0, %v543
        %v602 = vsub.f32 0.0, %v545
        %v603 = vsub.f32 0.0, %v548
        %v604 = vsub.f32 0.0, %v550
        %v605 = vsub.f32 0.0, %v553
        %v606 = vsub.f32 0.0, %v555
        %v607 = vsub.f32 0.0, %v558
        %v608 = vsub.f32 0.0, %v560
        %v609 = vsub.f32 0.0, %v563
        %v610 = vsub.f32 0.0, %v565
        %v611 = vsub.f32 0.0, %v568
        %v612 = vsub.f32 0.0, %v570
        %v613 = vsub.f32 0.0, %v573
        %v614 = vsub.f32 0.0, %v575
        %v615 = vsub.f32 0.0, %v578
        %v616 = vsub.f32 0.0, %v580
        %v617 = vsub.f32 0.0, %v583
        %v618 = vsub.f32 0.0, %v585
        %v619 = vsub.f32 0.0, %v588
        %v620 = vmul.f32 %v591, 1.442695
        %v621 = vpow.pop %v620
        %v622 = vmul.f32 %v592, 1.442695
        %v623 = vpow.pop %v622
        %v624 = vmul.f32 %v593, 1.442695
        %v625 = vpow.pop %v624
        %v626 = vmul.f32 %v594, 1.442695
        %v627 = vpow.pop %v626
        %v628 = vmul.f32 %v595, 1.442695
        %v629 = vpow.pop %v628
        %v630 = vmul.f32 %v596, 1.442695
        %v631 = vpow.pop %v630
        %v632 = vmul.f32 %v597, 1.442695
        %v633 = vpow.pop %v632
        %v634 = vmul.f32 %v598, 1.442695
        %v635 = vpow.pop %v634
        %v636 = vmul.f32 %v599, 1.442695
        %v637 = vpow.pop %v636
        %v638 = vmul.f32 %v600, 1.442695
        %v639 = vpow.pop %v638
        %v640 = vmul.f32 %v601, 1.442695
        %v641 = vpow.pop %v640
        %v642 = vmul.f32 %v602, 1.442695
        %v643 = vpow.pop %v642
        %v644 = vmul.f32 %v603, 1.442695
        %v645 = vpow.pop %v644
        %v646 = vmul.f32 %v604, 1.442695
        %v647 = vpow.pop %v646
        %v648 = vmul.f32 %v605, 1.442695
        %v649 = vpow.pop %v648
        %v650 = vmul.f32 %v606, 1.442695
        %v651 = vpow.pop %v650
        %v652 = vmul.f32 %v607, 1.442695
        %v653 = vpow.pop %v652
        %v654 = vmul.f32 %v608, 1.442695
        %v655 = vpow.pop %v654
        %v656 = vmul.f32 %v609, 1.442695
        %v657 = vpow.pop %v656
        %v658 = vmul.f32 %v610, 1.442695
        %v659 = vpow.pop %v658
        %v660 = vmul.f32 %v611, 1.442695
        %v661 = vpow.pop %v660
        %v662 = vmul.f32 %v612, 1.442695
        %v663 = vpow.pop %v662
        %v664 = vmul.f32 %v613, 1.442695
        %v665 = vpow.pop %v664
        %v666 = vmul.f32 %v614, 1.442695
        %v667 = vpow.pop %v666
        %v668 = vmul.f32 %v615, 1.442695
        %v669 = vpow.pop %v668
        %v670 = vmul.f32 %v616, 1.442695
        %v671 = vpow.pop %v670
        %v672 = vmul.f32 %v617, 1.442695
        %v673 = vpow.pop %v672
        %v674 = vmul.f32 %v618, 1.442695
        %v675 = vpow.pop %v674
        %v676 = vmul.f32 %v619, 1.442695
        %v677 = vpow.pop %v676
        %v678 = vadd.f32 %v621, 1.0
        %v679 = vadd.f32 %v623, 1.0
        %v680 = vadd.f32 %v625, 1.0
        %v681 = vadd.f32 %v627, 1.0
        %v682 = vadd.f32 %v629, 1.0
        %v683 = vadd.f32 %v631, 1.0
        %v684 = vadd.f32 %v633, 1.0
        %v685 = vadd.f32 %v635, 1.0
        %v686 = vadd.f32 %v637, 1.0
        %v687 = vadd.f32 %v639, 1.0
        %v688 = vadd.f32 %v641, 1.0
        %v689 = vadd.f32 %v643, 1.0
        %v690 = vadd.f32 %v645, 1.0
        %v691 = vadd.f32 %v647, 1.0
        %v692 = vadd.f32 %v649, 1.0
        %v693 = vadd.f32 %v651, 1.0
        %v694 = vadd.f32 %v653, 1.0
        %v695 = vadd.f32 %v655, 1.0
        %v696 = vadd.f32 %v657, 1.0
        %v697 = vadd.f32 %v659, 1.0
        %v698 = vadd.f32 %v661, 1.0
        %v699 = vadd.f32 %v663, 1.0
        %v700 = vadd.f32 %v665, 1.0
        %v701 = vadd.f32 %v667, 1.0
        %v702 = vadd.f32 %v669, 1.0
        %v703 = vadd.f32 %v671, 1.0
        %v704 = vadd.f32 %v673, 1.0
        %v705 = vadd.f32 %v675, 1.0
        %v706 = vadd.f32 %v677, 1.0
        %v707 = vrcp.pop %v678
        %v708 = vrcp.pop %v679
        %v709 = vrcp.pop %v680
        %v710 = vrcp.pop %v681
        %v711 = vrcp.pop %v682
        %v712 = vrcp.pop %v683
        %v713 = vrcp.pop %v684
        %v714 = vrcp.pop %v685
        %v715 = vrcp.pop %v686
        %v716 = vrcp.pop %v687
        %v717 = vrcp.pop %v688
        %v718 = vrcp.pop %v689
        %v719 = vrcp.pop %v690
        %v720 = vrcp.pop %v691
        %v721 = vrcp.pop %v692
        %v722 = vrcp.pop %v693
        %v723 = vrcp.pop %v694
        %v724 = vrcp.pop %v695
        %v725 = vrcp.pop %v696
        %v726 = vrcp.pop %v697
        %v727 = vrcp.pop %v698
        %v728 = vrcp.pop %v699
        %v729 = vrcp.pop %v700
        %v730 = vrcp.pop %v701
        %v731 = vrcp.pop %v702
        %v732 = vrcp.pop %v703
        %v733 = vrcp.pop %v704
        %v734 = vrcp.pop %v705
        %v735 = vrcp.pop %v706
        %v736 = vmul.f32 %v518, %v707
        %v737 = vmul.f32 %v520, %v708
        %v738 = vmul.f32 %v523, %v709
        %v739 = vmul.f32 %v525, %v710
        %v740 = vmul.f32 %v528, %v711
        %v741 = vmul.f32 %v530, %v712
        %v742 = vmul.f32 %v533, %v713
        %v743 = vmul.f32 %v535, %v714
        %v744 = vmul.f32 %v538, %v715
        %v745 = vmul.f32 %v540, %v716
        %v746 = vmul.f32 %v543, %v717
        %v747 = vmul.f32 %v545, %v718
        %v748 = vmul.f32 %v548, %v719
        %v749 = vmul.f32 %v550, %v720
        %v750 = vmul.f32 %v553, %v721
        %v751 = vmul.f32 %v555, %v722
        %v752 = vmul.f32 %v558, %v723
        %v753 = vmul.f32 %v560, %v724
        %v754 = vmul.f32 %v563, %v725
        %v755 = vmul.f32 %v565, %v726
        %v756 = vmul.f32 %v568, %v727
        %v757 = vmul.f32 %v570, %v728
        %v758 = vmul.f32 %v573, %v729
        %v759 = vmul.f32 %v575, %v730
        %v760 = vmul.f32 %v578, %v731
        %v761 = vmul.f32 %v580, %v732
        %v762 = vmul.f32 %v583, %v733
        %v763 = vmul.f32 %v585, %v734
        %v764 = vmul.f32 %v588, %v735
        %v765 = vpack.c.bf16 %v737, %v736
        %v766 = vpack.c.bf16 %v739, %v738
        %v767 = vpack.c.bf16 %v741, %v740
        %v768 = vpack.c.bf16 %v743, %v742
        %v769 = vpack.c.bf16 %v745, %v744
        %v770 = vpack.c.bf16 %v747, %v746
        %v771 = vpack.c.bf16 %v749, %v748
        %v772 = vpack.c.bf16 %v751, %v750
        %v773 = vpack.c.bf16 %v753, %v752
        %v774 = vpack.c.bf16 %v755, %v754
        %v775 = vpack.c.bf16 %v757, %v756
        %v776 = vpack.c.bf16 %v759, %v758
        %v777 = vpack.c.bf16 %v761, %v760
        %v778 = vpack.c.bf16 %v763, %v762
        %v779 = vpack.c.bf16 %v764, %v764
        %v780 = vld [vmem:[%s3] sm:$0xff]
        %v781 = vld [vmem:[%s3 + $0x8] sm:$0xff]
        %v782 = vld [vmem:[%s3 + $0x10] sm:$0xff]
        %v783 = vld [vmem:[%s4] sm:$0x3]
        %v785 = vperm.slane %v783, 0
        %v786 = vperm.slane %v783, 1
        %v792 = vunpack.c.l.b16 %v780
        %v793 = vunpack.c.h.b16 %v780
        %v794 = vunpack.c.l.b16 %v781
        %v795 = vunpack.c.h.b16 %v781
        %v796 = vunpack.c.l.b16 %v782
        %v797 = vunpack.c.h.b16 %v782
        %v798 = vpack.c.b16 %v794, %v792
        %v799 = vpack.c.b16 %v795, %v793
        %v800 = vpack.c.b16 %v796, %v796
        %v801 = vpack.c.b16 %v797, %v797
        %vm804 = vcmask 195584
        %v806 = vsel %vm804, %v765, 0
        %v809 = vsel %vm804, %v766, 0
        %v812 = vsel %vm804, %v767, 0
        %v815 = vsel %vm804, %v768, 0
        %v818 = vsel %vm804, %v769, 0
        %v821 = vsel %vm804, %v770, 0
        %v824 = vsel %vm804, %v771, 0
        %v827 = vsel %vm804, %v772, 0
        %v830 = vsel %vm804, %v773, 0
        %v833 = vsel %vm804, %v774, 0
        %v836 = vsel %vm804, %v775, 0
        %v839 = vsel %vm804, %v776, 0
        %v842 = vsel %vm804, %v777, 0
        %v845 = vsel %vm804, %v778, 0
        %v848 = vsel %vm804, %v779, 0
        %vm850 = vcmask 1043456
        %v852 = vsel %vm850, %v800, 0
        %v855 = vsel %vm850, %v801, 0
        %857 = vmatpush.bf16.msra.mxu0 0
        %858 = vmatpush.bf16.msra.mxu0 0
        %859 = vmatpush.bf16.msra.mxu0 0
        %860 = vmatpush.bf16.msra.mxu0 0
        %861 = vmatpush.bf16.msra.mxu0 0
        %862 = vmatpush.bf16.msra.mxu0 0
        %863 = vmatpush.bf16.msra.mxu0 %v852
        %864 = vmatpush.bf16.msra.mxu0 %v798
        %865 = vmatmul.bf16.gmra.mxu0 %v806
        %v866 = vpop.f32.mrf.mxu0
        %v867 = vadd.f32 %v785, %v866
        %v868 = vpop.f32.mrf.mxu0
        %v869 = vadd.f32 %v785, %v868
        %870 = vmatmul.bf16.gmra.mxu0 %v809
        %v871 = vpop.f32.mrf.mxu0
        %v872 = vadd.f32 %v785, %v871
        %v873 = vpop.f32.mrf.mxu0
        %v874 = vadd.f32 %v785, %v873
        %875 = vmatmul.bf16.gmra.mxu0 %v812
        %v876 = vpop.f32.mrf.mxu0
        %v877 = vadd.f32 %v785, %v876
        %v878 = vpop.f32.mrf.mxu0
        %v879 = vadd.f32 %v785, %v878
        %880 = vmatmul.bf16.gmra.mxu0 %v815
        %v881 = vpop.f32.mrf.mxu0
        %v882 = vadd.f32 %v785, %v881
        %v883 = vpop.f32.mrf.mxu0
        %v884 = vadd.f32 %v785, %v883
        %885 = vmatmul.bf16.gmra.mxu0 %v818
        %v886 = vpop.f32.mrf.mxu0
        %v887 = vadd.f32 %v785, %v886
        %v888 = vpop.f32.mrf.mxu0
        %v889 = vadd.f32 %v785, %v888
        %890 = vmatmul.bf16.gmra.mxu0 %v821
        %v891 = vpop.f32.mrf.mxu0
        %v892 = vadd.f32 %v785, %v891
        %v893 = vpop.f32.mrf.mxu0
        %v894 = vadd.f32 %v785, %v893
        %895 = vmatmul.bf16.gmra.mxu0 %v824
        %v896 = vpop.f32.mrf.mxu0
        %v897 = vadd.f32 %v785, %v896
        %v898 = vpop.f32.mrf.mxu0
        %v899 = vadd.f32 %v785, %v898
        %900 = vmatmul.bf16.gmra.mxu0 %v827
        %v901 = vpop.f32.mrf.mxu0
        %v902 = vadd.f32 %v785, %v901
        %v903 = vpop.f32.mrf.mxu0
        %v904 = vadd.f32 %v785, %v903
        %905 = vmatmul.bf16.gmra.mxu0 %v830
        %v906 = vpop.f32.mrf.mxu0
        %v907 = vadd.f32 %v785, %v906
        %v908 = vpop.f32.mrf.mxu0
        %v909 = vadd.f32 %v785, %v908
        %910 = vmatmul.bf16.gmra.mxu0 %v833
        %v911 = vpop.f32.mrf.mxu0
        %v912 = vadd.f32 %v785, %v911
        %v913 = vpop.f32.mrf.mxu0
        %v914 = vadd.f32 %v785, %v913
        %915 = vmatmul.bf16.gmra.mxu0 %v836
        %v916 = vpop.f32.mrf.mxu0
        %v917 = vadd.f32 %v785, %v916
        %v918 = vpop.f32.mrf.mxu0
        %v919 = vadd.f32 %v785, %v918
        %920 = vmatmul.bf16.gmra.mxu0 %v839
        %v921 = vpop.f32.mrf.mxu0
        %v922 = vadd.f32 %v785, %v921
        %v923 = vpop.f32.mrf.mxu0
        %v924 = vadd.f32 %v785, %v923
        %925 = vmatmul.bf16.gmra.mxu0 %v842
        %v926 = vpop.f32.mrf.mxu0
        %v927 = vadd.f32 %v785, %v926
        %v928 = vpop.f32.mrf.mxu0
        %v929 = vadd.f32 %v785, %v928
        %930 = vmatmul.bf16.gmra.mxu0 %v845
        %v931 = vpop.f32.mrf.mxu0
        %v932 = vadd.f32 %v785, %v931
        %v933 = vpop.f32.mrf.mxu0
        %934 = vmatmul.bf16.gmra.mxu0 %v848
        %v935 = vpop.f32.mrf.mxu0
        %v936 = vpop.f32.mrf.mxu0
        %937 = vdwg.mxu0
        %938 = vmatpush.bf16.msra.mxu0 0
        %939 = vmatpush.bf16.msra.mxu0 0
        %940 = vmatpush.bf16.msra.mxu0 0
        %941 = vmatpush.bf16.msra.mxu0 0
        %942 = vmatpush.bf16.msra.mxu0 0
        %943 = vmatpush.bf16.msra.mxu0 0
        %944 = vmatpush.bf16.msra.mxu0 %v855
        %945 = vmatpush.bf16.msra.mxu0 %v799
        %946 = vmatmul.bf16.gmra.mxu0 %v806
        %v947 = vpop.f32.mrf.mxu0
        %v948 = vadd.f32 %v786, %v947
        %v949 = vpop.f32.mrf.mxu0
        %v950 = vadd.f32 %v786, %v949
        %951 = vmatmul.bf16.gmra.mxu0 %v809
        %v952 = vpop.f32.mrf.mxu0
        %v953 = vadd.f32 %v786, %v952
        %v954 = vpop.f32.mrf.mxu0
        %v955 = vadd.f32 %v786, %v954
        %956 = vmatmul.bf16.gmra.mxu0 %v812
        %v957 = vpop.f32.mrf.mxu0
        %v958 = vadd.f32 %v786, %v957
        %v959 = vpop.f32.mrf.mxu0
        %v960 = vadd.f32 %v786, %v959
        %961 = vmatmul.bf16.gmra.mxu0 %v815
        %v962 = vpop.f32.mrf.mxu0
        %v963 = vadd.f32 %v786, %v962
        %v964 = vpop.f32.mrf.mxu0
        %v965 = vadd.f32 %v786, %v964
        %966 = vmatmul.bf16.gmra.mxu0 %v818
        %v967 = vpop.f32.mrf.mxu0
        %v968 = vadd.f32 %v786, %v967
        %v969 = vpop.f32.mrf.mxu0
        %v970 = vadd.f32 %v786, %v969
        %971 = vmatmul.bf16.gmra.mxu0 %v821
        %v972 = vpop.f32.mrf.mxu0
        %v973 = vadd.f32 %v786, %v972
        %v974 = vpop.f32.mrf.mxu0
        %v975 = vadd.f32 %v786, %v974
        %976 = vmatmul.bf16.gmra.mxu0 %v824
        %v977 = vpop.f32.mrf.mxu0
        %v978 = vadd.f32 %v786, %v977
        %v979 = vpop.f32.mrf.mxu0
        %v980 = vadd.f32 %v786, %v979
        %981 = vmatmul.bf16.gmra.mxu0 %v827
        %v982 = vpop.f32.mrf.mxu0
        %v983 = vadd.f32 %v786, %v982
        %v984 = vpop.f32.mrf.mxu0
        %v985 = vadd.f32 %v786, %v984
        %986 = vmatmul.bf16.gmra.mxu0 %v830
        %v987 = vpop.f32.mrf.mxu0
        %v988 = vadd.f32 %v786, %v987
        %v989 = vpop.f32.mrf.mxu0
        %v990 = vadd.f32 %v786, %v989
        %991 = vmatmul.bf16.gmra.mxu0 %v833
        %v992 = vpop.f32.mrf.mxu0
        %v993 = vadd.f32 %v786, %v992
        %v994 = vpop.f32.mrf.mxu0
        %v995 = vadd.f32 %v786, %v994
        %996 = vmatmul.bf16.gmra.mxu0 %v836
        %v997 = vpop.f32.mrf.mxu0
        %v998 = vadd.f32 %v786, %v997
        %v999 = vpop.f32.mrf.mxu0
        %v1000 = vadd.f32 %v786, %v999
        %1001 = vmatmul.bf16.gmra.mxu0 %v839
        %v1002 = vpop.f32.mrf.mxu0
        %v1003 = vadd.f32 %v786, %v1002
        %v1004 = vpop.f32.mrf.mxu0
        %v1005 = vadd.f32 %v786, %v1004
        %1006 = vmatmul.bf16.gmra.mxu0 %v842
        %v1007 = vpop.f32.mrf.mxu0
        %v1008 = vadd.f32 %v786, %v1007
        %v1009 = vpop.f32.mrf.mxu0
        %v1010 = vadd.f32 %v786, %v1009
        %1011 = vmatmul.bf16.gmra.mxu0 %v845
        %v1012 = vpop.f32.mrf.mxu0
        %v1013 = vadd.f32 %v786, %v1012
        %v1014 = vpop.f32.mrf.mxu0
        %1015 = vmatmul.bf16.gmra.mxu0 %v848
        %v1016 = vpop.f32.mrf.mxu0
        %v1017 = vpop.f32.mrf.mxu0
        %1018 = vdwg.mxu0
        %v1019 = vsub.f32 0.0, %v867
        %v1020 = vsub.f32 0.0, %v948
        %v1021 = vsub.f32 0.0, %v869
        %v1022 = vsub.f32 0.0, %v950
        %v1023 = vsub.f32 0.0, %v872
        %v1024 = vsub.f32 0.0, %v953
        %v1025 = vsub.f32 0.0, %v874
        %v1026 = vsub.f32 0.0, %v955
        %v1027 = vsub.f32 0.0, %v877
        %v1028 = vsub.f32 0.0, %v958
        %v1029 = vsub.f32 0.0, %v879
        %v1030 = vsub.f32 0.0, %v960
        %v1031 = vsub.f32 0.0, %v882
        %v1032 = vsub.f32 0.0, %v963
        %v1033 = vsub.f32 0.0, %v884
        %v1034 = vsub.f32 0.0, %v965
        %v1035 = vsub.f32 0.0, %v887
        %v1036 = vsub.f32 0.0, %v968
        %v1037 = vsub.f32 0.0, %v889
        %v1038 = vsub.f32 0.0, %v970
        %v1039 = vsub.f32 0.0, %v892
        %v1040 = vsub.f32 0.0, %v973
        %v1041 = vsub.f32 0.0, %v894
        %v1042 = vsub.f32 0.0, %v975
        %v1043 = vsub.f32 0.0, %v897
        %v1044 = vsub.f32 0.0, %v978
        %v1045 = vsub.f32 0.0, %v899
        %v1046 = vsub.f32 0.0, %v980
        %v1047 = vsub.f32 0.0, %v902
        %v1048 = vsub.f32 0.0, %v983
        %v1049 = vsub.f32 0.0, %v904
        %v1050 = vsub.f32 0.0, %v985
        %v1051 = vsub.f32 0.0, %v907
        %v1052 = vsub.f32 0.0, %v988
        %v1053 = vsub.f32 0.0, %v909
        %v1054 = vsub.f32 0.0, %v990
        %v1055 = vsub.f32 0.0, %v912
        %v1056 = vsub.f32 0.0, %v993
        %v1057 = vsub.f32 0.0, %v914
        %v1058 = vsub.f32 0.0, %v995
        %v1059 = vsub.f32 0.0, %v917
        %v1060 = vsub.f32 0.0, %v998
        %v1061 = vsub.f32 0.0, %v919
        %v1062 = vsub.f32 0.0, %v1000
        %v1063 = vsub.f32 0.0, %v922
        %v1064 = vsub.f32 0.0, %v1003
        %v1065 = vsub.f32 0.0, %v924
        %v1066 = vsub.f32 0.0, %v1005
        %v1067 = vsub.f32 0.0, %v927
        %v1068 = vsub.f32 0.0, %v1008
        %v1069 = vsub.f32 0.0, %v929
        %v1070 = vsub.f32 0.0, %v1010
        %v1071 = vsub.f32 0.0, %v932
        %v1072 = vsub.f32 0.0, %v1013
        %v1073 = vmul.f32 %v1019, 1.442695
        %v1074 = vpow.pop %v1073
        %v1075 = vmul.f32 %v1020, 1.442695
        %v1076 = vpow.pop %v1075
        %v1077 = vmul.f32 %v1021, 1.442695
        %v1078 = vpow.pop %v1077
        %v1079 = vmul.f32 %v1022, 1.442695
        %v1080 = vpow.pop %v1079
        %v1081 = vmul.f32 %v1023, 1.442695
        %v1082 = vpow.pop %v1081
        %v1083 = vmul.f32 %v1024, 1.442695
        %v1084 = vpow.pop %v1083
        %v1085 = vmul.f32 %v1025, 1.442695
        %v1086 = vpow.pop %v1085
        %v1087 = vmul.f32 %v1026, 1.442695
        %v1088 = vpow.pop %v1087
        %v1089 = vmul.f32 %v1027, 1.442695
        %v1090 = vpow.pop %v1089
        %v1091 = vmul.f32 %v1028, 1.442695
        %v1092 = vpow.pop %v1091
        %v1093 = vmul.f32 %v1029, 1.442695
        %v1094 = vpow.pop %v1093
        %v1095 = vmul.f32 %v1030, 1.442695
        %v1096 = vpow.pop %v1095
        %v1097 = vmul.f32 %v1031, 1.442695
        %v1098 = vpow.pop %v1097
        %v1099 = vmul.f32 %v1032, 1.442695
        %v1100 = vpow.pop %v1099
        %v1101 = vmul.f32 %v1033, 1.442695
        %v1102 = vpow.pop %v1101
        %v1103 = vmul.f32 %v1034, 1.442695
        %v1104 = vpow.pop %v1103
        %v1105 = vmul.f32 %v1035, 1.442695
        %v1106 = vpow.pop %v1105
        %v1107 = vmul.f32 %v1036, 1.442695
        %v1108 = vpow.pop %v1107
        %v1109 = vmul.f32 %v1037, 1.442695
        %v1110 = vpow.pop %v1109
        %v1111 = vmul.f32 %v1038, 1.442695
        %v1112 = vpow.pop %v1111
        %v1113 = vmul.f32 %v1039, 1.442695
        %v1114 = vpow.pop %v1113
        %v1115 = vmul.f32 %v1040, 1.442695
        %v1116 = vpow.pop %v1115
        %v1117 = vmul.f32 %v1041, 1.442695
        %v1118 = vpow.pop %v1117
        %v1119 = vmul.f32 %v1042, 1.442695
        %v1120 = vpow.pop %v1119
        %v1121 = vmul.f32 %v1043, 1.442695
        %v1122 = vpow.pop %v1121
        %v1123 = vmul.f32 %v1044, 1.442695
        %v1124 = vpow.pop %v1123
        %v1125 = vmul.f32 %v1045, 1.442695
        %v1126 = vpow.pop %v1125
        %v1127 = vmul.f32 %v1046, 1.442695
        %v1128 = vpow.pop %v1127
        %v1129 = vmul.f32 %v1047, 1.442695
        %v1130 = vpow.pop %v1129
        %v1131 = vmul.f32 %v1048, 1.442695
        %v1132 = vpow.pop %v1131
        %v1133 = vmul.f32 %v1049, 1.442695
        %v1134 = vpow.pop %v1133
        %v1135 = vmul.f32 %v1050, 1.442695
        %v1136 = vpow.pop %v1135
        %v1137 = vmul.f32 %v1051, 1.442695
        %v1138 = vpow.pop %v1137
        %v1139 = vmul.f32 %v1052, 1.442695
        %v1140 = vpow.pop %v1139
        %v1141 = vmul.f32 %v1053, 1.442695
        %v1142 = vpow.pop %v1141
        %v1143 = vmul.f32 %v1054, 1.442695
        %v1144 = vpow.pop %v1143
        %v1145 = vmul.f32 %v1055, 1.442695
        %v1146 = vpow.pop %v1145
        %v1147 = vmul.f32 %v1056, 1.442695
        %v1148 = vpow.pop %v1147
        %v1149 = vmul.f32 %v1057, 1.442695
        %v1150 = vpow.pop %v1149
        %v1151 = vmul.f32 %v1058, 1.442695
        %v1152 = vpow.pop %v1151
        %v1153 = vmul.f32 %v1059, 1.442695
        %v1154 = vpow.pop %v1153
        %v1155 = vmul.f32 %v1060, 1.442695
        %v1156 = vpow.pop %v1155
        %v1157 = vmul.f32 %v1061, 1.442695
        %v1158 = vpow.pop %v1157
        %v1159 = vmul.f32 %v1062, 1.442695
        %v1160 = vpow.pop %v1159
        %v1161 = vmul.f32 %v1063, 1.442695
        %v1162 = vpow.pop %v1161
        %v1163 = vmul.f32 %v1064, 1.442695
        %v1164 = vpow.pop %v1163
        %v1165 = vmul.f32 %v1065, 1.442695
        %v1166 = vpow.pop %v1165
        %v1167 = vmul.f32 %v1066, 1.442695
        %v1168 = vpow.pop %v1167
        %v1169 = vmul.f32 %v1067, 1.442695
        %v1170 = vpow.pop %v1169
        %v1171 = vmul.f32 %v1068, 1.442695
        %v1172 = vpow.pop %v1171
        %v1173 = vmul.f32 %v1069, 1.442695
        %v1174 = vpow.pop %v1173
        %v1175 = vmul.f32 %v1070, 1.442695
        %v1176 = vpow.pop %v1175
        %v1177 = vmul.f32 %v1071, 1.442695
        %v1178 = vpow.pop %v1177
        %v1179 = vmul.f32 %v1072, 1.442695
        %v1180 = vpow.pop %v1179
        %v1181 = vadd.f32 %v1074, 1.0
        %v1182 = vadd.f32 %v1076, 1.0
        %v1183 = vadd.f32 %v1078, 1.0
        %v1184 = vadd.f32 %v1080, 1.0
        %v1185 = vadd.f32 %v1082, 1.0
        %v1186 = vadd.f32 %v1084, 1.0
        %v1187 = vadd.f32 %v1086, 1.0
        %v1188 = vadd.f32 %v1088, 1.0
        %v1189 = vadd.f32 %v1090, 1.0
        %v1190 = vadd.f32 %v1092, 1.0
        %v1191 = vadd.f32 %v1094, 1.0
        %v1192 = vadd.f32 %v1096, 1.0
        %v1193 = vadd.f32 %v1098, 1.0
        %v1194 = vadd.f32 %v1100, 1.0
        %v1195 = vadd.f32 %v1102, 1.0
        %v1196 = vadd.f32 %v1104, 1.0
        %v1197 = vadd.f32 %v1106, 1.0
        %v1198 = vadd.f32 %v1108, 1.0
        %v1199 = vadd.f32 %v1110, 1.0
        %v1200 = vadd.f32 %v1112, 1.0
        %v1201 = vadd.f32 %v1114, 1.0
        %v1202 = vadd.f32 %v1116, 1.0
        %v1203 = vadd.f32 %v1118, 1.0
        %v1204 = vadd.f32 %v1120, 1.0
        %v1205 = vadd.f32 %v1122, 1.0
        %v1206 = vadd.f32 %v1124, 1.0
        %v1207 = vadd.f32 %v1126, 1.0
        %v1208 = vadd.f32 %v1128, 1.0
        %v1209 = vadd.f32 %v1130, 1.0
        %v1210 = vadd.f32 %v1132, 1.0
        %v1211 = vadd.f32 %v1134, 1.0
        %v1212 = vadd.f32 %v1136, 1.0
        %v1213 = vadd.f32 %v1138, 1.0
        %v1214 = vadd.f32 %v1140, 1.0
        %v1215 = vadd.f32 %v1142, 1.0
        %v1216 = vadd.f32 %v1144, 1.0
        %v1217 = vadd.f32 %v1146, 1.0
        %v1218 = vadd.f32 %v1148, 1.0
        %v1219 = vadd.f32 %v1150, 1.0
        %v1220 = vadd.f32 %v1152, 1.0
        %v1221 = vadd.f32 %v1154, 1.0
        %v1222 = vadd.f32 %v1156, 1.0
        %v1223 = vadd.f32 %v1158, 1.0
        %v1224 = vadd.f32 %v1160, 1.0
        %v1225 = vadd.f32 %v1162, 1.0
        %v1226 = vadd.f32 %v1164, 1.0
        %v1227 = vadd.f32 %v1166, 1.0
        %v1228 = vadd.f32 %v1168, 1.0
        %v1229 = vadd.f32 %v1170, 1.0
        %v1230 = vadd.f32 %v1172, 1.0
        %v1231 = vadd.f32 %v1174, 1.0
        %v1232 = vadd.f32 %v1176, 1.0
        %v1233 = vadd.f32 %v1178, 1.0
        %v1234 = vadd.f32 %v1180, 1.0
        %v1235 = vrcp.pop %v1181
        %v1236 = vrcp.pop %v1182
        %v1237 = vrcp.pop %v1183
        %v1238 = vrcp.pop %v1184
        %v1239 = vrcp.pop %v1185
        %v1240 = vrcp.pop %v1186
        %v1241 = vrcp.pop %v1187
        %v1242 = vrcp.pop %v1188
        %v1243 = vrcp.pop %v1189
        %v1244 = vrcp.pop %v1190
        %v1245 = vrcp.pop %v1191
        %v1246 = vrcp.pop %v1192
        %v1247 = vrcp.pop %v1193
        %v1248 = vrcp.pop %v1194
        %v1249 = vrcp.pop %v1195
        %v1250 = vrcp.pop %v1196
        %v1251 = vrcp.pop %v1197
        %v1252 = vrcp.pop %v1198
        %v1253 = vrcp.pop %v1199
        %v1254 = vrcp.pop %v1200
        %v1255 = vrcp.pop %v1201
        %v1256 = vrcp.pop %v1202
        %v1257 = vrcp.pop %v1203
        %v1258 = vrcp.pop %v1204
        %v1259 = vrcp.pop %v1205
        %v1260 = vrcp.pop %v1206
        %v1261 = vrcp.pop %v1207
        %v1262 = vrcp.pop %v1208
        %v1263 = vrcp.pop %v1209
        %v1264 = vrcp.pop %v1210
        %v1265 = vrcp.pop %v1211
        %v1266 = vrcp.pop %v1212
        %v1267 = vrcp.pop %v1213
        %v1268 = vrcp.pop %v1214
        %v1269 = vrcp.pop %v1215
        %v1270 = vrcp.pop %v1216
        %v1271 = vrcp.pop %v1217
        %v1272 = vrcp.pop %v1218
        %v1273 = vrcp.pop %v1219
        %v1274 = vrcp.pop %v1220
        %v1275 = vrcp.pop %v1221
        %v1276 = vrcp.pop %v1222
        %v1277 = vrcp.pop %v1223
        %v1278 = vrcp.pop %v1224
        %v1279 = vrcp.pop %v1225
        %v1280 = vrcp.pop %v1226
        %v1281 = vrcp.pop %v1227
        %v1282 = vrcp.pop %v1228
        %v1283 = vrcp.pop %v1229
        %v1284 = vrcp.pop %v1230
        %v1285 = vrcp.pop %v1231
        %v1286 = vrcp.pop %v1232
        %v1287 = vrcp.pop %v1233
        %v1288 = vrcp.pop %v1234
        %v1289 = vmul.f32 %v867, %v1235
        %v1290 = vmul.f32 %v948, %v1236
        %v1291 = vmul.f32 %v869, %v1237
        %v1292 = vmul.f32 %v950, %v1238
        %v1293 = vmul.f32 %v872, %v1239
        %v1294 = vmul.f32 %v953, %v1240
        %v1295 = vmul.f32 %v874, %v1241
        %v1296 = vmul.f32 %v955, %v1242
        %v1297 = vmul.f32 %v877, %v1243
        %v1298 = vmul.f32 %v958, %v1244
        %v1299 = vmul.f32 %v879, %v1245
        %v1300 = vmul.f32 %v960, %v1246
        %v1301 = vmul.f32 %v882, %v1247
        %v1302 = vmul.f32 %v963, %v1248
        %v1303 = vmul.f32 %v884, %v1249
        %v1304 = vmul.f32 %v965, %v1250
        %v1305 = vmul.f32 %v887, %v1251
        %v1306 = vmul.f32 %v968, %v1252
        %v1307 = vmul.f32 %v889, %v1253
        %v1308 = vmul.f32 %v970, %v1254
        %v1309 = vmul.f32 %v892, %v1255
        %v1310 = vmul.f32 %v973, %v1256
        %v1311 = vmul.f32 %v894, %v1257
        %v1312 = vmul.f32 %v975, %v1258
        %v1313 = vmul.f32 %v897, %v1259
        %v1314 = vmul.f32 %v978, %v1260
        %v1315 = vmul.f32 %v899, %v1261
        %v1316 = vmul.f32 %v980, %v1262
        %v1317 = vmul.f32 %v902, %v1263
        %v1318 = vmul.f32 %v983, %v1264
        %v1319 = vmul.f32 %v904, %v1265
        %v1320 = vmul.f32 %v985, %v1266
        %v1321 = vmul.f32 %v907, %v1267
        %v1322 = vmul.f32 %v988, %v1268
        %v1323 = vmul.f32 %v909, %v1269
        %v1324 = vmul.f32 %v990, %v1270
        %v1325 = vmul.f32 %v912, %v1271
        %v1326 = vmul.f32 %v993, %v1272
        %v1327 = vmul.f32 %v914, %v1273
        %v1328 = vmul.f32 %v995, %v1274
        %v1329 = vmul.f32 %v917, %v1275
        %v1330 = vmul.f32 %v998, %v1276
        %v1331 = vmul.f32 %v919, %v1277
        %v1332 = vmul.f32 %v1000, %v1278
        %v1333 = vmul.f32 %v922, %v1279
        %v1334 = vmul.f32 %v1003, %v1280
        %v1335 = vmul.f32 %v924, %v1281
        %v1336 = vmul.f32 %v1005, %v1282
        %v1337 = vmul.f32 %v927, %v1283
        %v1338 = vmul.f32 %v1008, %v1284
        %v1339 = vmul.f32 %v929, %v1285
        %v1340 = vmul.f32 %v1010, %v1286
        %v1341 = vmul.f32 %v932, %v1287
        %v1342 = vmul.f32 %v1013, %v1288
        %1343 = vst [vmem:[#allocation2] sm:$0xff] 0.0
        %1344 = vst [vmem:[#allocation2 + $0x8] sm:$0xff] 0.0
        %1345 = vst [vmem:[#allocation2 + $0x10] sm:$0xff] 0.0
        %1346 = vst [vmem:[#allocation2 + $0x18] sm:$0xff] 0.0
        %1347 = vst [vmem:[#allocation2 + $0x20] sm:$0xff] 0.0
        %1348 = vst [vmem:[#allocation2 + $0x28] sm:$0xff] 0.0
        %1349 = vst [vmem:[#allocation2 + $0x30] sm:$0xff] 0.0
        %1350 = vst [vmem:[#allocation2 + $0x38] sm:$0xff] 0.0
        %1351 = vst [vmem:[#allocation2 + $0x40] sm:$0xff] 0.0
        %1352 = vst [vmem:[#allocation2 + $0x48] sm:$0xff] 0.0
        %1353 = vst [vmem:[#allocation2 + $0x50] sm:$0xff] 0.0
        %1354 = vst [vmem:[#allocation2 + $0x58] sm:$0xff] 0.0
        %1355 = vst [vmem:[#allocation2 + $0x60] sm:$0xff] 0.0
        %1356 = vst [vmem:[#allocation2 + $0x68] sm:$0xff] 0.0
        %1357 = vst [vmem:[#allocation2 + $0x70] sm:$0xff] 0.0
        %1358 = vst [vmem:[#allocation2 + $0x78] sm:$0xff] 0.0
        %1359 = vst [vmem:[#allocation2 + $0x80] sm:$0xff] 0.0
        %1360 = vst [vmem:[#allocation2 + $0x88] sm:$0xff] 0.0
        %1361 = vst [vmem:[#allocation2 + $0x90] sm:$0xff] 0.0
        %1362 = vst [vmem:[#allocation2 + $0x98] sm:$0xff] 0.0
        %1363 = vst [vmem:[#allocation2 + $0xa0] sm:$0xff] 0.0
        %1364 = vst [vmem:[#allocation2 + $0xa8] sm:$0xff] 0.0
        %1365 = vst [vmem:[#allocation2 + $0xb0] sm:$0xff] 0.0
        %1366 = vst [vmem:[#allocation2 + $0xb8] sm:$0xff] 0.0
        %1367 = vst [vmem:[#allocation2 + $0xc0] sm:$0xff] 0.0
        %1368 = vst [vmem:[#allocation2 + $0xc8] sm:$0xff] 0.0
        %1369 = vst [vmem:[#allocation2 + $0xd0] sm:$0xff] 0.0
        %1370 = vst [vmem:[#allocation2 + $0xd8] sm:$0xff] 0.0
        %1371 = vst [vmem:[#allocation2 + $0xe0] sm:$0xff] 0.0
        %1372 = vst [vmem:[#allocation2 + $0xe8] sm:$0xff] 0.0
        %1373 = vst [vmem:[#allocation2 + $0xf0] sm:$0xff] 0.0
        %1374 = vst [vmem:[#allocation2 + $0xf8] sm:$0xff] 0.0
        %1375 = vst [vmem:[#allocation2 + $0x100] sm:$0xff] 0.0
        %1376 = vst [vmem:[#allocation2 + $0x108] sm:$0xff] 0.0
        %1377 = vst [vmem:[#allocation2 + $0x110] sm:$0xff] 0.0
        %1378 = vst [vmem:[#allocation2 + $0x118] sm:$0xff] 0.0
        %1379 = vst [vmem:[#allocation2 + $0x120] sm:$0xff] 0.0
        %1380 = vst [vmem:[#allocation2 + $0x128] sm:$0xff] 0.0
        %1381 = vst [vmem:[#allocation2 + $0x130] sm:$0xff] 0.0
        %1382 = vst [vmem:[#allocation2 + $0x138] sm:$0xff] 0.0
        %1383 = vst [vmem:[#allocation2 + $0x140] sm:$0x3] 0.0
        %1384 = vst [vmem:[#allocation2 + $0x148] sm:$0x3] 0.0
        %vm1391 = vcmask 1040384
        %v1392 = vrot.slane %v1291, 7
        %v1393 = vrot.slane %v1293, 7
        %v1394 = vsel %vm1391, %v1392, %v1393
        %v1395 = vrot.slane %v1292, 7
        %v1396 = vrot.slane %v1294, 7
        %v1397 = vsel %vm1391, %v1395, %v1396
        %v1398 = vrot.slane %v1295, 7
        %v1399 = vsel %vm1391, %v1393, %v1398
        %v1400 = vrot.slane %v1296, 7
        %v1401 = vsel %vm1391, %v1396, %v1400
        %v1406 = vmax.f32 %v1289, %v1394
        %v1407 = vmax.f32 %v1290, %v1397
        %v1408 = vmax.f32 %v1291, %v1399
        %v1409 = vmax.f32 %v1292, %v1401
        %v1412 = vrot.slane %v1407, 7
        %v1413 = vsel %vm1391, %v1406, %v1412
        %v1415 = vlaneseq
        %vm1416 = vcmp.ge.s32.totalorder %v1415, 0
        %vm1417 = vcmp.lt.s32.totalorder %v1415, 256
        %vm1418 = vmand %vm1416, %vm1417
        %s1419 = scalar_lea.vmem [#allocation2], 35
        %1420 = vst.msk [vmem:[%s1419] ss:$8 sm:$0x3] %vm1418, %v1413
        %1421 = vst.msk [vmem:[%s1419] ss:$8 sm:$0x0] %vm1418, %v1413
        %vm1424 = vcmask 1046528
        %v1425 = vrot.slane %v1406, 1
        %v1426 = vrot.slane %v1408, 1
        %v1427 = vsel %vm1424, %v1425, %v1426
        %v1428 = vrot.slane %v1407, 1
        %v1429 = vrot.slane %v1409, 1
        %v1430 = vsel %vm1424, %v1428, %v1429
        %v1435 = vmax.f32 %v1406, %v1427
        %v1436 = vmax.f32 %v1407, %v1430
        %v1437 = vmax.f32 %v1408, %v1426
        %v1438 = vmax.f32 %v1409, %v1429
        %v1443 = vrot.slane %v1435, 4
        %v1444 = vrot.slane %v1436, 4
        %v1445 = vrot.slane %v1437, 4
        %v1446 = vsel %vm850, %v1443, %v1445
        %v1447 = vrot.slane %v1438, 4
        %v1448 = vsel %vm850, %v1444, %v1447
        %1455 = vst [vmem:[#allocation2 + $0x20] sm:$0xf0] %v1443
        %1456 = vst [vmem:[#allocation2 + $0x28] sm:$0xf0] %v1444
        %1457 = vst [vmem:[#allocation2 + $0x30] sm:$0xff] %v1446
        %1458 = vst [vmem:[#allocation2 + $0x38] sm:$0xff] %v1448
        %1459 = vst [vmem:[#allocation2 + $0x40] sm:$0x3] %v1445
        %1460 = vst [vmem:[#allocation2 + $0x48] sm:$0x3] %v1447
        %1461 = vst [vmem:[#allocation1] sm:$0xff] %v1408
        %1462 = vst [vmem:[#allocation1 + $0x9] sm:$0xff] %v1409
        %s1463 = scalar_lea.vmem [#allocation1], 6
        %v1464 = vld [vmem:[%s1463] ss:$9 sm:$0xff]
        %s1466 = scalar_lea.vmem [#allocation2], 66
        %1467 = vst.msk [vmem:[%s1466] ss:$8 sm:$0x3] %vm1418, %v1464
        %1468 = vst.msk [vmem:[%s1466] ss:$8 sm:$0x0] %vm1418, %v1464
        %v1475 = vrot.slane %v1299, 7
        %v1476 = vrot.slane %v1300, 7
        %v1477 = vrot.slane %v1301, 7
        %v1478 = vsel %vm1391, %v1475, %v1477
        %v1479 = vrot.slane %v1302, 7
        %v1480 = vsel %vm1391, %v1476, %v1479
        %v1481 = vrot.slane %v1303, 7
        %v1482 = vsel %vm1391, %v1477, %v1481
        %v1483 = vrot.slane %v1304, 7
        %v1484 = vsel %vm1391, %v1479, %v1483
        %v1491 = vmax.f32 %v1295, %v1475
        %v1492 = vmax.f32 %v1296, %v1476
        %v1493 = vmax.f32 %v1297, %v1478
        %v1494 = vmax.f32 %v1298, %v1480
        %v1495 = vmax.f32 %v1299, %v1482
        %v1496 = vmax.f32 %v1300, %v1484
        %1499 = vst [vmem:[#allocation1] sm:$0xff] %v1491
        %1500 = vst [vmem:[#allocation1 + $0x9] sm:$0xff] %v1492
        %s1501 = scalar_lea.vmem [#allocation1], 6
        %v1502 = vld [vmem:[%s1501] ss:$9 sm:$0xff]
        %s1504 = scalar_lea.vmem [#allocation2], 69
        %1505 = vst.msk [vmem:[%s1504] ss:$8 sm:$0x3] %vm1418, %v1502
        %1506 = vst.msk [vmem:[%s1504] ss:$8 sm:$0x0] %vm1418, %v1502
        %v1511 = vrot.slane %v1491, 1
        %v1512 = vrot.slane %v1493, 1
        %v1513 = vsel %vm1424, %v1511, %v1512
        %v1514 = vrot.slane %v1492, 1
        %v1515 = vrot.slane %v1494, 1
        %v1516 = vsel %vm1424, %v1514, %v1515
        %v1517 = vrot.slane %v1495, 1
        %v1518 = vsel %vm1424, %v1512, %v1517
        %v1519 = vrot.slane %v1496, 1
        %v1520 = vsel %vm1424, %v1515, %v1519
        %v1527 = vmax.f32 %v1491, %v1513
        %v1528 = vmax.f32 %v1492, %v1516
        %v1529 = vmax.f32 %v1493, %v1518
        %v1530 = vmax.f32 %v1494, %v1520
        %v1531 = vmax.f32 %v1495, %v1517
        %v1532 = vmax.f32 %v1496, %v1519
        %1533 = vst [vmem:[#allocation2 + $0x40] sm:$0xc0] %v1527
        %1534 = vst [vmem:[#allocation2 + $0x48] sm:$0xc0] %v1528
        %1535 = vst [vmem:[#allocation2 + $0x50] sm:$0xff] %v1529
        %1536 = vst [vmem:[#allocation2 + $0x58] sm:$0xff] %v1530
        %1537 = vst [vmem:[#allocation2 + $0x60] sm:$0xf] %v1531
        %1538 = vst [vmem:[#allocation2 + $0x68] sm:$0xf] %v1532
        %1539 = vst [vmem:[#allocation1] sm:$0xff] %v1495
        %1540 = vst [vmem:[#allocation1 + $0x9] sm:$0xff] %v1496
        %s1541 = scalar_lea.vmem [#allocation1], 4
        %v1542 = vld [vmem:[%s1541] ss:$9 sm:$0xff]
        %s1544 = scalar_lea.vmem [#allocation2], 100
        %1545 = vst.msk [vmem:[%s1544] ss:$8 sm:$0x3] %vm1418, %v1542
        %1546 = vst.msk [vmem:[%s1544] ss:$8 sm:$0x0] %vm1418, %v1542
        %v1553 = vrot.slane %v1307, 7
        %v1554 = vrot.slane %v1308, 7
        %v1555 = vrot.slane %v1309, 7
        %v1556 = vsel %vm1391, %v1553, %v1555
        %v1557 = vrot.slane %v1310, 7
        %v1558 = vsel %vm1391, %v1554, %v1557
        %v1559 = vrot.slane %v1311, 7
        %v1560 = vsel %vm1391, %v1555, %v1559
        %v1561 = vrot.slane %v1312, 7
        %v1562 = vsel %vm1391, %v1557, %v1561
        %v1569 = vmax.f32 %v1303, %v1553
        %v1570 = vmax.f32 %v1304, %v1554
        %v1571 = vmax.f32 %v1305, %v1556
        %v1572 = vmax.f32 %v1306, %v1558
        %v1573 = vmax.f32 %v1307, %v1560
        %v1574 = vmax.f32 %v1308, %v1562
        %1577 = vst [vmem:[#allocation1] sm:$0xff] %v1569
        %1578 = vst [vmem:[#allocation1 + $0x9] sm:$0xff] %v1570
        %s1579 = scalar_lea.vmem [#allocation1], 4
        %v1580 = vld [vmem:[%s1579] ss:$9 sm:$0xff]
        %s1582 = scalar_lea.vmem [#allocation2], 103
        %1583 = vst.msk [vmem:[%s1582] ss:$8 sm:$0x3] %vm1418, %v1580
        %1584 = vst.msk [vmem:[%s1582] ss:$8 sm:$0x0] %vm1418, %v1580
        %v1589 = vrot.slane %v1569, 1
        %v1590 = vrot.slane %v1571, 1
        %v1591 = vsel %vm1424, %v1589, %v1590
        %v1592 = vrot.slane %v1570, 1
        %v1593 = vrot.slane %v1572, 1
        %v1594 = vsel %vm1424, %v1592, %v1593
        %v1595 = vrot.slane %v1573, 1
        %v1596 = vsel %vm1424, %v1590, %v1595
        %v1597 = vrot.slane %v1574, 1
        %v1598 = vsel %vm1424, %v1593, %v1597
        %v1605 = vmax.f32 %v1569, %v1591
        %v1606 = vmax.f32 %v1570, %v1594
        %v1607 = vmax.f32 %v1571, %v1596
        %v1608 = vmax.f32 %v1572, %v1598
        %v1609 = vmax.f32 %v1573, %v1595
        %v1610 = vmax.f32 %v1574, %v1597
        %v1617 = vrot.slane %v1605, 4
        %v1618 = vrot.slane %v1607, 4
        %v1619 = vsel %vm850, %v1617, %v1618
        %v1620 = vrot.slane %v1606, 4
        %v1621 = vrot.slane %v1608, 4
        %v1622 = vsel %vm850, %v1620, %v1621
        %v1623 = vrot.slane %v1609, 4
        %v1624 = vsel %vm850, %v1618, %v1623
        %v1625 = vrot.slane %v1610, 4
        %v1626 = vsel %vm850, %v1621, %v1625
        %1631 = vst [vmem:[#allocation2 + $0x70] sm:$0xff] %v1619
        %1632 = vst [vmem:[#allocation2 + $0x78] sm:$0xff] %v1622
        %1633 = vst [vmem:[#allocation2 + $0x80] sm:$0x3f] %v1624
        %1634 = vst [vmem:[#allocation2 + $0x88] sm:$0x3f] %v1626
        %1635 = vst [vmem:[#allocation1] sm:$0xff] %v1573
        %1636 = vst [vmem:[#allocation1 + $0x9] sm:$0xff] %v1574
        %s1637 = scalar_lea.vmem [#allocation1], 2
        %v1638 = vld [vmem:[%s1637] ss:$9 sm:$0xff]
        %s1640 = scalar_lea.vmem [#allocation2], 134
        %1641 = vst.msk [vmem:[%s1640] ss:$8 sm:$0x3] %vm1418, %v1638
        %1642 = vst.msk [vmem:[%s1640] ss:$8 sm:$0x0] %vm1418, %v1638
        %v1647 = vrot.slane %v1315, 7
        %v1648 = vrot.slane %v1316, 7
        %v1649 = vrot.slane %v1317, 7
        %v1650 = vsel %vm1391, %v1647, %v1649
        %v1651 = vrot.slane %v1318, 7
        %v1652 = vsel %vm1391, %v1648, %v1651
        %v1659 = vmax.f32 %v1311, %v1647
        %v1660 = vmax.f32 %v1312, %v1648
        %v1661 = vmax.f32 %v1313, %v1650
        %v1662 = vmax.f32 %v1314, %v1652
        %v1663 = vmax.f32 %v1315, %v1649
        %v1664 = vmax.f32 %v1316, %v1651
        %1667 = vst [vmem:[#allocation1] sm:$0xff] %v1659
        %1668 = vst [vmem:[#allocation1 + $0x9] sm:$0xff] %v1660
        %s1669 = scalar_lea.vmem [#allocation1], 2
        %v1670 = vld [vmem:[%s1669] ss:$9 sm:$0xff]
        %s1672 = scalar_lea.vmem [#allocation2], 145
        %1673 = vst.msk [vmem:[%s1672] ss:$8 sm:$0x3] %vm1418, %v1670
        %1674 = vst.msk [vmem:[%s1672] ss:$8 sm:$0x0] %vm1418, %v1670
        %v1679 = vrot.slane %v1659, 1
        %v1680 = vrot.slane %v1661, 1
        %v1681 = vsel %vm1424, %v1679, %v1680
        %v1682 = vrot.slane %v1660, 1
        %v1683 = vrot.slane %v1662, 1
        %v1684 = vsel %vm1424, %v1682, %v1683
        %v1685 = vrot.slane %v1663, 1
        %v1686 = vsel %vm1424, %v1680, %v1685
        %v1687 = vrot.slane %v1664, 1
        %v1688 = vsel %vm1424, %v1683, %v1687
        %v1693 = vmax.f32 %v1659, %v1681
        %v1694 = vmax.f32 %v1660, %v1684
        %v1695 = vmax.f32 %v1661, %v1686
        %v1696 = vmax.f32 %v1662, %v1688
        %1697 = vst [vmem:[#allocation2 + $0x90] sm:$0xfc] %v1693
        %1698 = vst [vmem:[#allocation2 + $0x98] sm:$0xfc] %v1694
        %1699 = vst [vmem:[#allocation2 + $0xa0] sm:$0xff] %v1695
        %1700 = vst [vmem:[#allocation2 + $0xa8] sm:$0xff] %v1696
        %v1701 = vrot.slane %v1664, 7
        %v1702 = vsel %vm1391, %v1663, %v1701
        %s1704 = scalar_lea.vmem [#allocation2], 176
        %1705 = vst.msk [vmem:[%s1704] ss:$8 sm:$0x3] %vm1418, %v1702
        %1706 = vst.msk [vmem:[%s1704] ss:$8 sm:$0x0] %vm1418, %v1702
        %v1713 = vrot.slane %v1321, 7
        %v1714 = vrot.slane %v1323, 7
        %v1715 = vsel %vm1391, %v1713, %v1714
        %v1716 = vrot.slane %v1322, 7
        %v1717 = vrot.slane %v1324, 7
        %v1718 = vsel %vm1391, %v1716, %v1717
        %v1719 = vrot.slane %v1325, 7
        %v1720 = vsel %vm1391, %v1714, %v1719
        %v1721 = vrot.slane %v1326, 7
        %v1722 = vsel %vm1391, %v1717, %v1721
        %v1727 = vmax.f32 %v1319, %v1715
        %v1728 = vmax.f32 %v1320, %v1718
        %v1729 = vmax.f32 %v1321, %v1720
        %v1730 = vmax.f32 %v1322, %v1722
        %v1733 = vrot.slane %v1728, 7
        %v1734 = vsel %vm1391, %v1727, %v1733
        %s1736 = scalar_lea.vmem [#allocation2], 179
        %1737 = vst.msk [vmem:[%s1736] ss:$8 sm:$0x3] %vm1418, %v1734
        %1738 = vst.msk [vmem:[%s1736] ss:$8 sm:$0x0] %vm1418, %v1734
        %v1741 = vrot.slane %v1727, 1
        %v1742 = vrot.slane %v1729, 1
        %v1743 = vsel %vm1424, %v1741, %v1742
        %v1744 = vrot.slane %v1728, 1
        %v1745 = vrot.slane %v1730, 1
        %v1746 = vsel %vm1424, %v1744, %v1745
        %v1751 = vmax.f32 %v1727, %v1743
        %v1752 = vmax.f32 %v1728, %v1746
        %v1753 = vmax.f32 %v1729, %v1742
        %v1754 = vmax.f32 %v1730, %v1745
        %v1759 = vrot.slane %v1751, 4
        %v1760 = vrot.slane %v1752, 4
        %v1761 = vrot.slane %v1753, 4
        %v1762 = vsel %vm850, %v1759, %v1761
        %v1763 = vrot.slane %v1754, 4
        %v1764 = vsel %vm850, %v1760, %v1763
        %1771 = vst [vmem:[#allocation2 + $0xb0] sm:$0xf0] %v1759
        %1772 = vst [vmem:[#allocation2 + $0xb8] sm:$0xf0] %v1760
        %1773 = vst [vmem:[#allocation2 + $0xc0] sm:$0xff] %v1762
        %1774 = vst [vmem:[#allocation2 + $0xc8] sm:$0xff] %v1764
        %1775 = vst [vmem:[#allocation2 + $0xd0] sm:$0x3] %v1761
        %1776 = vst [vmem:[#allocation2 + $0xd8] sm:$0x3] %v1763
        %1777 = vst [vmem:[#allocation1] sm:$0xff] %v1729
        %1778 = vst [vmem:[#allocation1 + $0x9] sm:$0xff] %v1730
        %s1779 = scalar_lea.vmem [#allocation1], 6
        %v1780 = vld [vmem:[%s1779] ss:$9 sm:$0xff]
        %s1782 = scalar_lea.vmem [#allocation2], 210
        %1783 = vst.msk [vmem:[%s1782] ss:$8 sm:$0x3] %vm1418, %v1780
        %1784 = vst.msk [vmem:[%s1782] ss:$8 sm:$0x0] %vm1418, %v1780
        %v1791 = vrot.slane %v1329, 7
        %v1792 = vrot.slane %v1330, 7
        %v1793 = vrot.slane %v1331, 7
        %v1794 = vsel %vm1391, %v1791, %v1793
        %v1795 = vrot.slane %v1332, 7
        %v1796 = vsel %vm1391, %v1792, %v1795
        %v1797 = vrot.slane %v1333, 7
        %v1798 = vsel %vm1391, %v1793, %v1797
        %v1799 = vrot.slane %v1334, 7
        %v1800 = vsel %vm1391, %v1795, %v1799
        %v1807 = vmax.f32 %v1325, %v1791
        %v1808 = vmax.f32 %v1326, %v1792
        %v1809 = vmax.f32 %v1327, %v1794
        %v1810 = vmax.f32 %v1328, %v1796
        %v1811 = vmax.f32 %v1329, %v1798
        %v1812 = vmax.f32 %v1330, %v1800
        %1815 = vst [vmem:[#allocation1] sm:$0xff] %v1807
        %1816 = vst [vmem:[#allocation1 + $0x9] sm:$0xff] %v1808
        %s1817 = scalar_lea.vmem [#allocation1], 6
        %v1818 = vld [vmem:[%s1817] ss:$9 sm:$0xff]
        %s1820 = scalar_lea.vmem [#allocation2], 213
        %1821 = vst.msk [vmem:[%s1820] ss:$8 sm:$0x3] %vm1418, %v1818
        %1822 = vst.msk [vmem:[%s1820] ss:$8 sm:$0x0] %vm1418, %v1818
        %v1827 = vrot.slane %v1807, 1
        %v1828 = vrot.slane %v1809, 1
        %v1829 = vsel %vm1424, %v1827, %v1828
        %v1830 = vrot.slane %v1808, 1
        %v1831 = vrot.slane %v1810, 1
        %v1832 = vsel %vm1424, %v1830, %v1831
        %v1833 = vrot.slane %v1811, 1
        %v1834 = vsel %vm1424, %v1828, %v1833
        %v1835 = vrot.slane %v1812, 1
        %v1836 = vsel %vm1424, %v1831, %v1835
        %v1843 = vmax.f32 %v1807, %v1829
        %v1844 = vmax.f32 %v1808, %v1832
        %v1845 = vmax.f32 %v1809, %v1834
        %v1846 = vmax.f32 %v1810, %v1836
        %v1847 = vmax.f32 %v1811, %v1833
        %v1848 = vmax.f32 %v1812, %v1835
        %1849 = vst [vmem:[#allocation2 + $0xd0] sm:$0xc0] %v1843
        %1850 = vst [vmem:[#allocation2 + $0xd8] sm:$0xc0] %v1844
        %1851 = vst [vmem:[#allocation2 + $0xe0] sm:$0xff] %v1845
        %1852 = vst [vmem:[#allocation2 + $0xe8] sm:$0xff] %v1846
        %1853 = vst [vmem:[#allocation2 + $0xf0] sm:$0xf] %v1847
        %1854 = vst [vmem:[#allocation2 + $0xf8] sm:$0xf] %v1848
        %1855 = vst [vmem:[#allocation1] sm:$0xff] %v1811
        %1856 = vst [vmem:[#allocation1 + $0x9] sm:$0xff] %v1812
        %s1857 = scalar_lea.vmem [#allocation1], 4
        %v1858 = vld [vmem:[%s1857] ss:$9 sm:$0xff]
        %s1860 = scalar_lea.vmem [#allocation2], 244
        %1861 = vst.msk [vmem:[%s1860] ss:$8 sm:$0x3] %vm1418, %v1858
        %1862 = vst.msk [vmem:[%s1860] ss:$8 sm:$0x0] %vm1418, %v1858
        %v1869 = vrot.slane %v1337, 7
        %v1870 = vrot.slane %v1338, 7
        %v1871 = vrot.slane %v1339, 7
        %v1872 = vsel %vm1391, %v1869, %v1871
        %v1873 = vrot.slane %v1340, 7
        %v1874 = vsel %vm1391, %v1870, %v1873
        %v1875 = vrot.slane %v1341, 7
        %v1876 = vsel %vm1391, %v1871, %v1875
        %v1877 = vrot.slane %v1342, 7
        %v1878 = vsel %vm1391, %v1873, %v1877
        %v1885 = vmax.f32 %v1333, %v1869
        %v1886 = vmax.f32 %v1334, %v1870
        %v1887 = vmax.f32 %v1335, %v1872
        %v1888 = vmax.f32 %v1336, %v1874
        %v1889 = vmax.f32 %v1337, %v1876
        %v1890 = vmax.f32 %v1338, %v1878
        %1893 = vst [vmem:[#allocation1] sm:$0xff] %v1885
        %1894 = vst [vmem:[#allocation1 + $0x9] sm:$0xff] %v1886
        %s1895 = scalar_lea.vmem [#allocation1], 4
        %v1896 = vld [vmem:[%s1895] ss:$9 sm:$0xff]
        %s1898 = scalar_lea.vmem [#allocation2], 247
        %1899 = vst.msk [vmem:[%s1898] ss:$8 sm:$0x3] %vm1418, %v1896
        %1900 = vst.msk [vmem:[%s1898] ss:$8 sm:$0x0] %vm1418, %v1896
        %v1905 = vrot.slane %v1885, 1
        %v1906 = vrot.slane %v1887, 1
        %v1907 = vsel %vm1424, %v1905, %v1906
        %v1908 = vrot.slane %v1886, 1
        %v1909 = vrot.slane %v1888, 1
        %v1910 = vsel %vm1424, %v1908, %v1909
        %v1911 = vrot.slane %v1889, 1
        %v1912 = vsel %vm1424, %v1906, %v1911
        %v1913 = vrot.slane %v1890, 1
        %v1914 = vsel %vm1424, %v1909, %v1913
        %v1921 = vmax.f32 %v1885, %v1907
        %v1922 = vmax.f32 %v1886, %v1910
        %v1923 = vmax.f32 %v1887, %v1912
        %v1924 = vmax.f32 %v1888, %v1914
        %v1925 = vmax.f32 %v1889, %v1911
        %v1926 = vmax.f32 %v1890, %v1913
        %v1933 = vrot.slane %v1921, 4
        %v1934 = vrot.slane %v1923, 4
        %v1935 = vsel %vm850, %v1933, %v1934
        %v1936 = vrot.slane %v1922, 4
        %v1937 = vrot.slane %v1924, 4
        %v1938 = vsel %vm850, %v1936, %v1937
        %v1939 = vrot.slane %v1925, 4
        %v1940 = vsel %vm850, %v1934, %v1939
        %v1941 = vrot.slane %v1926, 4
        %v1942 = vsel %vm850, %v1937, %v1941
        %1947 = vst [vmem:[#allocation2 + $0x100] sm:$0xff] %v1935
        %1948 = vst [vmem:[#allocation2 + $0x108] sm:$0xff] %v1938
        %1949 = vst [vmem:[#allocation2 + $0x110] sm:$0x3f] %v1940
        %1950 = vst [vmem:[#allocation2 + $0x118] sm:$0x3f] %v1942
        %1951 = vst [vmem:[#allocation1] sm:$0xff] %v1889
        %1952 = vst [vmem:[#allocation1 + $0x9] sm:$0xff] %v1890
        %s1953 = scalar_lea.vmem [#allocation1], 2
        %v1954 = vld [vmem:[%s1953] ss:$9 sm:$0xff]
        %s1956 = scalar_lea.vmem [#allocation2], 278
        %1957 = vst.msk [vmem:[%s1956] ss:$8 sm:$0x3] %vm1418, %v1954
        %1958 = vst.msk [vmem:[%s1956] ss:$8 sm:$0x0] %vm1418, %v1954
        %v1959 = vld [vmem:[#allocation2] sm:$0xff]
        %v1960 = vld [vmem:[#allocation2 + $0x8] sm:$0xff]
        %v1961 = vld [vmem:[#allocation2 + $0x10] sm:$0xff]
        %v1962 = vld [vmem:[#allocation2 + $0x18] sm:$0xff]
        %v1963 = vld [vmem:[#allocation2 + $0x20] sm:$0xff]
        %v1964 = vld [vmem:[#allocation2 + $0x28] sm:$0xff]
        %v1965 = vld [vmem:[#allocation2 + $0x30] sm:$0xff]
        %v1966 = vld [vmem:[#allocation2 + $0x38] sm:$0xff]
        %v1967 = vld [vmem:[#allocation2 + $0x40] sm:$0xff]
        %v1968 = vld [vmem:[#allocation2 + $0x48] sm:$0xff]
        %v1969 = vld [vmem:[#allocation2 + $0x50] sm:$0xff]
        %v1970 = vld [vmem:[#allocation2 + $0x58] sm:$0xff]
        %v1971 = vld [vmem:[#allocation2 + $0x60] sm:$0xff]
        %v1972 = vld [vmem:[#allocation2 + $0x68] sm:$0xff]
        %v1973 = vld [vmem:[#allocation2 + $0x70] sm:$0xff]
        %v1974 = vld [vmem:[#allocation2 + $0x78] sm:$0xff]
        %v1975 = vld [vmem:[#allocation2 + $0x80] sm:$0xff]
        %v1976 = vld [vmem:[#allocation2 + $0x88] sm:$0xff]
        %v1977 = vld [vmem:[#allocation2 + $0x90] sm:$0xff]
        %v1978 = vld [vmem:[#allocation2 + $0x98] sm:$0xff]
        %v1979 = vld [vmem:[#allocation2 + $0xa0] sm:$0xff]
        %v1980 = vld [vmem:[#allocation2 + $0xa8] sm:$0xff]
        %v1981 = vld [vmem:[#allocation2 + $0xb0] sm:$0xff]
        %v1982 = vld [vmem:[#allocation2 + $0xb8] sm:$0xff]
        %v1983 = vld [vmem:[#allocation2 + $0xc0] sm:$0xff]
        %v1984 = vld [vmem:[#allocation2 + $0xc8] sm:$0xff]
        %v1985 = vld [vmem:[#allocation2 + $0xd0] sm:$0xff]
        %v1986 = vld [vmem:[#allocation2 + $0xd8] sm:$0xff]
        %v1987 = vld [vmem:[#allocation2 + $0xe0] sm:$0xff]
        %v1988 = vld [vmem:[#allocation2 + $0xe8] sm:$0xff]
        %v1989 = vld [vmem:[#allocation2 + $0xf0] sm:$0xf]
        %v1990 = vld [vmem:[#allocation2 + $0xf8] sm:$0xf]
        %v1991 = vpack.c.bf16 %v1961, %v1959
        %v1992 = vpack.c.bf16 %v1962, %v1960
        %v1993 = vpack.c.bf16 %v1965, %v1963
        %v1994 = vpack.c.bf16 %v1966, %v1964
        %v1995 = vpack.c.bf16 %v1969, %v1967
        %v1996 = vpack.c.bf16 %v1970, %v1968
        %v1997 = vpack.c.bf16 %v1973, %v1971
        %v1998 = vpack.c.bf16 %v1974, %v1972
        %v1999 = vpack.c.bf16 %v1977, %v1975
        %v2000 = vpack.c.bf16 %v1978, %v1976
        %v2001 = vpack.c.bf16 %v1981, %v1979
        %v2002 = vpack.c.bf16 %v1982, %v1980
        %v2003 = vpack.c.bf16 %v1985, %v1983
        %v2004 = vpack.c.bf16 %v1986, %v1984
        %v2005 = vpack.c.bf16 %v1989, %v1987
        %v2006 = vpack.c.bf16 %v1990, %v1988
        %v2007 = vld [vmem:[%s5] sm:$0xff]
        %v2008 = vld [vmem:[%s5 + $0x8] sm:$0xf]
        %v2009 = vld [vmem:[%s5 + $0xc] sm:$0xff]
        %v2010 = vld [vmem:[%s5 + $0x14] sm:$0xf]
        %v2011 = vld [vmem:[%s5 + $0x18] sm:$0xff]
        %v2012 = vld [vmem:[%s5 + $0x20] sm:$0xf]
        %v2013 = vld [vmem:[%s5 + $0x24] sm:$0xff]
        %v2014 = vld [vmem:[%s5 + $0x2c] sm:$0xf]
        %v2015 = vld [vmem:[%s5 + $0x30] sm:$0xff]
        %v2016 = vld [vmem:[%s5 + $0x38] sm:$0xf]
        %v2017 = vld [vmem:[%s5 + $0x3c] sm:$0xff]
        %v2018 = vld [vmem:[%s5 + $0x44] sm:$0xf]
        %v2019 = vld [vmem:[%s5 + $0x48] sm:$0xff]
        %v2020 = vld [vmem:[%s5 + $0x50] sm:$0xf]
        %v2021 = vld [vmem:[%s5 + $0x54] sm:$0xff]
        %v2022 = vld [vmem:[%s5 + $0x5c] sm:$0xf]
        %v2023 = vld [vmem:[%s5 + $0x60] sm:$0xff]
        %v2024 = vld [vmem:[%s5 + $0x68] sm:$0xf]
        %v2025 = vld [vmem:[%s5 + $0x6c] sm:$0xff]
        %v2026 = vld [vmem:[%s5 + $0x74] sm:$0xf]
        %v2027 = vld [vmem:[%s5 + $0x78] sm:$0xff]
        %v2028 = vld [vmem:[%s5 + $0x80] sm:$0xf]
        %v2029 = vld [vmem:[%s5 + $0x84] sm:$0xff]
        %v2030 = vld [vmem:[%s5 + $0x8c] sm:$0xf]
        %v2031 = vld [vmem:[%s5 + $0x90] sm:$0xff]
        %v2032 = vld [vmem:[%s5 + $0x98] sm:$0xf]
        %v2033 = vld [vmem:[%s5 + $0x9c] sm:$0xff]
        %v2034 = vld [vmem:[%s5 + $0xa4] sm:$0xf]
        %v2035 = vld [vmem:[%s5 + $0xa8] sm:$0xff]
        %v2036 = vld [vmem:[%s5 + $0xb0] sm:$0xf]
        %v2037 = vld [vmem:[%s5 + $0xb4] sm:$0xff]
        %v2038 = vld [vmem:[%s5 + $0xbc] sm:$0xf]
        %v2039 = vld [vmem:[%s5 + $0xc0] sm:$0xff]
        %v2040 = vld [vmem:[%s5 + $0xc8] sm:$0xf]
        %v2041 = vld [vmem:[%s5 + $0xcc] sm:$0xff]
        %v2042 = vld [vmem:[%s5 + $0xd4] sm:$0xf]
        %v2043 = vld [vmem:[%s5 + $0xd8] sm:$0xff]
        %v2044 = vld [vmem:[%s5 + $0xe0] sm:$0xf]
        %v2045 = vld [vmem:[%s5 + $0xe4] sm:$0xff]
        %v2046 = vld [vmem:[%s5 + $0xec] sm:$0xf]
        %v2047 = vld [vmem:[%s5 + $0xf0] sm:$0xff]
        %v2048 = vld [vmem:[%s5 + $0xf8] sm:$0xf]
        %v2049 = vld [vmem:[%s5 + $0xfc] sm:$0xff]
        %v2050 = vld [vmem:[%s5 + $0x104] sm:$0xf]
        %v2051 = vld [vmem:[%s5 + $0x108] sm:$0xff]
        %v2052 = vld [vmem:[%s5 + $0x110] sm:$0xf]
        %v2053 = vld [vmem:[%s5 + $0x114] sm:$0xff]
        %v2054 = vld [vmem:[%s5 + $0x11c] sm:$0xf]
        %v2055 = vld [vmem:[%s5 + $0x120] sm:$0xff]
        %v2056 = vld [vmem:[%s5 + $0x128] sm:$0xf]
        %v2057 = vld [vmem:[%s5 + $0x12c] sm:$0xff]
        %v2058 = vld [vmem:[%s5 + $0x134] sm:$0xf]
        %v2059 = vld [vmem:[%s5 + $0x138] sm:$0xff]
        %v2060 = vld [vmem:[%s5 + $0x140] sm:$0xf]
        %v2061 = vld [vmem:[%s5 + $0x144] sm:$0xff]
        %v2062 = vld [vmem:[%s5 + $0x14c] sm:$0xf]
        %v2063 = vld [vmem:[%s5 + $0x150] sm:$0xff]
        %v2064 = vld [vmem:[%s5 + $0x158] sm:$0xf]
        %v2065 = vld [vmem:[%s5 + $0x15c] sm:$0xff]
        %v2066 = vld [vmem:[%s5 + $0x164] sm:$0xf]
        %v2067 = vld [vmem:[%s5 + $0x168] sm:$0xff]
        %v2068 = vld [vmem:[%s5 + $0x170] sm:$0xf]
        %v2069 = vld [vmem:[%s5 + $0x174] sm:$0xff]
        %v2070 = vld [vmem:[%s5 + $0x17c] sm:$0xf]
        %v2071 = vld [vmem:[#allocation2] sm:$0xfe]
        %v2072 = vld [vmem:[#allocation2 + $0x8] sm:$0xfe]
        %v2073 = vld [vmem:[#allocation2 + $0xf0] sm:$0x1f]
        %v2074 = vld [vmem:[#allocation2 + $0xf8] sm:$0x1f]
        %v2075 = vpack.c.bf16 %v1961, %v2071
        %v2076 = vpack.c.bf16 %v1962, %v2072
        %v2077 = vpack.c.bf16 %v2073, %v1987
        %v2078 = vpack.c.bf16 %v2074, %v1988
        %s2079 = scalar_lea.vmem %s5, 384
        %v2080 = vld [vmem:[%s2079] sm:$0xff]
        %v2081 = vld [vmem:[%s2079 + $0x8] sm:$0xf]
        %v2082 = vld [vmem:[%s2079 + $0xc] sm:$0xff]
        %v2083 = vld [vmem:[%s2079 + $0x14] sm:$0xf]
        %v2084 = vld [vmem:[%s2079 + $0x18] sm:$0xff]
        %v2085 = vld [vmem:[%s2079 + $0x20] sm:$0xf]
        %v2086 = vld [vmem:[%s2079 + $0x24] sm:$0xff]
        %v2087 = vld [vmem:[%s2079 + $0x2c] sm:$0xf]
        %v2088 = vld [vmem:[%s2079 + $0x30] sm:$0xff]
        %v2089 = vld [vmem:[%s2079 + $0x38] sm:$0xf]
        %v2090 = vld [vmem:[%s2079 + $0x3c] sm:$0xff]
        %v2091 = vld [vmem:[%s2079 + $0x44] sm:$0xf]
        %v2092 = vld [vmem:[%s2079 + $0x48] sm:$0xff]
        %v2093 = vld [vmem:[%s2079 + $0x50] sm:$0xf]
        %v2094 = vld [vmem:[%s2079 + $0x54] sm:$0xff]
        %v2095 = vld [vmem:[%s2079 + $0x5c] sm:$0xf]
        %v2096 = vld [vmem:[%s2079 + $0x60] sm:$0xff]
        %v2097 = vld [vmem:[%s2079 + $0x68] sm:$0xf]
        %v2098 = vld [vmem:[%s2079 + $0x6c] sm:$0xff]
        %v2099 = vld [vmem:[%s2079 + $0x74] sm:$0xf]
        %v2100 = vld [vmem:[%s2079 + $0x78] sm:$0xff]
        %v2101 = vld [vmem:[%s2079 + $0x80] sm:$0xf]
        %v2102 = vld [vmem:[%s2079 + $0x84] sm:$0xff]
        %v2103 = vld [vmem:[%s2079 + $0x8c] sm:$0xf]
        %v2104 = vld [vmem:[%s2079 + $0x90] sm:$0xff]
        %v2105 = vld [vmem:[%s2079 + $0x98] sm:$0xf]
        %v2106 = vld [vmem:[%s2079 + $0x9c] sm:$0xff]
        %v2107 = vld [vmem:[%s2079 + $0xa4] sm:$0xf]
        %v2108 = vld [vmem:[%s2079 + $0xa8] sm:$0xff]
        %v2109 = vld [vmem:[%s2079 + $0xb0] sm:$0xf]
        %v2110 = vld [vmem:[%s2079 + $0xb4] sm:$0xff]
        %v2111 = vld [vmem:[%s2079 + $0xbc] sm:$0xf]
        %v2112 = vld [vmem:[%s2079 + $0xc0] sm:$0xff]
        %v2113 = vld [vmem:[%s2079 + $0xc8] sm:$0xf]
        %v2114 = vld [vmem:[%s2079 + $0xcc] sm:$0xff]
        %v2115 = vld [vmem:[%s2079 + $0xd4] sm:$0xf]
        %v2116 = vld [vmem:[%s2079 + $0xd8] sm:$0xff]
        %v2117 = vld [vmem:[%s2079 + $0xe0] sm:$0xf]
        %v2118 = vld [vmem:[%s2079 + $0xe4] sm:$0xff]
        %v2119 = vld [vmem:[%s2079 + $0xec] sm:$0xf]
        %v2120 = vld [vmem:[%s2079 + $0xf0] sm:$0xff]
        %v2121 = vld [vmem:[%s2079 + $0xf8] sm:$0xf]
        %v2122 = vld [vmem:[%s2079 + $0xfc] sm:$0xff]
        %v2123 = vld [vmem:[%s2079 + $0x104] sm:$0xf]
        %v2124 = vld [vmem:[%s2079 + $0x108] sm:$0xff]
        %v2125 = vld [vmem:[%s2079 + $0x110] sm:$0xf]
        %v2126 = vld [vmem:[%s2079 + $0x114] sm:$0xff]
        %v2127 = vld [vmem:[%s2079 + $0x11c] sm:$0xf]
        %v2128 = vld [vmem:[%s2079 + $0x120] sm:$0xff]
        %v2129 = vld [vmem:[%s2079 + $0x128] sm:$0xf]
        %v2130 = vld [vmem:[%s2079 + $0x12c] sm:$0xff]
        %v2131 = vld [vmem:[%s2079 + $0x134] sm:$0xf]
        %v2132 = vld [vmem:[%s2079 + $0x138] sm:$0xff]
        %v2133 = vld [vmem:[%s2079 + $0x140] sm:$0xf]
        %v2134 = vld [vmem:[%s2079 + $0x144] sm:$0xff]
        %v2135 = vld [vmem:[%s2079 + $0x14c] sm:$0xf]
        %v2136 = vld [vmem:[%s2079 + $0x150] sm:$0xff]
        %v2137 = vld [vmem:[%s2079 + $0x158] sm:$0xf]
        %v2138 = vld [vmem:[%s2079 + $0x15c] sm:$0xff]
        %v2139 = vld [vmem:[%s2079 + $0x164] sm:$0xf]
        %v2140 = vld [vmem:[%s2079 + $0x168] sm:$0xff]
        %v2141 = vld [vmem:[%s2079 + $0x170] sm:$0xf]
        %v2142 = vld [vmem:[%s2079 + $0x174] sm:$0xff]
        %v2143 = vld [vmem:[%s2079 + $0x17c] sm:$0xf]
        %vm2144 = vsmask.f32 7424
        %v2146 = vshrl.u32 %v2075, 16
        %v2148 = vshll.u32 %v2075, 16
        %v2150 = vrot.slane %v2148, 1
        %v2151 = vor.u32 %v2146, %v2150
        %v2153 = vshll.u32 %v1993, 16
        %v2155 = vrot.slane %v2153, 1
        %v2156 = vsel %vm2144, %v2151, %v2155
        %v2158 = vshrl.u32 %v2076, 16
        %v2160 = vshll.u32 %v2076, 16
        %v2162 = vrot.slane %v2160, 1
        %v2163 = vor.u32 %v2158, %v2162
        %v2165 = vshll.u32 %v1994, 16
        %v2167 = vrot.slane %v2165, 1
        %v2168 = vsel %vm2144, %v2163, %v2167
        %v2169 = vshrl.u32 %v1993, 16
        %v2171 = vor.u32 %v2169, %v2155
        %v2173 = vshll.u32 %v1995, 16
        %v2175 = vrot.slane %v2173, 1
        %v2176 = vsel %vm2144, %v2171, %v2175
        %v2177 = vshrl.u32 %v1994, 16
        %v2179 = vor.u32 %v2177, %v2167
        %v2181 = vshll.u32 %v1996, 16
        %v2183 = vrot.slane %v2181, 1
        %v2184 = vsel %vm2144, %v2179, %v2183
        %v2185 = vshrl.u32 %v1995, 16
        %v2187 = vor.u32 %v2185, %v2175
        %v2189 = vshll.u32 %v1997, 16
        %v2191 = vrot.slane %v2189, 1
        %v2192 = vsel %vm2144, %v2187, %v2191
        %v2193 = vshrl.u32 %v1996, 16
        %v2195 = vor.u32 %v2193, %v2183
        %v2197 = vshll.u32 %v1998, 16
        %v2199 = vrot.slane %v2197, 1
        %v2200 = vsel %vm2144, %v2195, %v2199
        %v2201 = vshrl.u32 %v1997, 16
        %v2203 = vor.u32 %v2201, %v2191
        %v2205 = vshll.u32 %v1999, 16
        %v2207 = vrot.slane %v2205, 1
        %v2208 = vsel %vm2144, %v2203, %v2207
        %v2209 = vshrl.u32 %v1998, 16
        %v2211 = vor.u32 %v2209, %v2199
        %v2213 = vshll.u32 %v2000, 16
        %v2215 = vrot.slane %v2213, 1
        %v2216 = vsel %vm2144, %v2211, %v2215
        %v2217 = vshrl.u32 %v1999, 16
        %v2219 = vor.u32 %v2217, %v2207
        %v2221 = vshll.u32 %v2001, 16
        %v2223 = vrot.slane %v2221, 1
        %v2224 = vsel %vm2144, %v2219, %v2223
        %v2225 = vshrl.u32 %v2000, 16
        %v2227 = vor.u32 %v2225, %v2215
        %v2229 = vshll.u32 %v2002, 16
        %v2231 = vrot.slane %v2229, 1
        %v2232 = vsel %vm2144, %v2227, %v2231
        %v2233 = vshrl.u32 %v2001, 16
        %v2235 = vor.u32 %v2233, %v2223
        %v2237 = vshll.u32 %v2003, 16
        %v2239 = vrot.slane %v2237, 1
        %v2240 = vsel %vm2144, %v2235, %v2239
        %v2241 = vshrl.u32 %v2002, 16
        %v2243 = vor.u32 %v2241, %v2231
        %v2245 = vshll.u32 %v2004, 16
        %v2247 = vrot.slane %v2245, 1
        %v2248 = vsel %vm2144, %v2243, %v2247
        %v2249 = vshrl.u32 %v2003, 16
        %v2251 = vor.u32 %v2249, %v2239
        %v2253 = vshll.u32 %v2077, 16
        %v2255 = vrot.slane %v2253, 1
        %v2256 = vsel %vm2144, %v2251, %v2255
        %v2257 = vshrl.u32 %v2004, 16
        %v2259 = vor.u32 %v2257, %v2247
        %v2261 = vshll.u32 %v2078, 16
        %v2263 = vrot.slane %v2261, 1
        %v2264 = vsel %vm2144, %v2259, %v2263
        %v2265 = vshrl.u32 %v2077, 16
        %v2267 = vor.u32 %v2265, %v2255
        %v2268 = vshrl.u32 %v2078, 16
        %v2270 = vor.u32 %v2268, %v2263
        %v2351 = vunpack.c.l.b16 %v2080
        %v2352 = vunpack.c.h.b16 %v2080
        %v2353 = vunpack.c.l.b16 %v2081
        %v2354 = vunpack.c.l.b16 %v2082
        %v2355 = vunpack.c.h.b16 %v2082
        %v2356 = vunpack.c.l.b16 %v2083
        %v2357 = vunpack.c.l.b16 %v2084
        %v2358 = vunpack.c.h.b16 %v2084
        %v2359 = vunpack.c.l.b16 %v2085
        %v2360 = vunpack.c.l.b16 %v2086
        %v2361 = vunpack.c.h.b16 %v2086
        %v2362 = vunpack.c.l.b16 %v2087
        %v2363 = vunpack.c.l.b16 %v2088
        %v2364 = vunpack.c.h.b16 %v2088
        %v2365 = vunpack.c.l.b16 %v2089
        %v2366 = vunpack.c.l.b16 %v2090
        %v2367 = vunpack.c.h.b16 %v2090
        %v2368 = vunpack.c.l.b16 %v2091
        %v2369 = vunpack.c.l.b16 %v2092
        %v2370 = vunpack.c.h.b16 %v2092
        %v2371 = vunpack.c.l.b16 %v2093
        %v2372 = vunpack.c.l.b16 %v2094
        %v2373 = vunpack.c.h.b16 %v2094
        %v2374 = vunpack.c.l.b16 %v2095
        %v2375 = vunpack.c.l.b16 %v2096
        %v2376 = vunpack.c.h.b16 %v2096
        %v2377 = vunpack.c.l.b16 %v2097
        %v2378 = vunpack.c.l.b16 %v2098
        %v2379 = vunpack.c.h.b16 %v2098
        %v2380 = vunpack.c.l.b16 %v2099
        %v2381 = vunpack.c.l.b16 %v2100
        %v2382 = vunpack.c.h.b16 %v2100
        %v2383 = vunpack.c.l.b16 %v2101
        %v2384 = vunpack.c.l.b16 %v2102
        %v2385 = vunpack.c.h.b16 %v2102
        %v2386 = vunpack.c.l.b16 %v2103
        %v2387 = vunpack.c.l.b16 %v2104
        %v2388 = vunpack.c.h.b16 %v2104
        %v2389 = vunpack.c.l.b16 %v2105
        %v2390 = vunpack.c.l.b16 %v2106
        %v2391 = vunpack.c.h.b16 %v2106
        %v2392 = vunpack.c.l.b16 %v2107
        %v2393 = vunpack.c.l.b16 %v2108
        %v2394 = vunpack.c.h.b16 %v2108
        %v2395 = vunpack.c.l.b16 %v2109
        %v2396 = vunpack.c.l.b16 %v2110
        %v2397 = vunpack.c.h.b16 %v2110
        %v2398 = vunpack.c.l.b16 %v2111
        %v2399 = vunpack.c.l.b16 %v2112
        %v2400 = vunpack.c.h.b16 %v2112
        %v2401 = vunpack.c.l.b16 %v2113
        %v2402 = vunpack.c.l.b16 %v2114
        %v2403 = vunpack.c.h.b16 %v2114
        %v2404 = vunpack.c.l.b16 %v2115
        %v2405 = vunpack.c.l.b16 %v2116
        %v2406 = vunpack.c.h.b16 %v2116
        %v2407 = vunpack.c.l.b16 %v2117
        %v2408 = vunpack.c.l.b16 %v2118
        %v2409 = vunpack.c.h.b16 %v2118
        %v2410 = vunpack.c.l.b16 %v2119
        %v2411 = vunpack.c.l.b16 %v2120
        %v2412 = vunpack.c.h.b16 %v2120
        %v2413 = vunpack.c.l.b16 %v2121
        %v2414 = vunpack.c.l.b16 %v2122
        %v2415 = vunpack.c.h.b16 %v2122
        %v2416 = vunpack.c.l.b16 %v2123
        %v2417 = vunpack.c.l.b16 %v2124
        %v2418 = vunpack.c.h.b16 %v2124
        %v2419 = vunpack.c.l.b16 %v2125
        %v2420 = vunpack.c.l.b16 %v2126
        %v2421 = vunpack.c.h.b16 %v2126
        %v2422 = vunpack.c.l.b16 %v2127
        %v2423 = vunpack.c.l.b16 %v2128
        %v2424 = vunpack.c.h.b16 %v2128
        %v2425 = vunpack.c.l.b16 %v2129
        %v2426 = vunpack.c.l.b16 %v2130
        %v2427 = vunpack.c.h.b16 %v2130
        %v2428 = vunpack.c.l.b16 %v2131
        %v2429 = vunpack.c.l.b16 %v2132
        %v2430 = vunpack.c.h.b16 %v2132
        %v2431 = vunpack.c.l.b16 %v2133
        %v2432 = vunpack.c.l.b16 %v2134
        %v2433 = vunpack.c.h.b16 %v2134
        %v2434 = vunpack.c.l.b16 %v2135
        %v2435 = vunpack.c.l.b16 %v2136
        %v2436 = vunpack.c.h.b16 %v2136
        %v2437 = vunpack.c.l.b16 %v2137
        %v2438 = vunpack.c.l.b16 %v2138
        %v2439 = vunpack.c.h.b16 %v2138
        %v2440 = vunpack.c.l.b16 %v2139
        %v2441 = vunpack.c.l.b16 %v2140
        %v2442 = vunpack.c.h.b16 %v2140
        %v2443 = vunpack.c.l.b16 %v2141
        %v2444 = vunpack.c.l.b16 %v2142
        %v2445 = vunpack.c.h.b16 %v2142
        %v2446 = vunpack.c.l.b16 %v2143
        %v2447 = vpack.c.b16 %v2354, %v2351
        %v2448 = vpack.c.b16 %v2355, %v2352
        %v2449 = vpack.c.b16 %v2356, %v2353
        %v2450 = vpack.c.b16 %v2360, %v2357
        %v2451 = vpack.c.b16 %v2361, %v2358
        %v2452 = vpack.c.b16 %v2362, %v2359
        %v2453 = vpack.c.b16 %v2366, %v2363
        %v2454 = vpack.c.b16 %v2367, %v2364
        %v2455 = vpack.c.b16 %v2368, %v2365
        %v2456 = vpack.c.b16 %v2372, %v2369
        %v2457 = vpack.c.b16 %v2373, %v2370
        %v2458 = vpack.c.b16 %v2374, %v2371
        %v2459 = vpack.c.b16 %v2378, %v2375
        %v2460 = vpack.c.b16 %v2379, %v2376
        %v2461 = vpack.c.b16 %v2380, %v2377
        %v2462 = vpack.c.b16 %v2384, %v2381
        %v2463 = vpack.c.b16 %v2385, %v2382
        %v2464 = vpack.c.b16 %v2386, %v2383
        %v2465 = vpack.c.b16 %v2390, %v2387
        %v2466 = vpack.c.b16 %v2391, %v2388
        %v2467 = vpack.c.b16 %v2392, %v2389
        %v2468 = vpack.c.b16 %v2396, %v2393
        %v2469 = vpack.c.b16 %v2397, %v2394
        %v2470 = vpack.c.b16 %v2398, %v2395
        %v2471 = vpack.c.b16 %v2402, %v2399
        %v2472 = vpack.c.b16 %v2403, %v2400
        %v2473 = vpack.c.b16 %v2404, %v2401
        %v2474 = vpack.c.b16 %v2408, %v2405
        %v2475 = vpack.c.b16 %v2409, %v2406
        %v2476 = vpack.c.b16 %v2410, %v2407
        %v2477 = vpack.c.b16 %v2414, %v2411
        %v2478 = vpack.c.b16 %v2415, %v2412
        %v2479 = vpack.c.b16 %v2416, %v2413
        %v2480 = vpack.c.b16 %v2420, %v2417
        %v2481 = vpack.c.b16 %v2421, %v2418
        %v2482 = vpack.c.b16 %v2422, %v2419
        %v2483 = vpack.c.b16 %v2426, %v2423
        %v2484 = vpack.c.b16 %v2427, %v2424
        %v2485 = vpack.c.b16 %v2428, %v2425
        %v2486 = vpack.c.b16 %v2432, %v2429
        %v2487 = vpack.c.b16 %v2433, %v2430
        %v2488 = vpack.c.b16 %v2434, %v2431
        %v2489 = vpack.c.b16 %v2438, %v2435
        %v2490 = vpack.c.b16 %v2439, %v2436
        %v2491 = vpack.c.b16 %v2440, %v2437
        %v2492 = vpack.c.b16 %v2444, %v2441
        %v2493 = vpack.c.b16 %v2445, %v2442
        %v2494 = vpack.c.b16 %v2446, %v2443
        %2543 = vmatpush.bf16.msra.mxu0 %v2468
        %2544 = vmatpush.bf16.msra.mxu0 %v2465
        %2545 = vmatpush.bf16.msra.mxu0 %v2462
        %2546 = vmatpush.bf16.msra.mxu0 %v2459
        %2547 = vmatpush.bf16.msra.mxu0 %v2456
        %2548 = vmatpush.bf16.msra.mxu0 %v2453
        %2549 = vmatpush.bf16.msra.mxu0 %v2450
        %2550 = vmatpush.bf16.msra.mxu0 %v2447
        %2551 = vmatmul.bf16.gmra.mxu0 %v2156
        %v2552 = vpop.f32.mrf.mxu0
        %v2553 = vadd.f32 0.0, %v2552
        %v2554 = vpop.f32.mrf.mxu0
        %v2555 = vadd.f32 0.0, %v2554
        %2556 = vmatmul.bf16.gmra.mxu0 %v2176
        %v2557 = vpop.f32.mrf.mxu0
        %v2558 = vadd.f32 0.0, %v2557
        %v2559 = vpop.f32.mrf.mxu0
        %v2560 = vadd.f32 0.0, %v2559
        %2561 = vmatmul.bf16.gmra.mxu0 %v2192
        %v2562 = vpop.f32.mrf.mxu0
        %v2563 = vadd.f32 0.0, %v2562
        %v2564 = vpop.f32.mrf.mxu0
        %v2565 = vadd.f32 0.0, %v2564
        %2566 = vmatmul.bf16.gmra.mxu0 %v2208
        %v2567 = vpop.f32.mrf.mxu0
        %v2568 = vadd.f32 0.0, %v2567
        %v2569 = vpop.f32.mrf.mxu0
        %v2570 = vadd.f32 0.0, %v2569
        %2571 = vmatmul.bf16.gmra.mxu0 %v2224
        %v2572 = vpop.f32.mrf.mxu0
        %v2573 = vadd.f32 0.0, %v2572
        %v2574 = vpop.f32.mrf.mxu0
        %v2575 = vadd.f32 0.0, %v2574
        %2576 = vmatmul.bf16.gmra.mxu0 %v2240
        %v2577 = vpop.f32.mrf.mxu0
        %v2578 = vadd.f32 0.0, %v2577
        %v2579 = vpop.f32.mrf.mxu0
        %v2580 = vadd.f32 0.0, %v2579
        %2581 = vmatmul.bf16.gmra.mxu0 %v2256
        %v2582 = vpop.f32.mrf.mxu0
        %v2583 = vadd.f32 0.0, %v2582
        %v2584 = vpop.f32.mrf.mxu0
        %v2585 = vadd.f32 0.0, %v2584
        %2586 = vmatmul.bf16.gmra.mxu0 %v2267
        %v2587 = vpop.f32.mrf.mxu0
        %v2588 = vpop.f32.mrf.mxu0
        %2589 = vdwg.mxu0
        %2590 = vmatpush.bf16.msra.mxu0 %v2492
        %2591 = vmatpush.bf16.msra.mxu0 %v2489
        %2592 = vmatpush.bf16.msra.mxu0 %v2486
        %2593 = vmatpush.bf16.msra.mxu0 %v2483
        %2594 = vmatpush.bf16.msra.mxu0 %v2480
        %2595 = vmatpush.bf16.msra.mxu0 %v2477
        %2596 = vmatpush.bf16.msra.mxu0 %v2474
        %2597 = vmatpush.bf16.msra.mxu0 %v2471
        %2598 = vmatmul.bf16.gmra.mxu0 %v2168
        %v2599 = vpop.f32.mrf.mxu0
        %v2600 = vadd.f32 %v2553, %v2599
        %v2601 = vpop.f32.mrf.mxu0
        %v2602 = vadd.f32 %v2555, %v2601
        %2603 = vmatmul.bf16.gmra.mxu0 %v2184
        %v2604 = vpop.f32.mrf.mxu0
        %v2605 = vadd.f32 %v2558, %v2604
        %v2606 = vpop.f32.mrf.mxu0
        %v2607 = vadd.f32 %v2560, %v2606
        %2608 = vmatmul.bf16.gmra.mxu0 %v2200
        %v2609 = vpop.f32.mrf.mxu0
        %v2610 = vadd.f32 %v2563, %v2609
        %v2611 = vpop.f32.mrf.mxu0
        %v2612 = vadd.f32 %v2565, %v2611
        %2613 = vmatmul.bf16.gmra.mxu0 %v2216
        %v2614 = vpop.f32.mrf.mxu0
        %v2615 = vadd.f32 %v2568, %v2614
        %v2616 = vpop.f32.mrf.mxu0
        %v2617 = vadd.f32 %v2570, %v2616
        %2618 = vmatmul.bf16.gmra.mxu0 %v2232
        %v2619 = vpop.f32.mrf.mxu0
        %v2620 = vadd.f32 %v2573, %v2619
        %v2621 = vpop.f32.mrf.mxu0
        %v2622 = vadd.f32 %v2575, %v2621
        %2623 = vmatmul.bf16.gmra.mxu0 %v2248
        %v2624 = vpop.f32.mrf.mxu0
        %v2625 = vadd.f32 %v2578, %v2624
        %v2626 = vpop.f32.mrf.mxu0
        %v2627 = vadd.f32 %v2580, %v2626
        %2628 = vmatmul.bf16.gmra.mxu0 %v2264
        %v2629 = vpop.f32.mrf.mxu0
        %v2630 = vadd.f32 %v2583, %v2629
        %v2631 = vpop.f32.mrf.mxu0
        %v2632 = vadd.f32 %v2585, %v2631
        %2633 = vmatmul.bf16.gmra.mxu0 %v2270
        %v2634 = vpop.f32.mrf.mxu0
        %v2635 = vpop.f32.mrf.mxu0
        %2636 = vdwg.mxu0
        %2637 = vmatpush.bf16.msra.mxu0 %v2469
        %2638 = vmatpush.bf16.msra.mxu0 %v2466
        %2639 = vmatpush.bf16.msra.mxu0 %v2463
        %2640 = vmatpush.bf16.msra.mxu0 %v2460
        %2641 = vmatpush.bf16.msra.mxu0 %v2457
        %2642 = vmatpush.bf16.msra.mxu0 %v2454
        %2643 = vmatpush.bf16.msra.mxu0 %v2451
        %2644 = vmatpush.bf16.msra.mxu0 %v2448
        %2645 = vmatmul.bf16.gmra.mxu0 %v2156
        %v2646 = vpop.f32.mrf.mxu0
        %v2647 = vadd.f32 0.0, %v2646
        %v2648 = vpop.f32.mrf.mxu0
        %v2649 = vadd.f32 0.0, %v2648
        %2650 = vmatmul.bf16.gmra.mxu0 %v2176
        %v2651 = vpop.f32.mrf.mxu0
        %v2652 = vadd.f32 0.0, %v2651
        %v2653 = vpop.f32.mrf.mxu0
        %v2654 = vadd.f32 0.0, %v2653
        %2655 = vmatmul.bf16.gmra.mxu0 %v2192
        %v2656 = vpop.f32.mrf.mxu0
        %v2657 = vadd.f32 0.0, %v2656
        %v2658 = vpop.f32.mrf.mxu0
        %v2659 = vadd.f32 0.0, %v2658
        %2660 = vmatmul.bf16.gmra.mxu0 %v2208
        %v2661 = vpop.f32.mrf.mxu0
        %v2662 = vadd.f32 0.0, %v2661
        %v2663 = vpop.f32.mrf.mxu0
        %v2664 = vadd.f32 0.0, %v2663
        %2665 = vmatmul.bf16.gmra.mxu0 %v2224
        %v2666 = vpop.f32.mrf.mxu0
        %v2667 = vadd.f32 0.0, %v2666
        %v2668 = vpop.f32.mrf.mxu0
        %v2669 = vadd.f32 0.0, %v2668
        %2670 = vmatmul.bf16.gmra.mxu0 %v2240
        %v2671 = vpop.f32.mrf.mxu0
        %v2672 = vadd.f32 0.0, %v2671
        %v2673 = vpop.f32.mrf.mxu0
        %v2674 = vadd.f32 0.0, %v2673
        %2675 = vmatmul.bf16.gmra.mxu0 %v2256
        %v2676 = vpop.f32.mrf.mxu0
        %v2677 = vadd.f32 0.0, %v2676
        %v2678 = vpop.f32.mrf.mxu0
        %v2679 = vadd.f32 0.0, %v2678
        %2680 = vmatmul.bf16.gmra.mxu0 %v2267
        %v2681 = vpop.f32.mrf.mxu0
        %v2682 = vpop.f32.mrf.mxu0
        %2683 = vdwg.mxu0
        %2684 = vmatpush.bf16.msra.mxu0 %v2493
        %2685 = vmatpush.bf16.msra.mxu0 %v2490
        %2686 = vmatpush.bf16.msra.mxu0 %v2487
        %2687 = vmatpush.bf16.msra.mxu0 %v2484
        %2688 = vmatpush.bf16.msra.mxu0 %v2481
        %2689 = vmatpush.bf16.msra.mxu0 %v2478
        %2690 = vmatpush.bf16.msra.mxu0 %v2475
        %2691 = vmatpush.bf16.msra.mxu0 %v2472
        %2692 = vmatmul.bf16.gmra.mxu0 %v2168
        %v2693 = vpop.f32.mrf.mxu0
        %v2694 = vadd.f32 %v2647, %v2693
        %v2695 = vpop.f32.mrf.mxu0
        %v2696 = vadd.f32 %v2649, %v2695
        %2697 = vmatmul.bf16.gmra.mxu0 %v2184
        %v2698 = vpop.f32.mrf.mxu0
        %v2699 = vadd.f32 %v2652, %v2698
        %v2700 = vpop.f32.mrf.mxu0
        %v2701 = vadd.f32 %v2654, %v2700
        %2702 = vmatmul.bf16.gmra.mxu0 %v2200
        %v2703 = vpop.f32.mrf.mxu0
        %v2704 = vadd.f32 %v2657, %v2703
        %v2705 = vpop.f32.mrf.mxu0
        %v2706 = vadd.f32 %v2659, %v2705
        %2707 = vmatmul.bf16.gmra.mxu0 %v2216
        %v2708 = vpop.f32.mrf.mxu0
        %v2709 = vadd.f32 %v2662, %v2708
        %v2710 = vpop.f32.mrf.mxu0
        %v2711 = vadd.f32 %v2664, %v2710
        %2712 = vmatmul.bf16.gmra.mxu0 %v2232
        %v2713 = vpop.f32.mrf.mxu0
        %v2714 = vadd.f32 %v2667, %v2713
        %v2715 = vpop.f32.mrf.mxu0
        %v2716 = vadd.f32 %v2669, %v2715
        %2717 = vmatmul.bf16.gmra.mxu0 %v2248
        %v2718 = vpop.f32.mrf.mxu0
        %v2719 = vadd.f32 %v2672, %v2718
        %v2720 = vpop.f32.mrf.mxu0
        %v2721 = vadd.f32 %v2674, %v2720
        %2722 = vmatmul.bf16.gmra.mxu0 %v2264
        %v2723 = vpop.f32.mrf.mxu0
        %v2724 = vadd.f32 %v2677, %v2723
        %v2725 = vpop.f32.mrf.mxu0
        %v2726 = vadd.f32 %v2679, %v2725
        %2727 = vmatmul.bf16.gmra.mxu0 %v2270
        %v2728 = vpop.f32.mrf.mxu0
        %v2729 = vpop.f32.mrf.mxu0
        %2730 = vdwg.mxu0
        %2731 = vmatpush.bf16.msra.mxu0 %v2470
        %2732 = vmatpush.bf16.msra.mxu0 %v2467
        %2733 = vmatpush.bf16.msra.mxu0 %v2464
        %2734 = vmatpush.bf16.msra.mxu0 %v2461
        %2735 = vmatpush.bf16.msra.mxu0 %v2458
        %2736 = vmatpush.bf16.msra.mxu0 %v2455
        %2737 = vmatpush.bf16.msra.mxu0 %v2452
        %2738 = vmatpush.bf16.msra.mxu0 %v2449
        %2739 = vmatmul.bf16.gmra.mxu0 %v2156
        %v2740 = vpop.f32.mrf.mxu0
        %v2741 = vadd.f32 0.0, %v2740
        %v2742 = vpop.f32.mrf.mxu0
        %v2743 = vadd.f32 0.0, %v2742
        %2744 = vmatmul.bf16.gmra.mxu0 %v2176
        %v2745 = vpop.f32.mrf.mxu0
        %v2746 = vadd.f32 0.0, %v2745
        %v2747 = vpop.f32.mrf.mxu0
        %v2748 = vadd.f32 0.0, %v2747
        %2749 = vmatmul.bf16.gmra.mxu0 %v2192
        %v2750 = vpop.f32.mrf.mxu0
        %v2751 = vadd.f32 0.0, %v2750
        %v2752 = vpop.f32.mrf.mxu0
        %v2753 = vadd.f32 0.0, %v2752
        %2754 = vmatmul.bf16.gmra.mxu0 %v2208
        %v2755 = vpop.f32.mrf.mxu0
        %v2756 = vadd.f32 0.0, %v2755
        %v2757 = vpop.f32.mrf.mxu0
        %v2758 = vadd.f32 0.0, %v2757
        %2759 = vmatmul.bf16.gmra.mxu0 %v2224
        %v2760 = vpop.f32.mrf.mxu0
        %v2761 = vadd.f32 0.0, %v2760
        %v2762 = vpop.f32.mrf.mxu0
        %v2763 = vadd.f32 0.0, %v2762
        %2764 = vmatmul.bf16.gmra.mxu0 %v2240
        %v2765 = vpop.f32.mrf.mxu0
        %v2766 = vadd.f32 0.0, %v2765
        %v2767 = vpop.f32.mrf.mxu0
        %v2768 = vadd.f32 0.0, %v2767
        %2769 = vmatmul.bf16.gmra.mxu0 %v2256
        %v2770 = vpop.f32.mrf.mxu0
        %v2771 = vadd.f32 0.0, %v2770
        %v2772 = vpop.f32.mrf.mxu0
        %v2773 = vadd.f32 0.0, %v2772
        %2774 = vmatmul.bf16.gmra.mxu0 %v2267
        %v2775 = vpop.f32.mrf.mxu0
        %v2776 = vpop.f32.mrf.mxu0
        %2777 = vdwg.mxu0
        %2778 = vmatpush.bf16.msra.mxu0 %v2494
        %2779 = vmatpush.bf16.msra.mxu0 %v2491
        %2780 = vmatpush.bf16.msra.mxu0 %v2488
        %2781 = vmatpush.bf16.msra.mxu0 %v2485
        %2782 = vmatpush.bf16.msra.mxu0 %v2482
        %2783 = vmatpush.bf16.msra.mxu0 %v2479
        %2784 = vmatpush.bf16.msra.mxu0 %v2476
        %2785 = vmatpush.bf16.msra.mxu0 %v2473
        %2786 = vmatmul.bf16.gmra.mxu0 %v2168
        %v2787 = vpop.f32.mrf.mxu0
        %v2788 = vadd.f32 %v2741, %v2787
        %v2789 = vpop.f32.mrf.mxu0
        %v2790 = vadd.f32 %v2743, %v2789
        %2791 = vmatmul.bf16.gmra.mxu0 %v2184
        %v2792 = vpop.f32.mrf.mxu0
        %v2793 = vadd.f32 %v2746, %v2792
        %v2794 = vpop.f32.mrf.mxu0
        %v2795 = vadd.f32 %v2748, %v2794
        %2796 = vmatmul.bf16.gmra.mxu0 %v2200
        %v2797 = vpop.f32.mrf.mxu0
        %v2798 = vadd.f32 %v2751, %v2797
        %v2799 = vpop.f32.mrf.mxu0
        %v2800 = vadd.f32 %v2753, %v2799
        %2801 = vmatmul.bf16.gmra.mxu0 %v2216
        %v2802 = vpop.f32.mrf.mxu0
        %v2803 = vadd.f32 %v2756, %v2802
        %v2804 = vpop.f32.mrf.mxu0
        %v2805 = vadd.f32 %v2758, %v2804
        %2806 = vmatmul.bf16.gmra.mxu0 %v2232
        %v2807 = vpop.f32.mrf.mxu0
        %v2808 = vadd.f32 %v2761, %v2807
        %v2809 = vpop.f32.mrf.mxu0
        %v2810 = vadd.f32 %v2763, %v2809
        %2811 = vmatmul.bf16.gmra.mxu0 %v2248
        %v2812 = vpop.f32.mrf.mxu0
        %v2813 = vadd.f32 %v2766, %v2812
        %v2814 = vpop.f32.mrf.mxu0
        %v2815 = vadd.f32 %v2768, %v2814
        %2816 = vmatmul.bf16.gmra.mxu0 %v2264
        %v2817 = vpop.f32.mrf.mxu0
        %v2818 = vadd.f32 %v2771, %v2817
        %v2819 = vpop.f32.mrf.mxu0
        %v2820 = vadd.f32 %v2773, %v2819
        %2821 = vmatmul.bf16.gmra.mxu0 %v2270
        %v2822 = vpop.f32.mrf.mxu0
        %v2823 = vpop.f32.mrf.mxu0
        %2824 = vdwg.mxu0
        %v2889 = vunpack.c.l.b16 %v2007
        %v2890 = vunpack.c.h.b16 %v2007
        %v2891 = vunpack.c.l.b16 %v2008
        %v2892 = vunpack.c.l.b16 %v2009
        %v2893 = vunpack.c.h.b16 %v2009
        %v2894 = vunpack.c.l.b16 %v2010
        %v2895 = vunpack.c.l.b16 %v2011
        %v2896 = vunpack.c.h.b16 %v2011
        %v2897 = vunpack.c.l.b16 %v2012
        %v2898 = vunpack.c.l.b16 %v2013
        %v2899 = vunpack.c.h.b16 %v2013
        %v2900 = vunpack.c.l.b16 %v2014
        %v2901 = vunpack.c.l.b16 %v2015
        %v2902 = vunpack.c.h.b16 %v2015
        %v2903 = vunpack.c.l.b16 %v2016
        %v2904 = vunpack.c.l.b16 %v2017
        %v2905 = vunpack.c.h.b16 %v2017
        %v2906 = vunpack.c.l.b16 %v2018
        %v2907 = vunpack.c.l.b16 %v2019
        %v2908 = vunpack.c.h.b16 %v2019
        %v2909 = vunpack.c.l.b16 %v2020
        %v2910 = vunpack.c.l.b16 %v2021
        %v2911 = vunpack.c.h.b16 %v2021
        %v2912 = vunpack.c.l.b16 %v2022
        %v2913 = vunpack.c.l.b16 %v2023
        %v2914 = vunpack.c.h.b16 %v2023
        %v2915 = vunpack.c.l.b16 %v2024
        %v2916 = vunpack.c.l.b16 %v2025
        %v2917 = vunpack.c.h.b16 %v2025
        %v2918 = vunpack.c.l.b16 %v2026
        %v2919 = vunpack.c.l.b16 %v2027
        %v2920 = vunpack.c.h.b16 %v2027
        %v2921 = vunpack.c.l.b16 %v2028
        %v2922 = vunpack.c.l.b16 %v2029
        %v2923 = vunpack.c.h.b16 %v2029
        %v2924 = vunpack.c.l.b16 %v2030
        %v2925 = vunpack.c.l.b16 %v2031
        %v2926 = vunpack.c.h.b16 %v2031
        %v2927 = vunpack.c.l.b16 %v2032
        %v2928 = vunpack.c.l.b16 %v2033
        %v2929 = vunpack.c.h.b16 %v2033
        %v2930 = vunpack.c.l.b16 %v2034
        %v2931 = vunpack.c.l.b16 %v2035
        %v2932 = vunpack.c.h.b16 %v2035
        %v2933 = vunpack.c.l.b16 %v2036
        %v2934 = vunpack.c.l.b16 %v2037
        %v2935 = vunpack.c.h.b16 %v2037
        %v2936 = vunpack.c.l.b16 %v2038
        %v2937 = vunpack.c.l.b16 %v2039
        %v2938 = vunpack.c.h.b16 %v2039
        %v2939 = vunpack.c.l.b16 %v2040
        %v2940 = vunpack.c.l.b16 %v2041
        %v2941 = vunpack.c.h.b16 %v2041
        %v2942 = vunpack.c.l.b16 %v2042
        %v2943 = vunpack.c.l.b16 %v2043
        %v2944 = vunpack.c.h.b16 %v2043
        %v2945 = vunpack.c.l.b16 %v2044
        %v2946 = vunpack.c.l.b16 %v2045
        %v2947 = vunpack.c.h.b16 %v2045
        %v2948 = vunpack.c.l.b16 %v2046
        %v2949 = vunpack.c.l.b16 %v2047
        %v2950 = vunpack.c.h.b16 %v2047
        %v2951 = vunpack.c.l.b16 %v2048
        %v2952 = vunpack.c.l.b16 %v2049
        %v2953 = vunpack.c.h.b16 %v2049
        %v2954 = vunpack.c.l.b16 %v2050
        %v2955 = vunpack.c.l.b16 %v2051
        %v2956 = vunpack.c.h.b16 %v2051
        %v2957 = vunpack.c.l.b16 %v2052
        %v2958 = vunpack.c.l.b16 %v2053
        %v2959 = vunpack.c.h.b16 %v2053
        %v2960 = vunpack.c.l.b16 %v2054
        %v2961 = vunpack.c.l.b16 %v2055
        %v2962 = vunpack.c.h.b16 %v2055
        %v2963 = vunpack.c.l.b16 %v2056
        %v2964 = vunpack.c.l.b16 %v2057
        %v2965 = vunpack.c.h.b16 %v2057
        %v2966 = vunpack.c.l.b16 %v2058
        %v2967 = vunpack.c.l.b16 %v2059
        %v2968 = vunpack.c.h.b16 %v2059
        %v2969 = vunpack.c.l.b16 %v2060
        %v2970 = vunpack.c.l.b16 %v2061
        %v2971 = vunpack.c.h.b16 %v2061
        %v2972 = vunpack.c.l.b16 %v2062
        %v2973 = vunpack.c.l.b16 %v2063
        %v2974 = vunpack.c.h.b16 %v2063
        %v2975 = vunpack.c.l.b16 %v2064
        %v2976 = vunpack.c.l.b16 %v2065
        %v2977 = vunpack.c.h.b16 %v2065
        %v2978 = vunpack.c.l.b16 %v2066
        %v2979 = vunpack.c.l.b16 %v2067
        %v2980 = vunpack.c.h.b16 %v2067
        %v2981 = vunpack.c.l.b16 %v2068
        %v2982 = vunpack.c.l.b16 %v2069
        %v2983 = vunpack.c.h.b16 %v2069
        %v2984 = vunpack.c.l.b16 %v2070
        %v2985 = vpack.c.b16 %v2892, %v2889
        %v2986 = vpack.c.b16 %v2893, %v2890
        %v2987 = vpack.c.b16 %v2894, %v2891
        %v2988 = vpack.c.b16 %v2898, %v2895
        %v2989 = vpack.c.b16 %v2899, %v2896
        %v2990 = vpack.c.b16 %v2900, %v2897
        %v2991 = vpack.c.b16 %v2904, %v2901
        %v2992 = vpack.c.b16 %v2905, %v2902
        %v2993 = vpack.c.b16 %v2906, %v2903
        %v2994 = vpack.c.b16 %v2910, %v2907
        %v2995 = vpack.c.b16 %v2911, %v2908
        %v2996 = vpack.c.b16 %v2912, %v2909
        %v2997 = vpack.c.b16 %v2916, %v2913
        %v2998 = vpack.c.b16 %v2917, %v2914
        %v2999 = vpack.c.b16 %v2918, %v2915
        %v3000 = vpack.c.b16 %v2922, %v2919
        %v3001 = vpack.c.b16 %v2923, %v2920
        %v3002 = vpack.c.b16 %v2924, %v2921
        %v3003 = vpack.c.b16 %v2928, %v2925
        %v3004 = vpack.c.b16 %v2929, %v2926
        %v3005 = vpack.c.b16 %v2930, %v2927
        %v3006 = vpack.c.b16 %v2934, %v2931
        %v3007 = vpack.c.b16 %v2935, %v2932
        %v3008 = vpack.c.b16 %v2936, %v2933
        %v3009 = vpack.c.b16 %v2940, %v2937
        %v3010 = vpack.c.b16 %v2941, %v2938
        %v3011 = vpack.c.b16 %v2942, %v2939
        %v3012 = vpack.c.b16 %v2946, %v2943
        %v3013 = vpack.c.b16 %v2947, %v2944
        %v3014 = vpack.c.b16 %v2948, %v2945
        %v3015 = vpack.c.b16 %v2952, %v2949
        %v3016 = vpack.c.b16 %v2953, %v2950
        %v3017 = vpack.c.b16 %v2954, %v2951
        %v3018 = vpack.c.b16 %v2958, %v2955
        %v3019 = vpack.c.b16 %v2959, %v2956
        %v3020 = vpack.c.b16 %v2960, %v2957
        %v3021 = vpack.c.b16 %v2964, %v2961
        %v3022 = vpack.c.b16 %v2965, %v2962
        %v3023 = vpack.c.b16 %v2966, %v2963
        %v3024 = vpack.c.b16 %v2970, %v2967
        %v3025 = vpack.c.b16 %v2971, %v2968
        %v3026 = vpack.c.b16 %v2972, %v2969
        %v3027 = vpack.c.b16 %v2976, %v2973
        %v3028 = vpack.c.b16 %v2977, %v2974
        %v3029 = vpack.c.b16 %v2978, %v2975
        %v3030 = vpack.c.b16 %v2982, %v2979
        %v3031 = vpack.c.b16 %v2983, %v2980
        %v3032 = vpack.c.b16 %v2984, %v2981
        %3081 = vmatpush.bf16.msra.mxu0 %v3006
        %3082 = vmatpush.bf16.msra.mxu0 %v3003
        %3083 = vmatpush.bf16.msra.mxu0 %v3000
        %3084 = vmatpush.bf16.msra.mxu0 %v2997
        %3085 = vmatpush.bf16.msra.mxu0 %v2994
        %3086 = vmatpush.bf16.msra.mxu0 %v2991
        %3087 = vmatpush.bf16.msra.mxu0 %v2988
        %3088 = vmatpush.bf16.msra.mxu0 %v2985
        %3089 = vmatmul.bf16.gmra.mxu0 %v1991
        %v3090 = vpop.f32.mrf.mxu0
        %v3091 = vadd.f32 %v2600, %v3090
        %v3092 = vpop.f32.mrf.mxu0
        %v3093 = vadd.f32 %v2602, %v3092
        %3094 = vmatmul.bf16.gmra.mxu0 %v1993
        %v3095 = vpop.f32.mrf.mxu0
        %v3096 = vadd.f32 %v2605, %v3095
        %v3097 = vpop.f32.mrf.mxu0
        %v3098 = vadd.f32 %v2607, %v3097
        %3099 = vmatmul.bf16.gmra.mxu0 %v1995
        %v3100 = vpop.f32.mrf.mxu0
        %v3101 = vadd.f32 %v2610, %v3100
        %v3102 = vpop.f32.mrf.mxu0
        %v3103 = vadd.f32 %v2612, %v3102
        %3104 = vmatmul.bf16.gmra.mxu0 %v1997
        %v3105 = vpop.f32.mrf.mxu0
        %v3106 = vadd.f32 %v2615, %v3105
        %v3107 = vpop.f32.mrf.mxu0
        %v3108 = vadd.f32 %v2617, %v3107
        %3109 = vmatmul.bf16.gmra.mxu0 %v1999
        %v3110 = vpop.f32.mrf.mxu0
        %v3111 = vadd.f32 %v2620, %v3110
        %v3112 = vpop.f32.mrf.mxu0
        %v3113 = vadd.f32 %v2622, %v3112
        %3114 = vmatmul.bf16.gmra.mxu0 %v2001
        %v3115 = vpop.f32.mrf.mxu0
        %v3116 = vadd.f32 %v2625, %v3115
        %v3117 = vpop.f32.mrf.mxu0
        %v3118 = vadd.f32 %v2627, %v3117
        %3119 = vmatmul.bf16.gmra.mxu0 %v2003
        %v3120 = vpop.f32.mrf.mxu0
        %v3121 = vadd.f32 %v2630, %v3120
        %v3122 = vpop.f32.mrf.mxu0
        %v3123 = vadd.f32 %v2632, %v3122
        %3124 = vmatmul.bf16.gmra.mxu0 %v2005
        %v3125 = vpop.f32.mrf.mxu0
        %v3126 = vpop.f32.mrf.mxu0
        %3127 = vdwg.mxu0
        %3128 = vmatpush.bf16.msra.mxu0 %v3030
        %3129 = vmatpush.bf16.msra.mxu0 %v3027
        %3130 = vmatpush.bf16.msra.mxu0 %v3024
        %3131 = vmatpush.bf16.msra.mxu0 %v3021
        %3132 = vmatpush.bf16.msra.mxu0 %v3018
        %3133 = vmatpush.bf16.msra.mxu0 %v3015
        %3134 = vmatpush.bf16.msra.mxu0 %v3012
        %3135 = vmatpush.bf16.msra.mxu0 %v3009
        %3136 = vmatmul.bf16.gmra.mxu0 %v1992
        %v3137 = vpop.f32.mrf.mxu0
        %v3138 = vadd.f32 %v3091, %v3137
        %v3139 = vpop.f32.mrf.mxu0
        %v3140 = vadd.f32 %v3093, %v3139
        %3141 = vmatmul.bf16.gmra.mxu0 %v1994
        %v3142 = vpop.f32.mrf.mxu0
        %v3143 = vadd.f32 %v3096, %v3142
        %v3144 = vpop.f32.mrf.mxu0
        %v3145 = vadd.f32 %v3098, %v3144
        %3146 = vmatmul.bf16.gmra.mxu0 %v1996
        %v3147 = vpop.f32.mrf.mxu0
        %v3148 = vadd.f32 %v3101, %v3147
        %v3149 = vpop.f32.mrf.mxu0
        %v3150 = vadd.f32 %v3103, %v3149
        %3151 = vmatmul.bf16.gmra.mxu0 %v1998
        %v3152 = vpop.f32.mrf.mxu0
        %v3153 = vadd.f32 %v3106, %v3152
        %v3154 = vpop.f32.mrf.mxu0
        %v3155 = vadd.f32 %v3108, %v3154
        %3156 = vmatmul.bf16.gmra.mxu0 %v2000
        %v3157 = vpop.f32.mrf.mxu0
        %v3158 = vadd.f32 %v3111, %v3157
        %v3159 = vpop.f32.mrf.mxu0
        %v3160 = vadd.f32 %v3113, %v3159
        %3161 = vmatmul.bf16.gmra.mxu0 %v2002
        %v3162 = vpop.f32.mrf.mxu0
        %v3163 = vadd.f32 %v3116, %v3162
        %v3164 = vpop.f32.mrf.mxu0
        %v3165 = vadd.f32 %v3118, %v3164
        %3166 = vmatmul.bf16.gmra.mxu0 %v2004
        %v3167 = vpop.f32.mrf.mxu0
        %v3168 = vadd.f32 %v3121, %v3167
        %v3169 = vpop.f32.mrf.mxu0
        %v3170 = vadd.f32 %v3123, %v3169
        %3171 = vmatmul.bf16.gmra.mxu0 %v2006
        %v3172 = vpop.f32.mrf.mxu0
        %v3173 = vpop.f32.mrf.mxu0
        %3174 = vdwg.mxu0
        %3175 = vmatpush.bf16.msra.mxu0 %v3007
        %3176 = vmatpush.bf16.msra.mxu0 %v3004
        %3177 = vmatpush.bf16.msra.mxu0 %v3001
        %3178 = vmatpush.bf16.msra.mxu0 %v2998
        %3179 = vmatpush.bf16.msra.mxu0 %v2995
        %3180 = vmatpush.bf16.msra.mxu0 %v2992
        %3181 = vmatpush.bf16.msra.mxu0 %v2989
        %3182 = vmatpush.bf16.msra.mxu0 %v2986
        %3183 = vmatmul.bf16.gmra.mxu0 %v1991
        %v3184 = vpop.f32.mrf.mxu0
        %v3185 = vadd.f32 %v2694, %v3184
        %v3186 = vpop.f32.mrf.mxu0
        %v3187 = vadd.f32 %v2696, %v3186
        %3188 = vmatmul.bf16.gmra.mxu0 %v1993
        %v3189 = vpop.f32.mrf.mxu0
        %v3190 = vadd.f32 %v2699, %v3189
        %v3191 = vpop.f32.mrf.mxu0
        %v3192 = vadd.f32 %v2701, %v3191
        %3193 = vmatmul.bf16.gmra.mxu0 %v1995
        %v3194 = vpop.f32.mrf.mxu0
        %v3195 = vadd.f32 %v2704, %v3194
        %v3196 = vpop.f32.mrf.mxu0
        %v3197 = vadd.f32 %v2706, %v3196
        %3198 = vmatmul.bf16.gmra.mxu0 %v1997
        %v3199 = vpop.f32.mrf.mxu0
        %v3200 = vadd.f32 %v2709, %v3199
        %v3201 = vpop.f32.mrf.mxu0
        %v3202 = vadd.f32 %v2711, %v3201
        %3203 = vmatmul.bf16.gmra.mxu0 %v1999
        %v3204 = vpop.f32.mrf.mxu0
        %v3205 = vadd.f32 %v2714, %v3204
        %v3206 = vpop.f32.mrf.mxu0
        %v3207 = vadd.f32 %v2716, %v3206
        %3208 = vmatmul.bf16.gmra.mxu0 %v2001
        %v3209 = vpop.f32.mrf.mxu0
        %v3210 = vadd.f32 %v2719, %v3209
        %v3211 = vpop.f32.mrf.mxu0
        %v3212 = vadd.f32 %v2721, %v3211
        %3213 = vmatmul.bf16.gmra.mxu0 %v2003
        %v3214 = vpop.f32.mrf.mxu0
        %v3215 = vadd.f32 %v2724, %v3214
        %v3216 = vpop.f32.mrf.mxu0
        %v3217 = vadd.f32 %v2726, %v3216
        %3218 = vmatmul.bf16.gmra.mxu0 %v2005
        %v3219 = vpop.f32.mrf.mxu0
        %v3220 = vpop.f32.mrf.mxu0
        %3221 = vdwg.mxu0
        %3222 = vmatpush.bf16.msra.mxu0 %v3031
        %3223 = vmatpush.bf16.msra.mxu0 %v3028
        %3224 = vmatpush.bf16.msra.mxu0 %v3025
        %3225 = vmatpush.bf16.msra.mxu0 %v3022
        %3226 = vmatpush.bf16.msra.mxu0 %v3019
        %3227 = vmatpush.bf16.msra.mxu0 %v3016
        %3228 = vmatpush.bf16.msra.mxu0 %v3013
        %3229 = vmatpush.bf16.msra.mxu0 %v3010
        %3230 = vmatmul.bf16.gmra.mxu0 %v1992
        %v3231 = vpop.f32.mrf.mxu0
        %v3232 = vadd.f32 %v3185, %v3231
        %v3233 = vpop.f32.mrf.mxu0
        %v3234 = vadd.f32 %v3187, %v3233
        %3235 = vmatmul.bf16.gmra.mxu0 %v1994
        %v3236 = vpop.f32.mrf.mxu0
        %v3237 = vadd.f32 %v3190, %v3236
        %v3238 = vpop.f32.mrf.mxu0
        %v3239 = vadd.f32 %v3192, %v3238
        %3240 = vmatmul.bf16.gmra.mxu0 %v1996
        %v3241 = vpop.f32.mrf.mxu0
        %v3242 = vadd.f32 %v3195, %v3241
        %v3243 = vpop.f32.mrf.mxu0
        %v3244 = vadd.f32 %v3197, %v3243
        %3245 = vmatmul.bf16.gmra.mxu0 %v1998
        %v3246 = vpop.f32.mrf.mxu0
        %v3247 = vadd.f32 %v3200, %v3246
        %v3248 = vpop.f32.mrf.mxu0
        %v3249 = vadd.f32 %v3202, %v3248
        %3250 = vmatmul.bf16.gmra.mxu0 %v2000
        %v3251 = vpop.f32.mrf.mxu0
        %v3252 = vadd.f32 %v3205, %v3251
        %v3253 = vpop.f32.mrf.mxu0
        %v3254 = vadd.f32 %v3207, %v3253
        %3255 = vmatmul.bf16.gmra.mxu0 %v2002
        %v3256 = vpop.f32.mrf.mxu0
        %v3257 = vadd.f32 %v3210, %v3256
        %v3258 = vpop.f32.mrf.mxu0
        %v3259 = vadd.f32 %v3212, %v3258
        %3260 = vmatmul.bf16.gmra.mxu0 %v2004
        %v3261 = vpop.f32.mrf.mxu0
        %v3262 = vadd.f32 %v3215, %v3261
        %v3263 = vpop.f32.mrf.mxu0
        %v3264 = vadd.f32 %v3217, %v3263
        %3265 = vmatmul.bf16.gmra.mxu0 %v2006
        %v3266 = vpop.f32.mrf.mxu0
        %v3267 = vpop.f32.mrf.mxu0
        %3268 = vdwg.mxu0
        %3269 = vmatpush.bf16.msra.mxu0 %v3008
        %3270 = vmatpush.bf16.msra.mxu0 %v3005
        %3271 = vmatpush.bf16.msra.mxu0 %v3002
        %3272 = vmatpush.bf16.msra.mxu0 %v2999
        %3273 = vmatpush.bf16.msra.mxu0 %v2996
        %3274 = vmatpush.bf16.msra.mxu0 %v2993
        %3275 = vmatpush.bf16.msra.mxu0 %v2990
        %3276 = vmatpush.bf16.msra.mxu0 %v2987
        %3277 = vmatmul.bf16.gmra.mxu0 %v1991
        %v3278 = vpop.f32.mrf.mxu0
        %v3279 = vadd.f32 %v2788, %v3278
        %v3280 = vpop.f32.mrf.mxu0
        %v3281 = vadd.f32 %v2790, %v3280
        %3282 = vmatmul.bf16.gmra.mxu0 %v1993
        %v3283 = vpop.f32.mrf.mxu0
        %v3284 = vadd.f32 %v2793, %v3283
        %v3285 = vpop.f32.mrf.mxu0
        %v3286 = vadd.f32 %v2795, %v3285
        %3287 = vmatmul.bf16.gmra.mxu0 %v1995
        %v3288 = vpop.f32.mrf.mxu0
        %v3289 = vadd.f32 %v2798, %v3288
        %v3290 = vpop.f32.mrf.mxu0
        %v3291 = vadd.f32 %v2800, %v3290
        %3292 = vmatmul.bf16.gmra.mxu0 %v1997
        %v3293 = vpop.f32.mrf.mxu0
        %v3294 = vadd.f32 %v2803, %v3293
        %v3295 = vpop.f32.mrf.mxu0
        %v3296 = vadd.f32 %v2805, %v3295
        %3297 = vmatmul.bf16.gmra.mxu0 %v1999
        %v3298 = vpop.f32.mrf.mxu0
        %v3299 = vadd.f32 %v2808, %v3298
        %v3300 = vpop.f32.mrf.mxu0
        %v3301 = vadd.f32 %v2810, %v3300
        %3302 = vmatmul.bf16.gmra.mxu0 %v2001
        %v3303 = vpop.f32.mrf.mxu0
        %v3304 = vadd.f32 %v2813, %v3303
        %v3305 = vpop.f32.mrf.mxu0
        %v3306 = vadd.f32 %v2815, %v3305
        %3307 = vmatmul.bf16.gmra.mxu0 %v2003
        %v3308 = vpop.f32.mrf.mxu0
        %v3309 = vadd.f32 %v2818, %v3308
        %v3310 = vpop.f32.mrf.mxu0
        %v3311 = vadd.f32 %v2820, %v3310
        %3312 = vmatmul.bf16.gmra.mxu0 %v2005
        %v3313 = vpop.f32.mrf.mxu0
        %v3314 = vpop.f32.mrf.mxu0
        %3315 = vdwg.mxu0
        %3316 = vmatpush.bf16.msra.mxu0 %v3032
        %3317 = vmatpush.bf16.msra.mxu0 %v3029
        %3318 = vmatpush.bf16.msra.mxu0 %v3026
        %3319 = vmatpush.bf16.msra.mxu0 %v3023
        %3320 = vmatpush.bf16.msra.mxu0 %v3020
        %3321 = vmatpush.bf16.msra.mxu0 %v3017
        %3322 = vmatpush.bf16.msra.mxu0 %v3014
        %3323 = vmatpush.bf16.msra.mxu0 %v3011
        %3324 = vmatmul.bf16.gmra.mxu0 %v1992
        %v3325 = vpop.f32.mrf.mxu0
        %v3326 = vadd.f32 %v3279, %v3325
        %v3327 = vpop.f32.mrf.mxu0
        %v3328 = vadd.f32 %v3281, %v3327
        %3329 = vmatmul.bf16.gmra.mxu0 %v1994
        %v3330 = vpop.f32.mrf.mxu0
        %v3331 = vadd.f32 %v3284, %v3330
        %v3332 = vpop.f32.mrf.mxu0
        %v3333 = vadd.f32 %v3286, %v3332
        %3334 = vmatmul.bf16.gmra.mxu0 %v1996
        %v3335 = vpop.f32.mrf.mxu0
        %v3336 = vadd.f32 %v3289, %v3335
        %v3337 = vpop.f32.mrf.mxu0
        %v3338 = vadd.f32 %v3291, %v3337
        %3339 = vmatmul.bf16.gmra.mxu0 %v1998
        %v3340 = vpop.f32.mrf.mxu0
        %v3341 = vadd.f32 %v3294, %v3340
        %v3342 = vpop.f32.mrf.mxu0
        %v3343 = vadd.f32 %v3296, %v3342
        %3344 = vmatmul.bf16.gmra.mxu0 %v2000
        %v3345 = vpop.f32.mrf.mxu0
        %v3346 = vadd.f32 %v3299, %v3345
        %v3347 = vpop.f32.mrf.mxu0
        %v3348 = vadd.f32 %v3301, %v3347
        %3349 = vmatmul.bf16.gmra.mxu0 %v2002
        %v3350 = vpop.f32.mrf.mxu0
        %v3351 = vadd.f32 %v3304, %v3350
        %v3352 = vpop.f32.mrf.mxu0
        %v3353 = vadd.f32 %v3306, %v3352
        %3354 = vmatmul.bf16.gmra.mxu0 %v2004
        %v3355 = vpop.f32.mrf.mxu0
        %v3356 = vadd.f32 %v3309, %v3355
        %v3357 = vpop.f32.mrf.mxu0
        %v3358 = vadd.f32 %v3311, %v3357
        %3359 = vmatmul.bf16.gmra.mxu0 %v2006
        %v3360 = vpop.f32.mrf.mxu0
        %v3361 = vpop.f32.mrf.mxu0
        %3362 = vdwg.mxu0
        %v3363 = vld [vmem:[#allocation2] sm:$0xfc]
        %v3364 = vld [vmem:[#allocation2 + $0x8] sm:$0xfc]
        %v3365 = vld [vmem:[#allocation2 + $0xf0] sm:$0x3f]
        %v3366 = vld [vmem:[#allocation2 + $0xf8] sm:$0x3f]
        %v3367 = vpack.c.bf16 %v1961, %v3363
        %v3368 = vpack.c.bf16 %v1962, %v3364
        %v3369 = vpack.c.bf16 %v3365, %v1987
        %v3370 = vpack.c.bf16 %v3366, %v1988
        %s3371 = scalar_lea.vmem %s5, 768
        %v3372 = vld [vmem:[%s3371] sm:$0xff]
        %v3373 = vld [vmem:[%s3371 + $0x8] sm:$0xf]
        %v3374 = vld [vmem:[%s3371 + $0xc] sm:$0xff]
        %v3375 = vld [vmem:[%s3371 + $0x14] sm:$0xf]
        %v3376 = vld [vmem:[%s3371 + $0x18] sm:$0xff]
        %v3377 = vld [vmem:[%s3371 + $0x20] sm:$0xf]
        %v3378 = vld [vmem:[%s3371 + $0x24] sm:$0xff]
        %v3379 = vld [vmem:[%s3371 + $0x2c] sm:$0xf]
        %v3380 = vld [vmem:[%s3371 + $0x30] sm:$0xff]
        %v3381 = vld [vmem:[%s3371 + $0x38] sm:$0xf]
        %v3382 = vld [vmem:[%s3371 + $0x3c] sm:$0xff]
        %v3383 = vld [vmem:[%s3371 + $0x44] sm:$0xf]
        %v3384 = vld [vmem:[%s3371 + $0x48] sm:$0xff]
        %v3385 = vld [vmem:[%s3371 + $0x50] sm:$0xf]
        %v3386 = vld [vmem:[%s3371 + $0x54] sm:$0xff]
        %v3387 = vld [vmem:[%s3371 + $0x5c] sm:$0xf]
        %v3388 = vld [vmem:[%s3371 + $0x60] sm:$0xff]
        %v3389 = vld [vmem:[%s3371 + $0x68] sm:$0xf]
        %v3390 = vld [vmem:[%s3371 + $0x6c] sm:$0xff]
        %v3391 = vld [vmem:[%s3371 + $0x74] sm:$0xf]
        %v3392 = vld [vmem:[%s3371 + $0x78] sm:$0xff]
        %v3393 = vld [vmem:[%s3371 + $0x80] sm:$0xf]
        %v3394 = vld [vmem:[%s3371 + $0x84] sm:$0xff]
        %v3395 = vld [vmem:[%s3371 + $0x8c] sm:$0xf]
        %v3396 = vld [vmem:[%s3371 + $0x90] sm:$0xff]
        %v3397 = vld [vmem:[%s3371 + $0x98] sm:$0xf]
        %v3398 = vld [vmem:[%s3371 + $0x9c] sm:$0xff]
        %v3399 = vld [vmem:[%s3371 + $0xa4] sm:$0xf]
        %v3400 = vld [vmem:[%s3371 + $0xa8] sm:$0xff]
        %v3401 = vld [vmem:[%s3371 + $0xb0] sm:$0xf]
        %v3402 = vld [vmem:[%s3371 + $0xb4] sm:$0xff]
        %v3403 = vld [vmem:[%s3371 + $0xbc] sm:$0xf]
        %v3404 = vld [vmem:[%s3371 + $0xc0] sm:$0xff]
        %v3405 = vld [vmem:[%s3371 + $0xc8] sm:$0xf]
        %v3406 = vld [vmem:[%s3371 + $0xcc] sm:$0xff]
        %v3407 = vld [vmem:[%s3371 + $0xd4] sm:$0xf]
        %v3408 = vld [vmem:[%s3371 + $0xd8] sm:$0xff]
        %v3409 = vld [vmem:[%s3371 + $0xe0] sm:$0xf]
        %v3410 = vld [vmem:[%s3371 + $0xe4] sm:$0xff]
        %v3411 = vld [vmem:[%s3371 + $0xec] sm:$0xf]
        %v3412 = vld [vmem:[%s3371 + $0xf0] sm:$0xff]
        %v3413 = vld [vmem:[%s3371 + $0xf8] sm:$0xf]
        %v3414 = vld [vmem:[%s3371 + $0xfc] sm:$0xff]
        %v3415 = vld [vmem:[%s3371 + $0x104] sm:$0xf]
        %v3416 = vld [vmem:[%s3371 + $0x108] sm:$0xff]
        %v3417 = vld [vmem:[%s3371 + $0x110] sm:$0xf]
        %v3418 = vld [vmem:[%s3371 + $0x114] sm:$0xff]
        %v3419 = vld [vmem:[%s3371 + $0x11c] sm:$0xf]
        %v3420 = vld [vmem:[%s3371 + $0x120] sm:$0xff]
        %v3421 = vld [vmem:[%s3371 + $0x128] sm:$0xf]
        %v3422 = vld [vmem:[%s3371 + $0x12c] sm:$0xff]
        %v3423 = vld [vmem:[%s3371 + $0x134] sm:$0xf]
        %v3424 = vld [vmem:[%s3371 + $0x138] sm:$0xff]
        %v3425 = vld [vmem:[%s3371 + $0x140] sm:$0xf]
        %v3426 = vld [vmem:[%s3371 + $0x144] sm:$0xff]
        %v3427 = vld [vmem:[%s3371 + $0x14c] sm:$0xf]
        %v3428 = vld [vmem:[%s3371 + $0x150] sm:$0xff]
        %v3429 = vld [vmem:[%s3371 + $0x158] sm:$0xf]
        %v3430 = vld [vmem:[%s3371 + $0x15c] sm:$0xff]
        %v3431 = vld [vmem:[%s3371 + $0x164] sm:$0xf]
        %v3432 = vld [vmem:[%s3371 + $0x168] sm:$0xff]
        %v3433 = vld [vmem:[%s3371 + $0x170] sm:$0xf]
        %v3434 = vld [vmem:[%s3371 + $0x174] sm:$0xff]
        %v3435 = vld [vmem:[%s3371 + $0x17c] sm:$0xf]
        %vm3452 = vcmask 1046528
        %v3453 = vrot.slane %v3367, 1
        %v3454 = vrot.slane %v1993, 1
        %v3455 = vsel %vm3452, %v3453, %v3454
        %v3456 = vrot.slane %v3368, 1
        %v3457 = vrot.slane %v1994, 1
        %v3458 = vsel %vm3452, %v3456, %v3457
        %v3459 = vrot.slane %v1995, 1
        %v3460 = vsel %vm3452, %v3454, %v3459
        %v3461 = vrot.slane %v1996, 1
        %v3462 = vsel %vm3452, %v3457, %v3461
        %v3463 = vrot.slane %v1997, 1
        %v3464 = vsel %vm3452, %v3459, %v3463
        %v3465 = vrot.slane %v1998, 1
        %v3466 = vsel %vm3452, %v3461, %v3465
        %v3467 = vrot.slane %v1999, 1
        %v3468 = vsel %vm3452, %v3463, %v3467
        %v3469 = vrot.slane %v2000, 1
        %v3470 = vsel %vm3452, %v3465, %v3469
        %v3471 = vrot.slane %v2001, 1
        %v3472 = vsel %vm3452, %v3467, %v3471
        %v3473 = vrot.slane %v2002, 1
        %v3474 = vsel %vm3452, %v3469, %v3473
        %v3475 = vrot.slane %v2003, 1
        %v3476 = vsel %vm3452, %v3471, %v3475
        %v3477 = vrot.slane %v2004, 1
        %v3478 = vsel %vm3452, %v3473, %v3477
        %v3479 = vrot.slane %v3369, 1
        %v3480 = vsel %vm3452, %v3475, %v3479
        %v3481 = vrot.slane %v3370, 1
        %v3482 = vsel %vm3452, %v3477, %v3481
        %v3563 = vunpack.c.l.b16 %v3372
        %v3564 = vunpack.c.h.b16 %v3372
        %v3565 = vunpack.c.l.b16 %v3373
        %v3566 = vunpack.c.l.b16 %v3374
        %v3567 = vunpack.c.h.b16 %v3374
        %v3568 = vunpack.c.l.b16 %v3375
        %v3569 = vunpack.c.l.b16 %v3376
        %v3570 = vunpack.c.h.b16 %v3376
        %v3571 = vunpack.c.l.b16 %v3377
        %v3572 = vunpack.c.l.b16 %v3378
        %v3573 = vunpack.c.h.b16 %v3378
        %v3574 = vunpack.c.l.b16 %v3379
        %v3575 = vunpack.c.l.b16 %v3380
        %v3576 = vunpack.c.h.b16 %v3380
        %v3577 = vunpack.c.l.b16 %v3381
        %v3578 = vunpack.c.l.b16 %v3382
        %v3579 = vunpack.c.h.b16 %v3382
        %v3580 = vunpack.c.l.b16 %v3383
        %v3581 = vunpack.c.l.b16 %v3384
        %v3582 = vunpack.c.h.b16 %v3384
        %v3583 = vunpack.c.l.b16 %v3385
        %v3584 = vunpack.c.l.b16 %v3386
        %v3585 = vunpack.c.h.b16 %v3386
        %v3586 = vunpack.c.l.b16 %v3387
        %v3587 = vunpack.c.l.b16 %v3388
        %v3588 = vunpack.c.h.b16 %v3388
        %v3589 = vunpack.c.l.b16 %v3389
        %v3590 = vunpack.c.l.b16 %v3390
        %v3591 = vunpack.c.h.b16 %v3390
        %v3592 = vunpack.c.l.b16 %v3391
        %v3593 = vunpack.c.l.b16 %v3392
        %v3594 = vunpack.c.h.b16 %v3392
        %v3595 = vunpack.c.l.b16 %v3393
        %v3596 = vunpack.c.l.b16 %v3394
        %v3597 = vunpack.c.h.b16 %v3394
        %v3598 = vunpack.c.l.b16 %v3395
        %v3599 = vunpack.c.l.b16 %v3396
        %v3600 = vunpack.c.h.b16 %v3396
        %v3601 = vunpack.c.l.b16 %v3397
        %v3602 = vunpack.c.l.b16 %v3398
        %v3603 = vunpack.c.h.b16 %v3398
        %v3604 = vunpack.c.l.b16 %v3399
        %v3605 = vunpack.c.l.b16 %v3400
        %v3606 = vunpack.c.h.b16 %v3400
        %v3607 = vunpack.c.l.b16 %v3401
        %v3608 = vunpack.c.l.b16 %v3402
        %v3609 = vunpack.c.h.b16 %v3402
        %v3610 = vunpack.c.l.b16 %v3403
        %v3611 = vunpack.c.l.b16 %v3404
        %v3612 = vunpack.c.h.b16 %v3404
        %v3613 = vunpack.c.l.b16 %v3405
        %v3614 = vunpack.c.l.b16 %v3406
        %v3615 = vunpack.c.h.b16 %v3406
        %v3616 = vunpack.c.l.b16 %v3407
        %v3617 = vunpack.c.l.b16 %v3408
        %v3618 = vunpack.c.h.b16 %v3408
        %v3619 = vunpack.c.l.b16 %v3409
        %v3620 = vunpack.c.l.b16 %v3410
        %v3621 = vunpack.c.h.b16 %v3410
        %v3622 = vunpack.c.l.b16 %v3411
        %v3623 = vunpack.c.l.b16 %v3412
        %v3624 = vunpack.c.h.b16 %v3412
        %v3625 = vunpack.c.l.b16 %v3413
        %v3626 = vunpack.c.l.b16 %v3414
        %v3627 = vunpack.c.h.b16 %v3414
        %v3628 = vunpack.c.l.b16 %v3415
        %v3629 = vunpack.c.l.b16 %v3416
        %v3630 = vunpack.c.h.b16 %v3416
        %v3631 = vunpack.c.l.b16 %v3417
        %v3632 = vunpack.c.l.b16 %v3418
        %v3633 = vunpack.c.h.b16 %v3418
        %v3634 = vunpack.c.l.b16 %v3419
        %v3635 = vunpack.c.l.b16 %v3420
        %v3636 = vunpack.c.h.b16 %v3420
        %v3637 = vunpack.c.l.b16 %v3421
        %v3638 = vunpack.c.l.b16 %v3422
        %v3639 = vunpack.c.h.b16 %v3422
        %v3640 = vunpack.c.l.b16 %v3423
        %v3641 = vunpack.c.l.b16 %v3424
        %v3642 = vunpack.c.h.b16 %v3424
        %v3643 = vunpack.c.l.b16 %v3425
        %v3644 = vunpack.c.l.b16 %v3426
        %v3645 = vunpack.c.h.b16 %v3426
        %v3646 = vunpack.c.l.b16 %v3427
        %v3647 = vunpack.c.l.b16 %v3428
        %v3648 = vunpack.c.h.b16 %v3428
        %v3649 = vunpack.c.l.b16 %v3429
        %v3650 = vunpack.c.l.b16 %v3430
        %v3651 = vunpack.c.h.b16 %v3430
        %v3652 = vunpack.c.l.b16 %v3431
        %v3653 = vunpack.c.l.b16 %v3432
        %v3654 = vunpack.c.h.b16 %v3432
        %v3655 = vunpack.c.l.b16 %v3433
        %v3656 = vunpack.c.l.b16 %v3434
        %v3657 = vunpack.c.h.b16 %v3434
        %v3658 = vunpack.c.l.b16 %v3435
        %v3659 = vpack.c.b16 %v3566, %v3563
        %v3660 = vpack.c.b16 %v3567, %v3564
        %v3661 = vpack.c.b16 %v3568, %v3565
        %v3662 = vpack.c.b16 %v3572, %v3569
        %v3663 = vpack.c.b16 %v3573, %v3570
        %v3664 = vpack.c.b16 %v3574, %v3571
        %v3665 = vpack.c.b16 %v3578, %v3575
        %v3666 = vpack.c.b16 %v3579, %v3576
        %v3667 = vpack.c.b16 %v3580, %v3577
        %v3668 = vpack.c.b16 %v3584, %v3581
        %v3669 = vpack.c.b16 %v3585, %v3582
        %v3670 = vpack.c.b16 %v3586, %v3583
        %v3671 = vpack.c.b16 %v3590, %v3587
        %v3672 = vpack.c.b16 %v3591, %v3588
        %v3673 = vpack.c.b16 %v3592, %v3589
        %v3674 = vpack.c.b16 %v3596, %v3593
        %v3675 = vpack.c.b16 %v3597, %v3594
        %v3676 = vpack.c.b16 %v3598, %v3595
        %v3677 = vpack.c.b16 %v3602, %v3599
        %v3678 = vpack.c.b16 %v3603, %v3600
        %v3679 = vpack.c.b16 %v3604, %v3601
        %v3680 = vpack.c.b16 %v3608, %v3605
        %v3681 = vpack.c.b16 %v3609, %v3606
        %v3682 = vpack.c.b16 %v3610, %v3607
        %v3683 = vpack.c.b16 %v3614, %v3611
        %v3684 = vpack.c.b16 %v3615, %v3612
        %v3685 = vpack.c.b16 %v3616, %v3613
        %v3686 = vpack.c.b16 %v3620, %v3617
        %v3687 = vpack.c.b16 %v3621, %v3618
        %v3688 = vpack.c.b16 %v3622, %v3619
        %v3689 = vpack.c.b16 %v3626, %v3623
        %v3690 = vpack.c.b16 %v3627, %v3624
        %v3691 = vpack.c.b16 %v3628, %v3625
        %v3692 = vpack.c.b16 %v3632, %v3629
        %v3693 = vpack.c.b16 %v3633, %v3630
        %v3694 = vpack.c.b16 %v3634, %v3631
        %v3695 = vpack.c.b16 %v3638, %v3635
        %v3696 = vpack.c.b16 %v3639, %v3636
        %v3697 = vpack.c.b16 %v3640, %v3637
        %v3698 = vpack.c.b16 %v3644, %v3641
        %v3699 = vpack.c.b16 %v3645, %v3642
        %v3700 = vpack.c.b16 %v3646, %v3643
        %v3701 = vpack.c.b16 %v3650, %v3647
        %v3702 = vpack.c.b16 %v3651, %v3648
        %v3703 = vpack.c.b16 %v3652, %v3649
        %v3704 = vpack.c.b16 %v3656, %v3653
        %v3705 = vpack.c.b16 %v3657, %v3654
        %v3706 = vpack.c.b16 %v3658, %v3655
        %3755 = vmatpush.bf16.msra.mxu0 %v3680
        %3756 = vmatpush.bf16.msra.mxu0 %v3677
        %3757 = vmatpush.bf16.msra.mxu0 %v3674
        %3758 = vmatpush.bf16.msra.mxu0 %v3671
        %3759 = vmatpush.bf16.msra.mxu0 %v3668
        %3760 = vmatpush.bf16.msra.mxu0 %v3665
        %3761 = vmatpush.bf16.msra.mxu0 %v3662
        %3762 = vmatpush.bf16.msra.mxu0 %v3659
        %3763 = vmatmul.bf16.gmra.mxu0 %v3455
        %v3764 = vpop.f32.mrf.mxu0
        %v3765 = vadd.f32 0.0, %v3764
        %v3766 = vpop.f32.mrf.mxu0
        %v3767 = vadd.f32 0.0, %v3766
        %3768 = vmatmul.bf16.gmra.mxu0 %v3460
        %v3769 = vpop.f32.mrf.mxu0
        %v3770 = vadd.f32 0.0, %v3769
        %v3771 = vpop.f32.mrf.mxu0
        %v3772 = vadd.f32 0.0, %v3771
        %3773 = vmatmul.bf16.gmra.mxu0 %v3464
        %v3774 = vpop.f32.mrf.mxu0
        %v3775 = vadd.f32 0.0, %v3774
        %v3776 = vpop.f32.mrf.mxu0
        %v3777 = vadd.f32 0.0, %v3776
        %3778 = vmatmul.bf16.gmra.mxu0 %v3468
        %v3779 = vpop.f32.mrf.mxu0
        %v3780 = vadd.f32 0.0, %v3779
        %v3781 = vpop.f32.mrf.mxu0
        %v3782 = vadd.f32 0.0, %v3781
        %3783 = vmatmul.bf16.gmra.mxu0 %v3472
        %v3784 = vpop.f32.mrf.mxu0
        %v3785 = vadd.f32 0.0, %v3784
        %v3786 = vpop.f32.mrf.mxu0
        %v3787 = vadd.f32 0.0, %v3786
        %3788 = vmatmul.bf16.gmra.mxu0 %v3476
        %v3789 = vpop.f32.mrf.mxu0
        %v3790 = vadd.f32 0.0, %v3789
        %v3791 = vpop.f32.mrf.mxu0
        %v3792 = vadd.f32 0.0, %v3791
        %3793 = vmatmul.bf16.gmra.mxu0 %v3480
        %v3794 = vpop.f32.mrf.mxu0
        %v3795 = vadd.f32 0.0, %v3794
        %v3796 = vpop.f32.mrf.mxu0
        %v3797 = vadd.f32 0.0, %v3796
        %3798 = vmatmul.bf16.gmra.mxu0 %v3479
        %v3799 = vpop.f32.mrf.mxu0
        %v3800 = vpop.f32.mrf.mxu0
        %3801 = vdwg.mxu0
        %3802 = vmatpush.bf16.msra.mxu0 %v3704
        %3803 = vmatpush.bf16.msra.mxu0 %v3701
        %3804 = vmatpush.bf16.msra.mxu0 %v3698
        %3805 = vmatpush.bf16.msra.mxu0 %v3695
        %3806 = vmatpush.bf16.msra.mxu0 %v3692
        %3807 = vmatpush.bf16.msra.mxu0 %v3689
        %3808 = vmatpush.bf16.msra.mxu0 %v3686
        %3809 = vmatpush.bf16.msra.mxu0 %v3683
        %3810 = vmatmul.bf16.gmra.mxu0 %v3458
        %v3811 = vpop.f32.mrf.mxu0
        %v3812 = vadd.f32 %v3765, %v3811
        %v3813 = vpop.f32.mrf.mxu0
        %v3814 = vadd.f32 %v3767, %v3813
        %3815 = vmatmul.bf16.gmra.mxu0 %v3462
        %v3816 = vpop.f32.mrf.mxu0
        %v3817 = vadd.f32 %v3770, %v3816
        %v3818 = vpop.f32.mrf.mxu0
        %v3819 = vadd.f32 %v3772, %v3818
        %3820 = vmatmul.bf16.gmra.mxu0 %v3466
        %v3821 = vpop.f32.mrf.mxu0
        %v3822 = vadd.f32 %v3775, %v3821
        %v3823 = vpop.f32.mrf.mxu0
        %v3824 = vadd.f32 %v3777, %v3823
        %3825 = vmatmul.bf16.gmra.mxu0 %v3470
        %v3826 = vpop.f32.mrf.mxu0
        %v3827 = vadd.f32 %v3780, %v3826
        %v3828 = vpop.f32.mrf.mxu0
        %v3829 = vadd.f32 %v3782, %v3828
        %3830 = vmatmul.bf16.gmra.mxu0 %v3474
        %v3831 = vpop.f32.mrf.mxu0
        %v3832 = vadd.f32 %v3785, %v3831
        %v3833 = vpop.f32.mrf.mxu0
        %v3834 = vadd.f32 %v3787, %v3833
        %3835 = vmatmul.bf16.gmra.mxu0 %v3478
        %v3836 = vpop.f32.mrf.mxu0
        %v3837 = vadd.f32 %v3790, %v3836
        %v3838 = vpop.f32.mrf.mxu0
        %v3839 = vadd.f32 %v3792, %v3838
        %3840 = vmatmul.bf16.gmra.mxu0 %v3482
        %v3841 = vpop.f32.mrf.mxu0
        %v3842 = vadd.f32 %v3795, %v3841
        %v3843 = vpop.f32.mrf.mxu0
        %v3844 = vadd.f32 %v3797, %v3843
        %3845 = vmatmul.bf16.gmra.mxu0 %v3481
        %v3846 = vpop.f32.mrf.mxu0
        %v3847 = vpop.f32.mrf.mxu0
        %3848 = vdwg.mxu0
        %3849 = vmatpush.bf16.msra.mxu0 %v3681
        %3850 = vmatpush.bf16.msra.mxu0 %v3678
        %3851 = vmatpush.bf16.msra.mxu0 %v3675
        %3852 = vmatpush.bf16.msra.mxu0 %v3672
        %3853 = vmatpush.bf16.msra.mxu0 %v3669
        %3854 = vmatpush.bf16.msra.mxu0 %v3666
        %3855 = vmatpush.bf16.msra.mxu0 %v3663
        %3856 = vmatpush.bf16.msra.mxu0 %v3660
        %3857 = vmatmul.bf16.gmra.mxu0 %v3455
        %v3858 = vpop.f32.mrf.mxu0
        %v3859 = vadd.f32 0.0, %v3858
        %v3860 = vpop.f32.mrf.mxu0
        %v3861 = vadd.f32 0.0, %v3860
        %3862 = vmatmul.bf16.gmra.mxu0 %v3460
        %v3863 = vpop.f32.mrf.mxu0
        %v3864 = vadd.f32 0.0, %v3863
        %v3865 = vpop.f32.mrf.mxu0
        %v3866 = vadd.f32 0.0, %v3865
        %3867 = vmatmul.bf16.gmra.mxu0 %v3464
        %v3868 = vpop.f32.mrf.mxu0
        %v3869 = vadd.f32 0.0, %v3868
        %v3870 = vpop.f32.mrf.mxu0
        %v3871 = vadd.f32 0.0, %v3870
        %3872 = vmatmul.bf16.gmra.mxu0 %v3468
        %v3873 = vpop.f32.mrf.mxu0
        %v3874 = vadd.f32 0.0, %v3873
        %v3875 = vpop.f32.mrf.mxu0
        %v3876 = vadd.f32 0.0, %v3875
        %3877 = vmatmul.bf16.gmra.mxu0 %v3472
        %v3878 = vpop.f32.mrf.mxu0
        %v3879 = vadd.f32 0.0, %v3878
        %v3880 = vpop.f32.mrf.mxu0
        %v3881 = vadd.f32 0.0, %v3880
        %3882 = vmatmul.bf16.gmra.mxu0 %v3476
        %v3883 = vpop.f32.mrf.mxu0
        %v3884 = vadd.f32 0.0, %v3883
        %v3885 = vpop.f32.mrf.mxu0
        %v3886 = vadd.f32 0.0, %v3885
        %3887 = vmatmul.bf16.gmra.mxu0 %v3480
        %v3888 = vpop.f32.mrf.mxu0
        %v3889 = vadd.f32 0.0, %v3888
        %v3890 = vpop.f32.mrf.mxu0
        %v3891 = vadd.f32 0.0, %v3890
        %3892 = vmatmul.bf16.gmra.mxu0 %v3479
        %v3893 = vpop.f32.mrf.mxu0
        %v3894 = vpop.f32.mrf.mxu0
        %3895 = vdwg.mxu0
        %3896 = vmatpush.bf16.msra.mxu0 %v3705
        %3897 = vmatpush.bf16.msra.mxu0 %v3702
        %3898 = vmatpush.bf16.msra.mxu0 %v3699
        %3899 = vmatpush.bf16.msra.mxu0 %v3696
        %3900 = vmatpush.bf16.msra.mxu0 %v3693
        %3901 = vmatpush.bf16.msra.mxu0 %v3690
        %3902 = vmatpush.bf16.msra.mxu0 %v3687
        %3903 = vmatpush.bf16.msra.mxu0 %v3684
        %3904 = vmatmul.bf16.gmra.mxu0 %v3458
        %v3905 = vpop.f32.mrf.mxu0
        %v3906 = vadd.f32 %v3859, %v3905
        %v3907 = vpop.f32.mrf.mxu0
        %v3908 = vadd.f32 %v3861, %v3907
        %3909 = vmatmul.bf16.gmra.mxu0 %v3462
        %v3910 = vpop.f32.mrf.mxu0
        %v3911 = vadd.f32 %v3864, %v3910
        %v3912 = vpop.f32.mrf.mxu0
        %v3913 = vadd.f32 %v3866, %v3912
        %3914 = vmatmul.bf16.gmra.mxu0 %v3466
        %v3915 = vpop.f32.mrf.mxu0
        %v3916 = vadd.f32 %v3869, %v3915
        %v3917 = vpop.f32.mrf.mxu0
        %v3918 = vadd.f32 %v3871, %v3917
        %3919 = vmatmul.bf16.gmra.mxu0 %v3470
        %v3920 = vpop.f32.mrf.mxu0
        %v3921 = vadd.f32 %v3874, %v3920
        %v3922 = vpop.f32.mrf.mxu0
        %v3923 = vadd.f32 %v3876, %v3922
        %3924 = vmatmul.bf16.gmra.mxu0 %v3474
        %v3925 = vpop.f32.mrf.mxu0
        %v3926 = vadd.f32 %v3879, %v3925
        %v3927 = vpop.f32.mrf.mxu0
        %v3928 = vadd.f32 %v3881, %v3927
        %3929 = vmatmul.bf16.gmra.mxu0 %v3478
        %v3930 = vpop.f32.mrf.mxu0
        %v3931 = vadd.f32 %v3884, %v3930
        %v3932 = vpop.f32.mrf.mxu0
        %v3933 = vadd.f32 %v3886, %v3932
        %3934 = vmatmul.bf16.gmra.mxu0 %v3482
        %v3935 = vpop.f32.mrf.mxu0
        %v3936 = vadd.f32 %v3889, %v3935
        %v3937 = vpop.f32.mrf.mxu0
        %v3938 = vadd.f32 %v3891, %v3937
        %3939 = vmatmul.bf16.gmra.mxu0 %v3481
        %v3940 = vpop.f32.mrf.mxu0
        %v3941 = vpop.f32.mrf.mxu0
        %3942 = vdwg.mxu0
        %3943 = vmatpush.bf16.msra.mxu0 %v3682
        %3944 = vmatpush.bf16.msra.mxu0 %v3679
        %3945 = vmatpush.bf16.msra.mxu0 %v3676
        %3946 = vmatpush.bf16.msra.mxu0 %v3673
        %3947 = vmatpush.bf16.msra.mxu0 %v3670
        %3948 = vmatpush.bf16.msra.mxu0 %v3667
        %3949 = vmatpush.bf16.msra.mxu0 %v3664
        %3950 = vmatpush.bf16.msra.mxu0 %v3661
        %3951 = vmatmul.bf16.gmra.mxu0 %v3455
        %v3952 = vpop.f32.mrf.mxu0
        %v3953 = vadd.f32 0.0, %v3952
        %v3954 = vpop.f32.mrf.mxu0
        %v3955 = vadd.f32 0.0, %v3954
        %3956 = vmatmul.bf16.gmra.mxu0 %v3460
        %v3957 = vpop.f32.mrf.mxu0
        %v3958 = vadd.f32 0.0, %v3957
        %v3959 = vpop.f32.mrf.mxu0
        %v3960 = vadd.f32 0.0, %v3959
        %3961 = vmatmul.bf16.gmra.mxu0 %v3464
        %v3962 = vpop.f32.mrf.mxu0
        %v3963 = vadd.f32 0.0, %v3962
        %v3964 = vpop.f32.mrf.mxu0
        %v3965 = vadd.f32 0.0, %v3964
        %3966 = vmatmul.bf16.gmra.mxu0 %v3468
        %v3967 = vpop.f32.mrf.mxu0
        %v3968 = vadd.f32 0.0, %v3967
        %v3969 = vpop.f32.mrf.mxu0
        %v3970 = vadd.f32 0.0, %v3969
        %3971 = vmatmul.bf16.gmra.mxu0 %v3472
        %v3972 = vpop.f32.mrf.mxu0
        %v3973 = vadd.f32 0.0, %v3972
        %v3974 = vpop.f32.mrf.mxu0
        %v3975 = vadd.f32 0.0, %v3974
        %3976 = vmatmul.bf16.gmra.mxu0 %v3476
        %v3977 = vpop.f32.mrf.mxu0
        %v3978 = vadd.f32 0.0, %v3977
        %v3979 = vpop.f32.mrf.mxu0
        %v3980 = vadd.f32 0.0, %v3979
        %3981 = vmatmul.bf16.gmra.mxu0 %v3480
        %v3982 = vpop.f32.mrf.mxu0
        %v3983 = vadd.f32 0.0, %v3982
        %v3984 = vpop.f32.mrf.mxu0
        %v3985 = vadd.f32 0.0, %v3984
        %3986 = vmatmul.bf16.gmra.mxu0 %v3479
        %v3987 = vpop.f32.mrf.mxu0
        %v3988 = vpop.f32.mrf.mxu0
        %3989 = vdwg.mxu0
        %3990 = vmatpush.bf16.msra.mxu0 %v3706
        %3991 = vmatpush.bf16.msra.mxu0 %v3703
        %3992 = vmatpush.bf16.msra.mxu0 %v3700
        %3993 = vmatpush.bf16.msra.mxu0 %v3697
        %3994 = vmatpush.bf16.msra.mxu0 %v3694
        %3995 = vmatpush.bf16.msra.mxu0 %v3691
        %3996 = vmatpush.bf16.msra.mxu0 %v3688
        %3997 = vmatpush.bf16.msra.mxu0 %v3685
        %3998 = vmatmul.bf16.gmra.mxu0 %v3458
        %v3999 = vpop.f32.mrf.mxu0
        %v4000 = vadd.f32 %v3953, %v3999
        %v4001 = vpop.f32.mrf.mxu0
        %v4002 = vadd.f32 %v3955, %v4001
        %4003 = vmatmul.bf16.gmra.mxu0 %v3462
        %v4004 = vpop.f32.mrf.mxu0
        %v4005 = vadd.f32 %v3958, %v4004
        %v4006 = vpop.f32.mrf.mxu0
        %v4007 = vadd.f32 %v3960, %v4006
        %4008 = vmatmul.bf16.gmra.mxu0 %v3466
        %v4009 = vpop.f32.mrf.mxu0
        %v4010 = vadd.f32 %v3963, %v4009
        %v4011 = vpop.f32.mrf.mxu0
        %v4012 = vadd.f32 %v3965, %v4011
        %4013 = vmatmul.bf16.gmra.mxu0 %v3470
        %v4014 = vpop.f32.mrf.mxu0
        %v4015 = vadd.f32 %v3968, %v4014
        %v4016 = vpop.f32.mrf.mxu0
        %v4017 = vadd.f32 %v3970, %v4016
        %4018 = vmatmul.bf16.gmra.mxu0 %v3474
        %v4019 = vpop.f32.mrf.mxu0
        %v4020 = vadd.f32 %v3973, %v4019
        %v4021 = vpop.f32.mrf.mxu0
        %v4022 = vadd.f32 %v3975, %v4021
        %4023 = vmatmul.bf16.gmra.mxu0 %v3478
        %v4024 = vpop.f32.mrf.mxu0
        %v4025 = vadd.f32 %v3978, %v4024
        %v4026 = vpop.f32.mrf.mxu0
        %v4027 = vadd.f32 %v3980, %v4026
        %4028 = vmatmul.bf16.gmra.mxu0 %v3482
        %v4029 = vpop.f32.mrf.mxu0
        %v4030 = vadd.f32 %v3983, %v4029
        %v4031 = vpop.f32.mrf.mxu0
        %v4032 = vadd.f32 %v3985, %v4031
        %4033 = vmatmul.bf16.gmra.mxu0 %v3481
        %v4034 = vpop.f32.mrf.mxu0
        %v4035 = vpop.f32.mrf.mxu0
        %4036 = vdwg.mxu0
        %v4037 = vadd.f32 %v3138, %v3812
        %v4038 = vadd.f32 %v3232, %v3906
        %v4039 = vadd.f32 %v3326, %v4000
        %v4040 = vadd.f32 %v3140, %v3814
        %v4041 = vadd.f32 %v3234, %v3908
        %v4042 = vadd.f32 %v3328, %v4002
        %v4043 = vadd.f32 %v3143, %v3817
        %v4044 = vadd.f32 %v3237, %v3911
        %v4045 = vadd.f32 %v3331, %v4005
        %v4046 = vadd.f32 %v3145, %v3819
        %v4047 = vadd.f32 %v3239, %v3913
        %v4048 = vadd.f32 %v3333, %v4007
        %v4049 = vadd.f32 %v3148, %v3822
        %v4050 = vadd.f32 %v3242, %v3916
        %v4051 = vadd.f32 %v3336, %v4010
        %v4052 = vadd.f32 %v3150, %v3824
        %v4053 = vadd.f32 %v3244, %v3918
        %v4054 = vadd.f32 %v3338, %v4012
        %v4055 = vadd.f32 %v3153, %v3827
        %v4056 = vadd.f32 %v3247, %v3921
        %v4057 = vadd.f32 %v3341, %v4015
        %v4058 = vadd.f32 %v3155, %v3829
        %v4059 = vadd.f32 %v3249, %v3923
        %v4060 = vadd.f32 %v3343, %v4017
        %v4061 = vadd.f32 %v3158, %v3832
        %v4062 = vadd.f32 %v3252, %v3926
        %v4063 = vadd.f32 %v3346, %v4020
        %v4064 = vadd.f32 %v3160, %v3834
        %v4065 = vadd.f32 %v3254, %v3928
        %v4066 = vadd.f32 %v3348, %v4022
        %v4067 = vadd.f32 %v3163, %v3837
        %v4068 = vadd.f32 %v3257, %v3931
        %v4069 = vadd.f32 %v3351, %v4025
        %v4070 = vadd.f32 %v3165, %v3839
        %v4071 = vadd.f32 %v3259, %v3933
        %v4072 = vadd.f32 %v3353, %v4027
        %v4073 = vadd.f32 %v3168, %v3842
        %v4074 = vadd.f32 %v3262, %v3936
        %v4075 = vadd.f32 %v3356, %v4030
        %v4076 = vadd.f32 %v3170, %v3844
        %v4077 = vadd.f32 %v3264, %v3938
        %v4078 = vadd.f32 %v3358, %v4032
        %v4079 = vld [vmem:[#allocation2 + $0x20] sm:$0xfc]
        %v4080 = vld [vmem:[#allocation2 + $0x28] sm:$0xfc]
        %v4081 = vld [vmem:[#allocation2 + $0x30] sm:$0xff]
        %v4082 = vld [vmem:[#allocation2 + $0x38] sm:$0xff]
        %v4083 = vld [vmem:[#allocation2 + $0x40] sm:$0xff]
        %v4084 = vld [vmem:[#allocation2 + $0x48] sm:$0xff]
        %v4085 = vld [vmem:[#allocation2 + $0x50] sm:$0xff]
        %v4086 = vld [vmem:[#allocation2 + $0x58] sm:$0xff]
        %v4087 = vld [vmem:[#allocation2 + $0x60] sm:$0xff]
        %v4088 = vld [vmem:[#allocation2 + $0x68] sm:$0xff]
        %v4089 = vld [vmem:[#allocation2 + $0x70] sm:$0xff]
        %v4090 = vld [vmem:[#allocation2 + $0x78] sm:$0xff]
        %v4091 = vld [vmem:[#allocation2 + $0x80] sm:$0xff]
        %v4092 = vld [vmem:[#allocation2 + $0x88] sm:$0xff]
        %v4093 = vld [vmem:[#allocation2 + $0x90] sm:$0xff]
        %v4094 = vld [vmem:[#allocation2 + $0x98] sm:$0xff]
        %v4095 = vld [vmem:[#allocation2 + $0xa0] sm:$0xff]
        %v4096 = vld [vmem:[#allocation2 + $0xa8] sm:$0xff]
        %v4097 = vld [vmem:[#allocation2 + $0xb0] sm:$0xff]
        %v4098 = vld [vmem:[#allocation2 + $0xb8] sm:$0xff]
        %v4099 = vld [vmem:[#allocation2 + $0xc0] sm:$0xff]
        %v4100 = vld [vmem:[#allocation2 + $0xc8] sm:$0xff]
        %v4101 = vld [vmem:[#allocation2 + $0xd0] sm:$0xff]
        %v4102 = vld [vmem:[#allocation2 + $0xd8] sm:$0xff]
        %v4103 = vld [vmem:[#allocation2 + $0xe0] sm:$0xff]
        %v4104 = vld [vmem:[#allocation2 + $0xe8] sm:$0xff]
        %v4105 = vld [vmem:[#allocation2 + $0xf0] sm:$0xff]
        %v4106 = vld [vmem:[#allocation2 + $0xf8] sm:$0xff]
        %v4107 = vld [vmem:[#allocation2 + $0x100] sm:$0xff]
        %v4108 = vld [vmem:[#allocation2 + $0x108] sm:$0xff]
        %v4109 = vld [vmem:[#allocation2 + $0x110] sm:$0x3f]
        %v4110 = vld [vmem:[#allocation2 + $0x118] sm:$0x3f]
        %v4111 = vpack.c.bf16 %v4081, %v4079
        %v4112 = vpack.c.bf16 %v4082, %v4080
        %v4113 = vpack.c.bf16 %v4085, %v4083
        %v4114 = vpack.c.bf16 %v4086, %v4084
        %v4115 = vpack.c.bf16 %v4089, %v4087
        %v4116 = vpack.c.bf16 %v4090, %v4088
        %v4117 = vpack.c.bf16 %v4093, %v4091
        %v4118 = vpack.c.bf16 %v4094, %v4092
        %v4119 = vpack.c.bf16 %v4097, %v4095
        %v4120 = vpack.c.bf16 %v4098, %v4096
        %v4121 = vpack.c.bf16 %v4101, %v4099
        %v4122 = vpack.c.bf16 %v4102, %v4100
        %v4123 = vpack.c.bf16 %v4105, %v4103
        %v4124 = vpack.c.bf16 %v4106, %v4104
        %v4125 = vpack.c.bf16 %v4109, %v4107
        %v4126 = vpack.c.bf16 %v4110, %v4108
        %s4127 = scalar_lea.vmem %s5, 1152
        %v4128 = vld [vmem:[%s4127] sm:$0xff]
        %v4129 = vld [vmem:[%s4127 + $0x8] sm:$0xf]
        %v4130 = vld [vmem:[%s4127 + $0xc] sm:$0xff]
        %v4131 = vld [vmem:[%s4127 + $0x14] sm:$0xf]
        %v4132 = vld [vmem:[%s4127 + $0x18] sm:$0xff]
        %v4133 = vld [vmem:[%s4127 + $0x20] sm:$0xf]
        %v4134 = vld [vmem:[%s4127 + $0x24] sm:$0xff]
        %v4135 = vld [vmem:[%s4127 + $0x2c] sm:$0xf]
        %v4136 = vld [vmem:[%s4127 + $0x30] sm:$0xff]
        %v4137 = vld [vmem:[%s4127 + $0x38] sm:$0xf]
        %v4138 = vld [vmem:[%s4127 + $0x3c] sm:$0xff]
        %v4139 = vld [vmem:[%s4127 + $0x44] sm:$0xf]
        %v4140 = vld [vmem:[%s4127 + $0x48] sm:$0xff]
        %v4141 = vld [vmem:[%s4127 + $0x50] sm:$0xf]
        %v4142 = vld [vmem:[%s4127 + $0x54] sm:$0xff]
        %v4143 = vld [vmem:[%s4127 + $0x5c] sm:$0xf]
        %v4144 = vld [vmem:[%s4127 + $0x60] sm:$0xff]
        %v4145 = vld [vmem:[%s4127 + $0x68] sm:$0xf]
        %v4146 = vld [vmem:[%s4127 + $0x6c] sm:$0xff]
        %v4147 = vld [vmem:[%s4127 + $0x74] sm:$0xf]
        %v4148 = vld [vmem:[%s4127 + $0x78] sm:$0xff]
        %v4149 = vld [vmem:[%s4127 + $0x80] sm:$0xf]
        %v4150 = vld [vmem:[%s4127 + $0x84] sm:$0xff]
        %v4151 = vld [vmem:[%s4127 + $0x8c] sm:$0xf]
        %v4152 = vld [vmem:[%s4127 + $0x90] sm:$0xff]
        %v4153 = vld [vmem:[%s4127 + $0x98] sm:$0xf]
        %v4154 = vld [vmem:[%s4127 + $0x9c] sm:$0xff]
        %v4155 = vld [vmem:[%s4127 + $0xa4] sm:$0xf]
        %v4156 = vld [vmem:[%s4127 + $0xa8] sm:$0xff]
        %v4157 = vld [vmem:[%s4127 + $0xb0] sm:$0xf]
        %v4158 = vld [vmem:[%s4127 + $0xb4] sm:$0xff]
        %v4159 = vld [vmem:[%s4127 + $0xbc] sm:$0xf]
        %v4160 = vld [vmem:[%s4127 + $0xc0] sm:$0xff]
        %v4161 = vld [vmem:[%s4127 + $0xc8] sm:$0xf]
        %v4162 = vld [vmem:[%s4127 + $0xcc] sm:$0xff]
        %v4163 = vld [vmem:[%s4127 + $0xd4] sm:$0xf]
        %v4164 = vld [vmem:[%s4127 + $0xd8] sm:$0xff]
        %v4165 = vld [vmem:[%s4127 + $0xe0] sm:$0xf]
        %v4166 = vld [vmem:[%s4127 + $0xe4] sm:$0xff]
        %v4167 = vld [vmem:[%s4127 + $0xec] sm:$0xf]
        %v4168 = vld [vmem:[%s4127 + $0xf0] sm:$0xff]
        %v4169 = vld [vmem:[%s4127 + $0xf8] sm:$0xf]
        %v4170 = vld [vmem:[%s4127 + $0xfc] sm:$0xff]
        %v4171 = vld [vmem:[%s4127 + $0x104] sm:$0xf]
        %v4172 = vld [vmem:[%s4127 + $0x108] sm:$0xff]
        %v4173 = vld [vmem:[%s4127 + $0x110] sm:$0xf]
        %v4174 = vld [vmem:[%s4127 + $0x114] sm:$0xff]
        %v4175 = vld [vmem:[%s4127 + $0x11c] sm:$0xf]
        %v4176 = vld [vmem:[%s4127 + $0x120] sm:$0xff]
        %v4177 = vld [vmem:[%s4127 + $0x128] sm:$0xf]
        %v4178 = vld [vmem:[%s4127 + $0x12c] sm:$0xff]
        %v4179 = vld [vmem:[%s4127 + $0x134] sm:$0xf]
        %v4180 = vld [vmem:[%s4127 + $0x138] sm:$0xff]
        %v4181 = vld [vmem:[%s4127 + $0x140] sm:$0xf]
        %v4182 = vld [vmem:[%s4127 + $0x144] sm:$0xff]
        %v4183 = vld [vmem:[%s4127 + $0x14c] sm:$0xf]
        %v4184 = vld [vmem:[%s4127 + $0x150] sm:$0xff]
        %v4185 = vld [vmem:[%s4127 + $0x158] sm:$0xf]
        %v4186 = vld [vmem:[%s4127 + $0x15c] sm:$0xff]
        %v4187 = vld [vmem:[%s4127 + $0x164] sm:$0xf]
        %v4188 = vld [vmem:[%s4127 + $0x168] sm:$0xff]
        %v4189 = vld [vmem:[%s4127 + $0x170] sm:$0xf]
        %v4190 = vld [vmem:[%s4127 + $0x174] sm:$0xff]
        %v4191 = vld [vmem:[%s4127 + $0x17c] sm:$0xf]
        %v4208 = vrot.slane %v4111, 1
        %v4209 = vrot.slane %v4113, 1
        %v4210 = vsel %vm3452, %v4208, %v4209
        %v4211 = vrot.slane %v4112, 1
        %v4212 = vrot.slane %v4114, 1
        %v4213 = vsel %vm3452, %v4211, %v4212
        %v4214 = vrot.slane %v4115, 1
        %v4215 = vsel %vm3452, %v4209, %v4214
        %v4216 = vrot.slane %v4116, 1
        %v4217 = vsel %vm3452, %v4212, %v4216
        %v4218 = vrot.slane %v4117, 1
        %v4219 = vsel %vm3452, %v4214, %v4218
        %v4220 = vrot.slane %v4118, 1
        %v4221 = vsel %vm3452, %v4216, %v4220
        %v4222 = vrot.slane %v4119, 1
        %v4223 = vsel %vm3452, %v4218, %v4222
        %v4224 = vrot.slane %v4120, 1
        %v4225 = vsel %vm3452, %v4220, %v4224
        %v4226 = vrot.slane %v4121, 1
        %v4227 = vsel %vm3452, %v4222, %v4226
        %v4228 = vrot.slane %v4122, 1
        %v4229 = vsel %vm3452, %v4224, %v4228
        %v4230 = vrot.slane %v4123, 1
        %v4231 = vsel %vm3452, %v4226, %v4230
        %v4232 = vrot.slane %v4124, 1
        %v4233 = vsel %vm3452, %v4228, %v4232
        %v4234 = vrot.slane %v4125, 1
        %v4235 = vsel %vm3452, %v4230, %v4234
        %v4236 = vrot.slane %v4126, 1
        %v4237 = vsel %vm3452, %v4232, %v4236
        %v4318 = vunpack.c.l.b16 %v4128
        %v4319 = vunpack.c.h.b16 %v4128
        %v4320 = vunpack.c.l.b16 %v4129
        %v4321 = vunpack.c.l.b16 %v4130
        %v4322 = vunpack.c.h.b16 %v4130
        %v4323 = vunpack.c.l.b16 %v4131
        %v4324 = vunpack.c.l.b16 %v4132
        %v4325 = vunpack.c.h.b16 %v4132
        %v4326 = vunpack.c.l.b16 %v4133
        %v4327 = vunpack.c.l.b16 %v4134
        %v4328 = vunpack.c.h.b16 %v4134
        %v4329 = vunpack.c.l.b16 %v4135
        %v4330 = vunpack.c.l.b16 %v4136
        %v4331 = vunpack.c.h.b16 %v4136
        %v4332 = vunpack.c.l.b16 %v4137
        %v4333 = vunpack.c.l.b16 %v4138
        %v4334 = vunpack.c.h.b16 %v4138
        %v4335 = vunpack.c.l.b16 %v4139
        %v4336 = vunpack.c.l.b16 %v4140
        %v4337 = vunpack.c.h.b16 %v4140
        %v4338 = vunpack.c.l.b16 %v4141
        %v4339 = vunpack.c.l.b16 %v4142
        %v4340 = vunpack.c.h.b16 %v4142
        %v4341 = vunpack.c.l.b16 %v4143
        %v4342 = vunpack.c.l.b16 %v4144
        %v4343 = vunpack.c.h.b16 %v4144
        %v4344 = vunpack.c.l.b16 %v4145
        %v4345 = vunpack.c.l.b16 %v4146
        %v4346 = vunpack.c.h.b16 %v4146
        %v4347 = vunpack.c.l.b16 %v4147
        %v4348 = vunpack.c.l.b16 %v4148
        %v4349 = vunpack.c.h.b16 %v4148
        %v4350 = vunpack.c.l.b16 %v4149
        %v4351 = vunpack.c.l.b16 %v4150
        %v4352 = vunpack.c.h.b16 %v4150
        %v4353 = vunpack.c.l.b16 %v4151
        %v4354 = vunpack.c.l.b16 %v4152
        %v4355 = vunpack.c.h.b16 %v4152
        %v4356 = vunpack.c.l.b16 %v4153
        %v4357 = vunpack.c.l.b16 %v4154
        %v4358 = vunpack.c.h.b16 %v4154
        %v4359 = vunpack.c.l.b16 %v4155
        %v4360 = vunpack.c.l.b16 %v4156
        %v4361 = vunpack.c.h.b16 %v4156
        %v4362 = vunpack.c.l.b16 %v4157
        %v4363 = vunpack.c.l.b16 %v4158
        %v4364 = vunpack.c.h.b16 %v4158
        %v4365 = vunpack.c.l.b16 %v4159
        %v4366 = vunpack.c.l.b16 %v4160
        %v4367 = vunpack.c.h.b16 %v4160
        %v4368 = vunpack.c.l.b16 %v4161
        %v4369 = vunpack.c.l.b16 %v4162
        %v4370 = vunpack.c.h.b16 %v4162
        %v4371 = vunpack.c.l.b16 %v4163
        %v4372 = vunpack.c.l.b16 %v4164
        %v4373 = vunpack.c.h.b16 %v4164
        %v4374 = vunpack.c.l.b16 %v4165
        %v4375 = vunpack.c.l.b16 %v4166
        %v4376 = vunpack.c.h.b16 %v4166
        %v4377 = vunpack.c.l.b16 %v4167
        %v4378 = vunpack.c.l.b16 %v4168
        %v4379 = vunpack.c.h.b16 %v4168
        %v4380 = vunpack.c.l.b16 %v4169
        %v4381 = vunpack.c.l.b16 %v4170
        %v4382 = vunpack.c.h.b16 %v4170
        %v4383 = vunpack.c.l.b16 %v4171
        %v4384 = vunpack.c.l.b16 %v4172
        %v4385 = vunpack.c.h.b16 %v4172
        %v4386 = vunpack.c.l.b16 %v4173
        %v4387 = vunpack.c.l.b16 %v4174
        %v4388 = vunpack.c.h.b16 %v4174
        %v4389 = vunpack.c.l.b16 %v4175
        %v4390 = vunpack.c.l.b16 %v4176
        %v4391 = vunpack.c.h.b16 %v4176
        %v4392 = vunpack.c.l.b16 %v4177
        %v4393 = vunpack.c.l.b16 %v4178
        %v4394 = vunpack.c.h.b16 %v4178
        %v4395 = vunpack.c.l.b16 %v4179
        %v4396 = vunpack.c.l.b16 %v4180
        %v4397 = vunpack.c.h.b16 %v4180
        %v4398 = vunpack.c.l.b16 %v4181
        %v4399 = vunpack.c.l.b16 %v4182
        %v4400 = vunpack.c.h.b16 %v4182
        %v4401 = vunpack.c.l.b16 %v4183
        %v4402 = vunpack.c.l.b16 %v4184
        %v4403 = vunpack.c.h.b16 %v4184
        %v4404 = vunpack.c.l.b16 %v4185
        %v4405 = vunpack.c.l.b16 %v4186
        %v4406 = vunpack.c.h.b16 %v4186
        %v4407 = vunpack.c.l.b16 %v4187
        %v4408 = vunpack.c.l.b16 %v4188
        %v4409 = vunpack.c.h.b16 %v4188
        %v4410 = vunpack.c.l.b16 %v4189
        %v4411 = vunpack.c.l.b16 %v4190
        %v4412 = vunpack.c.h.b16 %v4190
        %v4413 = vunpack.c.l.b16 %v4191
        %v4414 = vpack.c.b16 %v4321, %v4318
        %v4415 = vpack.c.b16 %v4322, %v4319
        %v4416 = vpack.c.b16 %v4323, %v4320
        %v4417 = vpack.c.b16 %v4327, %v4324
        %v4418 = vpack.c.b16 %v4328, %v4325
        %v4419 = vpack.c.b16 %v4329, %v4326
        %v4420 = vpack.c.b16 %v4333, %v4330
        %v4421 = vpack.c.b16 %v4334, %v4331
        %v4422 = vpack.c.b16 %v4335, %v4332
        %v4423 = vpack.c.b16 %v4339, %v4336
        %v4424 = vpack.c.b16 %v4340, %v4337
        %v4425 = vpack.c.b16 %v4341, %v4338
        %v4426 = vpack.c.b16 %v4345, %v4342
        %v4427 = vpack.c.b16 %v4346, %v4343
        %v4428 = vpack.c.b16 %v4347, %v4344
        %v4429 = vpack.c.b16 %v4351, %v4348
        %v4430 = vpack.c.b16 %v4352, %v4349
        %v4431 = vpack.c.b16 %v4353, %v4350
        %v4432 = vpack.c.b16 %v4357, %v4354
        %v4433 = vpack.c.b16 %v4358, %v4355
        %v4434 = vpack.c.b16 %v4359, %v4356
        %v4435 = vpack.c.b16 %v4363, %v4360
        %v4436 = vpack.c.b16 %v4364, %v4361
        %v4437 = vpack.c.b16 %v4365, %v4362
        %v4438 = vpack.c.b16 %v4369, %v4366
        %v4439 = vpack.c.b16 %v4370, %v4367
        %v4440 = vpack.c.b16 %v4371, %v4368
        %v4441 = vpack.c.b16 %v4375, %v4372
        %v4442 = vpack.c.b16 %v4376, %v4373
        %v4443 = vpack.c.b16 %v4377, %v4374
        %v4444 = vpack.c.b16 %v4381, %v4378
        %v4445 = vpack.c.b16 %v4382, %v4379
        %v4446 = vpack.c.b16 %v4383, %v4380
        %v4447 = vpack.c.b16 %v4387, %v4384
        %v4448 = vpack.c.b16 %v4388, %v4385
        %v4449 = vpack.c.b16 %v4389, %v4386
        %v4450 = vpack.c.b16 %v4393, %v4390
        %v4451 = vpack.c.b16 %v4394, %v4391
        %v4452 = vpack.c.b16 %v4395, %v4392
        %v4453 = vpack.c.b16 %v4399, %v4396
        %v4454 = vpack.c.b16 %v4400, %v4397
        %v4455 = vpack.c.b16 %v4401, %v4398
        %v4456 = vpack.c.b16 %v4405, %v4402
        %v4457 = vpack.c.b16 %v4406, %v4403
        %v4458 = vpack.c.b16 %v4407, %v4404
        %v4459 = vpack.c.b16 %v4411, %v4408
        %v4460 = vpack.c.b16 %v4412, %v4409
        %v4461 = vpack.c.b16 %v4413, %v4410
        %4510 = vmatpush.bf16.msra.mxu0 %v4435
        %4511 = vmatpush.bf16.msra.mxu0 %v4432
        %4512 = vmatpush.bf16.msra.mxu0 %v4429
        %4513 = vmatpush.bf16.msra.mxu0 %v4426
        %4514 = vmatpush.bf16.msra.mxu0 %v4423
        %4515 = vmatpush.bf16.msra.mxu0 %v4420
        %4516 = vmatpush.bf16.msra.mxu0 %v4417
        %4517 = vmatpush.bf16.msra.mxu0 %v4414
        %4518 = vmatmul.bf16.gmra.mxu0 %v4210
        %v4519 = vpop.f32.mrf.mxu0
        %v4520 = vadd.f32 0.0, %v4519
        %v4521 = vpop.f32.mrf.mxu0
        %v4522 = vadd.f32 0.0, %v4521
        %4523 = vmatmul.bf16.gmra.mxu0 %v4215
        %v4524 = vpop.f32.mrf.mxu0
        %v4525 = vadd.f32 0.0, %v4524
        %v4526 = vpop.f32.mrf.mxu0
        %v4527 = vadd.f32 0.0, %v4526
        %4528 = vmatmul.bf16.gmra.mxu0 %v4219
        %v4529 = vpop.f32.mrf.mxu0
        %v4530 = vadd.f32 0.0, %v4529
        %v4531 = vpop.f32.mrf.mxu0
        %v4532 = vadd.f32 0.0, %v4531
        %4533 = vmatmul.bf16.gmra.mxu0 %v4223
        %v4534 = vpop.f32.mrf.mxu0
        %v4535 = vadd.f32 0.0, %v4534
        %v4536 = vpop.f32.mrf.mxu0
        %v4537 = vadd.f32 0.0, %v4536
        %4538 = vmatmul.bf16.gmra.mxu0 %v4227
        %v4539 = vpop.f32.mrf.mxu0
        %v4540 = vadd.f32 0.0, %v4539
        %v4541 = vpop.f32.mrf.mxu0
        %v4542 = vadd.f32 0.0, %v4541
        %4543 = vmatmul.bf16.gmra.mxu0 %v4231
        %v4544 = vpop.f32.mrf.mxu0
        %v4545 = vadd.f32 0.0, %v4544
        %v4546 = vpop.f32.mrf.mxu0
        %v4547 = vadd.f32 0.0, %v4546
        %4548 = vmatmul.bf16.gmra.mxu0 %v4235
        %v4549 = vpop.f32.mrf.mxu0
        %v4550 = vadd.f32 0.0, %v4549
        %v4551 = vpop.f32.mrf.mxu0
        %v4552 = vadd.f32 0.0, %v4551
        %4553 = vmatmul.bf16.gmra.mxu0 %v4234
        %v4554 = vpop.f32.mrf.mxu0
        %v4555 = vpop.f32.mrf.mxu0
        %4556 = vdwg.mxu0
        %4557 = vmatpush.bf16.msra.mxu0 %v4459
        %4558 = vmatpush.bf16.msra.mxu0 %v4456
        %4559 = vmatpush.bf16.msra.mxu0 %v4453
        %4560 = vmatpush.bf16.msra.mxu0 %v4450
        %4561 = vmatpush.bf16.msra.mxu0 %v4447
        %4562 = vmatpush.bf16.msra.mxu0 %v4444
        %4563 = vmatpush.bf16.msra.mxu0 %v4441
        %4564 = vmatpush.bf16.msra.mxu0 %v4438
        %4565 = vmatmul.bf16.gmra.mxu0 %v4213
        %v4566 = vpop.f32.mrf.mxu0
        %v4567 = vadd.f32 %v4520, %v4566
        %v4568 = vpop.f32.mrf.mxu0
        %v4569 = vadd.f32 %v4522, %v4568
        %4570 = vmatmul.bf16.gmra.mxu0 %v4217
        %v4571 = vpop.f32.mrf.mxu0
        %v4572 = vadd.f32 %v4525, %v4571
        %v4573 = vpop.f32.mrf.mxu0
        %v4574 = vadd.f32 %v4527, %v4573
        %4575 = vmatmul.bf16.gmra.mxu0 %v4221
        %v4576 = vpop.f32.mrf.mxu0
        %v4577 = vadd.f32 %v4530, %v4576
        %v4578 = vpop.f32.mrf.mxu0
        %v4579 = vadd.f32 %v4532, %v4578
        %4580 = vmatmul.bf16.gmra.mxu0 %v4225
        %v4581 = vpop.f32.mrf.mxu0
        %v4582 = vadd.f32 %v4535, %v4581
        %v4583 = vpop.f32.mrf.mxu0
        %v4584 = vadd.f32 %v4537, %v4583
        %4585 = vmatmul.bf16.gmra.mxu0 %v4229
        %v4586 = vpop.f32.mrf.mxu0
        %v4587 = vadd.f32 %v4540, %v4586
        %v4588 = vpop.f32.mrf.mxu0
        %v4589 = vadd.f32 %v4542, %v4588
        %4590 = vmatmul.bf16.gmra.mxu0 %v4233
        %v4591 = vpop.f32.mrf.mxu0
        %v4592 = vadd.f32 %v4545, %v4591
        %v4593 = vpop.f32.mrf.mxu0
        %v4594 = vadd.f32 %v4547, %v4593
        %4595 = vmatmul.bf16.gmra.mxu0 %v4237
        %v4596 = vpop.f32.mrf.mxu0
        %v4597 = vadd.f32 %v4550, %v4596
        %v4598 = vpop.f32.mrf.mxu0
        %v4599 = vadd.f32 %v4552, %v4598
        %4600 = vmatmul.bf16.gmra.mxu0 %v4236
        %v4601 = vpop.f32.mrf.mxu0
        %v4602 = vpop.f32.mrf.mxu0
        %4603 = vdwg.mxu0
        %4604 = vmatpush.bf16.msra.mxu0 %v4436
        %4605 = vmatpush.bf16.msra.mxu0 %v4433
        %4606 = vmatpush.bf16.msra.mxu0 %v4430
        %4607 = vmatpush.bf16.msra.mxu0 %v4427
        %4608 = vmatpush.bf16.msra.mxu0 %v4424
        %4609 = vmatpush.bf16.msra.mxu0 %v4421
        %4610 = vmatpush.bf16.msra.mxu0 %v4418
        %4611 = vmatpush.bf16.msra.mxu0 %v4415
        %4612 = vmatmul.bf16.gmra.mxu0 %v4210
        %v4613 = vpop.f32.mrf.mxu0
        %v4614 = vadd.f32 0.0, %v4613
        %v4615 = vpop.f32.mrf.mxu0
        %v4616 = vadd.f32 0.0, %v4615
        %4617 = vmatmul.bf16.gmra.mxu0 %v4215
        %v4618 = vpop.f32.mrf.mxu0
        %v4619 = vadd.f32 0.0, %v4618
        %v4620 = vpop.f32.mrf.mxu0
        %v4621 = vadd.f32 0.0, %v4620
        %4622 = vmatmul.bf16.gmra.mxu0 %v4219
        %v4623 = vpop.f32.mrf.mxu0
        %v4624 = vadd.f32 0.0, %v4623
        %v4625 = vpop.f32.mrf.mxu0
        %v4626 = vadd.f32 0.0, %v4625
        %4627 = vmatmul.bf16.gmra.mxu0 %v4223
        %v4628 = vpop.f32.mrf.mxu0
        %v4629 = vadd.f32 0.0, %v4628
        %v4630 = vpop.f32.mrf.mxu0
        %v4631 = vadd.f32 0.0, %v4630
        %4632 = vmatmul.bf16.gmra.mxu0 %v4227
        %v4633 = vpop.f32.mrf.mxu0
        %v4634 = vadd.f32 0.0, %v4633
        %v4635 = vpop.f32.mrf.mxu0
        %v4636 = vadd.f32 0.0, %v4635
        %4637 = vmatmul.bf16.gmra.mxu0 %v4231
        %v4638 = vpop.f32.mrf.mxu0
        %v4639 = vadd.f32 0.0, %v4638
        %v4640 = vpop.f32.mrf.mxu0
        %v4641 = vadd.f32 0.0, %v4640
        %4642 = vmatmul.bf16.gmra.mxu0 %v4235
        %v4643 = vpop.f32.mrf.mxu0
        %v4644 = vadd.f32 0.0, %v4643
        %v4645 = vpop.f32.mrf.mxu0
        %v4646 = vadd.f32 0.0, %v4645
        %4647 = vmatmul.bf16.gmra.mxu0 %v4234
        %v4648 = vpop.f32.mrf.mxu0
        %v4649 = vpop.f32.mrf.mxu0
        %4650 = vdwg.mxu0
        %4651 = vmatpush.bf16.msra.mxu0 %v4460
        %4652 = vmatpush.bf16.msra.mxu0 %v4457
        %4653 = vmatpush.bf16.msra.mxu0 %v4454
        %4654 = vmatpush.bf16.msra.mxu0 %v4451
        %4655 = vmatpush.bf16.msra.mxu0 %v4448
        %4656 = vmatpush.bf16.msra.mxu0 %v4445
        %4657 = vmatpush.bf16.msra.mxu0 %v4442
        %4658 = vmatpush.bf16.msra.mxu0 %v4439
        %4659 = vmatmul.bf16.gmra.mxu0 %v4213
        %v4660 = vpop.f32.mrf.mxu0
        %v4661 = vadd.f32 %v4614, %v4660
        %v4662 = vpop.f32.mrf.mxu0
        %v4663 = vadd.f32 %v4616, %v4662
        %4664 = vmatmul.bf16.gmra.mxu0 %v4217
        %v4665 = vpop.f32.mrf.mxu0
        %v4666 = vadd.f32 %v4619, %v4665
        %v4667 = vpop.f32.mrf.mxu0
        %v4668 = vadd.f32 %v4621, %v4667
        %4669 = vmatmul.bf16.gmra.mxu0 %v4221
        %v4670 = vpop.f32.mrf.mxu0
        %v4671 = vadd.f32 %v4624, %v4670
        %v4672 = vpop.f32.mrf.mxu0
        %v4673 = vadd.f32 %v4626, %v4672
        %4674 = vmatmul.bf16.gmra.mxu0 %v4225
        %v4675 = vpop.f32.mrf.mxu0
        %v4676 = vadd.f32 %v4629, %v4675
        %v4677 = vpop.f32.mrf.mxu0
        %v4678 = vadd.f32 %v4631, %v4677
        %4679 = vmatmul.bf16.gmra.mxu0 %v4229
        %v4680 = vpop.f32.mrf.mxu0
        %v4681 = vadd.f32 %v4634, %v4680
        %v4682 = vpop.f32.mrf.mxu0
        %v4683 = vadd.f32 %v4636, %v4682
        %4684 = vmatmul.bf16.gmra.mxu0 %v4233
        %v4685 = vpop.f32.mrf.mxu0
        %v4686 = vadd.f32 %v4639, %v4685
        %v4687 = vpop.f32.mrf.mxu0
        %v4688 = vadd.f32 %v4641, %v4687
        %4689 = vmatmul.bf16.gmra.mxu0 %v4237
        %v4690 = vpop.f32.mrf.mxu0
        %v4691 = vadd.f32 %v4644, %v4690
        %v4692 = vpop.f32.mrf.mxu0
        %v4693 = vadd.f32 %v4646, %v4692
        %4694 = vmatmul.bf16.gmra.mxu0 %v4236
        %v4695 = vpop.f32.mrf.mxu0
        %v4696 = vpop.f32.mrf.mxu0
        %4697 = vdwg.mxu0
        %4698 = vmatpush.bf16.msra.mxu0 %v4437
        %4699 = vmatpush.bf16.msra.mxu0 %v4434
        %4700 = vmatpush.bf16.msra.mxu0 %v4431
        %4701 = vmatpush.bf16.msra.mxu0 %v4428
        %4702 = vmatpush.bf16.msra.mxu0 %v4425
        %4703 = vmatpush.bf16.msra.mxu0 %v4422
        %4704 = vmatpush.bf16.msra.mxu0 %v4419
        %4705 = vmatpush.bf16.msra.mxu0 %v4416
        %4706 = vmatmul.bf16.gmra.mxu0 %v4210
        %v4707 = vpop.f32.mrf.mxu0
        %v4708 = vadd.f32 0.0, %v4707
        %v4709 = vpop.f32.mrf.mxu0
        %v4710 = vadd.f32 0.0, %v4709
        %4711 = vmatmul.bf16.gmra.mxu0 %v4215
        %v4712 = vpop.f32.mrf.mxu0
        %v4713 = vadd.f32 0.0, %v4712
        %v4714 = vpop.f32.mrf.mxu0
        %v4715 = vadd.f32 0.0, %v4714
        %4716 = vmatmul.bf16.gmra.mxu0 %v4219
        %v4717 = vpop.f32.mrf.mxu0
        %v4718 = vadd.f32 0.0, %v4717
        %v4719 = vpop.f32.mrf.mxu0
        %v4720 = vadd.f32 0.0, %v4719
        %4721 = vmatmul.bf16.gmra.mxu0 %v4223
        %v4722 = vpop.f32.mrf.mxu0
        %v4723 = vadd.f32 0.0, %v4722
        %v4724 = vpop.f32.mrf.mxu0
        %v4725 = vadd.f32 0.0, %v4724
        %4726 = vmatmul.bf16.gmra.mxu0 %v4227
        %v4727 = vpop.f32.mrf.mxu0
        %v4728 = vadd.f32 0.0, %v4727
        %v4729 = vpop.f32.mrf.mxu0
        %v4730 = vadd.f32 0.0, %v4729
        %4731 = vmatmul.bf16.gmra.mxu0 %v4231
        %v4732 = vpop.f32.mrf.mxu0
        %v4733 = vadd.f32 0.0, %v4732
        %v4734 = vpop.f32.mrf.mxu0
        %v4735 = vadd.f32 0.0, %v4734
        %4736 = vmatmul.bf16.gmra.mxu0 %v4235
        %v4737 = vpop.f32.mrf.mxu0
        %v4738 = vadd.f32 0.0, %v4737
        %v4739 = vpop.f32.mrf.mxu0
        %v4740 = vadd.f32 0.0, %v4739
        %4741 = vmatmul.bf16.gmra.mxu0 %v4234
        %v4742 = vpop.f32.mrf.mxu0
        %v4743 = vpop.f32.mrf.mxu0
        %4744 = vdwg.mxu0
        %4745 = vmatpush.bf16.msra.mxu0 %v4461
        %4746 = vmatpush.bf16.msra.mxu0 %v4458
        %4747 = vmatpush.bf16.msra.mxu0 %v4455
        %4748 = vmatpush.bf16.msra.mxu0 %v4452
        %4749 = vmatpush.bf16.msra.mxu0 %v4449
        %4750 = vmatpush.bf16.msra.mxu0 %v4446
        %4751 = vmatpush.bf16.msra.mxu0 %v4443
        %4752 = vmatpush.bf16.msra.mxu0 %v4440
        %4753 = vmatmul.bf16.gmra.mxu0 %v4213
        %v4754 = vpop.f32.mrf.mxu0
        %v4755 = vadd.f32 %v4708, %v4754
        %v4756 = vpop.f32.mrf.mxu0
        %v4757 = vadd.f32 %v4710, %v4756
        %4758 = vmatmul.bf16.gmra.mxu0 %v4217
        %v4759 = vpop.f32.mrf.mxu0
        %v4760 = vadd.f32 %v4713, %v4759
        %v4761 = vpop.f32.mrf.mxu0
        %v4762 = vadd.f32 %v4715, %v4761
        %4763 = vmatmul.bf16.gmra.mxu0 %v4221
        %v4764 = vpop.f32.mrf.mxu0
        %v4765 = vadd.f32 %v4718, %v4764
        %v4766 = vpop.f32.mrf.mxu0
        %v4767 = vadd.f32 %v4720, %v4766
        %4768 = vmatmul.bf16.gmra.mxu0 %v4225
        %v4769 = vpop.f32.mrf.mxu0
        %v4770 = vadd.f32 %v4723, %v4769
        %v4771 = vpop.f32.mrf.mxu0
        %v4772 = vadd.f32 %v4725, %v4771
        %4773 = vmatmul.bf16.gmra.mxu0 %v4229
        %v4774 = vpop.f32.mrf.mxu0
        %v4775 = vadd.f32 %v4728, %v4774
        %v4776 = vpop.f32.mrf.mxu0
        %v4777 = vadd.f32 %v4730, %v4776
        %4778 = vmatmul.bf16.gmra.mxu0 %v4233
        %v4779 = vpop.f32.mrf.mxu0
        %v4780 = vadd.f32 %v4733, %v4779
        %v4781 = vpop.f32.mrf.mxu0
        %v4782 = vadd.f32 %v4735, %v4781
        %4783 = vmatmul.bf16.gmra.mxu0 %v4237
        %v4784 = vpop.f32.mrf.mxu0
        %v4785 = vadd.f32 %v4738, %v4784
        %v4786 = vpop.f32.mrf.mxu0
        %v4787 = vadd.f32 %v4740, %v4786
        %4788 = vmatmul.bf16.gmra.mxu0 %v4236
        %v4789 = vpop.f32.mrf.mxu0
        %v4790 = vpop.f32.mrf.mxu0
        %4791 = vdwg.mxu0
        %v4792 = vadd.f32 %v4037, %v4567
        %v4793 = vadd.f32 %v4038, %v4661
        %v4794 = vadd.f32 %v4039, %v4755
        %v4795 = vadd.f32 %v4040, %v4569
        %v4796 = vadd.f32 %v4041, %v4663
        %v4797 = vadd.f32 %v4042, %v4757
        %v4798 = vadd.f32 %v4043, %v4572
        %v4799 = vadd.f32 %v4044, %v4666
        %v4800 = vadd.f32 %v4045, %v4760
        %v4801 = vadd.f32 %v4046, %v4574
        %v4802 = vadd.f32 %v4047, %v4668
        %v4803 = vadd.f32 %v4048, %v4762
        %v4804 = vadd.f32 %v4049, %v4577
        %v4805 = vadd.f32 %v4050, %v4671
        %v4806 = vadd.f32 %v4051, %v4765
        %v4807 = vadd.f32 %v4052, %v4579
        %v4808 = vadd.f32 %v4053, %v4673
        %v4809 = vadd.f32 %v4054, %v4767
        %v4810 = vadd.f32 %v4055, %v4582
        %v4811 = vadd.f32 %v4056, %v4676
        %v4812 = vadd.f32 %v4057, %v4770
        %v4813 = vadd.f32 %v4058, %v4584
        %v4814 = vadd.f32 %v4059, %v4678
        %v4815 = vadd.f32 %v4060, %v4772
        %v4816 = vadd.f32 %v4061, %v4587
        %v4817 = vadd.f32 %v4062, %v4681
        %v4818 = vadd.f32 %v4063, %v4775
        %v4819 = vadd.f32 %v4064, %v4589
        %v4820 = vadd.f32 %v4065, %v4683
        %v4821 = vadd.f32 %v4066, %v4777
        %v4822 = vadd.f32 %v4067, %v4592
        %v4823 = vadd.f32 %v4068, %v4686
        %v4824 = vadd.f32 %v4069, %v4780
        %v4825 = vadd.f32 %v4070, %v4594
        %v4826 = vadd.f32 %v4071, %v4688
        %v4827 = vadd.f32 %v4072, %v4782
        %v4828 = vadd.f32 %v4073, %v4597
        %v4829 = vadd.f32 %v4074, %v4691
        %v4830 = vadd.f32 %v4075, %v4785
        %v4831 = vadd.f32 %v4076, %v4599
        %v4832 = vadd.f32 %v4077, %v4693
        %v4833 = vadd.f32 %v4078, %v4787
        %v4834 = vld [vmem:[#allocation2 + $0x20] sm:$0xf8]
        %v4835 = vld [vmem:[#allocation2 + $0x28] sm:$0xf8]
        %v4836 = vld [vmem:[#allocation2 + $0x110] sm:$0x7f]
        %v4837 = vld [vmem:[#allocation2 + $0x118] sm:$0x7f]
        %v4838 = vpack.c.bf16 %v4081, %v4834
        %v4839 = vpack.c.bf16 %v4082, %v4835
        %v4840 = vpack.c.bf16 %v4836, %v4107
        %v4841 = vpack.c.bf16 %v4837, %v4108
        %s4842 = scalar_lea.vmem %s5, 1536
        %v4843 = vld [vmem:[%s4842] sm:$0xff]
        %v4844 = vld [vmem:[%s4842 + $0x8] sm:$0xf]
        %v4845 = vld [vmem:[%s4842 + $0xc] sm:$0xff]
        %v4846 = vld [vmem:[%s4842 + $0x14] sm:$0xf]
        %v4847 = vld [vmem:[%s4842 + $0x18] sm:$0xff]
        %v4848 = vld [vmem:[%s4842 + $0x20] sm:$0xf]
        %v4849 = vld [vmem:[%s4842 + $0x24] sm:$0xff]
        %v4850 = vld [vmem:[%s4842 + $0x2c] sm:$0xf]
        %v4851 = vld [vmem:[%s4842 + $0x30] sm:$0xff]
        %v4852 = vld [vmem:[%s4842 + $0x38] sm:$0xf]
        %v4853 = vld [vmem:[%s4842 + $0x3c] sm:$0xff]
        %v4854 = vld [vmem:[%s4842 + $0x44] sm:$0xf]
        %v4855 = vld [vmem:[%s4842 + $0x48] sm:$0xff]
        %v4856 = vld [vmem:[%s4842 + $0x50] sm:$0xf]
        %v4857 = vld [vmem:[%s4842 + $0x54] sm:$0xff]
        %v4858 = vld [vmem:[%s4842 + $0x5c] sm:$0xf]
        %v4859 = vld [vmem:[%s4842 + $0x60] sm:$0xff]
        %v4860 = vld [vmem:[%s4842 + $0x68] sm:$0xf]
        %v4861 = vld [vmem:[%s4842 + $0x6c] sm:$0xff]
        %v4862 = vld [vmem:[%s4842 + $0x74] sm:$0xf]
        %v4863 = vld [vmem:[%s4842 + $0x78] sm:$0xff]
        %v4864 = vld [vmem:[%s4842 + $0x80] sm:$0xf]
        %v4865 = vld [vmem:[%s4842 + $0x84] sm:$0xff]
        %v4866 = vld [vmem:[%s4842 + $0x8c] sm:$0xf]
        %v4867 = vld [vmem:[%s4842 + $0x90] sm:$0xff]
        %v4868 = vld [vmem:[%s4842 + $0x98] sm:$0xf]
        %v4869 = vld [vmem:[%s4842 + $0x9c] sm:$0xff]
        %v4870 = vld [vmem:[%s4842 + $0xa4] sm:$0xf]
        %v4871 = vld [vmem:[%s4842 + $0xa8] sm:$0xff]
        %v4872 = vld [vmem:[%s4842 + $0xb0] sm:$0xf]
        %v4873 = vld [vmem:[%s4842 + $0xb4] sm:$0xff]
        %v4874 = vld [vmem:[%s4842 + $0xbc] sm:$0xf]
        %v4875 = vld [vmem:[%s4842 + $0xc0] sm:$0xff]
        %v4876 = vld [vmem:[%s4842 + $0xc8] sm:$0xf]
        %v4877 = vld [vmem:[%s4842 + $0xcc] sm:$0xff]
        %v4878 = vld [vmem:[%s4842 + $0xd4] sm:$0xf]
        %v4879 = vld [vmem:[%s4842 + $0xd8] sm:$0xff]
        %v4880 = vld [vmem:[%s4842 + $0xe0] sm:$0xf]
        %v4881 = vld [vmem:[%s4842 + $0xe4] sm:$0xff]
        %v4882 = vld [vmem:[%s4842 + $0xec] sm:$0xf]
        %v4883 = vld [vmem:[%s4842 + $0xf0] sm:$0xff]
        %v4884 = vld [vmem:[%s4842 + $0xf8] sm:$0xf]
        %v4885 = vld [vmem:[%s4842 + $0xfc] sm:$0xff]
        %v4886 = vld [vmem:[%s4842 + $0x104] sm:$0xf]
        %v4887 = vld [vmem:[%s4842 + $0x108] sm:$0xff]
        %v4888 = vld [vmem:[%s4842 + $0x110] sm:$0xf]
        %v4889 = vld [vmem:[%s4842 + $0x114] sm:$0xff]
        %v4890 = vld [vmem:[%s4842 + $0x11c] sm:$0xf]
        %v4891 = vld [vmem:[%s4842 + $0x120] sm:$0xff]
        %v4892 = vld [vmem:[%s4842 + $0x128] sm:$0xf]
        %v4893 = vld [vmem:[%s4842 + $0x12c] sm:$0xff]
        %v4894 = vld [vmem:[%s4842 + $0x134] sm:$0xf]
        %v4895 = vld [vmem:[%s4842 + $0x138] sm:$0xff]
        %v4896 = vld [vmem:[%s4842 + $0x140] sm:$0xf]
        %v4897 = vld [vmem:[%s4842 + $0x144] sm:$0xff]
        %v4898 = vld [vmem:[%s4842 + $0x14c] sm:$0xf]
        %v4899 = vld [vmem:[%s4842 + $0x150] sm:$0xff]
        %v4900 = vld [vmem:[%s4842 + $0x158] sm:$0xf]
        %v4901 = vld [vmem:[%s4842 + $0x15c] sm:$0xff]
        %v4902 = vld [vmem:[%s4842 + $0x164] sm:$0xf]
        %v4903 = vld [vmem:[%s4842 + $0x168] sm:$0xff]
        %v4904 = vld [vmem:[%s4842 + $0x170] sm:$0xf]
        %v4905 = vld [vmem:[%s4842 + $0x174] sm:$0xff]
        %v4906 = vld [vmem:[%s4842 + $0x17c] sm:$0xf]
        %vm4907 = vsmask.f32 6400
        %v4909 = vshrl.u32 %v4838, 16
        %v4911 = vrot.slane %v4909, 1
        %v4912 = vshll.u32 %v4838, 16
        %v4914 = vrot.slane %v4912, 2
        %v4915 = vor.u32 %v4911, %v4914
        %v4917 = vshrl.u32 %v4113, 16
        %v4919 = vrot.slane %v4917, 1
        %v4920 = vshll.u32 %v4113, 16
        %v4922 = vrot.slane %v4920, 2
        %v4923 = vor.u32 %v4919, %v4922
        %v4924 = vsel %vm4907, %v4915, %v4923
        %v4926 = vshrl.u32 %v4839, 16
        %v4928 = vrot.slane %v4926, 1
        %v4929 = vshll.u32 %v4839, 16
        %v4931 = vrot.slane %v4929, 2
        %v4932 = vor.u32 %v4928, %v4931
        %v4934 = vshrl.u32 %v4114, 16
        %v4936 = vrot.slane %v4934, 1
        %v4937 = vshll.u32 %v4114, 16
        %v4939 = vrot.slane %v4937, 2
        %v4940 = vor.u32 %v4936, %v4939
        %v4941 = vsel %vm4907, %v4932, %v4940
        %v4943 = vshrl.u32 %v4115, 16
        %v4945 = vrot.slane %v4943, 1
        %v4946 = vshll.u32 %v4115, 16
        %v4948 = vrot.slane %v4946, 2
        %v4949 = vor.u32 %v4945, %v4948
        %v4950 = vsel %vm4907, %v4923, %v4949
        %v4952 = vshrl.u32 %v4116, 16
        %v4954 = vrot.slane %v4952, 1
        %v4955 = vshll.u32 %v4116, 16
        %v4957 = vrot.slane %v4955, 2
        %v4958 = vor.u32 %v4954, %v4957
        %v4959 = vsel %vm4907, %v4940, %v4958
        %v4961 = vshrl.u32 %v4117, 16
        %v4963 = vrot.slane %v4961, 1
        %v4964 = vshll.u32 %v4117, 16
        %v4966 = vrot.slane %v4964, 2
        %v4967 = vor.u32 %v4963, %v4966
        %v4968 = vsel %vm4907, %v4949, %v4967
        %v4970 = vshrl.u32 %v4118, 16
        %v4972 = vrot.slane %v4970, 1
        %v4973 = vshll.u32 %v4118, 16
        %v4975 = vrot.slane %v4973, 2
        %v4976 = vor.u32 %v4972, %v4975
        %v4977 = vsel %vm4907, %v4958, %v4976
        %v4979 = vshrl.u32 %v4119, 16
        %v4981 = vrot.slane %v4979, 1
        %v4982 = vshll.u32 %v4119, 16
        %v4984 = vrot.slane %v4982, 2
        %v4985 = vor.u32 %v4981, %v4984
        %v4986 = vsel %vm4907, %v4967, %v4985
        %v4988 = vshrl.u32 %v4120, 16
        %v4990 = vrot.slane %v4988, 1
        %v4991 = vshll.u32 %v4120, 16
        %v4993 = vrot.slane %v4991, 2
        %v4994 = vor.u32 %v4990, %v4993
        %v4995 = vsel %vm4907, %v4976, %v4994
        %v4997 = vshrl.u32 %v4121, 16
        %v4999 = vrot.slane %v4997, 1
        %v5000 = vshll.u32 %v4121, 16
        %v5002 = vrot.slane %v5000, 2
        %v5003 = vor.u32 %v4999, %v5002
        %v5004 = vsel %vm4907, %v4985, %v5003
        %v5006 = vshrl.u32 %v4122, 16
        %v5008 = vrot.slane %v5006, 1
        %v5009 = vshll.u32 %v4122, 16
        %v5011 = vrot.slane %v5009, 2
        %v5012 = vor.u32 %v5008, %v5011
        %v5013 = vsel %vm4907, %v4994, %v5012
        %v5015 = vshrl.u32 %v4123, 16
        %v5017 = vrot.slane %v5015, 1
        %v5018 = vshll.u32 %v4123, 16
        %v5020 = vrot.slane %v5018, 2
        %v5021 = vor.u32 %v5017, %v5020
        %v5022 = vsel %vm4907, %v5003, %v5021
        %v5024 = vshrl.u32 %v4124, 16
        %v5026 = vrot.slane %v5024, 1
        %v5027 = vshll.u32 %v4124, 16
        %v5029 = vrot.slane %v5027, 2
        %v5030 = vor.u32 %v5026, %v5029
        %v5031 = vsel %vm4907, %v5012, %v5030
        %v5033 = vshrl.u32 %v4840, 16
        %v5035 = vrot.slane %v5033, 1
        %v5036 = vshll.u32 %v4840, 16
        %v5038 = vrot.slane %v5036, 2
        %v5039 = vor.u32 %v5035, %v5038
        %v5040 = vsel %vm4907, %v5021, %v5039
        %v5042 = vshrl.u32 %v4841, 16
        %v5044 = vrot.slane %v5042, 1
        %v5045 = vshll.u32 %v4841, 16
        %v5047 = vrot.slane %v5045, 2
        %v5048 = vor.u32 %v5044, %v5047
        %v5049 = vsel %vm4907, %v5030, %v5048
        %v5130 = vunpack.c.l.b16 %v4843
        %v5131 = vunpack.c.h.b16 %v4843
        %v5132 = vunpack.c.l.b16 %v4844
        %v5133 = vunpack.c.l.b16 %v4845
        %v5134 = vunpack.c.h.b16 %v4845
        %v5135 = vunpack.c.l.b16 %v4846
        %v5136 = vunpack.c.l.b16 %v4847
        %v5137 = vunpack.c.h.b16 %v4847
        %v5138 = vunpack.c.l.b16 %v4848
        %v5139 = vunpack.c.l.b16 %v4849
        %v5140 = vunpack.c.h.b16 %v4849
        %v5141 = vunpack.c.l.b16 %v4850
        %v5142 = vunpack.c.l.b16 %v4851
        %v5143 = vunpack.c.h.b16 %v4851
        %v5144 = vunpack.c.l.b16 %v4852
        %v5145 = vunpack.c.l.b16 %v4853
        %v5146 = vunpack.c.h.b16 %v4853
        %v5147 = vunpack.c.l.b16 %v4854
        %v5148 = vunpack.c.l.b16 %v4855
        %v5149 = vunpack.c.h.b16 %v4855
        %v5150 = vunpack.c.l.b16 %v4856
        %v5151 = vunpack.c.l.b16 %v4857
        %v5152 = vunpack.c.h.b16 %v4857
        %v5153 = vunpack.c.l.b16 %v4858
        %v5154 = vunpack.c.l.b16 %v4859
        %v5155 = vunpack.c.h.b16 %v4859
        %v5156 = vunpack.c.l.b16 %v4860
        %v5157 = vunpack.c.l.b16 %v4861
        %v5158 = vunpack.c.h.b16 %v4861
        %v5159 = vunpack.c.l.b16 %v4862
        %v5160 = vunpack.c.l.b16 %v4863
        %v5161 = vunpack.c.h.b16 %v4863
        %v5162 = vunpack.c.l.b16 %v4864
        %v5163 = vunpack.c.l.b16 %v4865
        %v5164 = vunpack.c.h.b16 %v4865
        %v5165 = vunpack.c.l.b16 %v4866
        %v5166 = vunpack.c.l.b16 %v4867
        %v5167 = vunpack.c.h.b16 %v4867
        %v5168 = vunpack.c.l.b16 %v4868
        %v5169 = vunpack.c.l.b16 %v4869
        %v5170 = vunpack.c.h.b16 %v4869
        %v5171 = vunpack.c.l.b16 %v4870
        %v5172 = vunpack.c.l.b16 %v4871
        %v5173 = vunpack.c.h.b16 %v4871
        %v5174 = vunpack.c.l.b16 %v4872
        %v5175 = vunpack.c.l.b16 %v4873
        %v5176 = vunpack.c.h.b16 %v4873
        %v5177 = vunpack.c.l.b16 %v4874
        %v5178 = vunpack.c.l.b16 %v4875
        %v5179 = vunpack.c.h.b16 %v4875
        %v5180 = vunpack.c.l.b16 %v4876
        %v5181 = vunpack.c.l.b16 %v4877
        %v5182 = vunpack.c.h.b16 %v4877
        %v5183 = vunpack.c.l.b16 %v4878
        %v5184 = vunpack.c.l.b16 %v4879
        %v5185 = vunpack.c.h.b16 %v4879
        %v5186 = vunpack.c.l.b16 %v4880
        %v5187 = vunpack.c.l.b16 %v4881
        %v5188 = vunpack.c.h.b16 %v4881
        %v5189 = vunpack.c.l.b16 %v4882
        %v5190 = vunpack.c.l.b16 %v4883
        %v5191 = vunpack.c.h.b16 %v4883
        %v5192 = vunpack.c.l.b16 %v4884
        %v5193 = vunpack.c.l.b16 %v4885
        %v5194 = vunpack.c.h.b16 %v4885
        %v5195 = vunpack.c.l.b16 %v4886
        %v5196 = vunpack.c.l.b16 %v4887
        %v5197 = vunpack.c.h.b16 %v4887
        %v5198 = vunpack.c.l.b16 %v4888
        %v5199 = vunpack.c.l.b16 %v4889
        %v5200 = vunpack.c.h.b16 %v4889
        %v5201 = vunpack.c.l.b16 %v4890
        %v5202 = vunpack.c.l.b16 %v4891
        %v5203 = vunpack.c.h.b16 %v4891
        %v5204 = vunpack.c.l.b16 %v4892
        %v5205 = vunpack.c.l.b16 %v4893
        %v5206 = vunpack.c.h.b16 %v4893
        %v5207 = vunpack.c.l.b16 %v4894
        %v5208 = vunpack.c.l.b16 %v4895
        %v5209 = vunpack.c.h.b16 %v4895
        %v5210 = vunpack.c.l.b16 %v4896
        %v5211 = vunpack.c.l.b16 %v4897
        %v5212 = vunpack.c.h.b16 %v4897
        %v5213 = vunpack.c.l.b16 %v4898
        %v5214 = vunpack.c.l.b16 %v4899
        %v5215 = vunpack.c.h.b16 %v4899
        %v5216 = vunpack.c.l.b16 %v4900
        %v5217 = vunpack.c.l.b16 %v4901
        %v5218 = vunpack.c.h.b16 %v4901
        %v5219 = vunpack.c.l.b16 %v4902
        %v5220 = vunpack.c.l.b16 %v4903
        %v5221 = vunpack.c.h.b16 %v4903
        %v5222 = vunpack.c.l.b16 %v4904
        %v5223 = vunpack.c.l.b16 %v4905
        %v5224 = vunpack.c.h.b16 %v4905
        %v5225 = vunpack.c.l.b16 %v4906
        %v5226 = vpack.c.b16 %v5133, %v5130
        %v5227 = vpack.c.b16 %v5134, %v5131
        %v5228 = vpack.c.b16 %v5135, %v5132
        %v5229 = vpack.c.b16 %v5139, %v5136
        %v5230 = vpack.c.b16 %v5140, %v5137
        %v5231 = vpack.c.b16 %v5141, %v5138
        %v5232 = vpack.c.b16 %v5145, %v5142
        %v5233 = vpack.c.b16 %v5146, %v5143
        %v5234 = vpack.c.b16 %v5147, %v5144
        %v5235 = vpack.c.b16 %v5151, %v5148
        %v5236 = vpack.c.b16 %v5152, %v5149
        %v5237 = vpack.c.b16 %v5153, %v5150
        %v5238 = vpack.c.b16 %v5157, %v5154
        %v5239 = vpack.c.b16 %v5158, %v5155
        %v5240 = vpack.c.b16 %v5159, %v5156
        %v5241 = vpack.c.b16 %v5163, %v5160
        %v5242 = vpack.c.b16 %v5164, %v5161
        %v5243 = vpack.c.b16 %v5165, %v5162
        %v5244 = vpack.c.b16 %v5169, %v5166
        %v5245 = vpack.c.b16 %v5170, %v5167
        %v5246 = vpack.c.b16 %v5171, %v5168
        %v5247 = vpack.c.b16 %v5175, %v5172
        %v5248 = vpack.c.b16 %v5176, %v5173
        %v5249 = vpack.c.b16 %v5177, %v5174
        %v5250 = vpack.c.b16 %v5181, %v5178
        %v5251 = vpack.c.b16 %v5182, %v5179
        %v5252 = vpack.c.b16 %v5183, %v5180
        %v5253 = vpack.c.b16 %v5187, %v5184
        %v5254 = vpack.c.b16 %v5188, %v5185
        %v5255 = vpack.c.b16 %v5189, %v5186
        %v5256 = vpack.c.b16 %v5193, %v5190
        %v5257 = vpack.c.b16 %v5194, %v5191
        %v5258 = vpack.c.b16 %v5195, %v5192
        %v5259 = vpack.c.b16 %v5199, %v5196
        %v5260 = vpack.c.b16 %v5200, %v5197
        %v5261 = vpack.c.b16 %v5201, %v5198
        %v5262 = vpack.c.b16 %v5205, %v5202
        %v5263 = vpack.c.b16 %v5206, %v5203
        %v5264 = vpack.c.b16 %v5207, %v5204
        %v5265 = vpack.c.b16 %v5211, %v5208
        %v5266 = vpack.c.b16 %v5212, %v5209
        %v5267 = vpack.c.b16 %v5213, %v5210
        %v5268 = vpack.c.b16 %v5217, %v5214
        %v5269 = vpack.c.b16 %v5218, %v5215
        %v5270 = vpack.c.b16 %v5219, %v5216
        %v5271 = vpack.c.b16 %v5223, %v5220
        %v5272 = vpack.c.b16 %v5224, %v5221
        %v5273 = vpack.c.b16 %v5225, %v5222
        %5322 = vmatpush.bf16.msra.mxu0 %v5247
        %5323 = vmatpush.bf16.msra.mxu0 %v5244
        %5324 = vmatpush.bf16.msra.mxu0 %v5241
        %5325 = vmatpush.bf16.msra.mxu0 %v5238
        %5326 = vmatpush.bf16.msra.mxu0 %v5235
        %5327 = vmatpush.bf16.msra.mxu0 %v5232
        %5328 = vmatpush.bf16.msra.mxu0 %v5229
        %5329 = vmatpush.bf16.msra.mxu0 %v5226
        %5330 = vmatmul.bf16.gmra.mxu0 %v4924
        %v5331 = vpop.f32.mrf.mxu0
        %v5332 = vadd.f32 0.0, %v5331
        %v5333 = vpop.f32.mrf.mxu0
        %v5334 = vadd.f32 0.0, %v5333
        %5335 = vmatmul.bf16.gmra.mxu0 %v4950
        %v5336 = vpop.f32.mrf.mxu0
        %v5337 = vadd.f32 0.0, %v5336
        %v5338 = vpop.f32.mrf.mxu0
        %v5339 = vadd.f32 0.0, %v5338
        %5340 = vmatmul.bf16.gmra.mxu0 %v4968
        %v5341 = vpop.f32.mrf.mxu0
        %v5342 = vadd.f32 0.0, %v5341
        %v5343 = vpop.f32.mrf.mxu0
        %v5344 = vadd.f32 0.0, %v5343
        %5345 = vmatmul.bf16.gmra.mxu0 %v4986
        %v5346 = vpop.f32.mrf.mxu0
        %v5347 = vadd.f32 0.0, %v5346
        %v5348 = vpop.f32.mrf.mxu0
        %v5349 = vadd.f32 0.0, %v5348
        %5350 = vmatmul.bf16.gmra.mxu0 %v5004
        %v5351 = vpop.f32.mrf.mxu0
        %v5352 = vadd.f32 0.0, %v5351
        %v5353 = vpop.f32.mrf.mxu0
        %v5354 = vadd.f32 0.0, %v5353
        %5355 = vmatmul.bf16.gmra.mxu0 %v5022
        %v5356 = vpop.f32.mrf.mxu0
        %v5357 = vadd.f32 0.0, %v5356
        %v5358 = vpop.f32.mrf.mxu0
        %v5359 = vadd.f32 0.0, %v5358
        %5360 = vmatmul.bf16.gmra.mxu0 %v5040
        %v5361 = vpop.f32.mrf.mxu0
        %v5362 = vadd.f32 0.0, %v5361
        %v5363 = vpop.f32.mrf.mxu0
        %v5364 = vadd.f32 0.0, %v5363
        %5365 = vmatmul.bf16.gmra.mxu0 %v5039
        %v5366 = vpop.f32.mrf.mxu0
        %v5367 = vpop.f32.mrf.mxu0
        %5368 = vdwg.mxu0
        %5369 = vmatpush.bf16.msra.mxu0 %v5271
        %5370 = vmatpush.bf16.msra.mxu0 %v5268
        %5371 = vmatpush.bf16.msra.mxu0 %v5265
        %5372 = vmatpush.bf16.msra.mxu0 %v5262
        %5373 = vmatpush.bf16.msra.mxu0 %v5259
        %5374 = vmatpush.bf16.msra.mxu0 %v5256
        %5375 = vmatpush.bf16.msra.mxu0 %v5253
        %5376 = vmatpush.bf16.msra.mxu0 %v5250
        %5377 = vmatmul.bf16.gmra.mxu0 %v4941
        %v5378 = vpop.f32.mrf.mxu0
        %v5379 = vadd.f32 %v5332, %v5378
        %v5380 = vpop.f32.mrf.mxu0
        %v5381 = vadd.f32 %v5334, %v5380
        %5382 = vmatmul.bf16.gmra.mxu0 %v4959
        %v5383 = vpop.f32.mrf.mxu0
        %v5384 = vadd.f32 %v5337, %v5383
        %v5385 = vpop.f32.mrf.mxu0
        %v5386 = vadd.f32 %v5339, %v5385
        %5387 = vmatmul.bf16.gmra.mxu0 %v4977
        %v5388 = vpop.f32.mrf.mxu0
        %v5389 = vadd.f32 %v5342, %v5388
        %v5390 = vpop.f32.mrf.mxu0
        %v5391 = vadd.f32 %v5344, %v5390
        %5392 = vmatmul.bf16.gmra.mxu0 %v4995
        %v5393 = vpop.f32.mrf.mxu0
        %v5394 = vadd.f32 %v5347, %v5393
        %v5395 = vpop.f32.mrf.mxu0
        %v5396 = vadd.f32 %v5349, %v5395
        %5397 = vmatmul.bf16.gmra.mxu0 %v5013
        %v5398 = vpop.f32.mrf.mxu0
        %v5399 = vadd.f32 %v5352, %v5398
        %v5400 = vpop.f32.mrf.mxu0
        %v5401 = vadd.f32 %v5354, %v5400
        %5402 = vmatmul.bf16.gmra.mxu0 %v5031
        %v5403 = vpop.f32.mrf.mxu0
        %v5404 = vadd.f32 %v5357, %v5403
        %v5405 = vpop.f32.mrf.mxu0
        %v5406 = vadd.f32 %v5359, %v5405
        %5407 = vmatmul.bf16.gmra.mxu0 %v5049
        %v5408 = vpop.f32.mrf.mxu0
        %v5409 = vadd.f32 %v5362, %v5408
        %v5410 = vpop.f32.mrf.mxu0
        %v5411 = vadd.f32 %v5364, %v5410
        %5412 = vmatmul.bf16.gmra.mxu0 %v5048
        %v5413 = vpop.f32.mrf.mxu0
        %v5414 = vpop.f32.mrf.mxu0
        %5415 = vdwg.mxu0
        %5416 = vmatpush.bf16.msra.mxu0 %v5248
        %5417 = vmatpush.bf16.msra.mxu0 %v5245
        %5418 = vmatpush.bf16.msra.mxu0 %v5242
        %5419 = vmatpush.bf16.msra.mxu0 %v5239
        %5420 = vmatpush.bf16.msra.mxu0 %v5236
        %5421 = vmatpush.bf16.msra.mxu0 %v5233
        %5422 = vmatpush.bf16.msra.mxu0 %v5230
        %5423 = vmatpush.bf16.msra.mxu0 %v5227
        %5424 = vmatmul.bf16.gmra.mxu0 %v4924
        %v5425 = vpop.f32.mrf.mxu0
        %v5426 = vadd.f32 0.0, %v5425
        %v5427 = vpop.f32.mrf.mxu0
        %v5428 = vadd.f32 0.0, %v5427
        %5429 = vmatmul.bf16.gmra.mxu0 %v4950
        %v5430 = vpop.f32.mrf.mxu0
        %v5431 = vadd.f32 0.0, %v5430
        %v5432 = vpop.f32.mrf.mxu0
        %v5433 = vadd.f32 0.0, %v5432
        %5434 = vmatmul.bf16.gmra.mxu0 %v4968
        %v5435 = vpop.f32.mrf.mxu0
        %v5436 = vadd.f32 0.0, %v5435
        %v5437 = vpop.f32.mrf.mxu0
        %v5438 = vadd.f32 0.0, %v5437
        %5439 = vmatmul.bf16.gmra.mxu0 %v4986
        %v5440 = vpop.f32.mrf.mxu0
        %v5441 = vadd.f32 0.0, %v5440
        %v5442 = vpop.f32.mrf.mxu0
        %v5443 = vadd.f32 0.0, %v5442
        %5444 = vmatmul.bf16.gmra.mxu0 %v5004
        %v5445 = vpop.f32.mrf.mxu0
        %v5446 = vadd.f32 0.0, %v5445
        %v5447 = vpop.f32.mrf.mxu0
        %v5448 = vadd.f32 0.0, %v5447
        %5449 = vmatmul.bf16.gmra.mxu0 %v5022
        %v5450 = vpop.f32.mrf.mxu0
        %v5451 = vadd.f32 0.0, %v5450
        %v5452 = vpop.f32.mrf.mxu0
        %v5453 = vadd.f32 0.0, %v5452
        %5454 = vmatmul.bf16.gmra.mxu0 %v5040
        %v5455 = vpop.f32.mrf.mxu0
        %v5456 = vadd.f32 0.0, %v5455
        %v5457 = vpop.f32.mrf.mxu0
        %v5458 = vadd.f32 0.0, %v5457
        %5459 = vmatmul.bf16.gmra.mxu0 %v5039
        %v5460 = vpop.f32.mrf.mxu0
        %v5461 = vpop.f32.mrf.mxu0
        %5462 = vdwg.mxu0
        %5463 = vmatpush.bf16.msra.mxu0 %v5272
        %5464 = vmatpush.bf16.msra.mxu0 %v5269
        %5465 = vmatpush.bf16.msra.mxu0 %v5266
        %5466 = vmatpush.bf16.msra.mxu0 %v5263
        %5467 = vmatpush.bf16.msra.mxu0 %v5260
        %5468 = vmatpush.bf16.msra.mxu0 %v5257
        %5469 = vmatpush.bf16.msra.mxu0 %v5254
        %5470 = vmatpush.bf16.msra.mxu0 %v5251
        %5471 = vmatmul.bf16.gmra.mxu0 %v4941
        %v5472 = vpop.f32.mrf.mxu0
        %v5473 = vadd.f32 %v5426, %v5472
        %v5474 = vpop.f32.mrf.mxu0
        %v5475 = vadd.f32 %v5428, %v5474
        %5476 = vmatmul.bf16.gmra.mxu0 %v4959
        %v5477 = vpop.f32.mrf.mxu0
        %v5478 = vadd.f32 %v5431, %v5477
        %v5479 = vpop.f32.mrf.mxu0
        %v5480 = vadd.f32 %v5433, %v5479
        %5481 = vmatmul.bf16.gmra.mxu0 %v4977
        %v5482 = vpop.f32.mrf.mxu0
        %v5483 = vadd.f32 %v5436, %v5482
        %v5484 = vpop.f32.mrf.mxu0
        %v5485 = vadd.f32 %v5438, %v5484
        %5486 = vmatmul.bf16.gmra.mxu0 %v4995
        %v5487 = vpop.f32.mrf.mxu0
        %v5488 = vadd.f32 %v5441, %v5487
        %v5489 = vpop.f32.mrf.mxu0
        %v5490 = vadd.f32 %v5443, %v5489
        %5491 = vmatmul.bf16.gmra.mxu0 %v5013
        %v5492 = vpop.f32.mrf.mxu0
        %v5493 = vadd.f32 %v5446, %v5492
        %v5494 = vpop.f32.mrf.mxu0
        %v5495 = vadd.f32 %v5448, %v5494
        %5496 = vmatmul.bf16.gmra.mxu0 %v5031
        %v5497 = vpop.f32.mrf.mxu0
        %v5498 = vadd.f32 %v5451, %v5497
        %v5499 = vpop.f32.mrf.mxu0
        %v5500 = vadd.f32 %v5453, %v5499
        %5501 = vmatmul.bf16.gmra.mxu0 %v5049
        %v5502 = vpop.f32.mrf.mxu0
        %v5503 = vadd.f32 %v5456, %v5502
        %v5504 = vpop.f32.mrf.mxu0
        %v5505 = vadd.f32 %v5458, %v5504
        %5506 = vmatmul.bf16.gmra.mxu0 %v5048
        %v5507 = vpop.f32.mrf.mxu0
        %v5508 = vpop.f32.mrf.mxu0
        %5509 = vdwg.mxu0
        %5510 = vmatpush.bf16.msra.mxu0 %v5249
        %5511 = vmatpush.bf16.msra.mxu0 %v5246
        %5512 = vmatpush.bf16.msra.mxu0 %v5243
        %5513 = vmatpush.bf16.msra.mxu0 %v5240
        %5514 = vmatpush.bf16.msra.mxu0 %v5237
        %5515 = vmatpush.bf16.msra.mxu0 %v5234
        %5516 = vmatpush.bf16.msra.mxu0 %v5231
        %5517 = vmatpush.bf16.msra.mxu0 %v5228
        %5518 = vmatmul.bf16.gmra.mxu0 %v4924
        %v5519 = vpop.f32.mrf.mxu0
        %v5520 = vadd.f32 0.0, %v5519
        %v5521 = vpop.f32.mrf.mxu0
        %v5522 = vadd.f32 0.0, %v5521
        %5523 = vmatmul.bf16.gmra.mxu0 %v4950
        %v5524 = vpop.f32.mrf.mxu0
        %v5525 = vadd.f32 0.0, %v5524
        %v5526 = vpop.f32.mrf.mxu0
        %v5527 = vadd.f32 0.0, %v5526
        %5528 = vmatmul.bf16.gmra.mxu0 %v4968
        %v5529 = vpop.f32.mrf.mxu0
        %v5530 = vadd.f32 0.0, %v5529
        %v5531 = vpop.f32.mrf.mxu0
        %v5532 = vadd.f32 0.0, %v5531
        %5533 = vmatmul.bf16.gmra.mxu0 %v4986
        %v5534 = vpop.f32.mrf.mxu0
        %v5535 = vadd.f32 0.0, %v5534
        %v5536 = vpop.f32.mrf.mxu0
        %v5537 = vadd.f32 0.0, %v5536
        %5538 = vmatmul.bf16.gmra.mxu0 %v5004
        %v5539 = vpop.f32.mrf.mxu0
        %v5540 = vadd.f32 0.0, %v5539
        %v5541 = vpop.f32.mrf.mxu0
        %v5542 = vadd.f32 0.0, %v5541
        %5543 = vmatmul.bf16.gmra.mxu0 %v5022
        %v5544 = vpop.f32.mrf.mxu0
        %v5545 = vadd.f32 0.0, %v5544
        %v5546 = vpop.f32.mrf.mxu0
        %v5547 = vadd.f32 0.0, %v5546
        %5548 = vmatmul.bf16.gmra.mxu0 %v5040
        %v5549 = vpop.f32.mrf.mxu0
        %v5550 = vadd.f32 0.0, %v5549
        %v5551 = vpop.f32.mrf.mxu0
        %v5552 = vadd.f32 0.0, %v5551
        %5553 = vmatmul.bf16.gmra.mxu0 %v5039
        %v5554 = vpop.f32.mrf.mxu0
        %v5555 = vpop.f32.mrf.mxu0
        %5556 = vdwg.mxu0
        %5557 = vmatpush.bf16.msra.mxu0 %v5273
        %5558 = vmatpush.bf16.msra.mxu0 %v5270
        %5559 = vmatpush.bf16.msra.mxu0 %v5267
        %5560 = vmatpush.bf16.msra.mxu0 %v5264
        %5561 = vmatpush.bf16.msra.mxu0 %v5261
        %5562 = vmatpush.bf16.msra.mxu0 %v5258
        %5563 = vmatpush.bf16.msra.mxu0 %v5255
        %5564 = vmatpush.bf16.msra.mxu0 %v5252
        %5565 = vmatmul.bf16.gmra.mxu0 %v4941
        %v5566 = vpop.f32.mrf.mxu0
        %v5567 = vadd.f32 %v5520, %v5566
        %v5568 = vpop.f32.mrf.mxu0
        %v5569 = vadd.f32 %v5522, %v5568
        %5570 = vmatmul.bf16.gmra.mxu0 %v4959
        %v5571 = vpop.f32.mrf.mxu0
        %v5572 = vadd.f32 %v5525, %v5571
        %v5573 = vpop.f32.mrf.mxu0
        %v5574 = vadd.f32 %v5527, %v5573
        %5575 = vmatmul.bf16.gmra.mxu0 %v4977
        %v5576 = vpop.f32.mrf.mxu0
        %v5577 = vadd.f32 %v5530, %v5576
        %v5578 = vpop.f32.mrf.mxu0
        %v5579 = vadd.f32 %v5532, %v5578
        %5580 = vmatmul.bf16.gmra.mxu0 %v4995
        %v5581 = vpop.f32.mrf.mxu0
        %v5582 = vadd.f32 %v5535, %v5581
        %v5583 = vpop.f32.mrf.mxu0
        %v5584 = vadd.f32 %v5537, %v5583
        %5585 = vmatmul.bf16.gmra.mxu0 %v5013
        %v5586 = vpop.f32.mrf.mxu0
        %v5587 = vadd.f32 %v5540, %v5586
        %v5588 = vpop.f32.mrf.mxu0
        %v5589 = vadd.f32 %v5542, %v5588
        %5590 = vmatmul.bf16.gmra.mxu0 %v5031
        %v5591 = vpop.f32.mrf.mxu0
        %v5592 = vadd.f32 %v5545, %v5591
        %v5593 = vpop.f32.mrf.mxu0
        %v5594 = vadd.f32 %v5547, %v5593
        %5595 = vmatmul.bf16.gmra.mxu0 %v5049
        %v5596 = vpop.f32.mrf.mxu0
        %v5597 = vadd.f32 %v5550, %v5596
        %v5598 = vpop.f32.mrf.mxu0
        %v5599 = vadd.f32 %v5552, %v5598
        %5600 = vmatmul.bf16.gmra.mxu0 %v5048
        %v5601 = vpop.f32.mrf.mxu0
        %v5602 = vpop.f32.mrf.mxu0
        %5603 = vdwg.mxu0
        %v5604 = vadd.f32 %v4792, %v5379
        %v5605 = vadd.f32 %v4793, %v5473
        %v5606 = vadd.f32 %v4794, %v5567
        %v5607 = vadd.f32 %v4795, %v5381
        %v5608 = vadd.f32 %v4796, %v5475
        %v5609 = vadd.f32 %v4797, %v5569
        %v5610 = vadd.f32 %v4798, %v5384
        %v5611 = vadd.f32 %v4799, %v5478
        %v5612 = vadd.f32 %v4800, %v5572
        %v5613 = vadd.f32 %v4801, %v5386
        %v5614 = vadd.f32 %v4802, %v5480
        %v5615 = vadd.f32 %v4803, %v5574
        %v5616 = vadd.f32 %v4804, %v5389
        %v5617 = vadd.f32 %v4805, %v5483
        %v5618 = vadd.f32 %v4806, %v5577
        %v5619 = vadd.f32 %v4807, %v5391
        %v5620 = vadd.f32 %v4808, %v5485
        %v5621 = vadd.f32 %v4809, %v5579
        %v5622 = vadd.f32 %v4810, %v5394
        %v5623 = vadd.f32 %v4811, %v5488
        %v5624 = vadd.f32 %v4812, %v5582
        %v5625 = vadd.f32 %v4813, %v5396
        %v5626 = vadd.f32 %v4814, %v5490
        %v5627 = vadd.f32 %v4815, %v5584
        %v5628 = vadd.f32 %v4816, %v5399
        %v5629 = vadd.f32 %v4817, %v5493
        %v5630 = vadd.f32 %v4818, %v5587
        %v5631 = vadd.f32 %v4819, %v5401
        %v5632 = vadd.f32 %v4820, %v5495
        %v5633 = vadd.f32 %v4821, %v5589
        %v5634 = vadd.f32 %v4822, %v5404
        %v5635 = vadd.f32 %v4823, %v5498
        %v5636 = vadd.f32 %v4824, %v5592
        %v5637 = vadd.f32 %v4825, %v5406
        %v5638 = vadd.f32 %v4826, %v5500
        %v5639 = vadd.f32 %v4827, %v5594
        %v5640 = vadd.f32 %v4828, %v5409
        %v5641 = vadd.f32 %v4829, %v5503
        %v5642 = vadd.f32 %v4830, %v5597
        %v5643 = vadd.f32 %v4831, %v5411
        %v5644 = vadd.f32 %v4832, %v5505
        %v5645 = vadd.f32 %v4833, %v5599
        %v5646 = vld [vmem:[#allocation2 + $0x20] sm:$0xf0]
        %v5647 = vld [vmem:[#allocation2 + $0x28] sm:$0xf0]
        %v5648 = vld [vmem:[#allocation2 + $0x110] sm:$0xff]
        %v5649 = vld [vmem:[#allocation2 + $0x118] sm:$0xff]
        %v5650 = vpack.c.bf16 %v4081, %v5646
        %v5651 = vpack.c.bf16 %v4082, %v5647
        %v5652 = vpack.c.bf16 %v5648, %v4107
        %v5653 = vpack.c.bf16 %v5649, %v4108
        %s5654 = scalar_lea.vmem %s5, 1920
        %v5655 = vld [vmem:[%s5654] sm:$0xff]
        %v5656 = vld [vmem:[%s5654 + $0x8] sm:$0xf]
        %v5657 = vld [vmem:[%s5654 + $0xc] sm:$0xff]
        %v5658 = vld [vmem:[%s5654 + $0x14] sm:$0xf]
        %v5659 = vld [vmem:[%s5654 + $0x18] sm:$0xff]
        %v5660 = vld [vmem:[%s5654 + $0x20] sm:$0xf]
        %v5661 = vld [vmem:[%s5654 + $0x24] sm:$0xff]
        %v5662 = vld [vmem:[%s5654 + $0x2c] sm:$0xf]
        %v5663 = vld [vmem:[%s5654 + $0x30] sm:$0xff]
        %v5664 = vld [vmem:[%s5654 + $0x38] sm:$0xf]
        %v5665 = vld [vmem:[%s5654 + $0x3c] sm:$0xff]
        %v5666 = vld [vmem:[%s5654 + $0x44] sm:$0xf]
        %v5667 = vld [vmem:[%s5654 + $0x48] sm:$0xff]
        %v5668 = vld [vmem:[%s5654 + $0x50] sm:$0xf]
        %v5669 = vld [vmem:[%s5654 + $0x54] sm:$0xff]
        %v5670 = vld [vmem:[%s5654 + $0x5c] sm:$0xf]
        %v5671 = vld [vmem:[%s5654 + $0x60] sm:$0xff]
        %v5672 = vld [vmem:[%s5654 + $0x68] sm:$0xf]
        %v5673 = vld [vmem:[%s5654 + $0x6c] sm:$0xff]
        %v5674 = vld [vmem:[%s5654 + $0x74] sm:$0xf]
        %v5675 = vld [vmem:[%s5654 + $0x78] sm:$0xff]
        %v5676 = vld [vmem:[%s5654 + $0x80] sm:$0xf]
        %v5677 = vld [vmem:[%s5654 + $0x84] sm:$0xff]
        %v5678 = vld [vmem:[%s5654 + $0x8c] sm:$0xf]
        %v5679 = vld [vmem:[%s5654 + $0x90] sm:$0xff]
        %v5680 = vld [vmem:[%s5654 + $0x98] sm:$0xf]
        %v5681 = vld [vmem:[%s5654 + $0x9c] sm:$0xff]
        %v5682 = vld [vmem:[%s5654 + $0xa4] sm:$0xf]
        %v5683 = vld [vmem:[%s5654 + $0xa8] sm:$0xff]
        %v5684 = vld [vmem:[%s5654 + $0xb0] sm:$0xf]
        %v5685 = vld [vmem:[%s5654 + $0xb4] sm:$0xff]
        %v5686 = vld [vmem:[%s5654 + $0xbc] sm:$0xf]
        %v5687 = vld [vmem:[%s5654 + $0xc0] sm:$0xff]
        %v5688 = vld [vmem:[%s5654 + $0xc8] sm:$0xf]
        %v5689 = vld [vmem:[%s5654 + $0xcc] sm:$0xff]
        %v5690 = vld [vmem:[%s5654 + $0xd4] sm:$0xf]
        %v5691 = vld [vmem:[%s5654 + $0xd8] sm:$0xff]
        %v5692 = vld [vmem:[%s5654 + $0xe0] sm:$0xf]
        %v5693 = vld [vmem:[%s5654 + $0xe4] sm:$0xff]
        %v5694 = vld [vmem:[%s5654 + $0xec] sm:$0xf]
        %v5695 = vld [vmem:[%s5654 + $0xf0] sm:$0xff]
        %v5696 = vld [vmem:[%s5654 + $0xf8] sm:$0xf]
        %v5697 = vld [vmem:[%s5654 + $0xfc] sm:$0xff]
        %v5698 = vld [vmem:[%s5654 + $0x104] sm:$0xf]
        %v5699 = vld [vmem:[%s5654 + $0x108] sm:$0xff]
        %v5700 = vld [vmem:[%s5654 + $0x110] sm:$0xf]
        %v5701 = vld [vmem:[%s5654 + $0x114] sm:$0xff]
        %v5702 = vld [vmem:[%s5654 + $0x11c] sm:$0xf]
        %v5703 = vld [vmem:[%s5654 + $0x120] sm:$0xff]
        %v5704 = vld [vmem:[%s5654 + $0x128] sm:$0xf]
        %v5705 = vld [vmem:[%s5654 + $0x12c] sm:$0xff]
        %v5706 = vld [vmem:[%s5654 + $0x134] sm:$0xf]
        %v5707 = vld [vmem:[%s5654 + $0x138] sm:$0xff]
        %v5708 = vld [vmem:[%s5654 + $0x140] sm:$0xf]
        %v5709 = vld [vmem:[%s5654 + $0x144] sm:$0xff]
        %v5710 = vld [vmem:[%s5654 + $0x14c] sm:$0xf]
        %v5711 = vld [vmem:[%s5654 + $0x150] sm:$0xff]
        %v5712 = vld [vmem:[%s5654 + $0x158] sm:$0xf]
        %v5713 = vld [vmem:[%s5654 + $0x15c] sm:$0xff]
        %v5714 = vld [vmem:[%s5654 + $0x164] sm:$0xf]
        %v5715 = vld [vmem:[%s5654 + $0x168] sm:$0xff]
        %v5716 = vld [vmem:[%s5654 + $0x170] sm:$0xf]
        %v5717 = vld [vmem:[%s5654 + $0x174] sm:$0xff]
        %v5718 = vld [vmem:[%s5654 + $0x17c] sm:$0xf]
        %vm5723 = vcmask 1045504
        %v5724 = vrot.slane %v5650, 2
        %v5725 = vrot.slane %v4113, 2
        %v5726 = vsel %vm5723, %v5724, %v5725
        %v5727 = vrot.slane %v5651, 2
        %v5728 = vrot.slane %v4114, 2
        %v5729 = vsel %vm5723, %v5727, %v5728
        %v5730 = vrot.slane %v4115, 2
        %v5731 = vsel %vm5723, %v5725, %v5730
        %v5732 = vrot.slane %v4116, 2
        %v5733 = vsel %vm5723, %v5728, %v5732
        %v5734 = vrot.slane %v4117, 2
        %v5735 = vsel %vm5723, %v5730, %v5734
        %v5736 = vrot.slane %v4118, 2
        %v5737 = vsel %vm5723, %v5732, %v5736
        %v5738 = vrot.slane %v4119, 2
        %v5739 = vsel %vm5723, %v5734, %v5738
        %v5740 = vrot.slane %v4120, 2
        %v5741 = vsel %vm5723, %v5736, %v5740
        %v5742 = vrot.slane %v4121, 2
        %v5743 = vsel %vm5723, %v5738, %v5742
        %v5744 = vrot.slane %v4122, 2
        %v5745 = vsel %vm5723, %v5740, %v5744
        %v5746 = vrot.slane %v4123, 2
        %v5747 = vsel %vm5723, %v5742, %v5746
        %v5748 = vrot.slane %v4124, 2
        %v5749 = vsel %vm5723, %v5744, %v5748
        %v5750 = vrot.slane %v5652, 2
        %v5751 = vsel %vm5723, %v5746, %v5750
        %v5752 = vrot.slane %v5653, 2
        %v5753 = vsel %vm5723, %v5748, %v5752
        %v5834 = vunpack.c.l.b16 %v5655
        %v5835 = vunpack.c.h.b16 %v5655
        %v5836 = vunpack.c.l.b16 %v5656
        %v5837 = vunpack.c.l.b16 %v5657
        %v5838 = vunpack.c.h.b16 %v5657
        %v5839 = vunpack.c.l.b16 %v5658
        %v5840 = vunpack.c.l.b16 %v5659
        %v5841 = vunpack.c.h.b16 %v5659
        %v5842 = vunpack.c.l.b16 %v5660
        %v5843 = vunpack.c.l.b16 %v5661
        %v5844 = vunpack.c.h.b16 %v5661
        %v5845 = vunpack.c.l.b16 %v5662
        %v5846 = vunpack.c.l.b16 %v5663
        %v5847 = vunpack.c.h.b16 %v5663
        %v5848 = vunpack.c.l.b16 %v5664
        %v5849 = vunpack.c.l.b16 %v5665
        %v5850 = vunpack.c.h.b16 %v5665
        %v5851 = vunpack.c.l.b16 %v5666
        %v5852 = vunpack.c.l.b16 %v5667
        %v5853 = vunpack.c.h.b16 %v5667
        %v5854 = vunpack.c.l.b16 %v5668
        %v5855 = vunpack.c.l.b16 %v5669
        %v5856 = vunpack.c.h.b16 %v5669
        %v5857 = vunpack.c.l.b16 %v5670
        %v5858 = vunpack.c.l.b16 %v5671
        %v5859 = vunpack.c.h.b16 %v5671
        %v5860 = vunpack.c.l.b16 %v5672
        %v5861 = vunpack.c.l.b16 %v5673
        %v5862 = vunpack.c.h.b16 %v5673
        %v5863 = vunpack.c.l.b16 %v5674
        %v5864 = vunpack.c.l.b16 %v5675
        %v5865 = vunpack.c.h.b16 %v5675
        %v5866 = vunpack.c.l.b16 %v5676
        %v5867 = vunpack.c.l.b16 %v5677
        %v5868 = vunpack.c.h.b16 %v5677
        %v5869 = vunpack.c.l.b16 %v5678
        %v5870 = vunpack.c.l.b16 %v5679
        %v5871 = vunpack.c.h.b16 %v5679
        %v5872 = vunpack.c.l.b16 %v5680
        %v5873 = vunpack.c.l.b16 %v5681
        %v5874 = vunpack.c.h.b16 %v5681
        %v5875 = vunpack.c.l.b16 %v5682
        %v5876 = vunpack.c.l.b16 %v5683
        %v5877 = vunpack.c.h.b16 %v5683
        %v5878 = vunpack.c.l.b16 %v5684
        %v5879 = vunpack.c.l.b16 %v5685
        %v5880 = vunpack.c.h.b16 %v5685
        %v5881 = vunpack.c.l.b16 %v5686
        %v5882 = vunpack.c.l.b16 %v5687
        %v5883 = vunpack.c.h.b16 %v5687
        %v5884 = vunpack.c.l.b16 %v5688
        %v5885 = vunpack.c.l.b16 %v5689
        %v5886 = vunpack.c.h.b16 %v5689
        %v5887 = vunpack.c.l.b16 %v5690
        %v5888 = vunpack.c.l.b16 %v5691
        %v5889 = vunpack.c.h.b16 %v5691
        %v5890 = vunpack.c.l.b16 %v5692
        %v5891 = vunpack.c.l.b16 %v5693
        %v5892 = vunpack.c.h.b16 %v5693
        %v5893 = vunpack.c.l.b16 %v5694
        %v5894 = vunpack.c.l.b16 %v5695
        %v5895 = vunpack.c.h.b16 %v5695
        %v5896 = vunpack.c.l.b16 %v5696
        %v5897 = vunpack.c.l.b16 %v5697
        %v5898 = vunpack.c.h.b16 %v5697
        %v5899 = vunpack.c.l.b16 %v5698
        %v5900 = vunpack.c.l.b16 %v5699
        %v5901 = vunpack.c.h.b16 %v5699
        %v5902 = vunpack.c.l.b16 %v5700
        %v5903 = vunpack.c.l.b16 %v5701
        %v5904 = vunpack.c.h.b16 %v5701
        %v5905 = vunpack.c.l.b16 %v5702
        %v5906 = vunpack.c.l.b16 %v5703
        %v5907 = vunpack.c.h.b16 %v5703
        %v5908 = vunpack.c.l.b16 %v5704
        %v5909 = vunpack.c.l.b16 %v5705
        %v5910 = vunpack.c.h.b16 %v5705
        %v5911 = vunpack.c.l.b16 %v5706
        %v5912 = vunpack.c.l.b16 %v5707
        %v5913 = vunpack.c.h.b16 %v5707
        %v5914 = vunpack.c.l.b16 %v5708
        %v5915 = vunpack.c.l.b16 %v5709
        %v5916 = vunpack.c.h.b16 %v5709
        %v5917 = vunpack.c.l.b16 %v5710
        %v5918 = vunpack.c.l.b16 %v5711
        %v5919 = vunpack.c.h.b16 %v5711
        %v5920 = vunpack.c.l.b16 %v5712
        %v5921 = vunpack.c.l.b16 %v5713
        %v5922 = vunpack.c.h.b16 %v5713
        %v5923 = vunpack.c.l.b16 %v5714
        %v5924 = vunpack.c.l.b16 %v5715
        %v5925 = vunpack.c.h.b16 %v5715
        %v5926 = vunpack.c.l.b16 %v5716
        %v5927 = vunpack.c.l.b16 %v5717
        %v5928 = vunpack.c.h.b16 %v5717
        %v5929 = vunpack.c.l.b16 %v5718
        %v5930 = vpack.c.b16 %v5837, %v5834
        %v5931 = vpack.c.b16 %v5838, %v5835
        %v5932 = vpack.c.b16 %v5839, %v5836
        %v5933 = vpack.c.b16 %v5843, %v5840
        %v5934 = vpack.c.b16 %v5844, %v5841
        %v5935 = vpack.c.b16 %v5845, %v5842
        %v5936 = vpack.c.b16 %v5849, %v5846
        %v5937 = vpack.c.b16 %v5850, %v5847
        %v5938 = vpack.c.b16 %v5851, %v5848
        %v5939 = vpack.c.b16 %v5855, %v5852
        %v5940 = vpack.c.b16 %v5856, %v5853
        %v5941 = vpack.c.b16 %v5857, %v5854
        %v5942 = vpack.c.b16 %v5861, %v5858
        %v5943 = vpack.c.b16 %v5862, %v5859
        %v5944 = vpack.c.b16 %v5863, %v5860
        %v5945 = vpack.c.b16 %v5867, %v5864
        %v5946 = vpack.c.b16 %v5868, %v5865
        %v5947 = vpack.c.b16 %v5869, %v5866
        %v5948 = vpack.c.b16 %v5873, %v5870
        %v5949 = vpack.c.b16 %v5874, %v5871
        %v5950 = vpack.c.b16 %v5875, %v5872
        %v5951 = vpack.c.b16 %v5879, %v5876
        %v5952 = vpack.c.b16 %v5880, %v5877
        %v5953 = vpack.c.b16 %v5881, %v5878
        %v5954 = vpack.c.b16 %v5885, %v5882
        %v5955 = vpack.c.b16 %v5886, %v5883
        %v5956 = vpack.c.b16 %v5887, %v5884
        %v5957 = vpack.c.b16 %v5891, %v5888
        %v5958 = vpack.c.b16 %v5892, %v5889
        %v5959 = vpack.c.b16 %v5893, %v5890
        %v5960 = vpack.c.b16 %v5897, %v5894
        %v5961 = vpack.c.b16 %v5898, %v5895
        %v5962 = vpack.c.b16 %v5899, %v5896
        %v5963 = vpack.c.b16 %v5903, %v5900
        %v5964 = vpack.c.b16 %v5904, %v5901
        %v5965 = vpack.c.b16 %v5905, %v5902
        %v5966 = vpack.c.b16 %v5909, %v5906
        %v5967 = vpack.c.b16 %v5910, %v5907
        %v5968 = vpack.c.b16 %v5911, %v5908
        %v5969 = vpack.c.b16 %v5915, %v5912
        %v5970 = vpack.c.b16 %v5916, %v5913
        %v5971 = vpack.c.b16 %v5917, %v5914
        %v5972 = vpack.c.b16 %v5921, %v5918
        %v5973 = vpack.c.b16 %v5922, %v5919
        %v5974 = vpack.c.b16 %v5923, %v5920
        %v5975 = vpack.c.b16 %v5927, %v5924
        %v5976 = vpack.c.b16 %v5928, %v5925
        %v5977 = vpack.c.b16 %v5929, %v5926
        %6026 = vmatpush.bf16.msra.mxu0 %v5951
        %6027 = vmatpush.bf16.msra.mxu0 %v5948
        %6028 = vmatpush.bf16.msra.mxu0 %v5945
        %6029 = vmatpush.bf16.msra.mxu0 %v5942
        %6030 = vmatpush.bf16.msra.mxu0 %v5939
        %6031 = vmatpush.bf16.msra.mxu0 %v5936
        %6032 = vmatpush.bf16.msra.mxu0 %v5933
        %6033 = vmatpush.bf16.msra.mxu0 %v5930
        %6034 = vmatmul.bf16.gmra.mxu0 %v5726
        %v6035 = vpop.f32.mrf.mxu0
        %v6036 = vadd.f32 0.0, %v6035
        %v6037 = vpop.f32.mrf.mxu0
        %v6038 = vadd.f32 0.0, %v6037
        %6039 = vmatmul.bf16.gmra.mxu0 %v5731
        %v6040 = vpop.f32.mrf.mxu0
        %v6041 = vadd.f32 0.0, %v6040
        %v6042 = vpop.f32.mrf.mxu0
        %v6043 = vadd.f32 0.0, %v6042
        %6044 = vmatmul.bf16.gmra.mxu0 %v5735
        %v6045 = vpop.f32.mrf.mxu0
        %v6046 = vadd.f32 0.0, %v6045
        %v6047 = vpop.f32.mrf.mxu0
        %v6048 = vadd.f32 0.0, %v6047
        %6049 = vmatmul.bf16.gmra.mxu0 %v5739
        %v6050 = vpop.f32.mrf.mxu0
        %v6051 = vadd.f32 0.0, %v6050
        %v6052 = vpop.f32.mrf.mxu0
        %v6053 = vadd.f32 0.0, %v6052
        %6054 = vmatmul.bf16.gmra.mxu0 %v5743
        %v6055 = vpop.f32.mrf.mxu0
        %v6056 = vadd.f32 0.0, %v6055
        %v6057 = vpop.f32.mrf.mxu0
        %v6058 = vadd.f32 0.0, %v6057
        %6059 = vmatmul.bf16.gmra.mxu0 %v5747
        %v6060 = vpop.f32.mrf.mxu0
        %v6061 = vadd.f32 0.0, %v6060
        %v6062 = vpop.f32.mrf.mxu0
        %v6063 = vadd.f32 0.0, %v6062
        %6064 = vmatmul.bf16.gmra.mxu0 %v5751
        %v6065 = vpop.f32.mrf.mxu0
        %v6066 = vadd.f32 0.0, %v6065
        %v6067 = vpop.f32.mrf.mxu0
        %v6068 = vadd.f32 0.0, %v6067
        %6069 = vmatmul.bf16.gmra.mxu0 %v5750
        %v6070 = vpop.f32.mrf.mxu0
        %v6071 = vpop.f32.mrf.mxu0
        %6072 = vdwg.mxu0
        %6073 = vmatpush.bf16.msra.mxu0 %v5975
        %6074 = vmatpush.bf16.msra.mxu0 %v5972
        %6075 = vmatpush.bf16.msra.mxu0 %v5969
        %6076 = vmatpush.bf16.msra.mxu0 %v5966
        %6077 = vmatpush.bf16.msra.mxu0 %v5963
        %6078 = vmatpush.bf16.msra.mxu0 %v5960
        %6079 = vmatpush.bf16.msra.mxu0 %v5957
        %6080 = vmatpush.bf16.msra.mxu0 %v5954
        %6081 = vmatmul.bf16.gmra.mxu0 %v5729
        %v6082 = vpop.f32.mrf.mxu0
        %v6083 = vadd.f32 %v6036, %v6082
        %v6084 = vpop.f32.mrf.mxu0
        %v6085 = vadd.f32 %v6038, %v6084
        %6086 = vmatmul.bf16.gmra.mxu0 %v5733
        %v6087 = vpop.f32.mrf.mxu0
        %v6088 = vadd.f32 %v6041, %v6087
        %v6089 = vpop.f32.mrf.mxu0
        %v6090 = vadd.f32 %v6043, %v6089
        %6091 = vmatmul.bf16.gmra.mxu0 %v5737
        %v6092 = vpop.f32.mrf.mxu0
        %v6093 = vadd.f32 %v6046, %v6092
        %v6094 = vpop.f32.mrf.mxu0
        %v6095 = vadd.f32 %v6048, %v6094
        %6096 = vmatmul.bf16.gmra.mxu0 %v5741
        %v6097 = vpop.f32.mrf.mxu0
        %v6098 = vadd.f32 %v6051, %v6097
        %v6099 = vpop.f32.mrf.mxu0
        %v6100 = vadd.f32 %v6053, %v6099
        %6101 = vmatmul.bf16.gmra.mxu0 %v5745
        %v6102 = vpop.f32.mrf.mxu0
        %v6103 = vadd.f32 %v6056, %v6102
        %v6104 = vpop.f32.mrf.mxu0
        %v6105 = vadd.f32 %v6058, %v6104
        %6106 = vmatmul.bf16.gmra.mxu0 %v5749
        %v6107 = vpop.f32.mrf.mxu0
        %v6108 = vadd.f32 %v6061, %v6107
        %v6109 = vpop.f32.mrf.mxu0
        %v6110 = vadd.f32 %v6063, %v6109
        %6111 = vmatmul.bf16.gmra.mxu0 %v5753
        %v6112 = vpop.f32.mrf.mxu0
        %v6113 = vadd.f32 %v6066, %v6112
        %v6114 = vpop.f32.mrf.mxu0
        %v6115 = vadd.f32 %v6068, %v6114
        %6116 = vmatmul.bf16.gmra.mxu0 %v5752
        %v6117 = vpop.f32.mrf.mxu0
        %v6118 = vpop.f32.mrf.mxu0
        %6119 = vdwg.mxu0
        %6120 = vmatpush.bf16.msra.mxu0 %v5952
        %6121 = vmatpush.bf16.msra.mxu0 %v5949
        %6122 = vmatpush.bf16.msra.mxu0 %v5946
        %6123 = vmatpush.bf16.msra.mxu0 %v5943
        %6124 = vmatpush.bf16.msra.mxu0 %v5940
        %6125 = vmatpush.bf16.msra.mxu0 %v5937
        %6126 = vmatpush.bf16.msra.mxu0 %v5934
        %6127 = vmatpush.bf16.msra.mxu0 %v5931
        %6128 = vmatmul.bf16.gmra.mxu0 %v5726
        %v6129 = vpop.f32.mrf.mxu0
        %v6130 = vadd.f32 0.0, %v6129
        %v6131 = vpop.f32.mrf.mxu0
        %v6132 = vadd.f32 0.0, %v6131
        %6133 = vmatmul.bf16.gmra.mxu0 %v5731
        %v6134 = vpop.f32.mrf.mxu0
        %v6135 = vadd.f32 0.0, %v6134
        %v6136 = vpop.f32.mrf.mxu0
        %v6137 = vadd.f32 0.0, %v6136
        %6138 = vmatmul.bf16.gmra.mxu0 %v5735
        %v6139 = vpop.f32.mrf.mxu0
        %v6140 = vadd.f32 0.0, %v6139
        %v6141 = vpop.f32.mrf.mxu0
        %v6142 = vadd.f32 0.0, %v6141
        %6143 = vmatmul.bf16.gmra.mxu0 %v5739
        %v6144 = vpop.f32.mrf.mxu0
        %v6145 = vadd.f32 0.0, %v6144
        %v6146 = vpop.f32.mrf.mxu0
        %v6147 = vadd.f32 0.0, %v6146
        %6148 = vmatmul.bf16.gmra.mxu0 %v5743
        %v6149 = vpop.f32.mrf.mxu0
        %v6150 = vadd.f32 0.0, %v6149
        %v6151 = vpop.f32.mrf.mxu0
        %v6152 = vadd.f32 0.0, %v6151
        %6153 = vmatmul.bf16.gmra.mxu0 %v5747
        %v6154 = vpop.f32.mrf.mxu0
        %v6155 = vadd.f32 0.0, %v6154
        %v6156 = vpop.f32.mrf.mxu0
        %v6157 = vadd.f32 0.0, %v6156
        %6158 = vmatmul.bf16.gmra.mxu0 %v5751
        %v6159 = vpop.f32.mrf.mxu0
        %v6160 = vadd.f32 0.0, %v6159
        %v6161 = vpop.f32.mrf.mxu0
        %v6162 = vadd.f32 0.0, %v6161
        %6163 = vmatmul.bf16.gmra.mxu0 %v5750
        %v6164 = vpop.f32.mrf.mxu0
        %v6165 = vpop.f32.mrf.mxu0
        %6166 = vdwg.mxu0
        %6167 = vmatpush.bf16.msra.mxu0 %v5976
        %6168 = vmatpush.bf16.msra.mxu0 %v5973
        %6169 = vmatpush.bf16.msra.mxu0 %v5970
        %6170 = vmatpush.bf16.msra.mxu0 %v5967
        %6171 = vmatpush.bf16.msra.mxu0 %v5964
        %6172 = vmatpush.bf16.msra.mxu0 %v5961
        %6173 = vmatpush.bf16.msra.mxu0 %v5958
        %6174 = vmatpush.bf16.msra.mxu0 %v5955
        %6175 = vmatmul.bf16.gmra.mxu0 %v5729
        %v6176 = vpop.f32.mrf.mxu0
        %v6177 = vadd.f32 %v6130, %v6176
        %v6178 = vpop.f32.mrf.mxu0
        %v6179 = vadd.f32 %v6132, %v6178
        %6180 = vmatmul.bf16.gmra.mxu0 %v5733
        %v6181 = vpop.f32.mrf.mxu0
        %v6182 = vadd.f32 %v6135, %v6181
        %v6183 = vpop.f32.mrf.mxu0
        %v6184 = vadd.f32 %v6137, %v6183
        %6185 = vmatmul.bf16.gmra.mxu0 %v5737
        %v6186 = vpop.f32.mrf.mxu0
        %v6187 = vadd.f32 %v6140, %v6186
        %v6188 = vpop.f32.mrf.mxu0
        %v6189 = vadd.f32 %v6142, %v6188
        %6190 = vmatmul.bf16.gmra.mxu0 %v5741
        %v6191 = vpop.f32.mrf.mxu0
        %v6192 = vadd.f32 %v6145, %v6191
        %v6193 = vpop.f32.mrf.mxu0
        %v6194 = vadd.f32 %v6147, %v6193
        %6195 = vmatmul.bf16.gmra.mxu0 %v5745
        %v6196 = vpop.f32.mrf.mxu0
        %v6197 = vadd.f32 %v6150, %v6196
        %v6198 = vpop.f32.mrf.mxu0
        %v6199 = vadd.f32 %v6152, %v6198
        %6200 = vmatmul.bf16.gmra.mxu0 %v5749
        %v6201 = vpop.f32.mrf.mxu0
        %v6202 = vadd.f32 %v6155, %v6201
        %v6203 = vpop.f32.mrf.mxu0
        %v6204 = vadd.f32 %v6157, %v6203
        %6205 = vmatmul.bf16.gmra.mxu0 %v5753
        %v6206 = vpop.f32.mrf.mxu0
        %v6207 = vadd.f32 %v6160, %v6206
        %v6208 = vpop.f32.mrf.mxu0
        %v6209 = vadd.f32 %v6162, %v6208
        %6210 = vmatmul.bf16.gmra.mxu0 %v5752
        %v6211 = vpop.f32.mrf.mxu0
        %v6212 = vpop.f32.mrf.mxu0
        %6213 = vdwg.mxu0
        %6214 = vmatpush.bf16.msra.mxu0 %v5953
        %6215 = vmatpush.bf16.msra.mxu0 %v5950
        %6216 = vmatpush.bf16.msra.mxu0 %v5947
        %6217 = vmatpush.bf16.msra.mxu0 %v5944
        %6218 = vmatpush.bf16.msra.mxu0 %v5941
        %6219 = vmatpush.bf16.msra.mxu0 %v5938
        %6220 = vmatpush.bf16.msra.mxu0 %v5935
        %6221 = vmatpush.bf16.msra.mxu0 %v5932
        %6222 = vmatmul.bf16.gmra.mxu0 %v5726
        %v6223 = vpop.f32.mrf.mxu0
        %v6224 = vadd.f32 0.0, %v6223
        %v6225 = vpop.f32.mrf.mxu0
        %v6226 = vadd.f32 0.0, %v6225
        %6227 = vmatmul.bf16.gmra.mxu0 %v5731
        %v6228 = vpop.f32.mrf.mxu0
        %v6229 = vadd.f32 0.0, %v6228
        %v6230 = vpop.f32.mrf.mxu0
        %v6231 = vadd.f32 0.0, %v6230
        %6232 = vmatmul.bf16.gmra.mxu0 %v5735
        %v6233 = vpop.f32.mrf.mxu0
        %v6234 = vadd.f32 0.0, %v6233
        %v6235 = vpop.f32.mrf.mxu0
        %v6236 = vadd.f32 0.0, %v6235
        %6237 = vmatmul.bf16.gmra.mxu0 %v5739
        %v6238 = vpop.f32.mrf.mxu0
        %v6239 = vadd.f32 0.0, %v6238
        %v6240 = vpop.f32.mrf.mxu0
        %v6241 = vadd.f32 0.0, %v6240
        %6242 = vmatmul.bf16.gmra.mxu0 %v5743
        %v6243 = vpop.f32.mrf.mxu0
        %v6244 = vadd.f32 0.0, %v6243
        %v6245 = vpop.f32.mrf.mxu0
        %v6246 = vadd.f32 0.0, %v6245
        %6247 = vmatmul.bf16.gmra.mxu0 %v5747
        %v6248 = vpop.f32.mrf.mxu0
        %v6249 = vadd.f32 0.0, %v6248
        %v6250 = vpop.f32.mrf.mxu0
        %v6251 = vadd.f32 0.0, %v6250
        %6252 = vmatmul.bf16.gmra.mxu0 %v5751
        %v6253 = vpop.f32.mrf.mxu0
        %v6254 = vadd.f32 0.0, %v6253
        %v6255 = vpop.f32.mrf.mxu0
        %v6256 = vadd.f32 0.0, %v6255
        %6257 = vmatmul.bf16.gmra.mxu0 %v5750
        %v6258 = vpop.f32.mrf.mxu0
        %v6259 = vpop.f32.mrf.mxu0
        %6260 = vdwg.mxu0
        %6261 = vmatpush.bf16.msra.mxu0 %v5977
        %6262 = vmatpush.bf16.msra.mxu0 %v5974
        %6263 = vmatpush.bf16.msra.mxu0 %v5971
        %6264 = vmatpush.bf16.msra.mxu0 %v5968
        %6265 = vmatpush.bf16.msra.mxu0 %v5965
        %6266 = vmatpush.bf16.msra.mxu0 %v5962
        %6267 = vmatpush.bf16.msra.mxu0 %v5959
        %6268 = vmatpush.bf16.msra.mxu0 %v5956
        %6269 = vmatmul.bf16.gmra.mxu0 %v5729
        %v6270 = vpop.f32.mrf.mxu0
        %v6271 = vadd.f32 %v6224, %v6270
        %v6272 = vpop.f32.mrf.mxu0
        %v6273 = vadd.f32 %v6226, %v6272
        %6274 = vmatmul.bf16.gmra.mxu0 %v5733
        %v6275 = vpop.f32.mrf.mxu0
        %v6276 = vadd.f32 %v6229, %v6275
        %v6277 = vpop.f32.mrf.mxu0
        %v6278 = vadd.f32 %v6231, %v6277
        %6279 = vmatmul.bf16.gmra.mxu0 %v5737
        %v6280 = vpop.f32.mrf.mxu0
        %v6281 = vadd.f32 %v6234, %v6280
        %v6282 = vpop.f32.mrf.mxu0
        %v6283 = vadd.f32 %v6236, %v6282
        %6284 = vmatmul.bf16.gmra.mxu0 %v5741
        %v6285 = vpop.f32.mrf.mxu0
        %v6286 = vadd.f32 %v6239, %v6285
        %v6287 = vpop.f32.mrf.mxu0
        %v6288 = vadd.f32 %v6241, %v6287
        %6289 = vmatmul.bf16.gmra.mxu0 %v5745
        %v6290 = vpop.f32.mrf.mxu0
        %v6291 = vadd.f32 %v6244, %v6290
        %v6292 = vpop.f32.mrf.mxu0
        %v6293 = vadd.f32 %v6246, %v6292
        %6294 = vmatmul.bf16.gmra.mxu0 %v5749
        %v6295 = vpop.f32.mrf.mxu0
        %v6296 = vadd.f32 %v6249, %v6295
        %v6297 = vpop.f32.mrf.mxu0
        %v6298 = vadd.f32 %v6251, %v6297
        %6299 = vmatmul.bf16.gmra.mxu0 %v5753
        %v6300 = vpop.f32.mrf.mxu0
        %v6301 = vadd.f32 %v6254, %v6300
        %v6302 = vpop.f32.mrf.mxu0
        %v6303 = vadd.f32 %v6256, %v6302
        %6304 = vmatmul.bf16.gmra.mxu0 %v5752
        %v6305 = vpop.f32.mrf.mxu0
        %v6306 = vpop.f32.mrf.mxu0
        %6307 = vdwg.mxu0
        %v6308 = vadd.f32 %v5604, %v6083
        %v6309 = vadd.f32 %v5605, %v6177
        %v6310 = vadd.f32 %v5606, %v6271
        %v6311 = vadd.f32 %v5607, %v6085
        %v6312 = vadd.f32 %v5608, %v6179
        %v6313 = vadd.f32 %v5609, %v6273
        %v6314 = vadd.f32 %v5610, %v6088
        %v6315 = vadd.f32 %v5611, %v6182
        %v6316 = vadd.f32 %v5612, %v6276
        %v6317 = vadd.f32 %v5613, %v6090
        %v6318 = vadd.f32 %v5614, %v6184
        %v6319 = vadd.f32 %v5615, %v6278
        %v6320 = vadd.f32 %v5616, %v6093
        %v6321 = vadd.f32 %v5617, %v6187
        %v6322 = vadd.f32 %v5618, %v6281
        %v6323 = vadd.f32 %v5619, %v6095
        %v6324 = vadd.f32 %v5620, %v6189
        %v6325 = vadd.f32 %v5621, %v6283
        %v6326 = vadd.f32 %v5622, %v6098
        %v6327 = vadd.f32 %v5623, %v6192
        %v6328 = vadd.f32 %v5624, %v6286
        %v6329 = vadd.f32 %v5625, %v6100
        %v6330 = vadd.f32 %v5626, %v6194
        %v6331 = vadd.f32 %v5627, %v6288
        %v6332 = vadd.f32 %v5628, %v6103
        %v6333 = vadd.f32 %v5629, %v6197
        %v6334 = vadd.f32 %v5630, %v6291
        %v6335 = vadd.f32 %v5631, %v6105
        %v6336 = vadd.f32 %v5632, %v6199
        %v6337 = vadd.f32 %v5633, %v6293
        %v6338 = vadd.f32 %v5634, %v6108
        %v6339 = vadd.f32 %v5635, %v6202
        %v6340 = vadd.f32 %v5636, %v6296
        %v6341 = vadd.f32 %v5637, %v6110
        %v6342 = vadd.f32 %v5638, %v6204
        %v6343 = vadd.f32 %v5639, %v6298
        %v6344 = vadd.f32 %v5640, %v6113
        %v6345 = vadd.f32 %v5641, %v6207
        %v6346 = vadd.f32 %v5642, %v6301
        %v6347 = vadd.f32 %v5643, %v6115
        %v6348 = vadd.f32 %v5644, %v6209
        %v6349 = vadd.f32 %v5645, %v6303
        %v6350 = vld [vmem:[#allocation2 + $0x40] sm:$0xf0]
        %v6351 = vld [vmem:[#allocation2 + $0x48] sm:$0xf0]
        %v6352 = vld [vmem:[#allocation2 + $0x50] sm:$0xff]
        %v6353 = vld [vmem:[#allocation2 + $0x58] sm:$0xff]
        %v6354 = vld [vmem:[#allocation2 + $0x60] sm:$0xff]
        %v6355 = vld [vmem:[#allocation2 + $0x68] sm:$0xff]
        %v6356 = vld [vmem:[#allocation2 + $0x70] sm:$0xff]
        %v6357 = vld [vmem:[#allocation2 + $0x78] sm:$0xff]
        %v6358 = vld [vmem:[#allocation2 + $0x80] sm:$0xff]
        %v6359 = vld [vmem:[#allocation2 + $0x88] sm:$0xff]
        %v6360 = vld [vmem:[#allocation2 + $0x90] sm:$0xff]
        %v6361 = vld [vmem:[#allocation2 + $0x98] sm:$0xff]
        %v6362 = vld [vmem:[#allocation2 + $0xa0] sm:$0xff]
        %v6363 = vld [vmem:[#allocation2 + $0xa8] sm:$0xff]
        %v6364 = vld [vmem:[#allocation2 + $0xb0] sm:$0xff]
        %v6365 = vld [vmem:[#allocation2 + $0xb8] sm:$0xff]
        %v6366 = vld [vmem:[#allocation2 + $0xc0] sm:$0xff]
        %v6367 = vld [vmem:[#allocation2 + $0xc8] sm:$0xff]
        %v6368 = vld [vmem:[#allocation2 + $0xd0] sm:$0xff]
        %v6369 = vld [vmem:[#allocation2 + $0xd8] sm:$0xff]
        %v6370 = vld [vmem:[#allocation2 + $0xe0] sm:$0xff]
        %v6371 = vld [vmem:[#allocation2 + $0xe8] sm:$0xff]
        %v6372 = vld [vmem:[#allocation2 + $0xf0] sm:$0xff]
        %v6373 = vld [vmem:[#allocation2 + $0xf8] sm:$0xff]
        %v6374 = vld [vmem:[#allocation2 + $0x100] sm:$0xff]
        %v6375 = vld [vmem:[#allocation2 + $0x108] sm:$0xff]
        %v6376 = vld [vmem:[#allocation2 + $0x110] sm:$0xff]
        %v6377 = vld [vmem:[#allocation2 + $0x118] sm:$0xff]
        %v6378 = vld [vmem:[#allocation2 + $0x120] sm:$0xff]
        %v6379 = vld [vmem:[#allocation2 + $0x128] sm:$0xff]
        %v6380 = vld [vmem:[#allocation2 + $0x130] sm:$0xff]
        %v6381 = vld [vmem:[#allocation2 + $0x138] sm:$0xff]
        %v6382 = vpack.c.bf16 %v6352, %v6350
        %v6383 = vpack.c.bf16 %v6353, %v6351
        %v6384 = vpack.c.bf16 %v6356, %v6354
        %v6385 = vpack.c.bf16 %v6357, %v6355
        %v6386 = vpack.c.bf16 %v6360, %v6358
        %v6387 = vpack.c.bf16 %v6361, %v6359
        %v6388 = vpack.c.bf16 %v6364, %v6362
        %v6389 = vpack.c.bf16 %v6365, %v6363
        %v6390 = vpack.c.bf16 %v6368, %v6366
        %v6391 = vpack.c.bf16 %v6369, %v6367
        %v6392 = vpack.c.bf16 %v6372, %v6370
        %v6393 = vpack.c.bf16 %v6373, %v6371
        %v6394 = vpack.c.bf16 %v6376, %v6374
        %v6395 = vpack.c.bf16 %v6377, %v6375
        %v6396 = vpack.c.bf16 %v6380, %v6378
        %v6397 = vpack.c.bf16 %v6381, %v6379
        %s6398 = scalar_lea.vmem %s5, 2304
        %v6399 = vld [vmem:[%s6398] sm:$0xff]
        %v6400 = vld [vmem:[%s6398 + $0x8] sm:$0xf]
        %v6401 = vld [vmem:[%s6398 + $0xc] sm:$0xff]
        %v6402 = vld [vmem:[%s6398 + $0x14] sm:$0xf]
        %v6403 = vld [vmem:[%s6398 + $0x18] sm:$0xff]
        %v6404 = vld [vmem:[%s6398 + $0x20] sm:$0xf]
        %v6405 = vld [vmem:[%s6398 + $0x24] sm:$0xff]
        %v6406 = vld [vmem:[%s6398 + $0x2c] sm:$0xf]
        %v6407 = vld [vmem:[%s6398 + $0x30] sm:$0xff]
        %v6408 = vld [vmem:[%s6398 + $0x38] sm:$0xf]
        %v6409 = vld [vmem:[%s6398 + $0x3c] sm:$0xff]
        %v6410 = vld [vmem:[%s6398 + $0x44] sm:$0xf]
        %v6411 = vld [vmem:[%s6398 + $0x48] sm:$0xff]
        %v6412 = vld [vmem:[%s6398 + $0x50] sm:$0xf]
        %v6413 = vld [vmem:[%s6398 + $0x54] sm:$0xff]
        %v6414 = vld [vmem:[%s6398 + $0x5c] sm:$0xf]
        %v6415 = vld [vmem:[%s6398 + $0x60] sm:$0xff]
        %v6416 = vld [vmem:[%s6398 + $0x68] sm:$0xf]
        %v6417 = vld [vmem:[%s6398 + $0x6c] sm:$0xff]
        %v6418 = vld [vmem:[%s6398 + $0x74] sm:$0xf]
        %v6419 = vld [vmem:[%s6398 + $0x78] sm:$0xff]
        %v6420 = vld [vmem:[%s6398 + $0x80] sm:$0xf]
        %v6421 = vld [vmem:[%s6398 + $0x84] sm:$0xff]
        %v6422 = vld [vmem:[%s6398 + $0x8c] sm:$0xf]
        %v6423 = vld [vmem:[%s6398 + $0x90] sm:$0xff]
        %v6424 = vld [vmem:[%s6398 + $0x98] sm:$0xf]
        %v6425 = vld [vmem:[%s6398 + $0x9c] sm:$0xff]
        %v6426 = vld [vmem:[%s6398 + $0xa4] sm:$0xf]
        %v6427 = vld [vmem:[%s6398 + $0xa8] sm:$0xff]
        %v6428 = vld [vmem:[%s6398 + $0xb0] sm:$0xf]
        %v6429 = vld [vmem:[%s6398 + $0xb4] sm:$0xff]
        %v6430 = vld [vmem:[%s6398 + $0xbc] sm:$0xf]
        %v6431 = vld [vmem:[%s6398 + $0xc0] sm:$0xff]
        %v6432 = vld [vmem:[%s6398 + $0xc8] sm:$0xf]
        %v6433 = vld [vmem:[%s6398 + $0xcc] sm:$0xff]
        %v6434 = vld [vmem:[%s6398 + $0xd4] sm:$0xf]
        %v6435 = vld [vmem:[%s6398 + $0xd8] sm:$0xff]
        %v6436 = vld [vmem:[%s6398 + $0xe0] sm:$0xf]
        %v6437 = vld [vmem:[%s6398 + $0xe4] sm:$0xff]
        %v6438 = vld [vmem:[%s6398 + $0xec] sm:$0xf]
        %v6439 = vld [vmem:[%s6398 + $0xf0] sm:$0xff]
        %v6440 = vld [vmem:[%s6398 + $0xf8] sm:$0xf]
        %v6441 = vld [vmem:[%s6398 + $0xfc] sm:$0xff]
        %v6442 = vld [vmem:[%s6398 + $0x104] sm:$0xf]
        %v6443 = vld [vmem:[%s6398 + $0x108] sm:$0xff]
        %v6444 = vld [vmem:[%s6398 + $0x110] sm:$0xf]
        %v6445 = vld [vmem:[%s6398 + $0x114] sm:$0xff]
        %v6446 = vld [vmem:[%s6398 + $0x11c] sm:$0xf]
        %v6447 = vld [vmem:[%s6398 + $0x120] sm:$0xff]
        %v6448 = vld [vmem:[%s6398 + $0x128] sm:$0xf]
        %v6449 = vld [vmem:[%s6398 + $0x12c] sm:$0xff]
        %v6450 = vld [vmem:[%s6398 + $0x134] sm:$0xf]
        %v6451 = vld [vmem:[%s6398 + $0x138] sm:$0xff]
        %v6452 = vld [vmem:[%s6398 + $0x140] sm:$0xf]
        %v6453 = vld [vmem:[%s6398 + $0x144] sm:$0xff]
        %v6454 = vld [vmem:[%s6398 + $0x14c] sm:$0xf]
        %v6455 = vld [vmem:[%s6398 + $0x150] sm:$0xff]
        %v6456 = vld [vmem:[%s6398 + $0x158] sm:$0xf]
        %v6457 = vld [vmem:[%s6398 + $0x15c] sm:$0xff]
        %v6458 = vld [vmem:[%s6398 + $0x164] sm:$0xf]
        %v6459 = vld [vmem:[%s6398 + $0x168] sm:$0xff]
        %v6460 = vld [vmem:[%s6398 + $0x170] sm:$0xf]
        %v6461 = vld [vmem:[%s6398 + $0x174] sm:$0xff]
        %v6462 = vld [vmem:[%s6398 + $0x17c] sm:$0xf]
        %v6479 = vrot.slane %v6382, 2
        %v6480 = vrot.slane %v6384, 2
        %v6481 = vsel %vm5723, %v6479, %v6480
        %v6482 = vrot.slane %v6383, 2
        %v6483 = vrot.slane %v6385, 2
        %v6484 = vsel %vm5723, %v6482, %v6483
        %v6485 = vrot.slane %v6386, 2
        %v6486 = vsel %vm5723, %v6480, %v6485
        %v6487 = vrot.slane %v6387, 2
        %v6488 = vsel %vm5723, %v6483, %v6487
        %v6489 = vrot.slane %v6388, 2
        %v6490 = vsel %vm5723, %v6485, %v6489
        %v6491 = vrot.slane %v6389, 2
        %v6492 = vsel %vm5723, %v6487, %v6491
        %v6493 = vrot.slane %v6390, 2
        %v6494 = vsel %vm5723, %v6489, %v6493
        %v6495 = vrot.slane %v6391, 2
        %v6496 = vsel %vm5723, %v6491, %v6495
        %v6497 = vrot.slane %v6392, 2
        %v6498 = vsel %vm5723, %v6493, %v6497
        %v6499 = vrot.slane %v6393, 2
        %v6500 = vsel %vm5723, %v6495, %v6499
        %v6501 = vrot.slane %v6394, 2
        %v6502 = vsel %vm5723, %v6497, %v6501
        %v6503 = vrot.slane %v6395, 2
        %v6504 = vsel %vm5723, %v6499, %v6503
        %v6505 = vrot.slane %v6396, 2
        %v6506 = vsel %vm5723, %v6501, %v6505
        %v6507 = vrot.slane %v6397, 2
        %v6508 = vsel %vm5723, %v6503, %v6507
        %v6589 = vunpack.c.l.b16 %v6399
        %v6590 = vunpack.c.h.b16 %v6399
        %v6591 = vunpack.c.l.b16 %v6400
        %v6592 = vunpack.c.l.b16 %v6401
        %v6593 = vunpack.c.h.b16 %v6401
        %v6594 = vunpack.c.l.b16 %v6402
        %v6595 = vunpack.c.l.b16 %v6403
        %v6596 = vunpack.c.h.b16 %v6403
        %v6597 = vunpack.c.l.b16 %v6404
        %v6598 = vunpack.c.l.b16 %v6405
        %v6599 = vunpack.c.h.b16 %v6405
        %v6600 = vunpack.c.l.b16 %v6406
        %v6601 = vunpack.c.l.b16 %v6407
        %v6602 = vunpack.c.h.b16 %v6407
        %v6603 = vunpack.c.l.b16 %v6408
        %v6604 = vunpack.c.l.b16 %v6409
        %v6605 = vunpack.c.h.b16 %v6409
        %v6606 = vunpack.c.l.b16 %v6410
        %v6607 = vunpack.c.l.b16 %v6411
        %v6608 = vunpack.c.h.b16 %v6411
        %v6609 = vunpack.c.l.b16 %v6412
        %v6610 = vunpack.c.l.b16 %v6413
        %v6611 = vunpack.c.h.b16 %v6413
        %v6612 = vunpack.c.l.b16 %v6414
        %v6613 = vunpack.c.l.b16 %v6415
        %v6614 = vunpack.c.h.b16 %v6415
        %v6615 = vunpack.c.l.b16 %v6416
        %v6616 = vunpack.c.l.b16 %v6417
        %v6617 = vunpack.c.h.b16 %v6417
        %v6618 = vunpack.c.l.b16 %v6418
        %v6619 = vunpack.c.l.b16 %v6419
        %v6620 = vunpack.c.h.b16 %v6419
        %v6621 = vunpack.c.l.b16 %v6420
        %v6622 = vunpack.c.l.b16 %v6421
        %v6623 = vunpack.c.h.b16 %v6421
        %v6624 = vunpack.c.l.b16 %v6422
        %v6625 = vunpack.c.l.b16 %v6423
        %v6626 = vunpack.c.h.b16 %v6423
        %v6627 = vunpack.c.l.b16 %v6424
        %v6628 = vunpack.c.l.b16 %v6425
        %v6629 = vunpack.c.h.b16 %v6425
        %v6630 = vunpack.c.l.b16 %v6426
        %v6631 = vunpack.c.l.b16 %v6427
        %v6632 = vunpack.c.h.b16 %v6427
        %v6633 = vunpack.c.l.b16 %v6428
        %v6634 = vunpack.c.l.b16 %v6429
        %v6635 = vunpack.c.h.b16 %v6429
        %v6636 = vunpack.c.l.b16 %v6430
        %v6637 = vunpack.c.l.b16 %v6431
        %v6638 = vunpack.c.h.b16 %v6431
        %v6639 = vunpack.c.l.b16 %v6432
        %v6640 = vunpack.c.l.b16 %v6433
        %v6641 = vunpack.c.h.b16 %v6433
        %v6642 = vunpack.c.l.b16 %v6434
        %v6643 = vunpack.c.l.b16 %v6435
        %v6644 = vunpack.c.h.b16 %v6435
        %v6645 = vunpack.c.l.b16 %v6436
        %v6646 = vunpack.c.l.b16 %v6437
        %v6647 = vunpack.c.h.b16 %v6437
        %v6648 = vunpack.c.l.b16 %v6438
        %v6649 = vunpack.c.l.b16 %v6439
        %v6650 = vunpack.c.h.b16 %v6439
        %v6651 = vunpack.c.l.b16 %v6440
        %v6652 = vunpack.c.l.b16 %v6441
        %v6653 = vunpack.c.h.b16 %v6441
        %v6654 = vunpack.c.l.b16 %v6442
        %v6655 = vunpack.c.l.b16 %v6443
        %v6656 = vunpack.c.h.b16 %v6443
        %v6657 = vunpack.c.l.b16 %v6444
        %v6658 = vunpack.c.l.b16 %v6445
        %v6659 = vunpack.c.h.b16 %v6445
        %v6660 = vunpack.c.l.b16 %v6446
        %v6661 = vunpack.c.l.b16 %v6447
        %v6662 = vunpack.c.h.b16 %v6447
        %v6663 = vunpack.c.l.b16 %v6448
        %v6664 = vunpack.c.l.b16 %v6449
        %v6665 = vunpack.c.h.b16 %v6449
        %v6666 = vunpack.c.l.b16 %v6450
        %v6667 = vunpack.c.l.b16 %v6451
        %v6668 = vunpack.c.h.b16 %v6451
        %v6669 = vunpack.c.l.b16 %v6452
        %v6670 = vunpack.c.l.b16 %v6453
        %v6671 = vunpack.c.h.b16 %v6453
        %v6672 = vunpack.c.l.b16 %v6454
        %v6673 = vunpack.c.l.b16 %v6455
        %v6674 = vunpack.c.h.b16 %v6455
        %v6675 = vunpack.c.l.b16 %v6456
        %v6676 = vunpack.c.l.b16 %v6457
        %v6677 = vunpack.c.h.b16 %v6457
        %v6678 = vunpack.c.l.b16 %v6458
        %v6679 = vunpack.c.l.b16 %v6459
        %v6680 = vunpack.c.h.b16 %v6459
        %v6681 = vunpack.c.l.b16 %v6460
        %v6682 = vunpack.c.l.b16 %v6461
        %v6683 = vunpack.c.h.b16 %v6461
        %v6684 = vunpack.c.l.b16 %v6462
        %v6685 = vpack.c.b16 %v6592, %v6589
        %v6686 = vpack.c.b16 %v6593, %v6590
        %v6687 = vpack.c.b16 %v6594, %v6591
        %v6688 = vpack.c.b16 %v6598, %v6595
        %v6689 = vpack.c.b16 %v6599, %v6596
        %v6690 = vpack.c.b16 %v6600, %v6597
        %v6691 = vpack.c.b16 %v6604, %v6601
        %v6692 = vpack.c.b16 %v6605, %v6602
        %v6693 = vpack.c.b16 %v6606, %v6603
        %v6694 = vpack.c.b16 %v6610, %v6607
        %v6695 = vpack.c.b16 %v6611, %v6608
        %v6696 = vpack.c.b16 %v6612, %v6609
        %v6697 = vpack.c.b16 %v6616, %v6613
        %v6698 = vpack.c.b16 %v6617, %v6614
        %v6699 = vpack.c.b16 %v6618, %v6615
        %v6700 = vpack.c.b16 %v6622, %v6619
        %v6701 = vpack.c.b16 %v6623, %v6620
        %v6702 = vpack.c.b16 %v6624, %v6621
        %v6703 = vpack.c.b16 %v6628, %v6625
        %v6704 = vpack.c.b16 %v6629, %v6626
        %v6705 = vpack.c.b16 %v6630, %v6627
        %v6706 = vpack.c.b16 %v6634, %v6631
        %v6707 = vpack.c.b16 %v6635, %v6632
        %v6708 = vpack.c.b16 %v6636, %v6633
        %v6709 = vpack.c.b16 %v6640, %v6637
        %v6710 = vpack.c.b16 %v6641, %v6638
        %v6711 = vpack.c.b16 %v6642, %v6639
        %v6712 = vpack.c.b16 %v6646, %v6643
        %v6713 = vpack.c.b16 %v6647, %v6644
        %v6714 = vpack.c.b16 %v6648, %v6645
        %v6715 = vpack.c.b16 %v6652, %v6649
        %v6716 = vpack.c.b16 %v6653, %v6650
        %v6717 = vpack.c.b16 %v6654, %v6651
        %v6718 = vpack.c.b16 %v6658, %v6655
        %v6719 = vpack.c.b16 %v6659, %v6656
        %v6720 = vpack.c.b16 %v6660, %v6657
        %v6721 = vpack.c.b16 %v6664, %v6661
        %v6722 = vpack.c.b16 %v6665, %v6662
        %v6723 = vpack.c.b16 %v6666, %v6663
        %v6724 = vpack.c.b16 %v6670, %v6667
        %v6725 = vpack.c.b16 %v6671, %v6668
        %v6726 = vpack.c.b16 %v6672, %v6669
        %v6727 = vpack.c.b16 %v6676, %v6673
        %v6728 = vpack.c.b16 %v6677, %v6674
        %v6729 = vpack.c.b16 %v6678, %v6675
        %v6730 = vpack.c.b16 %v6682, %v6679
        %v6731 = vpack.c.b16 %v6683, %v6680
        %v6732 = vpack.c.b16 %v6684, %v6681
        %6781 = vmatpush.bf16.msra.mxu0 %v6706
        %6782 = vmatpush.bf16.msra.mxu0 %v6703
        %6783 = vmatpush.bf16.msra.mxu0 %v6700
        %6784 = vmatpush.bf16.msra.mxu0 %v6697
        %6785 = vmatpush.bf16.msra.mxu0 %v6694
        %6786 = vmatpush.bf16.msra.mxu0 %v6691
        %6787 = vmatpush.bf16.msra.mxu0 %v6688
        %6788 = vmatpush.bf16.msra.mxu0 %v6685
        %6789 = vmatmul.bf16.gmra.mxu0 %v6481
        %v6790 = vpop.f32.mrf.mxu0
        %v6791 = vadd.f32 0.0, %v6790
        %v6792 = vpop.f32.mrf.mxu0
        %v6793 = vadd.f32 0.0, %v6792
        %6794 = vmatmul.bf16.gmra.mxu0 %v6486
        %v6795 = vpop.f32.mrf.mxu0
        %v6796 = vadd.f32 0.0, %v6795
        %v6797 = vpop.f32.mrf.mxu0
        %v6798 = vadd.f32 0.0, %v6797
        %6799 = vmatmul.bf16.gmra.mxu0 %v6490
        %v6800 = vpop.f32.mrf.mxu0
        %v6801 = vadd.f32 0.0, %v6800
        %v6802 = vpop.f32.mrf.mxu0
        %v6803 = vadd.f32 0.0, %v6802
        %6804 = vmatmul.bf16.gmra.mxu0 %v6494
        %v6805 = vpop.f32.mrf.mxu0
        %v6806 = vadd.f32 0.0, %v6805
        %v6807 = vpop.f32.mrf.mxu0
        %v6808 = vadd.f32 0.0, %v6807
        %6809 = vmatmul.bf16.gmra.mxu0 %v6498
        %v6810 = vpop.f32.mrf.mxu0
        %v6811 = vadd.f32 0.0, %v6810
        %v6812 = vpop.f32.mrf.mxu0
        %v6813 = vadd.f32 0.0, %v6812
        %6814 = vmatmul.bf16.gmra.mxu0 %v6502
        %v6815 = vpop.f32.mrf.mxu0
        %v6816 = vadd.f32 0.0, %v6815
        %v6817 = vpop.f32.mrf.mxu0
        %v6818 = vadd.f32 0.0, %v6817
        %6819 = vmatmul.bf16.gmra.mxu0 %v6506
        %v6820 = vpop.f32.mrf.mxu0
        %v6821 = vadd.f32 0.0, %v6820
        %v6822 = vpop.f32.mrf.mxu0
        %v6823 = vadd.f32 0.0, %v6822
        %6824 = vmatmul.bf16.gmra.mxu0 %v6505
        %v6825 = vpop.f32.mrf.mxu0
        %v6826 = vpop.f32.mrf.mxu0
        %6827 = vdwg.mxu0
        %6828 = vmatpush.bf16.msra.mxu0 %v6730
        %6829 = vmatpush.bf16.msra.mxu0 %v6727
        %6830 = vmatpush.bf16.msra.mxu0 %v6724
        %6831 = vmatpush.bf16.msra.mxu0 %v6721
        %6832 = vmatpush.bf16.msra.mxu0 %v6718
        %6833 = vmatpush.bf16.msra.mxu0 %v6715
        %6834 = vmatpush.bf16.msra.mxu0 %v6712
        %6835 = vmatpush.bf16.msra.mxu0 %v6709
        %6836 = vmatmul.bf16.gmra.mxu0 %v6484
        %v6837 = vpop.f32.mrf.mxu0
        %v6838 = vadd.f32 %v6791, %v6837
        %v6839 = vpop.f32.mrf.mxu0
        %v6840 = vadd.f32 %v6793, %v6839
        %6841 = vmatmul.bf16.gmra.mxu0 %v6488
        %v6842 = vpop.f32.mrf.mxu0
        %v6843 = vadd.f32 %v6796, %v6842
        %v6844 = vpop.f32.mrf.mxu0
        %v6845 = vadd.f32 %v6798, %v6844
        %6846 = vmatmul.bf16.gmra.mxu0 %v6492
        %v6847 = vpop.f32.mrf.mxu0
        %v6848 = vadd.f32 %v6801, %v6847
        %v6849 = vpop.f32.mrf.mxu0
        %v6850 = vadd.f32 %v6803, %v6849
        %6851 = vmatmul.bf16.gmra.mxu0 %v6496
        %v6852 = vpop.f32.mrf.mxu0
        %v6853 = vadd.f32 %v6806, %v6852
        %v6854 = vpop.f32.mrf.mxu0
        %v6855 = vadd.f32 %v6808, %v6854
        %6856 = vmatmul.bf16.gmra.mxu0 %v6500
        %v6857 = vpop.f32.mrf.mxu0
        %v6858 = vadd.f32 %v6811, %v6857
        %v6859 = vpop.f32.mrf.mxu0
        %v6860 = vadd.f32 %v6813, %v6859
        %6861 = vmatmul.bf16.gmra.mxu0 %v6504
        %v6862 = vpop.f32.mrf.mxu0
        %v6863 = vadd.f32 %v6816, %v6862
        %v6864 = vpop.f32.mrf.mxu0
        %v6865 = vadd.f32 %v6818, %v6864
        %6866 = vmatmul.bf16.gmra.mxu0 %v6508
        %v6867 = vpop.f32.mrf.mxu0
        %v6868 = vadd.f32 %v6821, %v6867
        %v6869 = vpop.f32.mrf.mxu0
        %v6870 = vadd.f32 %v6823, %v6869
        %6871 = vmatmul.bf16.gmra.mxu0 %v6507
        %v6872 = vpop.f32.mrf.mxu0
        %v6873 = vpop.f32.mrf.mxu0
        %6874 = vdwg.mxu0
        %6875 = vmatpush.bf16.msra.mxu0 %v6707
        %6876 = vmatpush.bf16.msra.mxu0 %v6704
        %6877 = vmatpush.bf16.msra.mxu0 %v6701
        %6878 = vmatpush.bf16.msra.mxu0 %v6698
        %6879 = vmatpush.bf16.msra.mxu0 %v6695
        %6880 = vmatpush.bf16.msra.mxu0 %v6692
        %6881 = vmatpush.bf16.msra.mxu0 %v6689
        %6882 = vmatpush.bf16.msra.mxu0 %v6686
        %6883 = vmatmul.bf16.gmra.mxu0 %v6481
        %v6884 = vpop.f32.mrf.mxu0
        %v6885 = vadd.f32 0.0, %v6884
        %v6886 = vpop.f32.mrf.mxu0
        %v6887 = vadd.f32 0.0, %v6886
        %6888 = vmatmul.bf16.gmra.mxu0 %v6486
        %v6889 = vpop.f32.mrf.mxu0
        %v6890 = vadd.f32 0.0, %v6889
        %v6891 = vpop.f32.mrf.mxu0
        %v6892 = vadd.f32 0.0, %v6891
        %6893 = vmatmul.bf16.gmra.mxu0 %v6490
        %v6894 = vpop.f32.mrf.mxu0
        %v6895 = vadd.f32 0.0, %v6894
        %v6896 = vpop.f32.mrf.mxu0
        %v6897 = vadd.f32 0.0, %v6896
        %6898 = vmatmul.bf16.gmra.mxu0 %v6494
        %v6899 = vpop.f32.mrf.mxu0
        %v6900 = vadd.f32 0.0, %v6899
        %v6901 = vpop.f32.mrf.mxu0
        %v6902 = vadd.f32 0.0, %v6901
        %6903 = vmatmul.bf16.gmra.mxu0 %v6498
        %v6904 = vpop.f32.mrf.mxu0
        %v6905 = vadd.f32 0.0, %v6904
        %v6906 = vpop.f32.mrf.mxu0
        %v6907 = vadd.f32 0.0, %v6906
        %6908 = vmatmul.bf16.gmra.mxu0 %v6502
        %v6909 = vpop.f32.mrf.mxu0
        %v6910 = vadd.f32 0.0, %v6909
        %v6911 = vpop.f32.mrf.mxu0
        %v6912 = vadd.f32 0.0, %v6911
        %6913 = vmatmul.bf16.gmra.mxu0 %v6506
        %v6914 = vpop.f32.mrf.mxu0
        %v6915 = vadd.f32 0.0, %v6914
        %v6916 = vpop.f32.mrf.mxu0
        %v6917 = vadd.f32 0.0, %v6916
        %6918 = vmatmul.bf16.gmra.mxu0 %v6505
        %v6919 = vpop.f32.mrf.mxu0
        %v6920 = vpop.f32.mrf.mxu0
        %6921 = vdwg.mxu0
        %6922 = vmatpush.bf16.msra.mxu0 %v6731
        %6923 = vmatpush.bf16.msra.mxu0 %v6728
        %6924 = vmatpush.bf16.msra.mxu0 %v6725
        %6925 = vmatpush.bf16.msra.mxu0 %v6722
        %6926 = vmatpush.bf16.msra.mxu0 %v6719
        %6927 = vmatpush.bf16.msra.mxu0 %v6716
        %6928 = vmatpush.bf16.msra.mxu0 %v6713
        %6929 = vmatpush.bf16.msra.mxu0 %v6710
        %6930 = vmatmul.bf16.gmra.mxu0 %v6484
        %v6931 = vpop.f32.mrf.mxu0
        %v6932 = vadd.f32 %v6885, %v6931
        %v6933 = vpop.f32.mrf.mxu0
        %v6934 = vadd.f32 %v6887, %v6933
        %6935 = vmatmul.bf16.gmra.mxu0 %v6488
        %v6936 = vpop.f32.mrf.mxu0
        %v6937 = vadd.f32 %v6890, %v6936
        %v6938 = vpop.f32.mrf.mxu0
        %v6939 = vadd.f32 %v6892, %v6938
        %6940 = vmatmul.bf16.gmra.mxu0 %v6492
        %v6941 = vpop.f32.mrf.mxu0
        %v6942 = vadd.f32 %v6895, %v6941
        %v6943 = vpop.f32.mrf.mxu0
        %v6944 = vadd.f32 %v6897, %v6943
        %6945 = vmatmul.bf16.gmra.mxu0 %v6496
        %v6946 = vpop.f32.mrf.mxu0
        %v6947 = vadd.f32 %v6900, %v6946
        %v6948 = vpop.f32.mrf.mxu0
        %v6949 = vadd.f32 %v6902, %v6948
        %6950 = vmatmul.bf16.gmra.mxu0 %v6500
        %v6951 = vpop.f32.mrf.mxu0
        %v6952 = vadd.f32 %v6905, %v6951
        %v6953 = vpop.f32.mrf.mxu0
        %v6954 = vadd.f32 %v6907, %v6953
        %6955 = vmatmul.bf16.gmra.mxu0 %v6504
        %v6956 = vpop.f32.mrf.mxu0
        %v6957 = vadd.f32 %v6910, %v6956
        %v6958 = vpop.f32.mrf.mxu0
        %v6959 = vadd.f32 %v6912, %v6958
        %6960 = vmatmul.bf16.gmra.mxu0 %v6508
        %v6961 = vpop.f32.mrf.mxu0
        %v6962 = vadd.f32 %v6915, %v6961
        %v6963 = vpop.f32.mrf.mxu0
        %v6964 = vadd.f32 %v6917, %v6963
        %6965 = vmatmul.bf16.gmra.mxu0 %v6507
        %v6966 = vpop.f32.mrf.mxu0
        %v6967 = vpop.f32.mrf.mxu0
        %6968 = vdwg.mxu0
        %6969 = vmatpush.bf16.msra.mxu0 %v6708
        %6970 = vmatpush.bf16.msra.mxu0 %v6705
        %6971 = vmatpush.bf16.msra.mxu0 %v6702
        %6972 = vmatpush.bf16.msra.mxu0 %v6699
        %6973 = vmatpush.bf16.msra.mxu0 %v6696
        %6974 = vmatpush.bf16.msra.mxu0 %v6693
        %6975 = vmatpush.bf16.msra.mxu0 %v6690
        %6976 = vmatpush.bf16.msra.mxu0 %v6687
        %6977 = vmatmul.bf16.gmra.mxu0 %v6481
        %v6978 = vpop.f32.mrf.mxu0
        %v6979 = vadd.f32 0.0, %v6978
        %v6980 = vpop.f32.mrf.mxu0
        %v6981 = vadd.f32 0.0, %v6980
        %6982 = vmatmul.bf16.gmra.mxu0 %v6486
        %v6983 = vpop.f32.mrf.mxu0
        %v6984 = vadd.f32 0.0, %v6983
        %v6985 = vpop.f32.mrf.mxu0
        %v6986 = vadd.f32 0.0, %v6985
        %6987 = vmatmul.bf16.gmra.mxu0 %v6490
        %v6988 = vpop.f32.mrf.mxu0
        %v6989 = vadd.f32 0.0, %v6988
        %v6990 = vpop.f32.mrf.mxu0
        %v6991 = vadd.f32 0.0, %v6990
        %6992 = vmatmul.bf16.gmra.mxu0 %v6494
        %v6993 = vpop.f32.mrf.mxu0
        %v6994 = vadd.f32 0.0, %v6993
        %v6995 = vpop.f32.mrf.mxu0
        %v6996 = vadd.f32 0.0, %v6995
        %6997 = vmatmul.bf16.gmra.mxu0 %v6498
        %v6998 = vpop.f32.mrf.mxu0
        %v6999 = vadd.f32 0.0, %v6998
        %v7000 = vpop.f32.mrf.mxu0
        %v7001 = vadd.f32 0.0, %v7000
        %7002 = vmatmul.bf16.gmra.mxu0 %v6502
        %v7003 = vpop.f32.mrf.mxu0
        %v7004 = vadd.f32 0.0, %v7003
        %v7005 = vpop.f32.mrf.mxu0
        %v7006 = vadd.f32 0.0, %v7005
        %7007 = vmatmul.bf16.gmra.mxu0 %v6506
        %v7008 = vpop.f32.mrf.mxu0
        %v7009 = vadd.f32 0.0, %v7008
        %v7010 = vpop.f32.mrf.mxu0
        %v7011 = vadd.f32 0.0, %v7010
        %7012 = vmatmul.bf16.gmra.mxu0 %v6505
        %v7013 = vpop.f32.mrf.mxu0
        %v7014 = vpop.f32.mrf.mxu0
        %7015 = vdwg.mxu0
        %7016 = vmatpush.bf16.msra.mxu0 %v6732
        %7017 = vmatpush.bf16.msra.mxu0 %v6729
        %7018 = vmatpush.bf16.msra.mxu0 %v6726
        %7019 = vmatpush.bf16.msra.mxu0 %v6723
        %7020 = vmatpush.bf16.msra.mxu0 %v6720
        %7021 = vmatpush.bf16.msra.mxu0 %v6717
        %7022 = vmatpush.bf16.msra.mxu0 %v6714
        %7023 = vmatpush.bf16.msra.mxu0 %v6711
        %7024 = vmatmul.bf16.gmra.mxu0 %v6484
        %v7025 = vpop.f32.mrf.mxu0
        %v7026 = vadd.f32 %v6979, %v7025
        %v7027 = vpop.f32.mrf.mxu0
        %v7028 = vadd.f32 %v6981, %v7027
        %7029 = vmatmul.bf16.gmra.mxu0 %v6488
        %v7030 = vpop.f32.mrf.mxu0
        %v7031 = vadd.f32 %v6984, %v7030
        %v7032 = vpop.f32.mrf.mxu0
        %v7033 = vadd.f32 %v6986, %v7032
        %7034 = vmatmul.bf16.gmra.mxu0 %v6492
        %v7035 = vpop.f32.mrf.mxu0
        %v7036 = vadd.f32 %v6989, %v7035
        %v7037 = vpop.f32.mrf.mxu0
        %v7038 = vadd.f32 %v6991, %v7037
        %7039 = vmatmul.bf16.gmra.mxu0 %v6496
        %v7040 = vpop.f32.mrf.mxu0
        %v7041 = vadd.f32 %v6994, %v7040
        %v7042 = vpop.f32.mrf.mxu0
        %v7043 = vadd.f32 %v6996, %v7042
        %7044 = vmatmul.bf16.gmra.mxu0 %v6500
        %v7045 = vpop.f32.mrf.mxu0
        %v7046 = vadd.f32 %v6999, %v7045
        %v7047 = vpop.f32.mrf.mxu0
        %v7048 = vadd.f32 %v7001, %v7047
        %7049 = vmatmul.bf16.gmra.mxu0 %v6504
        %v7050 = vpop.f32.mrf.mxu0
        %v7051 = vadd.f32 %v7004, %v7050
        %v7052 = vpop.f32.mrf.mxu0
        %v7053 = vadd.f32 %v7006, %v7052
        %7054 = vmatmul.bf16.gmra.mxu0 %v6508
        %v7055 = vpop.f32.mrf.mxu0
        %v7056 = vadd.f32 %v7009, %v7055
        %v7057 = vpop.f32.mrf.mxu0
        %v7058 = vadd.f32 %v7011, %v7057
        %7059 = vmatmul.bf16.gmra.mxu0 %v6507
        %v7060 = vpop.f32.mrf.mxu0
        %v7061 = vpop.f32.mrf.mxu0
        %7062 = vdwg.mxu0
        %v7063 = vadd.f32 %v6308, %v6838
        %v7064 = vadd.f32 %v6309, %v6932
        %v7065 = vadd.f32 %v6310, %v7026
        %v7066 = vadd.f32 %v6311, %v6840
        %v7067 = vadd.f32 %v6312, %v6934
        %v7068 = vadd.f32 %v6313, %v7028
        %v7069 = vadd.f32 %v6314, %v6843
        %v7070 = vadd.f32 %v6315, %v6937
        %v7071 = vadd.f32 %v6316, %v7031
        %v7072 = vadd.f32 %v6317, %v6845
        %v7073 = vadd.f32 %v6318, %v6939
        %v7074 = vadd.f32 %v6319, %v7033
        %v7075 = vadd.f32 %v6320, %v6848
        %v7076 = vadd.f32 %v6321, %v6942
        %v7077 = vadd.f32 %v6322, %v7036
        %v7078 = vadd.f32 %v6323, %v6850
        %v7079 = vadd.f32 %v6324, %v6944
        %v7080 = vadd.f32 %v6325, %v7038
        %v7081 = vadd.f32 %v6326, %v6853
        %v7082 = vadd.f32 %v6327, %v6947
        %v7083 = vadd.f32 %v6328, %v7041
        %v7084 = vadd.f32 %v6329, %v6855
        %v7085 = vadd.f32 %v6330, %v6949
        %v7086 = vadd.f32 %v6331, %v7043
        %v7087 = vadd.f32 %v6332, %v6858
        %v7088 = vadd.f32 %v6333, %v6952
        %v7089 = vadd.f32 %v6334, %v7046
        %v7090 = vadd.f32 %v6335, %v6860
        %v7091 = vadd.f32 %v6336, %v6954
        %v7092 = vadd.f32 %v6337, %v7048
        %v7093 = vadd.f32 %v6338, %v6863
        %v7094 = vadd.f32 %v6339, %v6957
        %v7095 = vadd.f32 %v6340, %v7051
        %v7096 = vadd.f32 %v6341, %v6865
        %v7097 = vadd.f32 %v6342, %v6959
        %v7098 = vadd.f32 %v6343, %v7053
        %v7099 = vadd.f32 %v6344, %v6868
        %v7100 = vadd.f32 %v6345, %v6962
        %v7101 = vadd.f32 %v6346, %v7056
        %v7102 = vadd.f32 %v6347, %v6870
        %v7103 = vadd.f32 %v6348, %v6964
        %v7104 = vadd.f32 %v6349, %v7058
        %v7105 = vld [vmem:[#allocation2 + $0x40] sm:$0xe0]
        %v7106 = vld [vmem:[#allocation2 + $0x48] sm:$0xe0]
        %v7107 = vld [vmem:[#allocation2 + $0x50] sm:$0xff]
        %v7108 = vld [vmem:[#allocation2 + $0x58] sm:$0xff]
        %v7109 = vld [vmem:[#allocation2 + $0x60] sm:$0xff]
        %v7110 = vld [vmem:[#allocation2 + $0x68] sm:$0xff]
        %v7111 = vld [vmem:[#allocation2 + $0x70] sm:$0xff]
        %v7112 = vld [vmem:[#allocation2 + $0x78] sm:$0xff]
        %v7113 = vld [vmem:[#allocation2 + $0x80] sm:$0xff]
        %v7114 = vld [vmem:[#allocation2 + $0x88] sm:$0xff]
        %v7115 = vld [vmem:[#allocation2 + $0x90] sm:$0xff]
        %v7116 = vld [vmem:[#allocation2 + $0x98] sm:$0xff]
        %v7117 = vld [vmem:[#allocation2 + $0xa0] sm:$0xff]
        %v7118 = vld [vmem:[#allocation2 + $0xa8] sm:$0xff]
        %v7119 = vld [vmem:[#allocation2 + $0xb0] sm:$0xff]
        %v7120 = vld [vmem:[#allocation2 + $0xb8] sm:$0xff]
        %v7121 = vld [vmem:[#allocation2 + $0xc0] sm:$0xff]
        %v7122 = vld [vmem:[#allocation2 + $0xc8] sm:$0xff]
        %v7123 = vld [vmem:[#allocation2 + $0xd0] sm:$0xff]
        %v7124 = vld [vmem:[#allocation2 + $0xd8] sm:$0xff]
        %v7125 = vld [vmem:[#allocation2 + $0xe0] sm:$0xff]
        %v7126 = vld [vmem:[#allocation2 + $0xe8] sm:$0xff]
        %v7127 = vld [vmem:[#allocation2 + $0xf0] sm:$0xff]
        %v7128 = vld [vmem:[#allocation2 + $0xf8] sm:$0xff]
        %v7129 = vld [vmem:[#allocation2 + $0x100] sm:$0xff]
        %v7130 = vld [vmem:[#allocation2 + $0x108] sm:$0xff]
        %v7131 = vld [vmem:[#allocation2 + $0x110] sm:$0xff]
        %v7132 = vld [vmem:[#allocation2 + $0x118] sm:$0xff]
        %v7133 = vld [vmem:[#allocation2 + $0x120] sm:$0xff]
        %v7134 = vld [vmem:[#allocation2 + $0x128] sm:$0xff]
        %v7135 = vld [vmem:[#allocation2 + $0x130] sm:$0xff]
        %v7136 = vld [vmem:[#allocation2 + $0x138] sm:$0xff]
        %v7137 = vld [vmem:[#allocation2 + $0x140] sm:$0x1]
        %v7138 = vld [vmem:[#allocation2 + $0x148] sm:$0x1]
        %v7139 = vpack.c.bf16 %v7107, %v7105
        %v7140 = vpack.c.bf16 %v7108, %v7106
        %v7141 = vpack.c.bf16 %v7111, %v7109
        %v7142 = vpack.c.bf16 %v7112, %v7110
        %v7143 = vpack.c.bf16 %v7115, %v7113
        %v7144 = vpack.c.bf16 %v7116, %v7114
        %v7145 = vpack.c.bf16 %v7119, %v7117
        %v7146 = vpack.c.bf16 %v7120, %v7118
        %v7147 = vpack.c.bf16 %v7123, %v7121
        %v7148 = vpack.c.bf16 %v7124, %v7122
        %v7149 = vpack.c.bf16 %v7127, %v7125
        %v7150 = vpack.c.bf16 %v7128, %v7126
        %v7151 = vpack.c.bf16 %v7131, %v7129
        %v7152 = vpack.c.bf16 %v7132, %v7130
        %v7153 = vpack.c.bf16 %v7135, %v7133
        %v7154 = vpack.c.bf16 %v7136, %v7134
        %v7155 = vpack.c.bf16 %v7137, %v7137
        %v7156 = vpack.c.bf16 %v7138, %v7138
        %s7157 = scalar_lea.vmem %s5, 2688
        %v7158 = vld [vmem:[%s7157] sm:$0xff]
        %v7159 = vld [vmem:[%s7157 + $0x8] sm:$0xf]
        %v7160 = vld [vmem:[%s7157 + $0xc] sm:$0xff]
        %v7161 = vld [vmem:[%s7157 + $0x14] sm:$0xf]
        %v7162 = vld [vmem:[%s7157 + $0x18] sm:$0xff]
        %v7163 = vld [vmem:[%s7157 + $0x20] sm:$0xf]
        %v7164 = vld [vmem:[%s7157 + $0x24] sm:$0xff]
        %v7165 = vld [vmem:[%s7157 + $0x2c] sm:$0xf]
        %v7166 = vld [vmem:[%s7157 + $0x30] sm:$0xff]
        %v7167 = vld [vmem:[%s7157 + $0x38] sm:$0xf]
        %v7168 = vld [vmem:[%s7157 + $0x3c] sm:$0xff]
        %v7169 = vld [vmem:[%s7157 + $0x44] sm:$0xf]
        %v7170 = vld [vmem:[%s7157 + $0x48] sm:$0xff]
        %v7171 = vld [vmem:[%s7157 + $0x50] sm:$0xf]
        %v7172 = vld [vmem:[%s7157 + $0x54] sm:$0xff]
        %v7173 = vld [vmem:[%s7157 + $0x5c] sm:$0xf]
        %v7174 = vld [vmem:[%s7157 + $0x60] sm:$0xff]
        %v7175 = vld [vmem:[%s7157 + $0x68] sm:$0xf]
        %v7176 = vld [vmem:[%s7157 + $0x6c] sm:$0xff]
        %v7177 = vld [vmem:[%s7157 + $0x74] sm:$0xf]
        %v7178 = vld [vmem:[%s7157 + $0x78] sm:$0xff]
        %v7179 = vld [vmem:[%s7157 + $0x80] sm:$0xf]
        %v7180 = vld [vmem:[%s7157 + $0x84] sm:$0xff]
        %v7181 = vld [vmem:[%s7157 + $0x8c] sm:$0xf]
        %v7182 = vld [vmem:[%s7157 + $0x90] sm:$0xff]
        %v7183 = vld [vmem:[%s7157 + $0x98] sm:$0xf]
        %v7184 = vld [vmem:[%s7157 + $0x9c] sm:$0xff]
        %v7185 = vld [vmem:[%s7157 + $0xa4] sm:$0xf]
        %v7186 = vld [vmem:[%s7157 + $0xa8] sm:$0xff]
        %v7187 = vld [vmem:[%s7157 + $0xb0] sm:$0xf]
        %v7188 = vld [vmem:[%s7157 + $0xb4] sm:$0xff]
        %v7189 = vld [vmem:[%s7157 + $0xbc] sm:$0xf]
        %v7190 = vld [vmem:[%s7157 + $0xc0] sm:$0xff]
        %v7191 = vld [vmem:[%s7157 + $0xc8] sm:$0xf]
        %v7192 = vld [vmem:[%s7157 + $0xcc] sm:$0xff]
        %v7193 = vld [vmem:[%s7157 + $0xd4] sm:$0xf]
        %v7194 = vld [vmem:[%s7157 + $0xd8] sm:$0xff]
        %v7195 = vld [vmem:[%s7157 + $0xe0] sm:$0xf]
        %v7196 = vld [vmem:[%s7157 + $0xe4] sm:$0xff]
        %v7197 = vld [vmem:[%s7157 + $0xec] sm:$0xf]
        %v7198 = vld [vmem:[%s7157 + $0xf0] sm:$0xff]
        %v7199 = vld [vmem:[%s7157 + $0xf8] sm:$0xf]
        %v7200 = vld [vmem:[%s7157 + $0xfc] sm:$0xff]
        %v7201 = vld [vmem:[%s7157 + $0x104] sm:$0xf]
        %v7202 = vld [vmem:[%s7157 + $0x108] sm:$0xff]
        %v7203 = vld [vmem:[%s7157 + $0x110] sm:$0xf]
        %v7204 = vld [vmem:[%s7157 + $0x114] sm:$0xff]
        %v7205 = vld [vmem:[%s7157 + $0x11c] sm:$0xf]
        %v7206 = vld [vmem:[%s7157 + $0x120] sm:$0xff]
        %v7207 = vld [vmem:[%s7157 + $0x128] sm:$0xf]
        %v7208 = vld [vmem:[%s7157 + $0x12c] sm:$0xff]
        %v7209 = vld [vmem:[%s7157 + $0x134] sm:$0xf]
        %v7210 = vld [vmem:[%s7157 + $0x138] sm:$0xff]
        %v7211 = vld [vmem:[%s7157 + $0x140] sm:$0xf]
        %v7212 = vld [vmem:[%s7157 + $0x144] sm:$0xff]
        %v7213 = vld [vmem:[%s7157 + $0x14c] sm:$0xf]
        %v7214 = vld [vmem:[%s7157 + $0x150] sm:$0xff]
        %v7215 = vld [vmem:[%s7157 + $0x158] sm:$0xf]
        %v7216 = vld [vmem:[%s7157 + $0x15c] sm:$0xff]
        %v7217 = vld [vmem:[%s7157 + $0x164] sm:$0xf]
        %v7218 = vld [vmem:[%s7157 + $0x168] sm:$0xff]
        %v7219 = vld [vmem:[%s7157 + $0x170] sm:$0xf]
        %v7220 = vld [vmem:[%s7157 + $0x174] sm:$0xff]
        %v7221 = vld [vmem:[%s7157 + $0x17c] sm:$0xf]
        %vm7222 = vsmask.f32 5376
        %v7224 = vshrl.u32 %v7139, 16
        %v7226 = vrot.slane %v7224, 2
        %v7227 = vshll.u32 %v7139, 16
        %v7229 = vrot.slane %v7227, 3
        %v7230 = vor.u32 %v7226, %v7229
        %v7232 = vshrl.u32 %v7141, 16
        %v7234 = vrot.slane %v7232, 2
        %v7235 = vshll.u32 %v7141, 16
        %v7237 = vrot.slane %v7235, 3
        %v7238 = vor.u32 %v7234, %v7237
        %v7239 = vsel %vm7222, %v7230, %v7238
        %v7241 = vshrl.u32 %v7140, 16
        %v7243 = vrot.slane %v7241, 2
        %v7244 = vshll.u32 %v7140, 16
        %v7246 = vrot.slane %v7244, 3
        %v7247 = vor.u32 %v7243, %v7246
        %v7249 = vshrl.u32 %v7142, 16
        %v7251 = vrot.slane %v7249, 2
        %v7252 = vshll.u32 %v7142, 16
        %v7254 = vrot.slane %v7252, 3
        %v7255 = vor.u32 %v7251, %v7254
        %v7256 = vsel %vm7222, %v7247, %v7255
        %v7258 = vshrl.u32 %v7143, 16
        %v7260 = vrot.slane %v7258, 2
        %v7261 = vshll.u32 %v7143, 16
        %v7263 = vrot.slane %v7261, 3
        %v7264 = vor.u32 %v7260, %v7263
        %v7265 = vsel %vm7222, %v7238, %v7264
        %v7267 = vshrl.u32 %v7144, 16
        %v7269 = vrot.slane %v7267, 2
        %v7270 = vshll.u32 %v7144, 16
        %v7272 = vrot.slane %v7270, 3
        %v7273 = vor.u32 %v7269, %v7272
        %v7274 = vsel %vm7222, %v7255, %v7273
        %v7276 = vshrl.u32 %v7145, 16
        %v7278 = vrot.slane %v7276, 2
        %v7279 = vshll.u32 %v7145, 16
        %v7281 = vrot.slane %v7279, 3
        %v7282 = vor.u32 %v7278, %v7281
        %v7283 = vsel %vm7222, %v7264, %v7282
        %v7285 = vshrl.u32 %v7146, 16
        %v7287 = vrot.slane %v7285, 2
        %v7288 = vshll.u32 %v7146, 16
        %v7290 = vrot.slane %v7288, 3
        %v7291 = vor.u32 %v7287, %v7290
        %v7292 = vsel %vm7222, %v7273, %v7291
        %v7294 = vshrl.u32 %v7147, 16
        %v7296 = vrot.slane %v7294, 2
        %v7297 = vshll.u32 %v7147, 16
        %v7299 = vrot.slane %v7297, 3
        %v7300 = vor.u32 %v7296, %v7299
        %v7301 = vsel %vm7222, %v7282, %v7300
        %v7303 = vshrl.u32 %v7148, 16
        %v7305 = vrot.slane %v7303, 2
        %v7306 = vshll.u32 %v7148, 16
        %v7308 = vrot.slane %v7306, 3
        %v7309 = vor.u32 %v7305, %v7308
        %v7310 = vsel %vm7222, %v7291, %v7309
        %v7312 = vshrl.u32 %v7149, 16
        %v7314 = vrot.slane %v7312, 2
        %v7315 = vshll.u32 %v7149, 16
        %v7317 = vrot.slane %v7315, 3
        %v7318 = vor.u32 %v7314, %v7317
        %v7319 = vsel %vm7222, %v7300, %v7318
        %v7321 = vshrl.u32 %v7150, 16
        %v7323 = vrot.slane %v7321, 2
        %v7324 = vshll.u32 %v7150, 16
        %v7326 = vrot.slane %v7324, 3
        %v7327 = vor.u32 %v7323, %v7326
        %v7328 = vsel %vm7222, %v7309, %v7327
        %v7330 = vshrl.u32 %v7151, 16
        %v7332 = vrot.slane %v7330, 2
        %v7333 = vshll.u32 %v7151, 16
        %v7335 = vrot.slane %v7333, 3
        %v7336 = vor.u32 %v7332, %v7335
        %v7337 = vsel %vm7222, %v7318, %v7336
        %v7339 = vshrl.u32 %v7152, 16
        %v7341 = vrot.slane %v7339, 2
        %v7342 = vshll.u32 %v7152, 16
        %v7344 = vrot.slane %v7342, 3
        %v7345 = vor.u32 %v7341, %v7344
        %v7346 = vsel %vm7222, %v7327, %v7345
        %v7348 = vshrl.u32 %v7153, 16
        %v7350 = vrot.slane %v7348, 2
        %v7351 = vshll.u32 %v7153, 16
        %v7353 = vrot.slane %v7351, 3
        %v7354 = vor.u32 %v7350, %v7353
        %v7355 = vsel %vm7222, %v7336, %v7354
        %v7357 = vshrl.u32 %v7154, 16
        %v7359 = vrot.slane %v7357, 2
        %v7360 = vshll.u32 %v7154, 16
        %v7362 = vrot.slane %v7360, 3
        %v7363 = vor.u32 %v7359, %v7362
        %v7364 = vsel %vm7222, %v7345, %v7363
        %v7366 = vshll.u32 %v7155, 16
        %v7368 = vrot.slane %v7366, 3
        %v7369 = vsel %vm7222, %v7354, %v7368
        %v7371 = vshll.u32 %v7156, 16
        %v7373 = vrot.slane %v7371, 3
        %v7374 = vsel %vm7222, %v7363, %v7373
        %v7455 = vunpack.c.l.b16 %v7158
        %v7456 = vunpack.c.h.b16 %v7158
        %v7457 = vunpack.c.l.b16 %v7159
        %v7458 = vunpack.c.l.b16 %v7160
        %v7459 = vunpack.c.h.b16 %v7160
        %v7460 = vunpack.c.l.b16 %v7161
        %v7461 = vunpack.c.l.b16 %v7162
        %v7462 = vunpack.c.h.b16 %v7162
        %v7463 = vunpack.c.l.b16 %v7163
        %v7464 = vunpack.c.l.b16 %v7164
        %v7465 = vunpack.c.h.b16 %v7164
        %v7466 = vunpack.c.l.b16 %v7165
        %v7467 = vunpack.c.l.b16 %v7166
        %v7468 = vunpack.c.h.b16 %v7166
        %v7469 = vunpack.c.l.b16 %v7167
        %v7470 = vunpack.c.l.b16 %v7168
        %v7471 = vunpack.c.h.b16 %v7168
        %v7472 = vunpack.c.l.b16 %v7169
        %v7473 = vunpack.c.l.b16 %v7170
        %v7474 = vunpack.c.h.b16 %v7170
        %v7475 = vunpack.c.l.b16 %v7171
        %v7476 = vunpack.c.l.b16 %v7172
        %v7477 = vunpack.c.h.b16 %v7172
        %v7478 = vunpack.c.l.b16 %v7173
        %v7479 = vunpack.c.l.b16 %v7174
        %v7480 = vunpack.c.h.b16 %v7174
        %v7481 = vunpack.c.l.b16 %v7175
        %v7482 = vunpack.c.l.b16 %v7176
        %v7483 = vunpack.c.h.b16 %v7176
        %v7484 = vunpack.c.l.b16 %v7177
        %v7485 = vunpack.c.l.b16 %v7178
        %v7486 = vunpack.c.h.b16 %v7178
        %v7487 = vunpack.c.l.b16 %v7179
        %v7488 = vunpack.c.l.b16 %v7180
        %v7489 = vunpack.c.h.b16 %v7180
        %v7490 = vunpack.c.l.b16 %v7181
        %v7491 = vunpack.c.l.b16 %v7182
        %v7492 = vunpack.c.h.b16 %v7182
        %v7493 = vunpack.c.l.b16 %v7183
        %v7494 = vunpack.c.l.b16 %v7184
        %v7495 = vunpack.c.h.b16 %v7184
        %v7496 = vunpack.c.l.b16 %v7185
        %v7497 = vunpack.c.l.b16 %v7186
        %v7498 = vunpack.c.h.b16 %v7186
        %v7499 = vunpack.c.l.b16 %v7187
        %v7500 = vunpack.c.l.b16 %v7188
        %v7501 = vunpack.c.h.b16 %v7188
        %v7502 = vunpack.c.l.b16 %v7189
        %v7503 = vunpack.c.l.b16 %v7190
        %v7504 = vunpack.c.h.b16 %v7190
        %v7505 = vunpack.c.l.b16 %v7191
        %v7506 = vunpack.c.l.b16 %v7192
        %v7507 = vunpack.c.h.b16 %v7192
        %v7508 = vunpack.c.l.b16 %v7193
        %v7509 = vunpack.c.l.b16 %v7194
        %v7510 = vunpack.c.h.b16 %v7194
        %v7511 = vunpack.c.l.b16 %v7195
        %v7512 = vunpack.c.l.b16 %v7196
        %v7513 = vunpack.c.h.b16 %v7196
        %v7514 = vunpack.c.l.b16 %v7197
        %v7515 = vunpack.c.l.b16 %v7198
        %v7516 = vunpack.c.h.b16 %v7198
        %v7517 = vunpack.c.l.b16 %v7199
        %v7518 = vunpack.c.l.b16 %v7200
        %v7519 = vunpack.c.h.b16 %v7200
        %v7520 = vunpack.c.l.b16 %v7201
        %v7521 = vunpack.c.l.b16 %v7202
        %v7522 = vunpack.c.h.b16 %v7202
        %v7523 = vunpack.c.l.b16 %v7203
        %v7524 = vunpack.c.l.b16 %v7204
        %v7525 = vunpack.c.h.b16 %v7204
        %v7526 = vunpack.c.l.b16 %v7205
        %v7527 = vunpack.c.l.b16 %v7206
        %v7528 = vunpack.c.h.b16 %v7206
        %v7529 = vunpack.c.l.b16 %v7207
        %v7530 = vunpack.c.l.b16 %v7208
        %v7531 = vunpack.c.h.b16 %v7208
        %v7532 = vunpack.c.l.b16 %v7209
        %v7533 = vunpack.c.l.b16 %v7210
        %v7534 = vunpack.c.h.b16 %v7210
        %v7535 = vunpack.c.l.b16 %v7211
        %v7536 = vunpack.c.l.b16 %v7212
        %v7537 = vunpack.c.h.b16 %v7212
        %v7538 = vunpack.c.l.b16 %v7213
        %v7539 = vunpack.c.l.b16 %v7214
        %v7540 = vunpack.c.h.b16 %v7214
        %v7541 = vunpack.c.l.b16 %v7215
        %v7542 = vunpack.c.l.b16 %v7216
        %v7543 = vunpack.c.h.b16 %v7216
        %v7544 = vunpack.c.l.b16 %v7217
        %v7545 = vunpack.c.l.b16 %v7218
        %v7546 = vunpack.c.h.b16 %v7218
        %v7547 = vunpack.c.l.b16 %v7219
        %v7548 = vunpack.c.l.b16 %v7220
        %v7549 = vunpack.c.h.b16 %v7220
        %v7550 = vunpack.c.l.b16 %v7221
        %v7551 = vpack.c.b16 %v7458, %v7455
        %v7552 = vpack.c.b16 %v7459, %v7456
        %v7553 = vpack.c.b16 %v7460, %v7457
        %v7554 = vpack.c.b16 %v7464, %v7461
        %v7555 = vpack.c.b16 %v7465, %v7462
        %v7556 = vpack.c.b16 %v7466, %v7463
        %v7557 = vpack.c.b16 %v7470, %v7467
        %v7558 = vpack.c.b16 %v7471, %v7468
        %v7559 = vpack.c.b16 %v7472, %v7469
        %v7560 = vpack.c.b16 %v7476, %v7473
        %v7561 = vpack.c.b16 %v7477, %v7474
        %v7562 = vpack.c.b16 %v7478, %v7475
        %v7563 = vpack.c.b16 %v7482, %v7479
        %v7564 = vpack.c.b16 %v7483, %v7480
        %v7565 = vpack.c.b16 %v7484, %v7481
        %v7566 = vpack.c.b16 %v7488, %v7485
        %v7567 = vpack.c.b16 %v7489, %v7486
        %v7568 = vpack.c.b16 %v7490, %v7487
        %v7569 = vpack.c.b16 %v7494, %v7491
        %v7570 = vpack.c.b16 %v7495, %v7492
        %v7571 = vpack.c.b16 %v7496, %v7493
        %v7572 = vpack.c.b16 %v7500, %v7497
        %v7573 = vpack.c.b16 %v7501, %v7498
        %v7574 = vpack.c.b16 %v7502, %v7499
        %v7575 = vpack.c.b16 %v7506, %v7503
        %v7576 = vpack.c.b16 %v7507, %v7504
        %v7577 = vpack.c.b16 %v7508, %v7505
        %v7578 = vpack.c.b16 %v7512, %v7509
        %v7579 = vpack.c.b16 %v7513, %v7510
        %v7580 = vpack.c.b16 %v7514, %v7511
        %v7581 = vpack.c.b16 %v7518, %v7515
        %v7582 = vpack.c.b16 %v7519, %v7516
        %v7583 = vpack.c.b16 %v7520, %v7517
        %v7584 = vpack.c.b16 %v7524, %v7521
        %v7585 = vpack.c.b16 %v7525, %v7522
        %v7586 = vpack.c.b16 %v7526, %v7523
        %v7587 = vpack.c.b16 %v7530, %v7527
        %v7588 = vpack.c.b16 %v7531, %v7528
        %v7589 = vpack.c.b16 %v7532, %v7529
        %v7590 = vpack.c.b16 %v7536, %v7533
        %v7591 = vpack.c.b16 %v7537, %v7534
        %v7592 = vpack.c.b16 %v7538, %v7535
        %v7593 = vpack.c.b16 %v7542, %v7539
        %v7594 = vpack.c.b16 %v7543, %v7540
        %v7595 = vpack.c.b16 %v7544, %v7541
        %v7596 = vpack.c.b16 %v7548, %v7545
        %v7597 = vpack.c.b16 %v7549, %v7546
        %v7598 = vpack.c.b16 %v7550, %v7547
        %7647 = vmatpush.bf16.msra.mxu0 %v7572
        %7648 = vmatpush.bf16.msra.mxu0 %v7569
        %7649 = vmatpush.bf16.msra.mxu0 %v7566
        %7650 = vmatpush.bf16.msra.mxu0 %v7563
        %7651 = vmatpush.bf16.msra.mxu0 %v7560
        %7652 = vmatpush.bf16.msra.mxu0 %v7557
        %7653 = vmatpush.bf16.msra.mxu0 %v7554
        %7654 = vmatpush.bf16.msra.mxu0 %v7551
        %7655 = vmatmul.bf16.gmra.mxu0 %v7239
        %v7656 = vpop.f32.mrf.mxu0
        %v7657 = vadd.f32 0.0, %v7656
        %v7658 = vpop.f32.mrf.mxu0
        %v7659 = vadd.f32 0.0, %v7658
        %7660 = vmatmul.bf16.gmra.mxu0 %v7265
        %v7661 = vpop.f32.mrf.mxu0
        %v7662 = vadd.f32 0.0, %v7661
        %v7663 = vpop.f32.mrf.mxu0
        %v7664 = vadd.f32 0.0, %v7663
        %7665 = vmatmul.bf16.gmra.mxu0 %v7283
        %v7666 = vpop.f32.mrf.mxu0
        %v7667 = vadd.f32 0.0, %v7666
        %v7668 = vpop.f32.mrf.mxu0
        %v7669 = vadd.f32 0.0, %v7668
        %7670 = vmatmul.bf16.gmra.mxu0 %v7301
        %v7671 = vpop.f32.mrf.mxu0
        %v7672 = vadd.f32 0.0, %v7671
        %v7673 = vpop.f32.mrf.mxu0
        %v7674 = vadd.f32 0.0, %v7673
        %7675 = vmatmul.bf16.gmra.mxu0 %v7319
        %v7676 = vpop.f32.mrf.mxu0
        %v7677 = vadd.f32 0.0, %v7676
        %v7678 = vpop.f32.mrf.mxu0
        %v7679 = vadd.f32 0.0, %v7678
        %7680 = vmatmul.bf16.gmra.mxu0 %v7337
        %v7681 = vpop.f32.mrf.mxu0
        %v7682 = vadd.f32 0.0, %v7681
        %v7683 = vpop.f32.mrf.mxu0
        %v7684 = vadd.f32 0.0, %v7683
        %7685 = vmatmul.bf16.gmra.mxu0 %v7355
        %v7686 = vpop.f32.mrf.mxu0
        %v7687 = vadd.f32 0.0, %v7686
        %v7688 = vpop.f32.mrf.mxu0
        %v7689 = vadd.f32 0.0, %v7688
        %7690 = vmatmul.bf16.gmra.mxu0 %v7369
        %v7691 = vpop.f32.mrf.mxu0
        %v7692 = vpop.f32.mrf.mxu0
        %7693 = vdwg.mxu0
        %7694 = vmatpush.bf16.msra.mxu0 %v7596
        %7695 = vmatpush.bf16.msra.mxu0 %v7593
        %7696 = vmatpush.bf16.msra.mxu0 %v7590
        %7697 = vmatpush.bf16.msra.mxu0 %v7587
        %7698 = vmatpush.bf16.msra.mxu0 %v7584
        %7699 = vmatpush.bf16.msra.mxu0 %v7581
        %7700 = vmatpush.bf16.msra.mxu0 %v7578
        %7701 = vmatpush.bf16.msra.mxu0 %v7575
        %7702 = vmatmul.bf16.gmra.mxu0 %v7256
        %v7703 = vpop.f32.mrf.mxu0
        %v7704 = vadd.f32 %v7657, %v7703
        %v7705 = vpop.f32.mrf.mxu0
        %v7706 = vadd.f32 %v7659, %v7705
        %7707 = vmatmul.bf16.gmra.mxu0 %v7274
        %v7708 = vpop.f32.mrf.mxu0
        %v7709 = vadd.f32 %v7662, %v7708
        %v7710 = vpop.f32.mrf.mxu0
        %v7711 = vadd.f32 %v7664, %v7710
        %7712 = vmatmul.bf16.gmra.mxu0 %v7292
        %v7713 = vpop.f32.mrf.mxu0
        %v7714 = vadd.f32 %v7667, %v7713
        %v7715 = vpop.f32.mrf.mxu0
        %v7716 = vadd.f32 %v7669, %v7715
        %7717 = vmatmul.bf16.gmra.mxu0 %v7310
        %v7718 = vpop.f32.mrf.mxu0
        %v7719 = vadd.f32 %v7672, %v7718
        %v7720 = vpop.f32.mrf.mxu0
        %v7721 = vadd.f32 %v7674, %v7720
        %7722 = vmatmul.bf16.gmra.mxu0 %v7328
        %v7723 = vpop.f32.mrf.mxu0
        %v7724 = vadd.f32 %v7677, %v7723
        %v7725 = vpop.f32.mrf.mxu0
        %v7726 = vadd.f32 %v7679, %v7725
        %7727 = vmatmul.bf16.gmra.mxu0 %v7346
        %v7728 = vpop.f32.mrf.mxu0
        %v7729 = vadd.f32 %v7682, %v7728
        %v7730 = vpop.f32.mrf.mxu0
        %v7731 = vadd.f32 %v7684, %v7730
        %7732 = vmatmul.bf16.gmra.mxu0 %v7364
        %v7733 = vpop.f32.mrf.mxu0
        %v7734 = vadd.f32 %v7687, %v7733
        %v7735 = vpop.f32.mrf.mxu0
        %v7736 = vadd.f32 %v7689, %v7735
        %7737 = vmatmul.bf16.gmra.mxu0 %v7374
        %v7738 = vpop.f32.mrf.mxu0
        %v7739 = vpop.f32.mrf.mxu0
        %7740 = vdwg.mxu0
        %7741 = vmatpush.bf16.msra.mxu0 %v7573
        %7742 = vmatpush.bf16.msra.mxu0 %v7570
        %7743 = vmatpush.bf16.msra.mxu0 %v7567
        %7744 = vmatpush.bf16.msra.mxu0 %v7564
        %7745 = vmatpush.bf16.msra.mxu0 %v7561
        %7746 = vmatpush.bf16.msra.mxu0 %v7558
        %7747 = vmatpush.bf16.msra.mxu0 %v7555
        %7748 = vmatpush.bf16.msra.mxu0 %v7552
        %7749 = vmatmul.bf16.gmra.mxu0 %v7239
        %v7750 = vpop.f32.mrf.mxu0
        %v7751 = vadd.f32 0.0, %v7750
        %v7752 = vpop.f32.mrf.mxu0
        %v7753 = vadd.f32 0.0, %v7752
        %7754 = vmatmul.bf16.gmra.mxu0 %v7265
        %v7755 = vpop.f32.mrf.mxu0
        %v7756 = vadd.f32 0.0, %v7755
        %v7757 = vpop.f32.mrf.mxu0
        %v7758 = vadd.f32 0.0, %v7757
        %7759 = vmatmul.bf16.gmra.mxu0 %v7283
        %v7760 = vpop.f32.mrf.mxu0
        %v7761 = vadd.f32 0.0, %v7760
        %v7762 = vpop.f32.mrf.mxu0
        %v7763 = vadd.f32 0.0, %v7762
        %7764 = vmatmul.bf16.gmra.mxu0 %v7301
        %v7765 = vpop.f32.mrf.mxu0
        %v7766 = vadd.f32 0.0, %v7765
        %v7767 = vpop.f32.mrf.mxu0
        %v7768 = vadd.f32 0.0, %v7767
        %7769 = vmatmul.bf16.gmra.mxu0 %v7319
        %v7770 = vpop.f32.mrf.mxu0
        %v7771 = vadd.f32 0.0, %v7770
        %v7772 = vpop.f32.mrf.mxu0
        %v7773 = vadd.f32 0.0, %v7772
        %7774 = vmatmul.bf16.gmra.mxu0 %v7337
        %v7775 = vpop.f32.mrf.mxu0
        %v7776 = vadd.f32 0.0, %v7775
        %v7777 = vpop.f32.mrf.mxu0
        %v7778 = vadd.f32 0.0, %v7777
        %7779 = vmatmul.bf16.gmra.mxu0 %v7355
        %v7780 = vpop.f32.mrf.mxu0
        %v7781 = vadd.f32 0.0, %v7780
        %v7782 = vpop.f32.mrf.mxu0
        %v7783 = vadd.f32 0.0, %v7782
        %7784 = vmatmul.bf16.gmra.mxu0 %v7369
        %v7785 = vpop.f32.mrf.mxu0
        %v7786 = vpop.f32.mrf.mxu0
        %7787 = vdwg.mxu0
        %7788 = vmatpush.bf16.msra.mxu0 %v7597
        %7789 = vmatpush.bf16.msra.mxu0 %v7594
        %7790 = vmatpush.bf16.msra.mxu0 %v7591
        %7791 = vmatpush.bf16.msra.mxu0 %v7588
        %7792 = vmatpush.bf16.msra.mxu0 %v7585
        %7793 = vmatpush.bf16.msra.mxu0 %v7582
        %7794 = vmatpush.bf16.msra.mxu0 %v7579
        %7795 = vmatpush.bf16.msra.mxu0 %v7576
        %7796 = vmatmul.bf16.gmra.mxu0 %v7256
        %v7797 = vpop.f32.mrf.mxu0
        %v7798 = vadd.f32 %v7751, %v7797
        %v7799 = vpop.f32.mrf.mxu0
        %v7800 = vadd.f32 %v7753, %v7799
        %7801 = vmatmul.bf16.gmra.mxu0 %v7274
        %v7802 = vpop.f32.mrf.mxu0
        %v7803 = vadd.f32 %v7756, %v7802
        %v7804 = vpop.f32.mrf.mxu0
        %v7805 = vadd.f32 %v7758, %v7804
        %7806 = vmatmul.bf16.gmra.mxu0 %v7292
        %v7807 = vpop.f32.mrf.mxu0
        %v7808 = vadd.f32 %v7761, %v7807
        %v7809 = vpop.f32.mrf.mxu0
        %v7810 = vadd.f32 %v7763, %v7809
        %7811 = vmatmul.bf16.gmra.mxu0 %v7310
        %v7812 = vpop.f32.mrf.mxu0
        %v7813 = vadd.f32 %v7766, %v7812
        %v7814 = vpop.f32.mrf.mxu0
        %v7815 = vadd.f32 %v7768, %v7814
        %7816 = vmatmul.bf16.gmra.mxu0 %v7328
        %v7817 = vpop.f32.mrf.mxu0
        %v7818 = vadd.f32 %v7771, %v7817
        %v7819 = vpop.f32.mrf.mxu0
        %v7820 = vadd.f32 %v7773, %v7819
        %7821 = vmatmul.bf16.gmra.mxu0 %v7346
        %v7822 = vpop.f32.mrf.mxu0
        %v7823 = vadd.f32 %v7776, %v7822
        %v7824 = vpop.f32.mrf.mxu0
        %v7825 = vadd.f32 %v7778, %v7824
        %7826 = vmatmul.bf16.gmra.mxu0 %v7364
        %v7827 = vpop.f32.mrf.mxu0
        %v7828 = vadd.f32 %v7781, %v7827
        %v7829 = vpop.f32.mrf.mxu0
        %v7830 = vadd.f32 %v7783, %v7829
        %7831 = vmatmul.bf16.gmra.mxu0 %v7374
        %v7832 = vpop.f32.mrf.mxu0
        %v7833 = vpop.f32.mrf.mxu0
        %7834 = vdwg.mxu0
        %7835 = vmatpush.bf16.msra.mxu0 %v7574
        %7836 = vmatpush.bf16.msra.mxu0 %v7571
        %7837 = vmatpush.bf16.msra.mxu0 %v7568
        %7838 = vmatpush.bf16.msra.mxu0 %v7565
        %7839 = vmatpush.bf16.msra.mxu0 %v7562
        %7840 = vmatpush.bf16.msra.mxu0 %v7559
        %7841 = vmatpush.bf16.msra.mxu0 %v7556
        %7842 = vmatpush.bf16.msra.mxu0 %v7553
        %7843 = vmatmul.bf16.gmra.mxu0 %v7239
        %v7844 = vpop.f32.mrf.mxu0
        %v7845 = vadd.f32 0.0, %v7844
        %v7846 = vpop.f32.mrf.mxu0
        %v7847 = vadd.f32 0.0, %v7846
        %7848 = vmatmul.bf16.gmra.mxu0 %v7265
        %v7849 = vpop.f32.mrf.mxu0
        %v7850 = vadd.f32 0.0, %v7849
        %v7851 = vpop.f32.mrf.mxu0
        %v7852 = vadd.f32 0.0, %v7851
        %7853 = vmatmul.bf16.gmra.mxu0 %v7283
        %v7854 = vpop.f32.mrf.mxu0
        %v7855 = vadd.f32 0.0, %v7854
        %v7856 = vpop.f32.mrf.mxu0
        %v7857 = vadd.f32 0.0, %v7856
        %7858 = vmatmul.bf16.gmra.mxu0 %v7301
        %v7859 = vpop.f32.mrf.mxu0
        %v7860 = vadd.f32 0.0, %v7859
        %v7861 = vpop.f32.mrf.mxu0
        %v7862 = vadd.f32 0.0, %v7861
        %7863 = vmatmul.bf16.gmra.mxu0 %v7319
        %v7864 = vpop.f32.mrf.mxu0
        %v7865 = vadd.f32 0.0, %v7864
        %v7866 = vpop.f32.mrf.mxu0
        %v7867 = vadd.f32 0.0, %v7866
        %7868 = vmatmul.bf16.gmra.mxu0 %v7337
        %v7869 = vpop.f32.mrf.mxu0
        %v7870 = vadd.f32 0.0, %v7869
        %v7871 = vpop.f32.mrf.mxu0
        %v7872 = vadd.f32 0.0, %v7871
        %7873 = vmatmul.bf16.gmra.mxu0 %v7355
        %v7874 = vpop.f32.mrf.mxu0
        %v7875 = vadd.f32 0.0, %v7874
        %v7876 = vpop.f32.mrf.mxu0
        %v7877 = vadd.f32 0.0, %v7876
        %7878 = vmatmul.bf16.gmra.mxu0 %v7369
        %v7879 = vpop.f32.mrf.mxu0
        %v7880 = vpop.f32.mrf.mxu0
        %7881 = vdwg.mxu0
        %7882 = vmatpush.bf16.msra.mxu0 %v7598
        %7883 = vmatpush.bf16.msra.mxu0 %v7595
        %7884 = vmatpush.bf16.msra.mxu0 %v7592
        %7885 = vmatpush.bf16.msra.mxu0 %v7589
        %7886 = vmatpush.bf16.msra.mxu0 %v7586
        %7887 = vmatpush.bf16.msra.mxu0 %v7583
        %7888 = vmatpush.bf16.msra.mxu0 %v7580
        %7889 = vmatpush.bf16.msra.mxu0 %v7577
        %7890 = vmatmul.bf16.gmra.mxu0 %v7256
        %v7891 = vpop.f32.mrf.mxu0
        %v7892 = vadd.f32 %v7845, %v7891
        %v7893 = vpop.f32.mrf.mxu0
        %v7894 = vadd.f32 %v7847, %v7893
        %7895 = vmatmul.bf16.gmra.mxu0 %v7274
        %v7896 = vpop.f32.mrf.mxu0
        %v7897 = vadd.f32 %v7850, %v7896
        %v7898 = vpop.f32.mrf.mxu0
        %v7899 = vadd.f32 %v7852, %v7898
        %7900 = vmatmul.bf16.gmra.mxu0 %v7292
        %v7901 = vpop.f32.mrf.mxu0
        %v7902 = vadd.f32 %v7855, %v7901
        %v7903 = vpop.f32.mrf.mxu0
        %v7904 = vadd.f32 %v7857, %v7903
        %7905 = vmatmul.bf16.gmra.mxu0 %v7310
        %v7906 = vpop.f32.mrf.mxu0
        %v7907 = vadd.f32 %v7860, %v7906
        %v7908 = vpop.f32.mrf.mxu0
        %v7909 = vadd.f32 %v7862, %v7908
        %7910 = vmatmul.bf16.gmra.mxu0 %v7328
        %v7911 = vpop.f32.mrf.mxu0
        %v7912 = vadd.f32 %v7865, %v7911
        %v7913 = vpop.f32.mrf.mxu0
        %v7914 = vadd.f32 %v7867, %v7913
        %7915 = vmatmul.bf16.gmra.mxu0 %v7346
        %v7916 = vpop.f32.mrf.mxu0
        %v7917 = vadd.f32 %v7870, %v7916
        %v7918 = vpop.f32.mrf.mxu0
        %v7919 = vadd.f32 %v7872, %v7918
        %7920 = vmatmul.bf16.gmra.mxu0 %v7364
        %v7921 = vpop.f32.mrf.mxu0
        %v7922 = vadd.f32 %v7875, %v7921
        %v7923 = vpop.f32.mrf.mxu0
        %v7924 = vadd.f32 %v7877, %v7923
        %7925 = vmatmul.bf16.gmra.mxu0 %v7374
        %v7926 = vpop.f32.mrf.mxu0
        %v7927 = vpop.f32.mrf.mxu0
        %7928 = vdwg.mxu0
        %v7929 = vadd.f32 %v7063, %v7704
        %v7930 = vadd.f32 %v7064, %v7798
        %v7931 = vadd.f32 %v7065, %v7892
        %v7932 = vadd.f32 %v7066, %v7706
        %v7933 = vadd.f32 %v7067, %v7800
        %v7934 = vadd.f32 %v7068, %v7894
        %v7935 = vadd.f32 %v7069, %v7709
        %v7936 = vadd.f32 %v7070, %v7803
        %v7937 = vadd.f32 %v7071, %v7897
        %v7938 = vadd.f32 %v7072, %v7711
        %v7939 = vadd.f32 %v7073, %v7805
        %v7940 = vadd.f32 %v7074, %v7899
        %v7941 = vadd.f32 %v7075, %v7714
        %v7942 = vadd.f32 %v7076, %v7808
        %v7943 = vadd.f32 %v7077, %v7902
        %v7944 = vadd.f32 %v7078, %v7716
        %v7945 = vadd.f32 %v7079, %v7810
        %v7946 = vadd.f32 %v7080, %v7904
        %v7947 = vadd.f32 %v7081, %v7719
        %v7948 = vadd.f32 %v7082, %v7813
        %v7949 = vadd.f32 %v7083, %v7907
        %v7950 = vadd.f32 %v7084, %v7721
        %v7951 = vadd.f32 %v7085, %v7815
        %v7952 = vadd.f32 %v7086, %v7909
        %v7953 = vadd.f32 %v7087, %v7724
        %v7954 = vadd.f32 %v7088, %v7818
        %v7955 = vadd.f32 %v7089, %v7912
        %v7956 = vadd.f32 %v7090, %v7726
        %v7957 = vadd.f32 %v7091, %v7820
        %v7958 = vadd.f32 %v7092, %v7914
        %v7959 = vadd.f32 %v7093, %v7729
        %v7960 = vadd.f32 %v7094, %v7823
        %v7961 = vadd.f32 %v7095, %v7917
        %v7962 = vadd.f32 %v7096, %v7731
        %v7963 = vadd.f32 %v7097, %v7825
        %v7964 = vadd.f32 %v7098, %v7919
        %v7965 = vadd.f32 %v7099, %v7734
        %v7966 = vadd.f32 %v7100, %v7828
        %v7967 = vadd.f32 %v7101, %v7922
        %v7968 = vadd.f32 %v7102, %v7736
        %v7969 = vadd.f32 %v7103, %v7830
        %v7970 = vadd.f32 %v7104, %v7924
        %v7971 = vld [vmem:[#allocation2 + $0x40] sm:$0xc0]
        %v7972 = vld [vmem:[#allocation2 + $0x48] sm:$0xc0]
        %v7973 = vld [vmem:[#allocation2 + $0x140] sm:$0x3]
        %v7974 = vld [vmem:[#allocation2 + $0x148] sm:$0x3]
        %v7975 = vpack.c.bf16 %v7107, %v7971
        %v7976 = vpack.c.bf16 %v7108, %v7972
        %v7977 = vpack.c.bf16 %v7973, %v7973
        %v7978 = vpack.c.bf16 %v7974, %v7974
        %s7979 = scalar_lea.vmem %s5, 3072
        %v7980 = vld [vmem:[%s7979] sm:$0xff]
        %v7981 = vld [vmem:[%s7979 + $0x8] sm:$0xf]
        %v7982 = vld [vmem:[%s7979 + $0xc] sm:$0xff]
        %v7983 = vld [vmem:[%s7979 + $0x14] sm:$0xf]
        %v7984 = vld [vmem:[%s7979 + $0x18] sm:$0xff]
        %v7985 = vld [vmem:[%s7979 + $0x20] sm:$0xf]
        %v7986 = vld [vmem:[%s7979 + $0x24] sm:$0xff]
        %v7987 = vld [vmem:[%s7979 + $0x2c] sm:$0xf]
        %v7988 = vld [vmem:[%s7979 + $0x30] sm:$0xff]
        %v7989 = vld [vmem:[%s7979 + $0x38] sm:$0xf]
        %v7990 = vld [vmem:[%s7979 + $0x3c] sm:$0xff]
        %v7991 = vld [vmem:[%s7979 + $0x44] sm:$0xf]
        %v7992 = vld [vmem:[%s7979 + $0x48] sm:$0xff]
        %v7993 = vld [vmem:[%s7979 + $0x50] sm:$0xf]
        %v7994 = vld [vmem:[%s7979 + $0x54] sm:$0xff]
        %v7995 = vld [vmem:[%s7979 + $0x5c] sm:$0xf]
        %v7996 = vld [vmem:[%s7979 + $0x60] sm:$0xff]
        %v7997 = vld [vmem:[%s7979 + $0x68] sm:$0xf]
        %v7998 = vld [vmem:[%s7979 + $0x6c] sm:$0xff]
        %v7999 = vld [vmem:[%s7979 + $0x74] sm:$0xf]
        %v8000 = vld [vmem:[%s7979 + $0x78] sm:$0xff]
        %v8001 = vld [vmem:[%s7979 + $0x80] sm:$0xf]
        %v8002 = vld [vmem:[%s7979 + $0x84] sm:$0xff]
        %v8003 = vld [vmem:[%s7979 + $0x8c] sm:$0xf]
        %v8004 = vld [vmem:[%s7979 + $0x90] sm:$0xff]
        %v8005 = vld [vmem:[%s7979 + $0x98] sm:$0xf]
        %v8006 = vld [vmem:[%s7979 + $0x9c] sm:$0xff]
        %v8007 = vld [vmem:[%s7979 + $0xa4] sm:$0xf]
        %v8008 = vld [vmem:[%s7979 + $0xa8] sm:$0xff]
        %v8009 = vld [vmem:[%s7979 + $0xb0] sm:$0xf]
        %v8010 = vld [vmem:[%s7979 + $0xb4] sm:$0xff]
        %v8011 = vld [vmem:[%s7979 + $0xbc] sm:$0xf]
        %v8012 = vld [vmem:[%s7979 + $0xc0] sm:$0xff]
        %v8013 = vld [vmem:[%s7979 + $0xc8] sm:$0xf]
        %v8014 = vld [vmem:[%s7979 + $0xcc] sm:$0xff]
        %v8015 = vld [vmem:[%s7979 + $0xd4] sm:$0xf]
        %v8016 = vld [vmem:[%s7979 + $0xd8] sm:$0xff]
        %v8017 = vld [vmem:[%s7979 + $0xe0] sm:$0xf]
        %v8018 = vld [vmem:[%s7979 + $0xe4] sm:$0xff]
        %v8019 = vld [vmem:[%s7979 + $0xec] sm:$0xf]
        %v8020 = vld [vmem:[%s7979 + $0xf0] sm:$0xff]
        %v8021 = vld [vmem:[%s7979 + $0xf8] sm:$0xf]
        %v8022 = vld [vmem:[%s7979 + $0xfc] sm:$0xff]
        %v8023 = vld [vmem:[%s7979 + $0x104] sm:$0xf]
        %v8024 = vld [vmem:[%s7979 + $0x108] sm:$0xff]
        %v8025 = vld [vmem:[%s7979 + $0x110] sm:$0xf]
        %v8026 = vld [vmem:[%s7979 + $0x114] sm:$0xff]
        %v8027 = vld [vmem:[%s7979 + $0x11c] sm:$0xf]
        %v8028 = vld [vmem:[%s7979 + $0x120] sm:$0xff]
        %v8029 = vld [vmem:[%s7979 + $0x128] sm:$0xf]
        %v8030 = vld [vmem:[%s7979 + $0x12c] sm:$0xff]
        %v8031 = vld [vmem:[%s7979 + $0x134] sm:$0xf]
        %v8032 = vld [vmem:[%s7979 + $0x138] sm:$0xff]
        %v8033 = vld [vmem:[%s7979 + $0x140] sm:$0xf]
        %v8034 = vld [vmem:[%s7979 + $0x144] sm:$0xff]
        %v8035 = vld [vmem:[%s7979 + $0x14c] sm:$0xf]
        %v8036 = vld [vmem:[%s7979 + $0x150] sm:$0xff]
        %v8037 = vld [vmem:[%s7979 + $0x158] sm:$0xf]
        %v8038 = vld [vmem:[%s7979 + $0x15c] sm:$0xff]
        %v8039 = vld [vmem:[%s7979 + $0x164] sm:$0xf]
        %v8040 = vld [vmem:[%s7979 + $0x168] sm:$0xff]
        %v8041 = vld [vmem:[%s7979 + $0x170] sm:$0xf]
        %v8042 = vld [vmem:[%s7979 + $0x174] sm:$0xff]
        %v8043 = vld [vmem:[%s7979 + $0x17c] sm:$0xf]
        %vm8062 = vcmask 1044480
        %v8063 = vrot.slane %v7975, 3
        %v8064 = vrot.slane %v7141, 3
        %v8065 = vsel %vm8062, %v8063, %v8064
        %v8066 = vrot.slane %v7976, 3
        %v8067 = vrot.slane %v7142, 3
        %v8068 = vsel %vm8062, %v8066, %v8067
        %v8069 = vrot.slane %v7143, 3
        %v8070 = vsel %vm8062, %v8064, %v8069
        %v8071 = vrot.slane %v7144, 3
        %v8072 = vsel %vm8062, %v8067, %v8071
        %v8073 = vrot.slane %v7145, 3
        %v8074 = vsel %vm8062, %v8069, %v8073
        %v8075 = vrot.slane %v7146, 3
        %v8076 = vsel %vm8062, %v8071, %v8075
        %v8077 = vrot.slane %v7147, 3
        %v8078 = vsel %vm8062, %v8073, %v8077
        %v8079 = vrot.slane %v7148, 3
        %v8080 = vsel %vm8062, %v8075, %v8079
        %v8081 = vrot.slane %v7149, 3
        %v8082 = vsel %vm8062, %v8077, %v8081
        %v8083 = vrot.slane %v7150, 3
        %v8084 = vsel %vm8062, %v8079, %v8083
        %v8085 = vrot.slane %v7151, 3
        %v8086 = vsel %vm8062, %v8081, %v8085
        %v8087 = vrot.slane %v7152, 3
        %v8088 = vsel %vm8062, %v8083, %v8087
        %v8089 = vrot.slane %v7153, 3
        %v8090 = vsel %vm8062, %v8085, %v8089
        %v8091 = vrot.slane %v7154, 3
        %v8092 = vsel %vm8062, %v8087, %v8091
        %v8093 = vrot.slane %v7977, 3
        %v8094 = vsel %vm8062, %v8089, %v8093
        %v8095 = vrot.slane %v7978, 3
        %v8096 = vsel %vm8062, %v8091, %v8095
        %v8177 = vunpack.c.l.b16 %v7980
        %v8178 = vunpack.c.h.b16 %v7980
        %v8179 = vunpack.c.l.b16 %v7981
        %v8180 = vunpack.c.l.b16 %v7982
        %v8181 = vunpack.c.h.b16 %v7982
        %v8182 = vunpack.c.l.b16 %v7983
        %v8183 = vunpack.c.l.b16 %v7984
        %v8184 = vunpack.c.h.b16 %v7984
        %v8185 = vunpack.c.l.b16 %v7985
        %v8186 = vunpack.c.l.b16 %v7986
        %v8187 = vunpack.c.h.b16 %v7986
        %v8188 = vunpack.c.l.b16 %v7987
        %v8189 = vunpack.c.l.b16 %v7988
        %v8190 = vunpack.c.h.b16 %v7988
        %v8191 = vunpack.c.l.b16 %v7989
        %v8192 = vunpack.c.l.b16 %v7990
        %v8193 = vunpack.c.h.b16 %v7990
        %v8194 = vunpack.c.l.b16 %v7991
        %v8195 = vunpack.c.l.b16 %v7992
        %v8196 = vunpack.c.h.b16 %v7992
        %v8197 = vunpack.c.l.b16 %v7993
        %v8198 = vunpack.c.l.b16 %v7994
        %v8199 = vunpack.c.h.b16 %v7994
        %v8200 = vunpack.c.l.b16 %v7995
        %v8201 = vunpack.c.l.b16 %v7996
        %v8202 = vunpack.c.h.b16 %v7996
        %v8203 = vunpack.c.l.b16 %v7997
        %v8204 = vunpack.c.l.b16 %v7998
        %v8205 = vunpack.c.h.b16 %v7998
        %v8206 = vunpack.c.l.b16 %v7999
        %v8207 = vunpack.c.l.b16 %v8000
        %v8208 = vunpack.c.h.b16 %v8000
        %v8209 = vunpack.c.l.b16 %v8001
        %v8210 = vunpack.c.l.b16 %v8002
        %v8211 = vunpack.c.h.b16 %v8002
        %v8212 = vunpack.c.l.b16 %v8003
        %v8213 = vunpack.c.l.b16 %v8004
        %v8214 = vunpack.c.h.b16 %v8004
        %v8215 = vunpack.c.l.b16 %v8005
        %v8216 = vunpack.c.l.b16 %v8006
        %v8217 = vunpack.c.h.b16 %v8006
        %v8218 = vunpack.c.l.b16 %v8007
        %v8219 = vunpack.c.l.b16 %v8008
        %v8220 = vunpack.c.h.b16 %v8008
        %v8221 = vunpack.c.l.b16 %v8009
        %v8222 = vunpack.c.l.b16 %v8010
        %v8223 = vunpack.c.h.b16 %v8010
        %v8224 = vunpack.c.l.b16 %v8011
        %v8225 = vunpack.c.l.b16 %v8012
        %v8226 = vunpack.c.h.b16 %v8012
        %v8227 = vunpack.c.l.b16 %v8013
        %v8228 = vunpack.c.l.b16 %v8014
        %v8229 = vunpack.c.h.b16 %v8014
        %v8230 = vunpack.c.l.b16 %v8015
        %v8231 = vunpack.c.l.b16 %v8016
        %v8232 = vunpack.c.h.b16 %v8016
        %v8233 = vunpack.c.l.b16 %v8017
        %v8234 = vunpack.c.l.b16 %v8018
        %v8235 = vunpack.c.h.b16 %v8018
        %v8236 = vunpack.c.l.b16 %v8019
        %v8237 = vunpack.c.l.b16 %v8020
        %v8238 = vunpack.c.h.b16 %v8020
        %v8239 = vunpack.c.l.b16 %v8021
        %v8240 = vunpack.c.l.b16 %v8022
        %v8241 = vunpack.c.h.b16 %v8022
        %v8242 = vunpack.c.l.b16 %v8023
        %v8243 = vunpack.c.l.b16 %v8024
        %v8244 = vunpack.c.h.b16 %v8024
        %v8245 = vunpack.c.l.b16 %v8025
        %v8246 = vunpack.c.l.b16 %v8026
        %v8247 = vunpack.c.h.b16 %v8026
        %v8248 = vunpack.c.l.b16 %v8027
        %v8249 = vunpack.c.l.b16 %v8028
        %v8250 = vunpack.c.h.b16 %v8028
        %v8251 = vunpack.c.l.b16 %v8029
        %v8252 = vunpack.c.l.b16 %v8030
        %v8253 = vunpack.c.h.b16 %v8030
        %v8254 = vunpack.c.l.b16 %v8031
        %v8255 = vunpack.c.l.b16 %v8032
        %v8256 = vunpack.c.h.b16 %v8032
        %v8257 = vunpack.c.l.b16 %v8033
        %v8258 = vunpack.c.l.b16 %v8034
        %v8259 = vunpack.c.h.b16 %v8034
        %v8260 = vunpack.c.l.b16 %v8035
        %v8261 = vunpack.c.l.b16 %v8036
        %v8262 = vunpack.c.h.b16 %v8036
        %v8263 = vunpack.c.l.b16 %v8037
        %v8264 = vunpack.c.l.b16 %v8038
        %v8265 = vunpack.c.h.b16 %v8038
        %v8266 = vunpack.c.l.b16 %v8039
        %v8267 = vunpack.c.l.b16 %v8040
        %v8268 = vunpack.c.h.b16 %v8040
        %v8269 = vunpack.c.l.b16 %v8041
        %v8270 = vunpack.c.l.b16 %v8042
        %v8271 = vunpack.c.h.b16 %v8042
        %v8272 = vunpack.c.l.b16 %v8043
        %v8273 = vpack.c.b16 %v8180, %v8177
        %v8274 = vpack.c.b16 %v8181, %v8178
        %v8275 = vpack.c.b16 %v8182, %v8179
        %v8276 = vpack.c.b16 %v8186, %v8183
        %v8277 = vpack.c.b16 %v8187, %v8184
        %v8278 = vpack.c.b16 %v8188, %v8185
        %v8279 = vpack.c.b16 %v8192, %v8189
        %v8280 = vpack.c.b16 %v8193, %v8190
        %v8281 = vpack.c.b16 %v8194, %v8191
        %v8282 = vpack.c.b16 %v8198, %v8195
        %v8283 = vpack.c.b16 %v8199, %v8196
        %v8284 = vpack.c.b16 %v8200, %v8197
        %v8285 = vpack.c.b16 %v8204, %v8201
        %v8286 = vpack.c.b16 %v8205, %v8202
        %v8287 = vpack.c.b16 %v8206, %v8203
        %v8288 = vpack.c.b16 %v8210, %v8207
        %v8289 = vpack.c.b16 %v8211, %v8208
        %v8290 = vpack.c.b16 %v8212, %v8209
        %v8291 = vpack.c.b16 %v8216, %v8213
        %v8292 = vpack.c.b16 %v8217, %v8214
        %v8293 = vpack.c.b16 %v8218, %v8215
        %v8294 = vpack.c.b16 %v8222, %v8219
        %v8295 = vpack.c.b16 %v8223, %v8220
        %v8296 = vpack.c.b16 %v8224, %v8221
        %v8297 = vpack.c.b16 %v8228, %v8225
        %v8298 = vpack.c.b16 %v8229, %v8226
        %v8299 = vpack.c.b16 %v8230, %v8227
        %v8300 = vpack.c.b16 %v8234, %v8231
        %v8301 = vpack.c.b16 %v8235, %v8232
        %v8302 = vpack.c.b16 %v8236, %v8233
        %v8303 = vpack.c.b16 %v8240, %v8237
        %v8304 = vpack.c.b16 %v8241, %v8238
        %v8305 = vpack.c.b16 %v8242, %v8239
        %v8306 = vpack.c.b16 %v8246, %v8243
        %v8307 = vpack.c.b16 %v8247, %v8244
        %v8308 = vpack.c.b16 %v8248, %v8245
        %v8309 = vpack.c.b16 %v8252, %v8249
        %v8310 = vpack.c.b16 %v8253, %v8250
        %v8311 = vpack.c.b16 %v8254, %v8251
        %v8312 = vpack.c.b16 %v8258, %v8255
        %v8313 = vpack.c.b16 %v8259, %v8256
        %v8314 = vpack.c.b16 %v8260, %v8257
        %v8315 = vpack.c.b16 %v8264, %v8261
        %v8316 = vpack.c.b16 %v8265, %v8262
        %v8317 = vpack.c.b16 %v8266, %v8263
        %v8318 = vpack.c.b16 %v8270, %v8267
        %v8319 = vpack.c.b16 %v8271, %v8268
        %v8320 = vpack.c.b16 %v8272, %v8269
        %8369 = vmatpush.bf16.msra.mxu0 %v8294
        %8370 = vmatpush.bf16.msra.mxu0 %v8291
        %8371 = vmatpush.bf16.msra.mxu0 %v8288
        %8372 = vmatpush.bf16.msra.mxu0 %v8285
        %8373 = vmatpush.bf16.msra.mxu0 %v8282
        %8374 = vmatpush.bf16.msra.mxu0 %v8279
        %8375 = vmatpush.bf16.msra.mxu0 %v8276
        %8376 = vmatpush.bf16.msra.mxu0 %v8273
        %8377 = vmatmul.bf16.gmra.mxu0 %v8065
        %v8378 = vpop.f32.mrf.mxu0
        %v8379 = vadd.f32 0.0, %v8378
        %v8380 = vpop.f32.mrf.mxu0
        %v8381 = vadd.f32 0.0, %v8380
        %8382 = vmatmul.bf16.gmra.mxu0 %v8070
        %v8383 = vpop.f32.mrf.mxu0
        %v8384 = vadd.f32 0.0, %v8383
        %v8385 = vpop.f32.mrf.mxu0
        %v8386 = vadd.f32 0.0, %v8385
        %8387 = vmatmul.bf16.gmra.mxu0 %v8074
        %v8388 = vpop.f32.mrf.mxu0
        %v8389 = vadd.f32 0.0, %v8388
        %v8390 = vpop.f32.mrf.mxu0
        %v8391 = vadd.f32 0.0, %v8390
        %8392 = vmatmul.bf16.gmra.mxu0 %v8078
        %v8393 = vpop.f32.mrf.mxu0
        %v8394 = vadd.f32 0.0, %v8393
        %v8395 = vpop.f32.mrf.mxu0
        %v8396 = vadd.f32 0.0, %v8395
        %8397 = vmatmul.bf16.gmra.mxu0 %v8082
        %v8398 = vpop.f32.mrf.mxu0
        %v8399 = vadd.f32 0.0, %v8398
        %v8400 = vpop.f32.mrf.mxu0
        %v8401 = vadd.f32 0.0, %v8400
        %8402 = vmatmul.bf16.gmra.mxu0 %v8086
        %v8403 = vpop.f32.mrf.mxu0
        %v8404 = vadd.f32 0.0, %v8403
        %v8405 = vpop.f32.mrf.mxu0
        %v8406 = vadd.f32 0.0, %v8405
        %8407 = vmatmul.bf16.gmra.mxu0 %v8090
        %v8408 = vpop.f32.mrf.mxu0
        %v8409 = vadd.f32 0.0, %v8408
        %v8410 = vpop.f32.mrf.mxu0
        %v8411 = vadd.f32 0.0, %v8410
        %8412 = vmatmul.bf16.gmra.mxu0 %v8094
        %v8413 = vpop.f32.mrf.mxu0
        %v8414 = vpop.f32.mrf.mxu0
        %8415 = vdwg.mxu0
        %8416 = vmatpush.bf16.msra.mxu0 %v8318
        %8417 = vmatpush.bf16.msra.mxu0 %v8315
        %8418 = vmatpush.bf16.msra.mxu0 %v8312
        %8419 = vmatpush.bf16.msra.mxu0 %v8309
        %8420 = vmatpush.bf16.msra.mxu0 %v8306
        %8421 = vmatpush.bf16.msra.mxu0 %v8303
        %8422 = vmatpush.bf16.msra.mxu0 %v8300
        %8423 = vmatpush.bf16.msra.mxu0 %v8297
        %8424 = vmatmul.bf16.gmra.mxu0 %v8068
        %v8425 = vpop.f32.mrf.mxu0
        %v8426 = vadd.f32 %v8379, %v8425
        %v8427 = vpop.f32.mrf.mxu0
        %v8428 = vadd.f32 %v8381, %v8427
        %8429 = vmatmul.bf16.gmra.mxu0 %v8072
        %v8430 = vpop.f32.mrf.mxu0
        %v8431 = vadd.f32 %v8384, %v8430
        %v8432 = vpop.f32.mrf.mxu0
        %v8433 = vadd.f32 %v8386, %v8432
        %8434 = vmatmul.bf16.gmra.mxu0 %v8076
        %v8435 = vpop.f32.mrf.mxu0
        %v8436 = vadd.f32 %v8389, %v8435
        %v8437 = vpop.f32.mrf.mxu0
        %v8438 = vadd.f32 %v8391, %v8437
        %8439 = vmatmul.bf16.gmra.mxu0 %v8080
        %v8440 = vpop.f32.mrf.mxu0
        %v8441 = vadd.f32 %v8394, %v8440
        %v8442 = vpop.f32.mrf.mxu0
        %v8443 = vadd.f32 %v8396, %v8442
        %8444 = vmatmul.bf16.gmra.mxu0 %v8084
        %v8445 = vpop.f32.mrf.mxu0
        %v8446 = vadd.f32 %v8399, %v8445
        %v8447 = vpop.f32.mrf.mxu0
        %v8448 = vadd.f32 %v8401, %v8447
        %8449 = vmatmul.bf16.gmra.mxu0 %v8088
        %v8450 = vpop.f32.mrf.mxu0
        %v8451 = vadd.f32 %v8404, %v8450
        %v8452 = vpop.f32.mrf.mxu0
        %v8453 = vadd.f32 %v8406, %v8452
        %8454 = vmatmul.bf16.gmra.mxu0 %v8092
        %v8455 = vpop.f32.mrf.mxu0
        %v8456 = vadd.f32 %v8409, %v8455
        %v8457 = vpop.f32.mrf.mxu0
        %v8458 = vadd.f32 %v8411, %v8457
        %8459 = vmatmul.bf16.gmra.mxu0 %v8096
        %v8460 = vpop.f32.mrf.mxu0
        %v8461 = vpop.f32.mrf.mxu0
        %8462 = vdwg.mxu0
        %8463 = vmatpush.bf16.msra.mxu0 %v8295
        %8464 = vmatpush.bf16.msra.mxu0 %v8292
        %8465 = vmatpush.bf16.msra.mxu0 %v8289
        %8466 = vmatpush.bf16.msra.mxu0 %v8286
        %8467 = vmatpush.bf16.msra.mxu0 %v8283
        %8468 = vmatpush.bf16.msra.mxu0 %v8280
        %8469 = vmatpush.bf16.msra.mxu0 %v8277
        %8470 = vmatpush.bf16.msra.mxu0 %v8274
        %8471 = vmatmul.bf16.gmra.mxu0 %v8065
        %v8472 = vpop.f32.mrf.mxu0
        %v8473 = vadd.f32 0.0, %v8472
        %v8474 = vpop.f32.mrf.mxu0
        %v8475 = vadd.f32 0.0, %v8474
        %8476 = vmatmul.bf16.gmra.mxu0 %v8070
        %v8477 = vpop.f32.mrf.mxu0
        %v8478 = vadd.f32 0.0, %v8477
        %v8479 = vpop.f32.mrf.mxu0
        %v8480 = vadd.f32 0.0, %v8479
        %8481 = vmatmul.bf16.gmra.mxu0 %v8074
        %v8482 = vpop.f32.mrf.mxu0
        %v8483 = vadd.f32 0.0, %v8482
        %v8484 = vpop.f32.mrf.mxu0
        %v8485 = vadd.f32 0.0, %v8484
        %8486 = vmatmul.bf16.gmra.mxu0 %v8078
        %v8487 = vpop.f32.mrf.mxu0
        %v8488 = vadd.f32 0.0, %v8487
        %v8489 = vpop.f32.mrf.mxu0
        %v8490 = vadd.f32 0.0, %v8489
        %8491 = vmatmul.bf16.gmra.mxu0 %v8082
        %v8492 = vpop.f32.mrf.mxu0
        %v8493 = vadd.f32 0.0, %v8492
        %v8494 = vpop.f32.mrf.mxu0
        %v8495 = vadd.f32 0.0, %v8494
        %8496 = vmatmul.bf16.gmra.mxu0 %v8086
        %v8497 = vpop.f32.mrf.mxu0
        %v8498 = vadd.f32 0.0, %v8497
        %v8499 = vpop.f32.mrf.mxu0
        %v8500 = vadd.f32 0.0, %v8499
        %8501 = vmatmul.bf16.gmra.mxu0 %v8090
        %v8502 = vpop.f32.mrf.mxu0
        %v8503 = vadd.f32 0.0, %v8502
        %v8504 = vpop.f32.mrf.mxu0
        %v8505 = vadd.f32 0.0, %v8504
        %8506 = vmatmul.bf16.gmra.mxu0 %v8094
        %v8507 = vpop.f32.mrf.mxu0
        %v8508 = vpop.f32.mrf.mxu0
        %8509 = vdwg.mxu0
        %8510 = vmatpush.bf16.msra.mxu0 %v8319
        %8511 = vmatpush.bf16.msra.mxu0 %v8316
        %8512 = vmatpush.bf16.msra.mxu0 %v8313
        %8513 = vmatpush.bf16.msra.mxu0 %v8310
        %8514 = vmatpush.bf16.msra.mxu0 %v8307
        %8515 = vmatpush.bf16.msra.mxu0 %v8304
        %8516 = vmatpush.bf16.msra.mxu0 %v8301
        %8517 = vmatpush.bf16.msra.mxu0 %v8298
        %8518 = vmatmul.bf16.gmra.mxu0 %v8068
        %v8519 = vpop.f32.mrf.mxu0
        %v8520 = vadd.f32 %v8473, %v8519
        %v8521 = vpop.f32.mrf.mxu0
        %v8522 = vadd.f32 %v8475, %v8521
        %8523 = vmatmul.bf16.gmra.mxu0 %v8072
        %v8524 = vpop.f32.mrf.mxu0
        %v8525 = vadd.f32 %v8478, %v8524
        %v8526 = vpop.f32.mrf.mxu0
        %v8527 = vadd.f32 %v8480, %v8526
        %8528 = vmatmul.bf16.gmra.mxu0 %v8076
        %v8529 = vpop.f32.mrf.mxu0
        %v8530 = vadd.f32 %v8483, %v8529
        %v8531 = vpop.f32.mrf.mxu0
        %v8532 = vadd.f32 %v8485, %v8531
        %8533 = vmatmul.bf16.gmra.mxu0 %v8080
        %v8534 = vpop.f32.mrf.mxu0
        %v8535 = vadd.f32 %v8488, %v8534
        %v8536 = vpop.f32.mrf.mxu0
        %v8537 = vadd.f32 %v8490, %v8536
        %8538 = vmatmul.bf16.gmra.mxu0 %v8084
        %v8539 = vpop.f32.mrf.mxu0
        %v8540 = vadd.f32 %v8493, %v8539
        %v8541 = vpop.f32.mrf.mxu0
        %v8542 = vadd.f32 %v8495, %v8541
        %8543 = vmatmul.bf16.gmra.mxu0 %v8088
        %v8544 = vpop.f32.mrf.mxu0
        %v8545 = vadd.f32 %v8498, %v8544
        %v8546 = vpop.f32.mrf.mxu0
        %v8547 = vadd.f32 %v8500, %v8546
        %8548 = vmatmul.bf16.gmra.mxu0 %v8092
        %v8549 = vpop.f32.mrf.mxu0
        %v8550 = vadd.f32 %v8503, %v8549
        %v8551 = vpop.f32.mrf.mxu0
        %v8552 = vadd.f32 %v8505, %v8551
        %8553 = vmatmul.bf16.gmra.mxu0 %v8096
        %v8554 = vpop.f32.mrf.mxu0
        %v8555 = vpop.f32.mrf.mxu0
        %8556 = vdwg.mxu0
        %8557 = vmatpush.bf16.msra.mxu0 %v8296
        %8558 = vmatpush.bf16.msra.mxu0 %v8293
        %8559 = vmatpush.bf16.msra.mxu0 %v8290
        %8560 = vmatpush.bf16.msra.mxu0 %v8287
        %8561 = vmatpush.bf16.msra.mxu0 %v8284
        %8562 = vmatpush.bf16.msra.mxu0 %v8281
        %8563 = vmatpush.bf16.msra.mxu0 %v8278
        %8564 = vmatpush.bf16.msra.mxu0 %v8275
        %8565 = vmatmul.bf16.gmra.mxu0 %v8065
        %v8566 = vpop.f32.mrf.mxu0
        %v8567 = vadd.f32 0.0, %v8566
        %v8568 = vpop.f32.mrf.mxu0
        %v8569 = vadd.f32 0.0, %v8568
        %8570 = vmatmul.bf16.gmra.mxu0 %v8070
        %v8571 = vpop.f32.mrf.mxu0
        %v8572 = vadd.f32 0.0, %v8571
        %v8573 = vpop.f32.mrf.mxu0
        %v8574 = vadd.f32 0.0, %v8573
        %8575 = vmatmul.bf16.gmra.mxu0 %v8074
        %v8576 = vpop.f32.mrf.mxu0
        %v8577 = vadd.f32 0.0, %v8576
        %v8578 = vpop.f32.mrf.mxu0
        %v8579 = vadd.f32 0.0, %v8578
        %8580 = vmatmul.bf16.gmra.mxu0 %v8078
        %v8581 = vpop.f32.mrf.mxu0
        %v8582 = vadd.f32 0.0, %v8581
        %v8583 = vpop.f32.mrf.mxu0
        %v8584 = vadd.f32 0.0, %v8583
        %8585 = vmatmul.bf16.gmra.mxu0 %v8082
        %v8586 = vpop.f32.mrf.mxu0
        %v8587 = vadd.f32 0.0, %v8586
        %v8588 = vpop.f32.mrf.mxu0
        %v8589 = vadd.f32 0.0, %v8588
        %8590 = vmatmul.bf16.gmra.mxu0 %v8086
        %v8591 = vpop.f32.mrf.mxu0
        %v8592 = vadd.f32 0.0, %v8591
        %v8593 = vpop.f32.mrf.mxu0
        %v8594 = vadd.f32 0.0, %v8593
        %8595 = vmatmul.bf16.gmra.mxu0 %v8090
        %v8596 = vpop.f32.mrf.mxu0
        %v8597 = vadd.f32 0.0, %v8596
        %v8598 = vpop.f32.mrf.mxu0
        %v8599 = vadd.f32 0.0, %v8598
        %8600 = vmatmul.bf16.gmra.mxu0 %v8094
        %v8601 = vpop.f32.mrf.mxu0
        %v8602 = vpop.f32.mrf.mxu0
        %8603 = vdwg.mxu0
        %8604 = vmatpush.bf16.msra.mxu0 %v8320
        %8605 = vmatpush.bf16.msra.mxu0 %v8317
        %8606 = vmatpush.bf16.msra.mxu0 %v8314
        %8607 = vmatpush.bf16.msra.mxu0 %v8311
        %8608 = vmatpush.bf16.msra.mxu0 %v8308
        %8609 = vmatpush.bf16.msra.mxu0 %v8305
        %8610 = vmatpush.bf16.msra.mxu0 %v8302
        %8611 = vmatpush.bf16.msra.mxu0 %v8299
        %8612 = vmatmul.bf16.gmra.mxu0 %v8068
        %v8613 = vpop.f32.mrf.mxu0
        %v8614 = vadd.f32 %v8567, %v8613
        %v8615 = vpop.f32.mrf.mxu0
        %v8616 = vadd.f32 %v8569, %v8615
        %8617 = vmatmul.bf16.gmra.mxu0 %v8072
        %v8618 = vpop.f32.mrf.mxu0
        %v8619 = vadd.f32 %v8572, %v8618
        %v8620 = vpop.f32.mrf.mxu0
        %v8621 = vadd.f32 %v8574, %v8620
        %8622 = vmatmul.bf16.gmra.mxu0 %v8076
        %v8623 = vpop.f32.mrf.mxu0
        %v8624 = vadd.f32 %v8577, %v8623
        %v8625 = vpop.f32.mrf.mxu0
        %v8626 = vadd.f32 %v8579, %v8625
        %8627 = vmatmul.bf16.gmra.mxu0 %v8080
        %v8628 = vpop.f32.mrf.mxu0
        %v8629 = vadd.f32 %v8582, %v8628
        %v8630 = vpop.f32.mrf.mxu0
        %v8631 = vadd.f32 %v8584, %v8630
        %8632 = vmatmul.bf16.gmra.mxu0 %v8084
        %v8633 = vpop.f32.mrf.mxu0
        %v8634 = vadd.f32 %v8587, %v8633
        %v8635 = vpop.f32.mrf.mxu0
        %v8636 = vadd.f32 %v8589, %v8635
        %8637 = vmatmul.bf16.gmra.mxu0 %v8088
        %v8638 = vpop.f32.mrf.mxu0
        %v8639 = vadd.f32 %v8592, %v8638
        %v8640 = vpop.f32.mrf.mxu0
        %v8641 = vadd.f32 %v8594, %v8640
        %8642 = vmatmul.bf16.gmra.mxu0 %v8092
        %v8643 = vpop.f32.mrf.mxu0
        %v8644 = vadd.f32 %v8597, %v8643
        %v8645 = vpop.f32.mrf.mxu0
        %v8646 = vadd.f32 %v8599, %v8645
        %8647 = vmatmul.bf16.gmra.mxu0 %v8096
        %v8648 = vpop.f32.mrf.mxu0
        %v8649 = vpop.f32.mrf.mxu0
        %8650 = vdwg.mxu0
        %v8651 = vadd.f32 %v7929, %v8426
        %v8652 = vadd.f32 %v7930, %v8520
        %v8653 = vadd.f32 %v7931, %v8614
        %v8654 = vadd.f32 %v7932, %v8428
        %v8655 = vadd.f32 %v7933, %v8522
        %v8656 = vadd.f32 %v7934, %v8616
        %v8657 = vadd.f32 %v7935, %v8431
        %v8658 = vadd.f32 %v7936, %v8525
        %v8659 = vadd.f32 %v7937, %v8619
        %v8660 = vadd.f32 %v7938, %v8433
        %v8661 = vadd.f32 %v7939, %v8527
        %v8662 = vadd.f32 %v7940, %v8621
        %v8663 = vadd.f32 %v7941, %v8436
        %v8664 = vadd.f32 %v7942, %v8530
        %v8665 = vadd.f32 %v7943, %v8624
        %v8666 = vadd.f32 %v7944, %v8438
        %v8667 = vadd.f32 %v7945, %v8532
        %v8668 = vadd.f32 %v7946, %v8626
        %v8669 = vadd.f32 %v7947, %v8441
        %v8670 = vadd.f32 %v7948, %v8535
        %v8671 = vadd.f32 %v7949, %v8629
        %v8672 = vadd.f32 %v7950, %v8443
        %v8673 = vadd.f32 %v7951, %v8537
        %v8674 = vadd.f32 %v7952, %v8631
        %v8675 = vadd.f32 %v7953, %v8446
        %v8676 = vadd.f32 %v7954, %v8540
        %v8677 = vadd.f32 %v7955, %v8634
        %v8678 = vadd.f32 %v7956, %v8448
        %v8679 = vadd.f32 %v7957, %v8542
        %v8680 = vadd.f32 %v7958, %v8636
        %v8681 = vadd.f32 %v7959, %v8451
        %v8682 = vadd.f32 %v7960, %v8545
        %v8683 = vadd.f32 %v7961, %v8639
        %v8684 = vadd.f32 %v7962, %v8453
        %v8685 = vadd.f32 %v7963, %v8547
        %v8686 = vadd.f32 %v7964, %v8641
        %v8687 = vadd.f32 %v7965, %v8456
        %v8688 = vadd.f32 %v7966, %v8550
        %v8689 = vadd.f32 %v7967, %v8644
        %v8690 = vadd.f32 %v7968, %v8458
        %v8691 = vadd.f32 %v7969, %v8552
        %v8692 = vadd.f32 %v7970, %v8646
        %v8693 = vld [vmem:[%s6] sm:$0x7]
        %v8695 = vperm.slane %v8693, 0
        %v8696 = vperm.slane %v8693, 1
        %v8697 = vperm.slane %v8693, 2
        %v8701 = vadd.f32 %v8651, %v8695
        %v8702 = vadd.f32 %v8652, %v8696
        %v8703 = vadd.f32 %v8653, %v8697
        %v8704 = vadd.f32 %v8654, %v8695
        %v8705 = vadd.f32 %v8655, %v8696
        %v8706 = vadd.f32 %v8656, %v8697
        %v8707 = vadd.f32 %v8657, %v8695
        %v8708 = vadd.f32 %v8658, %v8696
        %v8709 = vadd.f32 %v8659, %v8697
        %v8710 = vadd.f32 %v8660, %v8695
        %v8711 = vadd.f32 %v8661, %v8696
        %v8712 = vadd.f32 %v8662, %v8697
        %v8713 = vadd.f32 %v8663, %v8695
        %v8714 = vadd.f32 %v8664, %v8696
        %v8715 = vadd.f32 %v8665, %v8697
        %v8716 = vadd.f32 %v8666, %v8695
        %v8717 = vadd.f32 %v8667, %v8696
        %v8718 = vadd.f32 %v8668, %v8697
        %v8719 = vadd.f32 %v8669, %v8695
        %v8720 = vadd.f32 %v8670, %v8696
        %v8721 = vadd.f32 %v8671, %v8697
        %v8722 = vadd.f32 %v8672, %v8695
        %v8723 = vadd.f32 %v8673, %v8696
        %v8724 = vadd.f32 %v8674, %v8697
        %v8725 = vadd.f32 %v8675, %v8695
        %v8726 = vadd.f32 %v8676, %v8696
        %v8727 = vadd.f32 %v8677, %v8697
        %v8728 = vadd.f32 %v8678, %v8695
        %v8729 = vadd.f32 %v8679, %v8696
        %v8730 = vadd.f32 %v8680, %v8697
        %v8731 = vadd.f32 %v8681, %v8695
        %v8732 = vadd.f32 %v8682, %v8696
        %v8733 = vadd.f32 %v8683, %v8697
        %v8734 = vadd.f32 %v8684, %v8695
        %v8735 = vadd.f32 %v8685, %v8696
        %v8736 = vadd.f32 %v8686, %v8697
        %v8737 = vadd.f32 %v8687, %v8695
        %v8738 = vadd.f32 %v8688, %v8696
        %v8739 = vadd.f32 %v8689, %v8697
        %v8740 = vadd.f32 %v8690, %v8695
        %v8741 = vadd.f32 %v8691, %v8696
        %v8742 = vadd.f32 %v8692, %v8697
        %v8743 = vmax.f32 %v8701, 0.0
        %v8744 = vmax.f32 %v8702, 0.0
        %v8745 = vmax.f32 %v8703, 0.0
        %v8746 = vmax.f32 %v8704, 0.0
        %v8747 = vmax.f32 %v8705, 0.0
        %v8748 = vmax.f32 %v8706, 0.0
        %v8749 = vmax.f32 %v8707, 0.0
        %v8750 = vmax.f32 %v8708, 0.0
        %v8751 = vmax.f32 %v8709, 0.0
        %v8752 = vmax.f32 %v8710, 0.0
        %v8753 = vmax.f32 %v8711, 0.0
        %v8754 = vmax.f32 %v8712, 0.0
        %v8755 = vmax.f32 %v8713, 0.0
        %v8756 = vmax.f32 %v8714, 0.0
        %v8757 = vmax.f32 %v8715, 0.0
        %v8758 = vmax.f32 %v8716, 0.0
        %v8759 = vmax.f32 %v8717, 0.0
        %v8760 = vmax.f32 %v8718, 0.0
        %v8761 = vmax.f32 %v8719, 0.0
        %v8762 = vmax.f32 %v8720, 0.0
        %v8763 = vmax.f32 %v8721, 0.0
        %v8764 = vmax.f32 %v8722, 0.0
        %v8765 = vmax.f32 %v8723, 0.0
        %v8766 = vmax.f32 %v8724, 0.0
        %v8767 = vmax.f32 %v8725, 0.0
        %v8768 = vmax.f32 %v8726, 0.0
        %v8769 = vmax.f32 %v8727, 0.0
        %v8770 = vmax.f32 %v8728, 0.0
        %v8771 = vmax.f32 %v8729, 0.0
        %v8772 = vmax.f32 %v8730, 0.0
        %v8773 = vmax.f32 %v8731, 0.0
        %v8774 = vmax.f32 %v8732, 0.0
        %v8775 = vmax.f32 %v8733, 0.0
        %v8776 = vmax.f32 %v8734, 0.0
        %v8777 = vmax.f32 %v8735, 0.0
        %v8778 = vmax.f32 %v8736, 0.0
        %v8779 = vmax.f32 %v8737, 0.0
        %v8780 = vmax.f32 %v8738, 0.0
        %v8781 = vmax.f32 %v8739, 0.0
        %v8782 = vmax.f32 %v8740, 0.0
        %v8783 = vmax.f32 %v8741, 0.0
        %v8784 = vmax.f32 %v8742, 0.0
        %vm8794 = vcmask 1045504
        %v8795 = vrot.slane %v8749, 2
        %v8796 = vrot.slane %v8752, 2
        %v8797 = vsel %vm8794, %v8795, %v8796
        %v8798 = vrot.slane %v8750, 2
        %v8799 = vrot.slane %v8753, 2
        %v8800 = vsel %vm8794, %v8798, %v8799
        %v8801 = vrot.slane %v8751, 2
        %v8802 = vrot.slane %v8754, 2
        %v8803 = vsel %vm8794, %v8801, %v8802
        %v8804 = vrot.slane %v8755, 2
        %v8805 = vsel %vm8794, %v8796, %v8804
        %v8806 = vrot.slane %v8756, 2
        %v8807 = vsel %vm8794, %v8799, %v8806
        %v8808 = vrot.slane %v8757, 2
        %v8809 = vsel %vm8794, %v8802, %v8808
        %v8816 = vmax.f32 %v8743, %v8797
        %v8817 = vmax.f32 %v8744, %v8800
        %v8818 = vmax.f32 %v8745, %v8803
        %v8819 = vmax.f32 %v8746, %v8805
        %v8820 = vmax.f32 %v8747, %v8807
        %v8821 = vmax.f32 %v8748, %v8809
        %v8825 = vrot.slane %v8817, 7
        %v8826 = vrot.slane %v8818, 6
        %v8827 = vsel %vm1391, %v8816, %v8825
        %v8828 = vsel %vm504, %v8827, %v8826
        %vm8830 = vcmp.lt.s32.totalorder %v1415, 384
        %vm8831 = vmand %vm1416, %vm8830
        %8832 = vst.msk [vmem:[#allocation3] ss:$8 sm:$0x7] %vm8831, %v8828
        %8833 = vst.msk [vmem:[#allocation3] ss:$8 sm:$0x0] %vm8831, %v8828
        %v8837 = vrot.slane %v8816, 1
        %v8838 = vrot.slane %v8819, 1
        %v8839 = vsel %vm1424, %v8837, %v8838
        %v8840 = vrot.slane %v8817, 1
        %v8841 = vrot.slane %v8820, 1
        %v8842 = vsel %vm1424, %v8840, %v8841
        %v8843 = vrot.slane %v8818, 1
        %v8844 = vrot.slane %v8821, 1
        %v8845 = vsel %vm1424, %v8843, %v8844
        %v8852 = vmax.f32 %v8816, %v8839
        %v8853 = vmax.f32 %v8817, %v8842
        %v8854 = vmax.f32 %v8818, %v8845
        %v8855 = vmax.f32 %v8819, %v8838
        %v8856 = vmax.f32 %v8820, %v8841
        %v8857 = vmax.f32 %v8821, %v8844
        %v8864 = vrot.slane %v8852, 7
        %v8865 = vrot.slane %v8853, 7
        %v8866 = vrot.slane %v8854, 7
        %v8867 = vrot.slane %v8855, 7
        %v8868 = vsel %vm1391, %v8864, %v8867
        %v8869 = vrot.slane %v8856, 7
        %v8870 = vsel %vm1391, %v8865, %v8869
        %v8871 = vrot.slane %v8857, 7
        %v8872 = vsel %vm1391, %v8866, %v8871
        %8879 = vst [vmem:[#allocation3] sm:$0xfe] %v8864
        %8880 = vst [vmem:[#allocation3 + $0x8] sm:$0xfe] %v8865
        %8881 = vst [vmem:[#allocation3 + $0x10] sm:$0xfe] %v8866
        %8882 = vst [vmem:[#allocation3 + $0x18] sm:$0xff] %v8868
        %8883 = vst [vmem:[#allocation3 + $0x20] sm:$0xff] %v8870
        %8884 = vst [vmem:[#allocation3 + $0x28] sm:$0xff] %v8872
        %8885 = vst [vmem:[#allocation1] sm:$0xff] %v8819
        %8886 = vst [vmem:[#allocation1 + $0x9] sm:$0xff] %v8820
        %8887 = vst [vmem:[#allocation1 + $0x12] sm:$0xff] %v8821
        %s8888 = scalar_lea.vmem [#allocation1], 7
        %v8889 = vld [vmem:[%s8888] ss:$9 sm:$0xff]
        %s8891 = scalar_lea.vmem [#allocation3], 48
        %8892 = vst.msk [vmem:[%s8891] ss:$8 sm:$0x7] %vm8831, %v8889
        %8893 = vst.msk [vmem:[%s8891] ss:$8 sm:$0x0] %vm8831, %v8889
        %v8903 = vrot.slane %v8761, 2
        %v8904 = vrot.slane %v8764, 2
        %v8905 = vsel %vm8794, %v8903, %v8904
        %v8906 = vrot.slane %v8762, 2
        %v8907 = vrot.slane %v8765, 2
        %v8908 = vsel %vm8794, %v8906, %v8907
        %v8909 = vrot.slane %v8763, 2
        %v8910 = vrot.slane %v8766, 2
        %v8911 = vsel %vm8794, %v8909, %v8910
        %v8912 = vrot.slane %v8767, 2
        %v8913 = vsel %vm8794, %v8904, %v8912
        %v8914 = vrot.slane %v8768, 2
        %v8915 = vsel %vm8794, %v8907, %v8914
        %v8916 = vrot.slane %v8769, 2
        %v8917 = vsel %vm8794, %v8910, %v8916
        %v8927 = vmax.f32 %v8755, %v8905
        %v8928 = vmax.f32 %v8756, %v8908
        %v8929 = vmax.f32 %v8757, %v8911
        %v8930 = vmax.f32 %v8758, %v8913
        %v8931 = vmax.f32 %v8759, %v8915
        %v8932 = vmax.f32 %v8760, %v8917
        %v8933 = vmax.f32 %v8761, %v8912
        %v8934 = vmax.f32 %v8762, %v8914
        %v8935 = vmax.f32 %v8763, %v8916
        %8939 = vst [vmem:[#allocation1] sm:$0xff] %v8927
        %8940 = vst [vmem:[#allocation1 + $0x9] sm:$0xff] %v8928
        %8941 = vst [vmem:[#allocation1 + $0x12] sm:$0xff] %v8929
        %s8942 = scalar_lea.vmem [#allocation1], 4
        %v8943 = vld [vmem:[%s8942] ss:$9 sm:$0xff]
        %s8945 = scalar_lea.vmem [#allocation3], 49
        %8946 = vst.msk [vmem:[%s8945] ss:$8 sm:$0x7] %vm8831, %v8943
        %8947 = vst.msk [vmem:[%s8945] ss:$8 sm:$0x0] %vm8831, %v8943
        %v8954 = vrot.slane %v8927, 1
        %v8955 = vrot.slane %v8930, 1
        %v8956 = vsel %vm1424, %v8954, %v8955
        %v8957 = vrot.slane %v8928, 1
        %v8958 = vrot.slane %v8931, 1
        %v8959 = vsel %vm1424, %v8957, %v8958
        %v8960 = vrot.slane %v8929, 1
        %v8961 = vrot.slane %v8932, 1
        %v8962 = vsel %vm1424, %v8960, %v8961
        %v8963 = vrot.slane %v8933, 1
        %v8964 = vsel %vm1424, %v8955, %v8963
        %v8965 = vrot.slane %v8934, 1
        %v8966 = vsel %vm1424, %v8958, %v8965
        %v8967 = vrot.slane %v8935, 1
        %v8968 = vsel %vm1424, %v8961, %v8967
        %v8978 = vmax.f32 %v8927, %v8956
        %v8979 = vmax.f32 %v8928, %v8959
        %v8980 = vmax.f32 %v8929, %v8962
        %v8981 = vmax.f32 %v8930, %v8964
        %v8982 = vmax.f32 %v8931, %v8966
        %v8983 = vmax.f32 %v8932, %v8968
        %v8984 = vmax.f32 %v8933, %v8963
        %v8985 = vmax.f32 %v8934, %v8965
        %v8986 = vmax.f32 %v8935, %v8967
        %v8996 = vrot.slane %v8978, 2
        %v8997 = vrot.slane %v8981, 2
        %v8998 = vsel %vm8794, %v8996, %v8997
        %v8999 = vrot.slane %v8979, 2
        %v9000 = vrot.slane %v8982, 2
        %v9001 = vsel %vm8794, %v8999, %v9000
        %v9002 = vrot.slane %v8980, 2
        %v9003 = vrot.slane %v8983, 2
        %v9004 = vsel %vm8794, %v9002, %v9003
        %v9005 = vrot.slane %v8984, 2
        %v9006 = vsel %vm8794, %v8997, %v9005
        %v9007 = vrot.slane %v8985, 2
        %v9008 = vsel %vm8794, %v9000, %v9007
        %v9009 = vrot.slane %v8986, 2
        %v9010 = vsel %vm8794, %v9003, %v9009
        %9020 = vst [vmem:[#allocation3 + $0x30] sm:$0xfc] %v8998
        %9021 = vst [vmem:[#allocation3 + $0x38] sm:$0xfc] %v9001
        %9022 = vst [vmem:[#allocation3 + $0x40] sm:$0xfc] %v9004
        %9023 = vst [vmem:[#allocation3 + $0x48] sm:$0xff] %v9006
        %9024 = vst [vmem:[#allocation3 + $0x50] sm:$0xff] %v9008
        %9025 = vst [vmem:[#allocation3 + $0x58] sm:$0xff] %v9010
        %9026 = vst [vmem:[#allocation3 + $0x60] sm:$0x1] %v9005
        %9027 = vst [vmem:[#allocation3 + $0x68] sm:$0x1] %v9007
        %9028 = vst [vmem:[#allocation3 + $0x70] sm:$0x1] %v9009
        %9029 = vst [vmem:[#allocation1] sm:$0xff] %v8933
        %9030 = vst [vmem:[#allocation1 + $0x9] sm:$0xff] %v8934
        %9031 = vst [vmem:[#allocation1 + $0x12] sm:$0xff] %v8935
        %s9032 = scalar_lea.vmem [#allocation1], 3
        %v9033 = vld [vmem:[%s9032] ss:$9 sm:$0xff]
        %s9035 = scalar_lea.vmem [#allocation3], 97
        %9036 = vst.msk [vmem:[%s9035] ss:$8 sm:$0x7] %vm8831, %v9033
        %9037 = vst.msk [vmem:[%s9035] ss:$8 sm:$0x0] %vm8831, %v9033
        %v9047 = vrot.slane %v8776, 2
        %v9048 = vrot.slane %v8779, 2
        %v9049 = vsel %vm8794, %v9047, %v9048
        %v9050 = vrot.slane %v8777, 2
        %v9051 = vrot.slane %v8780, 2
        %v9052 = vsel %vm8794, %v9050, %v9051
        %v9053 = vrot.slane %v8778, 2
        %v9054 = vrot.slane %v8781, 2
        %v9055 = vsel %vm8794, %v9053, %v9054
        %v9056 = vrot.slane %v8782, 2
        %v9057 = vsel %vm8794, %v9048, %v9056
        %v9058 = vrot.slane %v8783, 2
        %v9059 = vsel %vm8794, %v9051, %v9058
        %v9060 = vrot.slane %v8784, 2
        %v9061 = vsel %vm8794, %v9054, %v9060
        %v9068 = vmax.f32 %v8770, %v9049
        %v9069 = vmax.f32 %v8771, %v9052
        %v9070 = vmax.f32 %v8772, %v9055
        %v9071 = vmax.f32 %v8773, %v9057
        %v9072 = vmax.f32 %v8774, %v9059
        %v9073 = vmax.f32 %v8775, %v9061
        %v9077 = vrot.slane %v9069, 7
        %v9078 = vrot.slane %v9070, 6
        %v9079 = vsel %vm1391, %v9068, %v9077
        %v9080 = vsel %vm504, %v9079, %v9078
        %s9082 = scalar_lea.vmem [#allocation3], 98
        %9083 = vst.msk [vmem:[%s9082] ss:$8 sm:$0x7] %vm8831, %v9080
        %9084 = vst.msk [vmem:[%s9082] ss:$8 sm:$0x0] %vm8831, %v9080
        %v9088 = vrot.slane %v9068, 1
        %v9089 = vrot.slane %v9071, 1
        %v9090 = vsel %vm1424, %v9088, %v9089
        %v9091 = vrot.slane %v9069, 1
        %v9092 = vrot.slane %v9072, 1
        %v9093 = vsel %vm1424, %v9091, %v9092
        %v9094 = vrot.slane %v9070, 1
        %v9095 = vrot.slane %v9073, 1
        %v9096 = vsel %vm1424, %v9094, %v9095
        %v9103 = vmax.f32 %v9068, %v9090
        %v9104 = vmax.f32 %v9069, %v9093
        %v9105 = vmax.f32 %v9070, %v9096
        %v9106 = vmax.f32 %v9071, %v9089
        %v9107 = vmax.f32 %v9072, %v9092
        %v9108 = vmax.f32 %v9073, %v9095
        %vm9115 = vcmask 1042432
        %v9116 = vrot.slane %v9103, 5
        %v9117 = vrot.slane %v9104, 5
        %v9118 = vrot.slane %v9105, 5
        %v9119 = vrot.slane %v9106, 5
        %v9120 = vsel %vm9115, %v9116, %v9119
        %v9121 = vrot.slane %v9107, 5
        %v9122 = vsel %vm9115, %v9117, %v9121
        %v9123 = vrot.slane %v9108, 5
        %v9124 = vsel %vm9115, %v9118, %v9123
        %9134 = vst [vmem:[#allocation3 + $0x60] sm:$0xf8] %v9116
        %9135 = vst [vmem:[#allocation3 + $0x68] sm:$0xf8] %v9117
        %9136 = vst [vmem:[#allocation3 + $0x70] sm:$0xf8] %v9118
        %9137 = vst [vmem:[#allocation3 + $0x78] sm:$0xff] %v9120
        %9138 = vst [vmem:[#allocation3 + $0x80] sm:$0xff] %v9122
        %9139 = vst [vmem:[#allocation3 + $0x88] sm:$0xff] %v9124
        %9140 = vst [vmem:[#allocation3 + $0x90] sm:$0x3] %v9119
        %9141 = vst [vmem:[#allocation3 + $0x98] sm:$0x3] %v9121
        %9142 = vst [vmem:[#allocation3 + $0xa0] sm:$0x3] %v9123
        %9143 = vst [vmem:[#allocation1] sm:$0xff] %v9071
        %9144 = vst [vmem:[#allocation1 + $0x9] sm:$0xff] %v9072
        %9145 = vst [vmem:[#allocation1 + $0x12] sm:$0xff] %v9073
        %s9146 = scalar_lea.vmem [#allocation1], 7
        %v9147 = vld [vmem:[%s9146] ss:$9 sm:$0xff]
        %s9149 = scalar_lea.vmem [#allocation3], 146
        %9150 = vst.msk [vmem:[%s9149] ss:$8 sm:$0x7] %vm8831, %v9147
        %9151 = vst.msk [vmem:[%s9149] ss:$8 sm:$0x0] %vm8831, %v9147
        %v9152 = vld [vmem:[#allocation3] sm:$0xff]
        %v9153 = vld [vmem:[#allocation3 + $0x8] sm:$0xff]
        %v9154 = vld [vmem:[#allocation3 + $0x10] sm:$0xff]
        %v9155 = vld [vmem:[#allocation3 + $0x18] sm:$0xff]
        %v9156 = vld [vmem:[#allocation3 + $0x20] sm:$0xff]
        %v9157 = vld [vmem:[#allocation3 + $0x28] sm:$0xff]
        %v9158 = vld [vmem:[#allocation3 + $0x30] sm:$0xff]
        %v9159 = vld [vmem:[#allocation3 + $0x38] sm:$0xff]
        %v9160 = vld [vmem:[#allocation3 + $0x40] sm:$0xff]
        %v9161 = vld [vmem:[#allocation3 + $0x48] sm:$0xff]
        %v9162 = vld [vmem:[#allocation3 + $0x50] sm:$0xff]
        %v9163 = vld [vmem:[#allocation3 + $0x58] sm:$0xff]
        %v9164 = vld [vmem:[#allocation3 + $0x60] sm:$0x1]
        %v9165 = vld [vmem:[#allocation3 + $0x68] sm:$0x1]
        %v9166 = vld [vmem:[#allocation3 + $0x70] sm:$0x1]
        %v9167 = vpack.c.bf16 %v9155, %v9152
        %v9168 = vpack.c.bf16 %v9156, %v9153
        %v9169 = vpack.c.bf16 %v9157, %v9154
        %v9170 = vpack.c.bf16 %v9161, %v9158
        %v9171 = vpack.c.bf16 %v9162, %v9159
        %v9172 = vpack.c.bf16 %v9163, %v9160
        %v9173 = vpack.c.bf16 %v9164, %v9164
        %v9174 = vpack.c.bf16 %v9165, %v9165
        %v9175 = vpack.c.bf16 %v9166, %v9166
        %v9176 = vld [vmem:[%s7] sm:$0xff]
        %v9177 = vld [vmem:[%s7 + $0x8] sm:$0xf]
        %v9178 = vld [vmem:[%s7 + $0xc] sm:$0xff]
        %v9179 = vld [vmem:[%s7 + $0x14] sm:$0xf]
        %v9180 = vld [vmem:[%s7 + $0x18] sm:$0xff]
        %v9181 = vld [vmem:[%s7 + $0x20] sm:$0xf]
        %v9182 = vld [vmem:[%s7 + $0x24] sm:$0xff]
        %v9183 = vld [vmem:[%s7 + $0x2c] sm:$0xf]
        %v9184 = vld [vmem:[%s7 + $0x30] sm:$0xff]
        %v9185 = vld [vmem:[%s7 + $0x38] sm:$0xf]
        %v9186 = vld [vmem:[%s7 + $0x3c] sm:$0xff]
        %v9187 = vld [vmem:[%s7 + $0x44] sm:$0xf]
        %v9188 = vld [vmem:[%s7 + $0x48] sm:$0xff]
        %v9189 = vld [vmem:[%s7 + $0x50] sm:$0xf]
        %v9190 = vld [vmem:[%s7 + $0x54] sm:$0xff]
        %v9191 = vld [vmem:[%s7 + $0x5c] sm:$0xf]
        %v9192 = vld [vmem:[%s7 + $0x60] sm:$0xff]
        %v9193 = vld [vmem:[%s7 + $0x68] sm:$0xf]
        %v9194 = vld [vmem:[%s7 + $0x6c] sm:$0xff]
        %v9195 = vld [vmem:[%s7 + $0x74] sm:$0xf]
        %v9196 = vld [vmem:[%s7 + $0x78] sm:$0xff]
        %v9197 = vld [vmem:[%s7 + $0x80] sm:$0xf]
        %v9198 = vld [vmem:[%s7 + $0x84] sm:$0xff]
        %v9199 = vld [vmem:[%s7 + $0x8c] sm:$0xf]
        %v9200 = vld [vmem:[%s7 + $0x90] sm:$0xff]
        %v9201 = vld [vmem:[%s7 + $0x98] sm:$0xf]
        %v9202 = vld [vmem:[%s7 + $0x9c] sm:$0xff]
        %v9203 = vld [vmem:[%s7 + $0xa4] sm:$0xf]
        %v9204 = vld [vmem:[%s7 + $0xa8] sm:$0xff]
        %v9205 = vld [vmem:[%s7 + $0xb0] sm:$0xf]
        %v9206 = vld [vmem:[%s7 + $0xb4] sm:$0xff]
        %v9207 = vld [vmem:[%s7 + $0xbc] sm:$0xf]
        %v9208 = vld [vmem:[%s7 + $0xc0] sm:$0xff]
        %v9209 = vld [vmem:[%s7 + $0xc8] sm:$0xf]
        %v9210 = vld [vmem:[%s7 + $0xcc] sm:$0xff]
        %v9211 = vld [vmem:[%s7 + $0xd4] sm:$0xf]
        %v9212 = vld [vmem:[%s7 + $0xd8] sm:$0xff]
        %v9213 = vld [vmem:[%s7 + $0xe0] sm:$0xf]
        %v9214 = vld [vmem:[%s7 + $0xe4] sm:$0xff]
        %v9215 = vld [vmem:[%s7 + $0xec] sm:$0xf]
        %v9216 = vld [vmem:[%s7 + $0xf0] sm:$0xff]
        %v9217 = vld [vmem:[%s7 + $0xf8] sm:$0xf]
        %v9218 = vld [vmem:[%s7 + $0xfc] sm:$0xff]
        %v9219 = vld [vmem:[%s7 + $0x104] sm:$0xf]
        %v9220 = vld [vmem:[%s7 + $0x108] sm:$0xff]
        %v9221 = vld [vmem:[%s7 + $0x110] sm:$0xf]
        %v9222 = vld [vmem:[%s7 + $0x114] sm:$0xff]
        %v9223 = vld [vmem:[%s7 + $0x11c] sm:$0xf]
        %v9224 = vld [vmem:[%s7 + $0x120] sm:$0xff]
        %v9225 = vld [vmem:[%s7 + $0x128] sm:$0xf]
        %v9226 = vld [vmem:[%s7 + $0x12c] sm:$0xff]
        %v9227 = vld [vmem:[%s7 + $0x134] sm:$0xf]
        %v9228 = vld [vmem:[%s7 + $0x138] sm:$0xff]
        %v9229 = vld [vmem:[%s7 + $0x140] sm:$0xf]
        %v9230 = vld [vmem:[%s7 + $0x144] sm:$0xff]
        %v9231 = vld [vmem:[%s7 + $0x14c] sm:$0xf]
        %v9232 = vld [vmem:[%s7 + $0x150] sm:$0xff]
        %v9233 = vld [vmem:[%s7 + $0x158] sm:$0xf]
        %v9234 = vld [vmem:[%s7 + $0x15c] sm:$0xff]
        %v9235 = vld [vmem:[%s7 + $0x164] sm:$0xf]
        %v9236 = vld [vmem:[%s7 + $0x168] sm:$0xff]
        %v9237 = vld [vmem:[%s7 + $0x170] sm:$0xf]
        %v9238 = vld [vmem:[%s7 + $0x174] sm:$0xff]
        %v9239 = vld [vmem:[%s7 + $0x17c] sm:$0xf]
        %v9240 = vld [vmem:[%s7 + $0x180] sm:$0xff]
        %v9241 = vld [vmem:[%s7 + $0x188] sm:$0xf]
        %v9242 = vld [vmem:[%s7 + $0x18c] sm:$0xff]
        %v9243 = vld [vmem:[%s7 + $0x194] sm:$0xf]
        %v9244 = vld [vmem:[%s7 + $0x198] sm:$0xff]
        %v9245 = vld [vmem:[%s7 + $0x1a0] sm:$0xf]
        %v9246 = vld [vmem:[%s7 + $0x1a4] sm:$0xff]
        %v9247 = vld [vmem:[%s7 + $0x1ac] sm:$0xf]
        %v9248 = vld [vmem:[%s7 + $0x1b0] sm:$0xff]
        %v9249 = vld [vmem:[%s7 + $0x1b8] sm:$0xf]
        %v9250 = vld [vmem:[%s7 + $0x1bc] sm:$0xff]
        %v9251 = vld [vmem:[%s7 + $0x1c4] sm:$0xf]
        %v9252 = vld [vmem:[%s7 + $0x1c8] sm:$0xff]
        %v9253 = vld [vmem:[%s7 + $0x1d0] sm:$0xf]
        %v9254 = vld [vmem:[%s7 + $0x1d4] sm:$0xff]
        %v9255 = vld [vmem:[%s7 + $0x1dc] sm:$0xf]
        %v9256 = vld [vmem:[%s7 + $0x1e0] sm:$0xff]
        %v9257 = vld [vmem:[%s7 + $0x1e8] sm:$0xf]
        %v9258 = vld [vmem:[%s7 + $0x1ec] sm:$0xff]
        %v9259 = vld [vmem:[%s7 + $0x1f4] sm:$0xf]
        %v9260 = vld [vmem:[%s7 + $0x1f8] sm:$0xff]
        %v9261 = vld [vmem:[%s7 + $0x200] sm:$0xf]
        %v9262 = vld [vmem:[%s7 + $0x204] sm:$0xff]
        %v9263 = vld [vmem:[%s7 + $0x20c] sm:$0xf]
        %v9264 = vld [vmem:[%s7 + $0x210] sm:$0xff]
        %v9265 = vld [vmem:[%s7 + $0x218] sm:$0xf]
        %v9266 = vld [vmem:[%s7 + $0x21c] sm:$0xff]
        %v9267 = vld [vmem:[%s7 + $0x224] sm:$0xf]
        %v9268 = vld [vmem:[%s7 + $0x228] sm:$0xff]
        %v9269 = vld [vmem:[%s7 + $0x230] sm:$0xf]
        %v9270 = vld [vmem:[%s7 + $0x234] sm:$0xff]
        %v9271 = vld [vmem:[%s7 + $0x23c] sm:$0xf]
        %v9272 = vld [vmem:[#allocation3] sm:$0xfe]
        %v9273 = vld [vmem:[#allocation3 + $0x8] sm:$0xfe]
        %v9274 = vld [vmem:[#allocation3 + $0x10] sm:$0xfe]
        %v9275 = vld [vmem:[#allocation3 + $0x60] sm:$0x3]
        %v9276 = vld [vmem:[#allocation3 + $0x68] sm:$0x3]
        %v9277 = vld [vmem:[#allocation3 + $0x70] sm:$0x3]
        %v9278 = vpack.c.bf16 %v9155, %v9272
        %v9279 = vpack.c.bf16 %v9156, %v9273
        %v9280 = vpack.c.bf16 %v9157, %v9274
        %v9281 = vpack.c.bf16 %v9275, %v9275
        %v9282 = vpack.c.bf16 %v9276, %v9276
        %v9283 = vpack.c.bf16 %v9277, %v9277
        %s9284 = scalar_lea.vmem %s7, 576
        %v9285 = vld [vmem:[%s9284] sm:$0xff]
        %v9286 = vld [vmem:[%s9284 + $0x8] sm:$0xf]
        %v9287 = vld [vmem:[%s9284 + $0xc] sm:$0xff]
        %v9288 = vld [vmem:[%s9284 + $0x14] sm:$0xf]
        %v9289 = vld [vmem:[%s9284 + $0x18] sm:$0xff]
        %v9290 = vld [vmem:[%s9284 + $0x20] sm:$0xf]
        %v9291 = vld [vmem:[%s9284 + $0x24] sm:$0xff]
        %v9292 = vld [vmem:[%s9284 + $0x2c] sm:$0xf]
        %v9293 = vld [vmem:[%s9284 + $0x30] sm:$0xff]
        %v9294 = vld [vmem:[%s9284 + $0x38] sm:$0xf]
        %v9295 = vld [vmem:[%s9284 + $0x3c] sm:$0xff]
        %v9296 = vld [vmem:[%s9284 + $0x44] sm:$0xf]
        %v9297 = vld [vmem:[%s9284 + $0x48] sm:$0xff]
        %v9298 = vld [vmem:[%s9284 + $0x50] sm:$0xf]
        %v9299 = vld [vmem:[%s9284 + $0x54] sm:$0xff]
        %v9300 = vld [vmem:[%s9284 + $0x5c] sm:$0xf]
        %v9301 = vld [vmem:[%s9284 + $0x60] sm:$0xff]
        %v9302 = vld [vmem:[%s9284 + $0x68] sm:$0xf]
        %v9303 = vld [vmem:[%s9284 + $0x6c] sm:$0xff]
        %v9304 = vld [vmem:[%s9284 + $0x74] sm:$0xf]
        %v9305 = vld [vmem:[%s9284 + $0x78] sm:$0xff]
        %v9306 = vld [vmem:[%s9284 + $0x80] sm:$0xf]
        %v9307 = vld [vmem:[%s9284 + $0x84] sm:$0xff]
        %v9308 = vld [vmem:[%s9284 + $0x8c] sm:$0xf]
        %v9309 = vld [vmem:[%s9284 + $0x90] sm:$0xff]
        %v9310 = vld [vmem:[%s9284 + $0x98] sm:$0xf]
        %v9311 = vld [vmem:[%s9284 + $0x9c] sm:$0xff]
        %v9312 = vld [vmem:[%s9284 + $0xa4] sm:$0xf]
        %v9313 = vld [vmem:[%s9284 + $0xa8] sm:$0xff]
        %v9314 = vld [vmem:[%s9284 + $0xb0] sm:$0xf]
        %v9315 = vld [vmem:[%s9284 + $0xb4] sm:$0xff]
        %v9316 = vld [vmem:[%s9284 + $0xbc] sm:$0xf]
        %v9317 = vld [vmem:[%s9284 + $0xc0] sm:$0xff]
        %v9318 = vld [vmem:[%s9284 + $0xc8] sm:$0xf]
        %v9319 = vld [vmem:[%s9284 + $0xcc] sm:$0xff]
        %v9320 = vld [vmem:[%s9284 + $0xd4] sm:$0xf]
        %v9321 = vld [vmem:[%s9284 + $0xd8] sm:$0xff]
        %v9322 = vld [vmem:[%s9284 + $0xe0] sm:$0xf]
        %v9323 = vld [vmem:[%s9284 + $0xe4] sm:$0xff]
        %v9324 = vld [vmem:[%s9284 + $0xec] sm:$0xf]
        %v9325 = vld [vmem:[%s9284 + $0xf0] sm:$0xff]
        %v9326 = vld [vmem:[%s9284 + $0xf8] sm:$0xf]
        %v9327 = vld [vmem:[%s9284 + $0xfc] sm:$0xff]
        %v9328 = vld [vmem:[%s9284 + $0x104] sm:$0xf]
        %v9329 = vld [vmem:[%s9284 + $0x108] sm:$0xff]
        %v9330 = vld [vmem:[%s9284 + $0x110] sm:$0xf]
        %v9331 = vld [vmem:[%s9284 + $0x114] sm:$0xff]
        %v9332 = vld [vmem:[%s9284 + $0x11c] sm:$0xf]
        %v9333 = vld [vmem:[%s9284 + $0x120] sm:$0xff]
        %v9334 = vld [vmem:[%s9284 + $0x128] sm:$0xf]
        %v9335 = vld [vmem:[%s9284 + $0x12c] sm:$0xff]
        %v9336 = vld [vmem:[%s9284 + $0x134] sm:$0xf]
        %v9337 = vld [vmem:[%s9284 + $0x138] sm:$0xff]
        %v9338 = vld [vmem:[%s9284 + $0x140] sm:$0xf]
        %v9339 = vld [vmem:[%s9284 + $0x144] sm:$0xff]
        %v9340 = vld [vmem:[%s9284 + $0x14c] sm:$0xf]
        %v9341 = vld [vmem:[%s9284 + $0x150] sm:$0xff]
        %v9342 = vld [vmem:[%s9284 + $0x158] sm:$0xf]
        %v9343 = vld [vmem:[%s9284 + $0x15c] sm:$0xff]
        %v9344 = vld [vmem:[%s9284 + $0x164] sm:$0xf]
        %v9345 = vld [vmem:[%s9284 + $0x168] sm:$0xff]
        %v9346 = vld [vmem:[%s9284 + $0x170] sm:$0xf]
        %v9347 = vld [vmem:[%s9284 + $0x174] sm:$0xff]
        %v9348 = vld [vmem:[%s9284 + $0x17c] sm:$0xf]
        %v9349 = vld [vmem:[%s9284 + $0x180] sm:$0xff]
        %v9350 = vld [vmem:[%s9284 + $0x188] sm:$0xf]
        %v9351 = vld [vmem:[%s9284 + $0x18c] sm:$0xff]
        %v9352 = vld [vmem:[%s9284 + $0x194] sm:$0xf]
        %v9353 = vld [vmem:[%s9284 + $0x198] sm:$0xff]
        %v9354 = vld [vmem:[%s9284 + $0x1a0] sm:$0xf]
        %v9355 = vld [vmem:[%s9284 + $0x1a4] sm:$0xff]
        %v9356 = vld [vmem:[%s9284 + $0x1ac] sm:$0xf]
        %v9357 = vld [vmem:[%s9284 + $0x1b0] sm:$0xff]
        %v9358 = vld [vmem:[%s9284 + $0x1b8] sm:$0xf]
        %v9359 = vld [vmem:[%s9284 + $0x1bc] sm:$0xff]
        %v9360 = vld [vmem:[%s9284 + $0x1c4] sm:$0xf]
        %v9361 = vld [vmem:[%s9284 + $0x1c8] sm:$0xff]
        %v9362 = vld [vmem:[%s9284 + $0x1d0] sm:$0xf]
        %v9363 = vld [vmem:[%s9284 + $0x1d4] sm:$0xff]
        %v9364 = vld [vmem:[%s9284 + $0x1dc] sm:$0xf]
        %v9365 = vld [vmem:[%s9284 + $0x1e0] sm:$0xff]
        %v9366 = vld [vmem:[%s9284 + $0x1e8] sm:$0xf]
        %v9367 = vld [vmem:[%s9284 + $0x1ec] sm:$0xff]
        %v9368 = vld [vmem:[%s9284 + $0x1f4] sm:$0xf]
        %v9369 = vld [vmem:[%s9284 + $0x1f8] sm:$0xff]
        %v9370 = vld [vmem:[%s9284 + $0x200] sm:$0xf]
        %v9371 = vld [vmem:[%s9284 + $0x204] sm:$0xff]
        %v9372 = vld [vmem:[%s9284 + $0x20c] sm:$0xf]
        %v9373 = vld [vmem:[%s9284 + $0x210] sm:$0xff]
        %v9374 = vld [vmem:[%s9284 + $0x218] sm:$0xf]
        %v9375 = vld [vmem:[%s9284 + $0x21c] sm:$0xff]
        %v9376 = vld [vmem:[%s9284 + $0x224] sm:$0xf]
        %v9377 = vld [vmem:[%s9284 + $0x228] sm:$0xff]
        %v9378 = vld [vmem:[%s9284 + $0x230] sm:$0xf]
        %v9379 = vld [vmem:[%s9284 + $0x234] sm:$0xff]
        %v9380 = vld [vmem:[%s9284 + $0x23c] sm:$0xf]
        %v9382 = vshrl.u32 %v9278, 16
        %v9384 = vshll.u32 %v9278, 16
        %v9386 = vrot.slane %v9384, 1
        %v9387 = vor.u32 %v9382, %v9386
        %v9389 = vshll.u32 %v9170, 16
        %v9391 = vrot.slane %v9389, 1
        %v9392 = vsel %vm2144, %v9387, %v9391
        %v9394 = vshrl.u32 %v9279, 16
        %v9396 = vshll.u32 %v9279, 16
        %v9398 = vrot.slane %v9396, 1
        %v9399 = vor.u32 %v9394, %v9398
        %v9401 = vshll.u32 %v9171, 16
        %v9403 = vrot.slane %v9401, 1
        %v9404 = vsel %vm2144, %v9399, %v9403
        %v9406 = vshrl.u32 %v9280, 16
        %v9408 = vshll.u32 %v9280, 16
        %v9410 = vrot.slane %v9408, 1
        %v9411 = vor.u32 %v9406, %v9410
        %v9413 = vshll.u32 %v9172, 16
        %v9415 = vrot.slane %v9413, 1
        %v9416 = vsel %vm2144, %v9411, %v9415
        %v9417 = vshrl.u32 %v9170, 16
        %v9419 = vor.u32 %v9417, %v9391
        %v9421 = vshll.u32 %v9281, 16
        %v9423 = vrot.slane %v9421, 1
        %v9424 = vsel %vm2144, %v9419, %v9423
        %v9425 = vshrl.u32 %v9171, 16
        %v9427 = vor.u32 %v9425, %v9403
        %v9429 = vshll.u32 %v9282, 16
        %v9431 = vrot.slane %v9429, 1
        %v9432 = vsel %vm2144, %v9427, %v9431
        %v9433 = vshrl.u32 %v9172, 16
        %v9435 = vor.u32 %v9433, %v9415
        %v9437 = vshll.u32 %v9283, 16
        %v9439 = vrot.slane %v9437, 1
        %v9440 = vsel %vm2144, %v9435, %v9439
        %v9441 = vshrl.u32 %v9281, 16
        %v9443 = vshrl.u32 %v9282, 16
        %v9445 = vshrl.u32 %v9283, 16
        %v9552 = vunpack.c.l.b16 %v9285
        %v9553 = vunpack.c.h.b16 %v9285
        %v9554 = vunpack.c.l.b16 %v9286
        %v9555 = vunpack.c.l.b16 %v9287
        %v9556 = vunpack.c.h.b16 %v9287
        %v9557 = vunpack.c.l.b16 %v9288
        %v9558 = vunpack.c.l.b16 %v9289
        %v9559 = vunpack.c.h.b16 %v9289
        %v9560 = vunpack.c.l.b16 %v9290
        %v9561 = vunpack.c.l.b16 %v9291
        %v9562 = vunpack.c.h.b16 %v9291
        %v9563 = vunpack.c.l.b16 %v9292
        %v9564 = vunpack.c.l.b16 %v9293
        %v9565 = vunpack.c.h.b16 %v9293
        %v9566 = vunpack.c.l.b16 %v9294
        %v9567 = vunpack.c.l.b16 %v9295
        %v9568 = vunpack.c.h.b16 %v9295
        %v9569 = vunpack.c.l.b16 %v9296
        %v9570 = vunpack.c.l.b16 %v9297
        %v9571 = vunpack.c.h.b16 %v9297
        %v9572 = vunpack.c.l.b16 %v9298
        %v9573 = vunpack.c.l.b16 %v9299
        %v9574 = vunpack.c.h.b16 %v9299
        %v9575 = vunpack.c.l.b16 %v9300
        %v9576 = vunpack.c.l.b16 %v9301
        %v9577 = vunpack.c.h.b16 %v9301
        %v9578 = vunpack.c.l.b16 %v9302
        %v9579 = vunpack.c.l.b16 %v9303
        %v9580 = vunpack.c.h.b16 %v9303
        %v9581 = vunpack.c.l.b16 %v9304
        %v9582 = vunpack.c.l.b16 %v9305
        %v9583 = vunpack.c.h.b16 %v9305
        %v9584 = vunpack.c.l.b16 %v9306
        %v9585 = vunpack.c.l.b16 %v9307
        %v9586 = vunpack.c.h.b16 %v9307
        %v9587 = vunpack.c.l.b16 %v9308
        %v9588 = vunpack.c.l.b16 %v9309
        %v9589 = vunpack.c.h.b16 %v9309
        %v9590 = vunpack.c.l.b16 %v9310
        %v9591 = vunpack.c.l.b16 %v9311
        %v9592 = vunpack.c.h.b16 %v9311
        %v9593 = vunpack.c.l.b16 %v9312
        %v9594 = vunpack.c.l.b16 %v9313
        %v9595 = vunpack.c.h.b16 %v9313
        %v9596 = vunpack.c.l.b16 %v9314
        %v9597 = vunpack.c.l.b16 %v9315
        %v9598 = vunpack.c.h.b16 %v9315
        %v9599 = vunpack.c.l.b16 %v9316
        %v9600 = vunpack.c.l.b16 %v9317
        %v9601 = vunpack.c.h.b16 %v9317
        %v9602 = vunpack.c.l.b16 %v9318
        %v9603 = vunpack.c.l.b16 %v9319
        %v9604 = vunpack.c.h.b16 %v9319
        %v9605 = vunpack.c.l.b16 %v9320
        %v9606 = vunpack.c.l.b16 %v9321
        %v9607 = vunpack.c.h.b16 %v9321
        %v9608 = vunpack.c.l.b16 %v9322
        %v9609 = vunpack.c.l.b16 %v9323
        %v9610 = vunpack.c.h.b16 %v9323
        %v9611 = vunpack.c.l.b16 %v9324
        %v9612 = vunpack.c.l.b16 %v9325
        %v9613 = vunpack.c.h.b16 %v9325
        %v9614 = vunpack.c.l.b16 %v9326
        %v9615 = vunpack.c.l.b16 %v9327
        %v9616 = vunpack.c.h.b16 %v9327
        %v9617 = vunpack.c.l.b16 %v9328
        %v9618 = vunpack.c.l.b16 %v9329
        %v9619 = vunpack.c.h.b16 %v9329
        %v9620 = vunpack.c.l.b16 %v9330
        %v9621 = vunpack.c.l.b16 %v9331
        %v9622 = vunpack.c.h.b16 %v9331
        %v9623 = vunpack.c.l.b16 %v9332
        %v9624 = vunpack.c.l.b16 %v9333
        %v9625 = vunpack.c.h.b16 %v9333
        %v9626 = vunpack.c.l.b16 %v9334
        %v9627 = vunpack.c.l.b16 %v9335
        %v9628 = vunpack.c.h.b16 %v9335
        %v9629 = vunpack.c.l.b16 %v9336
        %v9630 = vunpack.c.l.b16 %v9337
        %v9631 = vunpack.c.h.b16 %v9337
        %v9632 = vunpack.c.l.b16 %v9338
        %v9633 = vunpack.c.l.b16 %v9339
        %v9634 = vunpack.c.h.b16 %v9339
        %v9635 = vunpack.c.l.b16 %v9340
        %v9636 = vunpack.c.l.b16 %v9341
        %v9637 = vunpack.c.h.b16 %v9341
        %v9638 = vunpack.c.l.b16 %v9342
        %v9639 = vunpack.c.l.b16 %v9343
        %v9640 = vunpack.c.h.b16 %v9343
        %v9641 = vunpack.c.l.b16 %v9344
        %v9642 = vunpack.c.l.b16 %v9345
        %v9643 = vunpack.c.h.b16 %v9345
        %v9644 = vunpack.c.l.b16 %v9346
        %v9645 = vunpack.c.l.b16 %v9347
        %v9646 = vunpack.c.h.b16 %v9347
        %v9647 = vunpack.c.l.b16 %v9348
        %v9648 = vunpack.c.l.b16 %v9349
        %v9649 = vunpack.c.h.b16 %v9349
        %v9650 = vunpack.c.l.b16 %v9350
        %v9651 = vunpack.c.l.b16 %v9351
        %v9652 = vunpack.c.h.b16 %v9351
        %v9653 = vunpack.c.l.b16 %v9352
        %v9654 = vunpack.c.l.b16 %v9353
        %v9655 = vunpack.c.h.b16 %v9353
        %v9656 = vunpack.c.l.b16 %v9354
        %v9657 = vunpack.c.l.b16 %v9355
        %v9658 = vunpack.c.h.b16 %v9355
        %v9659 = vunpack.c.l.b16 %v9356
        %v9660 = vunpack.c.l.b16 %v9357
        %v9661 = vunpack.c.h.b16 %v9357
        %v9662 = vunpack.c.l.b16 %v9358
        %v9663 = vunpack.c.l.b16 %v9359
        %v9664 = vunpack.c.h.b16 %v9359
        %v9665 = vunpack.c.l.b16 %v9360
        %v9666 = vunpack.c.l.b16 %v9361
        %v9667 = vunpack.c.h.b16 %v9361
        %v9668 = vunpack.c.l.b16 %v9362
        %v9669 = vunpack.c.l.b16 %v9363
        %v9670 = vunpack.c.h.b16 %v9363
        %v9671 = vunpack.c.l.b16 %v9364
        %v9672 = vunpack.c.l.b16 %v9365
        %v9673 = vunpack.c.h.b16 %v9365
        %v9674 = vunpack.c.l.b16 %v9366
        %v9675 = vunpack.c.l.b16 %v9367
        %v9676 = vunpack.c.h.b16 %v9367
        %v9677 = vunpack.c.l.b16 %v9368
        %v9678 = vunpack.c.l.b16 %v9369
        %v9679 = vunpack.c.h.b16 %v9369
        %v9680 = vunpack.c.l.b16 %v9370
        %v9681 = vunpack.c.l.b16 %v9371
        %v9682 = vunpack.c.h.b16 %v9371
        %v9683 = vunpack.c.l.b16 %v9372
        %v9684 = vunpack.c.l.b16 %v9373
        %v9685 = vunpack.c.h.b16 %v9373
        %v9686 = vunpack.c.l.b16 %v9374
        %v9687 = vunpack.c.l.b16 %v9375
        %v9688 = vunpack.c.h.b16 %v9375
        %v9689 = vunpack.c.l.b16 %v9376
        %v9690 = vunpack.c.l.b16 %v9377
        %v9691 = vunpack.c.h.b16 %v9377
        %v9692 = vunpack.c.l.b16 %v9378
        %v9693 = vunpack.c.l.b16 %v9379
        %v9694 = vunpack.c.h.b16 %v9379
        %v9695 = vunpack.c.l.b16 %v9380
        %v9696 = vpack.c.b16 %v9555, %v9552
        %v9697 = vpack.c.b16 %v9556, %v9553
        %v9698 = vpack.c.b16 %v9557, %v9554
        %v9699 = vpack.c.b16 %v9561, %v9558
        %v9700 = vpack.c.b16 %v9562, %v9559
        %v9701 = vpack.c.b16 %v9563, %v9560
        %v9702 = vpack.c.b16 %v9567, %v9564
        %v9703 = vpack.c.b16 %v9568, %v9565
        %v9704 = vpack.c.b16 %v9569, %v9566
        %v9705 = vpack.c.b16 %v9573, %v9570
        %v9706 = vpack.c.b16 %v9574, %v9571
        %v9707 = vpack.c.b16 %v9575, %v9572
        %v9708 = vpack.c.b16 %v9579, %v9576
        %v9709 = vpack.c.b16 %v9580, %v9577
        %v9710 = vpack.c.b16 %v9581, %v9578
        %v9711 = vpack.c.b16 %v9585, %v9582
        %v9712 = vpack.c.b16 %v9586, %v9583
        %v9713 = vpack.c.b16 %v9587, %v9584
        %v9714 = vpack.c.b16 %v9591, %v9588
        %v9715 = vpack.c.b16 %v9592, %v9589
        %v9716 = vpack.c.b16 %v9593, %v9590
        %v9717 = vpack.c.b16 %v9597, %v9594
        %v9718 = vpack.c.b16 %v9598, %v9595
        %v9719 = vpack.c.b16 %v9599, %v9596
        %v9720 = vpack.c.b16 %v9603, %v9600
        %v9721 = vpack.c.b16 %v9604, %v9601
        %v9722 = vpack.c.b16 %v9605, %v9602
        %v9723 = vpack.c.b16 %v9609, %v9606
        %v9724 = vpack.c.b16 %v9610, %v9607
        %v9725 = vpack.c.b16 %v9611, %v9608
        %v9726 = vpack.c.b16 %v9615, %v9612
        %v9727 = vpack.c.b16 %v9616, %v9613
        %v9728 = vpack.c.b16 %v9617, %v9614
        %v9729 = vpack.c.b16 %v9621, %v9618
        %v9730 = vpack.c.b16 %v9622, %v9619
        %v9731 = vpack.c.b16 %v9623, %v9620
        %v9732 = vpack.c.b16 %v9627, %v9624
        %v9733 = vpack.c.b16 %v9628, %v9625
        %v9734 = vpack.c.b16 %v9629, %v9626
        %v9735 = vpack.c.b16 %v9633, %v9630
        %v9736 = vpack.c.b16 %v9634, %v9631
        %v9737 = vpack.c.b16 %v9635, %v9632
        %v9738 = vpack.c.b16 %v9639, %v9636
        %v9739 = vpack.c.b16 %v9640, %v9637
        %v9740 = vpack.c.b16 %v9641, %v9638
        %v9741 = vpack.c.b16 %v9645, %v9642
        %v9742 = vpack.c.b16 %v9646, %v9643
        %v9743 = vpack.c.b16 %v9647, %v9644
        %v9744 = vpack.c.b16 %v9651, %v9648
        %v9745 = vpack.c.b16 %v9652, %v9649
        %v9746 = vpack.c.b16 %v9653, %v9650
        %v9747 = vpack.c.b16 %v9657, %v9654
        %v9748 = vpack.c.b16 %v9658, %v9655
        %v9749 = vpack.c.b16 %v9659, %v9656
        %v9750 = vpack.c.b16 %v9663, %v9660
        %v9751 = vpack.c.b16 %v9664, %v9661
        %v9752 = vpack.c.b16 %v9665, %v9662
        %v9753 = vpack.c.b16 %v9669, %v9666
        %v9754 = vpack.c.b16 %v9670, %v9667
        %v9755 = vpack.c.b16 %v9671, %v9668
        %v9756 = vpack.c.b16 %v9675, %v9672
        %v9757 = vpack.c.b16 %v9676, %v9673
        %v9758 = vpack.c.b16 %v9677, %v9674
        %v9759 = vpack.c.b16 %v9681, %v9678
        %v9760 = vpack.c.b16 %v9682, %v9679
        %v9761 = vpack.c.b16 %v9683, %v9680
        %v9762 = vpack.c.b16 %v9687, %v9684
        %v9763 = vpack.c.b16 %v9688, %v9685
        %v9764 = vpack.c.b16 %v9689, %v9686
        %v9765 = vpack.c.b16 %v9693, %v9690
        %v9766 = vpack.c.b16 %v9694, %v9691
        %v9767 = vpack.c.b16 %v9695, %v9692
        %9840 = vmatpush.bf16.msra.mxu0 %v9717
        %9841 = vmatpush.bf16.msra.mxu0 %v9714
        %9842 = vmatpush.bf16.msra.mxu0 %v9711
        %9843 = vmatpush.bf16.msra.mxu0 %v9708
        %9844 = vmatpush.bf16.msra.mxu0 %v9705
        %9845 = vmatpush.bf16.msra.mxu0 %v9702
        %9846 = vmatpush.bf16.msra.mxu0 %v9699
        %9847 = vmatpush.bf16.msra.mxu0 %v9696
        %9848 = vmatmul.bf16.gmra.mxu0 %v9392
        %v9849 = vpop.f32.mrf.mxu0
        %v9850 = vadd.f32 0.0, %v9849
        %v9851 = vpop.f32.mrf.mxu0
        %v9852 = vadd.f32 0.0, %v9851
        %9853 = vmatmul.bf16.gmra.mxu0 %v9424
        %v9854 = vpop.f32.mrf.mxu0
        %v9855 = vadd.f32 0.0, %v9854
        %v9856 = vpop.f32.mrf.mxu0
        %v9857 = vadd.f32 0.0, %v9856
        %9858 = vmatmul.bf16.gmra.mxu0 %v9441
        %v9859 = vpop.f32.mrf.mxu0
        %v9860 = vadd.f32 0.0, %v9859
        %v9861 = vpop.f32.mrf.mxu0
        %9862 = vdwg.mxu0
        %9863 = vmatpush.bf16.msra.mxu0 %v9741
        %9864 = vmatpush.bf16.msra.mxu0 %v9738
        %9865 = vmatpush.bf16.msra.mxu0 %v9735
        %9866 = vmatpush.bf16.msra.mxu0 %v9732
        %9867 = vmatpush.bf16.msra.mxu0 %v9729
        %9868 = vmatpush.bf16.msra.mxu0 %v9726
        %9869 = vmatpush.bf16.msra.mxu0 %v9723
        %9870 = vmatpush.bf16.msra.mxu0 %v9720
        %9871 = vmatmul.bf16.gmra.mxu0 %v9404
        %v9872 = vpop.f32.mrf.mxu0
        %v9873 = vadd.f32 %v9850, %v9872
        %v9874 = vpop.f32.mrf.mxu0
        %v9875 = vadd.f32 %v9852, %v9874
        %9876 = vmatmul.bf16.gmra.mxu0 %v9432
        %v9877 = vpop.f32.mrf.mxu0
        %v9878 = vadd.f32 %v9855, %v9877
        %v9879 = vpop.f32.mrf.mxu0
        %v9880 = vadd.f32 %v9857, %v9879
        %9881 = vmatmul.bf16.gmra.mxu0 %v9443
        %v9882 = vpop.f32.mrf.mxu0
        %v9883 = vadd.f32 %v9860, %v9882
        %v9884 = vpop.f32.mrf.mxu0
        %9885 = vdwg.mxu0
        %9886 = vmatpush.bf16.msra.mxu0 %v9765
        %9887 = vmatpush.bf16.msra.mxu0 %v9762
        %9888 = vmatpush.bf16.msra.mxu0 %v9759
        %9889 = vmatpush.bf16.msra.mxu0 %v9756
        %9890 = vmatpush.bf16.msra.mxu0 %v9753
        %9891 = vmatpush.bf16.msra.mxu0 %v9750
        %9892 = vmatpush.bf16.msra.mxu0 %v9747
        %9893 = vmatpush.bf16.msra.mxu0 %v9744
        %9894 = vmatmul.bf16.gmra.mxu0 %v9416
        %v9895 = vpop.f32.mrf.mxu0
        %v9896 = vadd.f32 %v9873, %v9895
        %v9897 = vpop.f32.mrf.mxu0
        %v9898 = vadd.f32 %v9875, %v9897
        %9899 = vmatmul.bf16.gmra.mxu0 %v9440
        %v9900 = vpop.f32.mrf.mxu0
        %v9901 = vadd.f32 %v9878, %v9900
        %v9902 = vpop.f32.mrf.mxu0
        %v9903 = vadd.f32 %v9880, %v9902
        %9904 = vmatmul.bf16.gmra.mxu0 %v9445
        %v9905 = vpop.f32.mrf.mxu0
        %v9906 = vadd.f32 %v9883, %v9905
        %v9907 = vpop.f32.mrf.mxu0
        %9908 = vdwg.mxu0
        %9909 = vmatpush.bf16.msra.mxu0 %v9718
        %9910 = vmatpush.bf16.msra.mxu0 %v9715
        %9911 = vmatpush.bf16.msra.mxu0 %v9712
        %9912 = vmatpush.bf16.msra.mxu0 %v9709
        %9913 = vmatpush.bf16.msra.mxu0 %v9706
        %9914 = vmatpush.bf16.msra.mxu0 %v9703
        %9915 = vmatpush.bf16.msra.mxu0 %v9700
        %9916 = vmatpush.bf16.msra.mxu0 %v9697
        %9917 = vmatmul.bf16.gmra.mxu0 %v9392
        %v9918 = vpop.f32.mrf.mxu0
        %v9919 = vadd.f32 0.0, %v9918
        %v9920 = vpop.f32.mrf.mxu0
        %v9921 = vadd.f32 0.0, %v9920
        %9922 = vmatmul.bf16.gmra.mxu0 %v9424
        %v9923 = vpop.f32.mrf.mxu0
        %v9924 = vadd.f32 0.0, %v9923
        %v9925 = vpop.f32.mrf.mxu0
        %v9926 = vadd.f32 0.0, %v9925
        %9927 = vmatmul.bf16.gmra.mxu0 %v9441
        %v9928 = vpop.f32.mrf.mxu0
        %v9929 = vadd.f32 0.0, %v9928
        %v9930 = vpop.f32.mrf.mxu0
        %9931 = vdwg.mxu0
        %9932 = vmatpush.bf16.msra.mxu0 %v9742
        %9933 = vmatpush.bf16.msra.mxu0 %v9739
        %9934 = vmatpush.bf16.msra.mxu0 %v9736
        %9935 = vmatpush.bf16.msra.mxu0 %v9733
        %9936 = vmatpush.bf16.msra.mxu0 %v9730
        %9937 = vmatpush.bf16.msra.mxu0 %v9727
        %9938 = vmatpush.bf16.msra.mxu0 %v9724
        %9939 = vmatpush.bf16.msra.mxu0 %v9721
        %9940 = vmatmul.bf16.gmra.mxu0 %v9404
        %v9941 = vpop.f32.mrf.mxu0
        %v9942 = vadd.f32 %v9919, %v9941
        %v9943 = vpop.f32.mrf.mxu0
        %v9944 = vadd.f32 %v9921, %v9943
        %9945 = vmatmul.bf16.gmra.mxu0 %v9432
        %v9946 = vpop.f32.mrf.mxu0
        %v9947 = vadd.f32 %v9924, %v9946
        %v9948 = vpop.f32.mrf.mxu0
        %v9949 = vadd.f32 %v9926, %v9948
        %9950 = vmatmul.bf16.gmra.mxu0 %v9443
        %v9951 = vpop.f32.mrf.mxu0
        %v9952 = vadd.f32 %v9929, %v9951
        %v9953 = vpop.f32.mrf.mxu0
        %9954 = vdwg.mxu0
        %9955 = vmatpush.bf16.msra.mxu0 %v9766
        %9956 = vmatpush.bf16.msra.mxu0 %v9763
        %9957 = vmatpush.bf16.msra.mxu0 %v9760
        %9958 = vmatpush.bf16.msra.mxu0 %v9757
        %9959 = vmatpush.bf16.msra.mxu0 %v9754
        %9960 = vmatpush.bf16.msra.mxu0 %v9751
        %9961 = vmatpush.bf16.msra.mxu0 %v9748
        %9962 = vmatpush.bf16.msra.mxu0 %v9745
        %9963 = vmatmul.bf16.gmra.mxu0 %v9416
        %v9964 = vpop.f32.mrf.mxu0
        %v9965 = vadd.f32 %v9942, %v9964
        %v9966 = vpop.f32.mrf.mxu0
        %v9967 = vadd.f32 %v9944, %v9966
        %9968 = vmatmul.bf16.gmra.mxu0 %v9440
        %v9969 = vpop.f32.mrf.mxu0
        %v9970 = vadd.f32 %v9947, %v9969
        %v9971 = vpop.f32.mrf.mxu0
        %v9972 = vadd.f32 %v9949, %v9971
        %9973 = vmatmul.bf16.gmra.mxu0 %v9445
        %v9974 = vpop.f32.mrf.mxu0
        %v9975 = vadd.f32 %v9952, %v9974
        %v9976 = vpop.f32.mrf.mxu0
        %9977 = vdwg.mxu0
        %9978 = vmatpush.bf16.msra.mxu0 %v9719
        %9979 = vmatpush.bf16.msra.mxu0 %v9716
        %9980 = vmatpush.bf16.msra.mxu0 %v9713
        %9981 = vmatpush.bf16.msra.mxu0 %v9710
        %9982 = vmatpush.bf16.msra.mxu0 %v9707
        %9983 = vmatpush.bf16.msra.mxu0 %v9704
        %9984 = vmatpush.bf16.msra.mxu0 %v9701
        %9985 = vmatpush.bf16.msra.mxu0 %v9698
        %9986 = vmatmul.bf16.gmra.mxu0 %v9392
        %v9987 = vpop.f32.mrf.mxu0
        %v9988 = vadd.f32 0.0, %v9987
        %v9989 = vpop.f32.mrf.mxu0
        %v9990 = vadd.f32 0.0, %v9989
        %9991 = vmatmul.bf16.gmra.mxu0 %v9424
        %v9992 = vpop.f32.mrf.mxu0
        %v9993 = vadd.f32 0.0, %v9992
        %v9994 = vpop.f32.mrf.mxu0
        %v9995 = vadd.f32 0.0, %v9994
        %9996 = vmatmul.bf16.gmra.mxu0 %v9441
        %v9997 = vpop.f32.mrf.mxu0
        %v9998 = vadd.f32 0.0, %v9997
        %v9999 = vpop.f32.mrf.mxu0
        %10000 = vdwg.mxu0
        %10001 = vmatpush.bf16.msra.mxu0 %v9743
        %10002 = vmatpush.bf16.msra.mxu0 %v9740
        %10003 = vmatpush.bf16.msra.mxu0 %v9737
        %10004 = vmatpush.bf16.msra.mxu0 %v9734
        %10005 = vmatpush.bf16.msra.mxu0 %v9731
        %10006 = vmatpush.bf16.msra.mxu0 %v9728
        %10007 = vmatpush.bf16.msra.mxu0 %v9725
        %10008 = vmatpush.bf16.msra.mxu0 %v9722
        %10009 = vmatmul.bf16.gmra.mxu0 %v9404
        %v10010 = vpop.f32.mrf.mxu0
        %v10011 = vadd.f32 %v9988, %v10010
        %v10012 = vpop.f32.mrf.mxu0
        %v10013 = vadd.f32 %v9990, %v10012
        %10014 = vmatmul.bf16.gmra.mxu0 %v9432
        %v10015 = vpop.f32.mrf.mxu0
        %v10016 = vadd.f32 %v9993, %v10015
        %v10017 = vpop.f32.mrf.mxu0
        %v10018 = vadd.f32 %v9995, %v10017
        %10019 = vmatmul.bf16.gmra.mxu0 %v9443
        %v10020 = vpop.f32.mrf.mxu0
        %v10021 = vadd.f32 %v9998, %v10020
        %v10022 = vpop.f32.mrf.mxu0
        %10023 = vdwg.mxu0
        %10024 = vmatpush.bf16.msra.mxu0 %v9767
        %10025 = vmatpush.bf16.msra.mxu0 %v9764
        %10026 = vmatpush.bf16.msra.mxu0 %v9761
        %10027 = vmatpush.bf16.msra.mxu0 %v9758
        %10028 = vmatpush.bf16.msra.mxu0 %v9755
        %10029 = vmatpush.bf16.msra.mxu0 %v9752
        %10030 = vmatpush.bf16.msra.mxu0 %v9749
        %10031 = vmatpush.bf16.msra.mxu0 %v9746
        %10032 = vmatmul.bf16.gmra.mxu0 %v9416
        %v10033 = vpop.f32.mrf.mxu0
        %v10034 = vadd.f32 %v10011, %v10033
        %v10035 = vpop.f32.mrf.mxu0
        %v10036 = vadd.f32 %v10013, %v10035
        %10037 = vmatmul.bf16.gmra.mxu0 %v9440
        %v10038 = vpop.f32.mrf.mxu0
        %v10039 = vadd.f32 %v10016, %v10038
        %v10040 = vpop.f32.mrf.mxu0
        %v10041 = vadd.f32 %v10018, %v10040
        %10042 = vmatmul.bf16.gmra.mxu0 %v9445
        %v10043 = vpop.f32.mrf.mxu0
        %v10044 = vadd.f32 %v10021, %v10043
        %v10045 = vpop.f32.mrf.mxu0
        %10046 = vdwg.mxu0
        %v10143 = vunpack.c.l.b16 %v9176
        %v10144 = vunpack.c.h.b16 %v9176
        %v10145 = vunpack.c.l.b16 %v9177
        %v10146 = vunpack.c.l.b16 %v9178
        %v10147 = vunpack.c.h.b16 %v9178
        %v10148 = vunpack.c.l.b16 %v9179
        %v10149 = vunpack.c.l.b16 %v9180
        %v10150 = vunpack.c.h.b16 %v9180
        %v10151 = vunpack.c.l.b16 %v9181
        %v10152 = vunpack.c.l.b16 %v9182
        %v10153 = vunpack.c.h.b16 %v9182
        %v10154 = vunpack.c.l.b16 %v9183
        %v10155 = vunpack.c.l.b16 %v9184
        %v10156 = vunpack.c.h.b16 %v9184
        %v10157 = vunpack.c.l.b16 %v9185
        %v10158 = vunpack.c.l.b16 %v9186
        %v10159 = vunpack.c.h.b16 %v9186
        %v10160 = vunpack.c.l.b16 %v9187
        %v10161 = vunpack.c.l.b16 %v9188
        %v10162 = vunpack.c.h.b16 %v9188
        %v10163 = vunpack.c.l.b16 %v9189
        %v10164 = vunpack.c.l.b16 %v9190
        %v10165 = vunpack.c.h.b16 %v9190
        %v10166 = vunpack.c.l.b16 %v9191
        %v10167 = vunpack.c.l.b16 %v9192
        %v10168 = vunpack.c.h.b16 %v9192
        %v10169 = vunpack.c.l.b16 %v9193
        %v10170 = vunpack.c.l.b16 %v9194
        %v10171 = vunpack.c.h.b16 %v9194
        %v10172 = vunpack.c.l.b16 %v9195
        %v10173 = vunpack.c.l.b16 %v9196
        %v10174 = vunpack.c.h.b16 %v9196
        %v10175 = vunpack.c.l.b16 %v9197
        %v10176 = vunpack.c.l.b16 %v9198
        %v10177 = vunpack.c.h.b16 %v9198
        %v10178 = vunpack.c.l.b16 %v9199
        %v10179 = vunpack.c.l.b16 %v9200
        %v10180 = vunpack.c.h.b16 %v9200
        %v10181 = vunpack.c.l.b16 %v9201
        %v10182 = vunpack.c.l.b16 %v9202
        %v10183 = vunpack.c.h.b16 %v9202
        %v10184 = vunpack.c.l.b16 %v9203
        %v10185 = vunpack.c.l.b16 %v9204
        %v10186 = vunpack.c.h.b16 %v9204
        %v10187 = vunpack.c.l.b16 %v9205
        %v10188 = vunpack.c.l.b16 %v9206
        %v10189 = vunpack.c.h.b16 %v9206
        %v10190 = vunpack.c.l.b16 %v9207
        %v10191 = vunpack.c.l.b16 %v9208
        %v10192 = vunpack.c.h.b16 %v9208
        %v10193 = vunpack.c.l.b16 %v9209
        %v10194 = vunpack.c.l.b16 %v9210
        %v10195 = vunpack.c.h.b16 %v9210
        %v10196 = vunpack.c.l.b16 %v9211
        %v10197 = vunpack.c.l.b16 %v9212
        %v10198 = vunpack.c.h.b16 %v9212
        %v10199 = vunpack.c.l.b16 %v9213
        %v10200 = vunpack.c.l.b16 %v9214
        %v10201 = vunpack.c.h.b16 %v9214
        %v10202 = vunpack.c.l.b16 %v9215
        %v10203 = vunpack.c.l.b16 %v9216
        %v10204 = vunpack.c.h.b16 %v9216
        %v10205 = vunpack.c.l.b16 %v9217
        %v10206 = vunpack.c.l.b16 %v9218
        %v10207 = vunpack.c.h.b16 %v9218
        %v10208 = vunpack.c.l.b16 %v9219
        %v10209 = vunpack.c.l.b16 %v9220
        %v10210 = vunpack.c.h.b16 %v9220
        %v10211 = vunpack.c.l.b16 %v9221
        %v10212 = vunpack.c.l.b16 %v9222
        %v10213 = vunpack.c.h.b16 %v9222
        %v10214 = vunpack.c.l.b16 %v9223
        %v10215 = vunpack.c.l.b16 %v9224
        %v10216 = vunpack.c.h.b16 %v9224
        %v10217 = vunpack.c.l.b16 %v9225
        %v10218 = vunpack.c.l.b16 %v9226
        %v10219 = vunpack.c.h.b16 %v9226
        %v10220 = vunpack.c.l.b16 %v9227
        %v10221 = vunpack.c.l.b16 %v9228
        %v10222 = vunpack.c.h.b16 %v9228
        %v10223 = vunpack.c.l.b16 %v9229
        %v10224 = vunpack.c.l.b16 %v9230
        %v10225 = vunpack.c.h.b16 %v9230
        %v10226 = vunpack.c.l.b16 %v9231
        %v10227 = vunpack.c.l.b16 %v9232
        %v10228 = vunpack.c.h.b16 %v9232
        %v10229 = vunpack.c.l.b16 %v9233
        %v10230 = vunpack.c.l.b16 %v9234
        %v10231 = vunpack.c.h.b16 %v9234
        %v10232 = vunpack.c.l.b16 %v9235
        %v10233 = vunpack.c.l.b16 %v9236
        %v10234 = vunpack.c.h.b16 %v9236
        %v10235 = vunpack.c.l.b16 %v9237
        %v10236 = vunpack.c.l.b16 %v9238
        %v10237 = vunpack.c.h.b16 %v9238
        %v10238 = vunpack.c.l.b16 %v9239
        %v10239 = vunpack.c.l.b16 %v9240
        %v10240 = vunpack.c.h.b16 %v9240
        %v10241 = vunpack.c.l.b16 %v9241
        %v10242 = vunpack.c.l.b16 %v9242
        %v10243 = vunpack.c.h.b16 %v9242
        %v10244 = vunpack.c.l.b16 %v9243
        %v10245 = vunpack.c.l.b16 %v9244
        %v10246 = vunpack.c.h.b16 %v9244
        %v10247 = vunpack.c.l.b16 %v9245
        %v10248 = vunpack.c.l.b16 %v9246
        %v10249 = vunpack.c.h.b16 %v9246
        %v10250 = vunpack.c.l.b16 %v9247
        %v10251 = vunpack.c.l.b16 %v9248
        %v10252 = vunpack.c.h.b16 %v9248
        %v10253 = vunpack.c.l.b16 %v9249
        %v10254 = vunpack.c.l.b16 %v9250
        %v10255 = vunpack.c.h.b16 %v9250
        %v10256 = vunpack.c.l.b16 %v9251
        %v10257 = vunpack.c.l.b16 %v9252
        %v10258 = vunpack.c.h.b16 %v9252
        %v10259 = vunpack.c.l.b16 %v9253
        %v10260 = vunpack.c.l.b16 %v9254
        %v10261 = vunpack.c.h.b16 %v9254
        %v10262 = vunpack.c.l.b16 %v9255
        %v10263 = vunpack.c.l.b16 %v9256
        %v10264 = vunpack.c.h.b16 %v9256
        %v10265 = vunpack.c.l.b16 %v9257
        %v10266 = vunpack.c.l.b16 %v9258
        %v10267 = vunpack.c.h.b16 %v9258
        %v10268 = vunpack.c.l.b16 %v9259
        %v10269 = vunpack.c.l.b16 %v9260
        %v10270 = vunpack.c.h.b16 %v9260
        %v10271 = vunpack.c.l.b16 %v9261
        %v10272 = vunpack.c.l.b16 %v9262
        %v10273 = vunpack.c.h.b16 %v9262
        %v10274 = vunpack.c.l.b16 %v9263
        %v10275 = vunpack.c.l.b16 %v9264
        %v10276 = vunpack.c.h.b16 %v9264
        %v10277 = vunpack.c.l.b16 %v9265
        %v10278 = vunpack.c.l.b16 %v9266
        %v10279 = vunpack.c.h.b16 %v9266
        %v10280 = vunpack.c.l.b16 %v9267
        %v10281 = vunpack.c.l.b16 %v9268
        %v10282 = vunpack.c.h.b16 %v9268
        %v10283 = vunpack.c.l.b16 %v9269
        %v10284 = vunpack.c.l.b16 %v9270
        %v10285 = vunpack.c.h.b16 %v9270
        %v10286 = vunpack.c.l.b16 %v9271
        %v10287 = vpack.c.b16 %v10146, %v10143
        %v10288 = vpack.c.b16 %v10147, %v10144
        %v10289 = vpack.c.b16 %v10148, %v10145
        %v10290 = vpack.c.b16 %v10152, %v10149
        %v10291 = vpack.c.b16 %v10153, %v10150
        %v10292 = vpack.c.b16 %v10154, %v10151
        %v10293 = vpack.c.b16 %v10158, %v10155
        %v10294 = vpack.c.b16 %v10159, %v10156
        %v10295 = vpack.c.b16 %v10160, %v10157
        %v10296 = vpack.c.b16 %v10164, %v10161
        %v10297 = vpack.c.b16 %v10165, %v10162
        %v10298 = vpack.c.b16 %v10166, %v10163
        %v10299 = vpack.c.b16 %v10170, %v10167
        %v10300 = vpack.c.b16 %v10171, %v10168
        %v10301 = vpack.c.b16 %v10172, %v10169
        %v10302 = vpack.c.b16 %v10176, %v10173
        %v10303 = vpack.c.b16 %v10177, %v10174
        %v10304 = vpack.c.b16 %v10178, %v10175
        %v10305 = vpack.c.b16 %v10182, %v10179
        %v10306 = vpack.c.b16 %v10183, %v10180
        %v10307 = vpack.c.b16 %v10184, %v10181
        %v10308 = vpack.c.b16 %v10188, %v10185
        %v10309 = vpack.c.b16 %v10189, %v10186
        %v10310 = vpack.c.b16 %v10190, %v10187
        %v10311 = vpack.c.b16 %v10194, %v10191
        %v10312 = vpack.c.b16 %v10195, %v10192
        %v10313 = vpack.c.b16 %v10196, %v10193
        %v10314 = vpack.c.b16 %v10200, %v10197
        %v10315 = vpack.c.b16 %v10201, %v10198
        %v10316 = vpack.c.b16 %v10202, %v10199
        %v10317 = vpack.c.b16 %v10206, %v10203
        %v10318 = vpack.c.b16 %v10207, %v10204
        %v10319 = vpack.c.b16 %v10208, %v10205
        %v10320 = vpack.c.b16 %v10212, %v10209
        %v10321 = vpack.c.b16 %v10213, %v10210
        %v10322 = vpack.c.b16 %v10214, %v10211
        %v10323 = vpack.c.b16 %v10218, %v10215
        %v10324 = vpack.c.b16 %v10219, %v10216
        %v10325 = vpack.c.b16 %v10220, %v10217
        %v10326 = vpack.c.b16 %v10224, %v10221
        %v10327 = vpack.c.b16 %v10225, %v10222
        %v10328 = vpack.c.b16 %v10226, %v10223
        %v10329 = vpack.c.b16 %v10230, %v10227
        %v10330 = vpack.c.b16 %v10231, %v10228
        %v10331 = vpack.c.b16 %v10232, %v10229
        %v10332 = vpack.c.b16 %v10236, %v10233
        %v10333 = vpack.c.b16 %v10237, %v10234
        %v10334 = vpack.c.b16 %v10238, %v10235
        %v10335 = vpack.c.b16 %v10242, %v10239
        %v10336 = vpack.c.b16 %v10243, %v10240
        %v10337 = vpack.c.b16 %v10244, %v10241
        %v10338 = vpack.c.b16 %v10248, %v10245
        %v10339 = vpack.c.b16 %v10249, %v10246
        %v10340 = vpack.c.b16 %v10250, %v10247
        %v10341 = vpack.c.b16 %v10254, %v10251
        %v10342 = vpack.c.b16 %v10255, %v10252
        %v10343 = vpack.c.b16 %v10256, %v10253
        %v10344 = vpack.c.b16 %v10260, %v10257
        %v10345 = vpack.c.b16 %v10261, %v10258
        %v10346 = vpack.c.b16 %v10262, %v10259
        %v10347 = vpack.c.b16 %v10266, %v10263
        %v10348 = vpack.c.b16 %v10267, %v10264
        %v10349 = vpack.c.b16 %v10268, %v10265
        %v10350 = vpack.c.b16 %v10272, %v10269
        %v10351 = vpack.c.b16 %v10273, %v10270
        %v10352 = vpack.c.b16 %v10274, %v10271
        %v10353 = vpack.c.b16 %v10278, %v10275
        %v10354 = vpack.c.b16 %v10279, %v10276
        %v10355 = vpack.c.b16 %v10280, %v10277
        %v10356 = vpack.c.b16 %v10284, %v10281
        %v10357 = vpack.c.b16 %v10285, %v10282
        %v10358 = vpack.c.b16 %v10286, %v10283
        %10431 = vmatpush.bf16.msra.mxu0 %v10308
        %10432 = vmatpush.bf16.msra.mxu0 %v10305
        %10433 = vmatpush.bf16.msra.mxu0 %v10302
        %10434 = vmatpush.bf16.msra.mxu0 %v10299
        %10435 = vmatpush.bf16.msra.mxu0 %v10296
        %10436 = vmatpush.bf16.msra.mxu0 %v10293
        %10437 = vmatpush.bf16.msra.mxu0 %v10290
        %10438 = vmatpush.bf16.msra.mxu0 %v10287
        %10439 = vmatmul.bf16.gmra.mxu0 %v9167
        %v10440 = vpop.f32.mrf.mxu0
        %v10441 = vadd.f32 %v9896, %v10440
        %v10442 = vpop.f32.mrf.mxu0
        %v10443 = vadd.f32 %v9898, %v10442
        %10444 = vmatmul.bf16.gmra.mxu0 %v9170
        %v10445 = vpop.f32.mrf.mxu0
        %v10446 = vadd.f32 %v9901, %v10445
        %v10447 = vpop.f32.mrf.mxu0
        %v10448 = vadd.f32 %v9903, %v10447
        %10449 = vmatmul.bf16.gmra.mxu0 %v9173
        %v10450 = vpop.f32.mrf.mxu0
        %v10451 = vadd.f32 %v9906, %v10450
        %v10452 = vpop.f32.mrf.mxu0
        %10453 = vdwg.mxu0
        %10454 = vmatpush.bf16.msra.mxu0 %v10332
        %10455 = vmatpush.bf16.msra.mxu0 %v10329
        %10456 = vmatpush.bf16.msra.mxu0 %v10326
        %10457 = vmatpush.bf16.msra.mxu0 %v10323
        %10458 = vmatpush.bf16.msra.mxu0 %v10320
        %10459 = vmatpush.bf16.msra.mxu0 %v10317
        %10460 = vmatpush.bf16.msra.mxu0 %v10314
        %10461 = vmatpush.bf16.msra.mxu0 %v10311
        %10462 = vmatmul.bf16.gmra.mxu0 %v9168
        %v10463 = vpop.f32.mrf.mxu0
        %v10464 = vadd.f32 %v10441, %v10463
        %v10465 = vpop.f32.mrf.mxu0
        %v10466 = vadd.f32 %v10443, %v10465
        %10467 = vmatmul.bf16.gmra.mxu0 %v9171
        %v10468 = vpop.f32.mrf.mxu0
        %v10469 = vadd.f32 %v10446, %v10468
        %v10470 = vpop.f32.mrf.mxu0
        %v10471 = vadd.f32 %v10448, %v10470
        %10472 = vmatmul.bf16.gmra.mxu0 %v9174
        %v10473 = vpop.f32.mrf.mxu0
        %v10474 = vadd.f32 %v10451, %v10473
        %v10475 = vpop.f32.mrf.mxu0
        %10476 = vdwg.mxu0
        %10477 = vmatpush.bf16.msra.mxu0 %v10356
        %10478 = vmatpush.bf16.msra.mxu0 %v10353
        %10479 = vmatpush.bf16.msra.mxu0 %v10350
        %10480 = vmatpush.bf16.msra.mxu0 %v10347
        %10481 = vmatpush.bf16.msra.mxu0 %v10344
        %10482 = vmatpush.bf16.msra.mxu0 %v10341
        %10483 = vmatpush.bf16.msra.mxu0 %v10338
        %10484 = vmatpush.bf16.msra.mxu0 %v10335
        %10485 = vmatmul.bf16.gmra.mxu0 %v9169
        %v10486 = vpop.f32.mrf.mxu0
        %v10487 = vadd.f32 %v10464, %v10486
        %v10488 = vpop.f32.mrf.mxu0
        %v10489 = vadd.f32 %v10466, %v10488
        %10490 = vmatmul.bf16.gmra.mxu0 %v9172
        %v10491 = vpop.f32.mrf.mxu0
        %v10492 = vadd.f32 %v10469, %v10491
        %v10493 = vpop.f32.mrf.mxu0
        %v10494 = vadd.f32 %v10471, %v10493
        %10495 = vmatmul.bf16.gmra.mxu0 %v9175
        %v10496 = vpop.f32.mrf.mxu0
        %v10497 = vadd.f32 %v10474, %v10496
        %v10498 = vpop.f32.mrf.mxu0
        %10499 = vdwg.mxu0
        %10500 = vmatpush.bf16.msra.mxu0 %v10309
        %10501 = vmatpush.bf16.msra.mxu0 %v10306
        %10502 = vmatpush.bf16.msra.mxu0 %v10303
        %10503 = vmatpush.bf16.msra.mxu0 %v10300
        %10504 = vmatpush.bf16.msra.mxu0 %v10297
        %10505 = vmatpush.bf16.msra.mxu0 %v10294
        %10506 = vmatpush.bf16.msra.mxu0 %v10291
        %10507 = vmatpush.bf16.msra.mxu0 %v10288
        %10508 = vmatmul.bf16.gmra.mxu0 %v9167
        %v10509 = vpop.f32.mrf.mxu0
        %v10510 = vadd.f32 %v9965, %v10509
        %v10511 = vpop.f32.mrf.mxu0
        %v10512 = vadd.f32 %v9967, %v10511
        %10513 = vmatmul.bf16.gmra.mxu0 %v9170
        %v10514 = vpop.f32.mrf.mxu0
        %v10515 = vadd.f32 %v9970, %v10514
        %v10516 = vpop.f32.mrf.mxu0
        %v10517 = vadd.f32 %v9972, %v10516
        %10518 = vmatmul.bf16.gmra.mxu0 %v9173
        %v10519 = vpop.f32.mrf.mxu0
        %v10520 = vadd.f32 %v9975, %v10519
        %v10521 = vpop.f32.mrf.mxu0
        %10522 = vdwg.mxu0
        %10523 = vmatpush.bf16.msra.mxu0 %v10333
        %10524 = vmatpush.bf16.msra.mxu0 %v10330
        %10525 = vmatpush.bf16.msra.mxu0 %v10327
        %10526 = vmatpush.bf16.msra.mxu0 %v10324
        %10527 = vmatpush.bf16.msra.mxu0 %v10321
        %10528 = vmatpush.bf16.msra.mxu0 %v10318
        %10529 = vmatpush.bf16.msra.mxu0 %v10315
        %10530 = vmatpush.bf16.msra.mxu0 %v10312
        %10531 = vmatmul.bf16.gmra.mxu0 %v9168
        %v10532 = vpop.f32.mrf.mxu0
        %v10533 = vadd.f32 %v10510, %v10532
        %v10534 = vpop.f32.mrf.mxu0
        %v10535 = vadd.f32 %v10512, %v10534
        %10536 = vmatmul.bf16.gmra.mxu0 %v9171
        %v10537 = vpop.f32.mrf.mxu0
        %v10538 = vadd.f32 %v10515, %v10537
        %v10539 = vpop.f32.mrf.mxu0
        %v10540 = vadd.f32 %v10517, %v10539
        %10541 = vmatmul.bf16.gmra.mxu0 %v9174
        %v10542 = vpop.f32.mrf.mxu0
        %v10543 = vadd.f32 %v10520, %v10542
        %v10544 = vpop.f32.mrf.mxu0
        %10545 = vdwg.mxu0
        %10546 = vmatpush.bf16.msra.mxu0 %v10357
        %10547 = vmatpush.bf16.msra.mxu0 %v10354
        %10548 = vmatpush.bf16.msra.mxu0 %v10351
        %10549 = vmatpush.bf16.msra.mxu0 %v10348
        %10550 = vmatpush.bf16.msra.mxu0 %v10345
        %10551 = vmatpush.bf16.msra.mxu0 %v10342
        %10552 = vmatpush.bf16.msra.mxu0 %v10339
        %10553 = vmatpush.bf16.msra.mxu0 %v10336
        %10554 = vmatmul.bf16.gmra.mxu0 %v9169
        %v10555 = vpop.f32.mrf.mxu0
        %v10556 = vadd.f32 %v10533, %v10555
        %v10557 = vpop.f32.mrf.mxu0
        %v10558 = vadd.f32 %v10535, %v10557
        %10559 = vmatmul.bf16.gmra.mxu0 %v9172
        %v10560 = vpop.f32.mrf.mxu0
        %v10561 = vadd.f32 %v10538, %v10560
        %v10562 = vpop.f32.mrf.mxu0
        %v10563 = vadd.f32 %v10540, %v10562
        %10564 = vmatmul.bf16.gmra.mxu0 %v9175
        %v10565 = vpop.f32.mrf.mxu0
        %v10566 = vadd.f32 %v10543, %v10565
        %v10567 = vpop.f32.mrf.mxu0
        %10568 = vdwg.mxu0
        %10569 = vmatpush.bf16.msra.mxu0 %v10310
        %10570 = vmatpush.bf16.msra.mxu0 %v10307
        %10571 = vmatpush.bf16.msra.mxu0 %v10304
        %10572 = vmatpush.bf16.msra.mxu0 %v10301
        %10573 = vmatpush.bf16.msra.mxu0 %v10298
        %10574 = vmatpush.bf16.msra.mxu0 %v10295
        %10575 = vmatpush.bf16.msra.mxu0 %v10292
        %10576 = vmatpush.bf16.msra.mxu0 %v10289
        %10577 = vmatmul.bf16.gmra.mxu0 %v9167
        %v10578 = vpop.f32.mrf.mxu0
        %v10579 = vadd.f32 %v10034, %v10578
        %v10580 = vpop.f32.mrf.mxu0
        %v10581 = vadd.f32 %v10036, %v10580
        %10582 = vmatmul.bf16.gmra.mxu0 %v9170
        %v10583 = vpop.f32.mrf.mxu0
        %v10584 = vadd.f32 %v10039, %v10583
        %v10585 = vpop.f32.mrf.mxu0
        %v10586 = vadd.f32 %v10041, %v10585
        %10587 = vmatmul.bf16.gmra.mxu0 %v9173
        %v10588 = vpop.f32.mrf.mxu0
        %v10589 = vadd.f32 %v10044, %v10588
        %v10590 = vpop.f32.mrf.mxu0
        %10591 = vdwg.mxu0
        %10592 = vmatpush.bf16.msra.mxu0 %v10334
        %10593 = vmatpush.bf16.msra.mxu0 %v10331
        %10594 = vmatpush.bf16.msra.mxu0 %v10328
        %10595 = vmatpush.bf16.msra.mxu0 %v10325
        %10596 = vmatpush.bf16.msra.mxu0 %v10322
        %10597 = vmatpush.bf16.msra.mxu0 %v10319
        %10598 = vmatpush.bf16.msra.mxu0 %v10316
        %10599 = vmatpush.bf16.msra.mxu0 %v10313
        %10600 = vmatmul.bf16.gmra.mxu0 %v9168
        %v10601 = vpop.f32.mrf.mxu0
        %v10602 = vadd.f32 %v10579, %v10601
        %v10603 = vpop.f32.mrf.mxu0
        %v10604 = vadd.f32 %v10581, %v10603
        %10605 = vmatmul.bf16.gmra.mxu0 %v9171
        %v10606 = vpop.f32.mrf.mxu0
        %v10607 = vadd.f32 %v10584, %v10606
        %v10608 = vpop.f32.mrf.mxu0
        %v10609 = vadd.f32 %v10586, %v10608
        %10610 = vmatmul.bf16.gmra.mxu0 %v9174
        %v10611 = vpop.f32.mrf.mxu0
        %v10612 = vadd.f32 %v10589, %v10611
        %v10613 = vpop.f32.mrf.mxu0
        %10614 = vdwg.mxu0
        %10615 = vmatpush.bf16.msra.mxu0 %v10358
        %10616 = vmatpush.bf16.msra.mxu0 %v10355
        %10617 = vmatpush.bf16.msra.mxu0 %v10352
        %10618 = vmatpush.bf16.msra.mxu0 %v10349
        %10619 = vmatpush.bf16.msra.mxu0 %v10346
        %10620 = vmatpush.bf16.msra.mxu0 %v10343
        %10621 = vmatpush.bf16.msra.mxu0 %v10340
        %10622 = vmatpush.bf16.msra.mxu0 %v10337
        %10623 = vmatmul.bf16.gmra.mxu0 %v9169
        %v10624 = vpop.f32.mrf.mxu0
        %v10625 = vadd.f32 %v10602, %v10624
        %v10626 = vpop.f32.mrf.mxu0
        %v10627 = vadd.f32 %v10604, %v10626
        %10628 = vmatmul.bf16.gmra.mxu0 %v9172
        %v10629 = vpop.f32.mrf.mxu0
        %v10630 = vadd.f32 %v10607, %v10629
        %v10631 = vpop.f32.mrf.mxu0
        %v10632 = vadd.f32 %v10609, %v10631
        %10633 = vmatmul.bf16.gmra.mxu0 %v9175
        %v10634 = vpop.f32.mrf.mxu0
        %v10635 = vadd.f32 %v10612, %v10634
        %v10636 = vpop.f32.mrf.mxu0
        %10637 = vdwg.mxu0
        %v10638 = vld [vmem:[#allocation3 + $0x30] sm:$0xfe]
        %v10639 = vld [vmem:[#allocation3 + $0x38] sm:$0xfe]
        %v10640 = vld [vmem:[#allocation3 + $0x40] sm:$0xfe]
        %v10641 = vld [vmem:[#allocation3 + $0x48] sm:$0xff]
        %v10642 = vld [vmem:[#allocation3 + $0x50] sm:$0xff]
        %v10643 = vld [vmem:[#allocation3 + $0x58] sm:$0xff]
        %v10644 = vld [vmem:[#allocation3 + $0x60] sm:$0xff]
        %v10645 = vld [vmem:[#allocation3 + $0x68] sm:$0xff]
        %v10646 = vld [vmem:[#allocation3 + $0x70] sm:$0xff]
        %v10647 = vld [vmem:[#allocation3 + $0x78] sm:$0xff]
        %v10648 = vld [vmem:[#allocation3 + $0x80] sm:$0xff]
        %v10649 = vld [vmem:[#allocation3 + $0x88] sm:$0xff]
        %v10650 = vld [vmem:[#allocation3 + $0x90] sm:$0x3]
        %v10651 = vld [vmem:[#allocation3 + $0x98] sm:$0x3]
        %v10652 = vld [vmem:[#allocation3 + $0xa0] sm:$0x3]
        %v10653 = vpack.c.bf16 %v10641, %v10638
        %v10654 = vpack.c.bf16 %v10642, %v10639
        %v10655 = vpack.c.bf16 %v10643, %v10640
        %v10656 = vpack.c.bf16 %v10647, %v10644
        %v10657 = vpack.c.bf16 %v10648, %v10645
        %v10658 = vpack.c.bf16 %v10649, %v10646
        %v10659 = vpack.c.bf16 %v10650, %v10650
        %v10660 = vpack.c.bf16 %v10651, %v10651
        %v10661 = vpack.c.bf16 %v10652, %v10652
        %s10662 = scalar_lea.vmem %s7, 1152
        %v10663 = vld [vmem:[%s10662] sm:$0xff]
        %v10664 = vld [vmem:[%s10662 + $0x8] sm:$0xf]
        %v10665 = vld [vmem:[%s10662 + $0xc] sm:$0xff]
        %v10666 = vld [vmem:[%s10662 + $0x14] sm:$0xf]
        %v10667 = vld [vmem:[%s10662 + $0x18] sm:$0xff]
        %v10668 = vld [vmem:[%s10662 + $0x20] sm:$0xf]
        %v10669 = vld [vmem:[%s10662 + $0x24] sm:$0xff]
        %v10670 = vld [vmem:[%s10662 + $0x2c] sm:$0xf]
        %v10671 = vld [vmem:[%s10662 + $0x30] sm:$0xff]
        %v10672 = vld [vmem:[%s10662 + $0x38] sm:$0xf]
        %v10673 = vld [vmem:[%s10662 + $0x3c] sm:$0xff]
        %v10674 = vld [vmem:[%s10662 + $0x44] sm:$0xf]
        %v10675 = vld [vmem:[%s10662 + $0x48] sm:$0xff]
        %v10676 = vld [vmem:[%s10662 + $0x50] sm:$0xf]
        %v10677 = vld [vmem:[%s10662 + $0x54] sm:$0xff]
        %v10678 = vld [vmem:[%s10662 + $0x5c] sm:$0xf]
        %v10679 = vld [vmem:[%s10662 + $0x60] sm:$0xff]
        %v10680 = vld [vmem:[%s10662 + $0x68] sm:$0xf]
        %v10681 = vld [vmem:[%s10662 + $0x6c] sm:$0xff]
        %v10682 = vld [vmem:[%s10662 + $0x74] sm:$0xf]
        %v10683 = vld [vmem:[%s10662 + $0x78] sm:$0xff]
        %v10684 = vld [vmem:[%s10662 + $0x80] sm:$0xf]
        %v10685 = vld [vmem:[%s10662 + $0x84] sm:$0xff]
        %v10686 = vld [vmem:[%s10662 + $0x8c] sm:$0xf]
        %v10687 = vld [vmem:[%s10662 + $0x90] sm:$0xff]
        %v10688 = vld [vmem:[%s10662 + $0x98] sm:$0xf]
        %v10689 = vld [vmem:[%s10662 + $0x9c] sm:$0xff]
        %v10690 = vld [vmem:[%s10662 + $0xa4] sm:$0xf]
        %v10691 = vld [vmem:[%s10662 + $0xa8] sm:$0xff]
        %v10692 = vld [vmem:[%s10662 + $0xb0] sm:$0xf]
        %v10693 = vld [vmem:[%s10662 + $0xb4] sm:$0xff]
        %v10694 = vld [vmem:[%s10662 + $0xbc] sm:$0xf]
        %v10695 = vld [vmem:[%s10662 + $0xc0] sm:$0xff]
        %v10696 = vld [vmem:[%s10662 + $0xc8] sm:$0xf]
        %v10697 = vld [vmem:[%s10662 + $0xcc] sm:$0xff]
        %v10698 = vld [vmem:[%s10662 + $0xd4] sm:$0xf]
        %v10699 = vld [vmem:[%s10662 + $0xd8] sm:$0xff]
        %v10700 = vld [vmem:[%s10662 + $0xe0] sm:$0xf]
        %v10701 = vld [vmem:[%s10662 + $0xe4] sm:$0xff]
        %v10702 = vld [vmem:[%s10662 + $0xec] sm:$0xf]
        %v10703 = vld [vmem:[%s10662 + $0xf0] sm:$0xff]
        %v10704 = vld [vmem:[%s10662 + $0xf8] sm:$0xf]
        %v10705 = vld [vmem:[%s10662 + $0xfc] sm:$0xff]
        %v10706 = vld [vmem:[%s10662 + $0x104] sm:$0xf]
        %v10707 = vld [vmem:[%s10662 + $0x108] sm:$0xff]
        %v10708 = vld [vmem:[%s10662 + $0x110] sm:$0xf]
        %v10709 = vld [vmem:[%s10662 + $0x114] sm:$0xff]
        %v10710 = vld [vmem:[%s10662 + $0x11c] sm:$0xf]
        %v10711 = vld [vmem:[%s10662 + $0x120] sm:$0xff]
        %v10712 = vld [vmem:[%s10662 + $0x128] sm:$0xf]
        %v10713 = vld [vmem:[%s10662 + $0x12c] sm:$0xff]
        %v10714 = vld [vmem:[%s10662 + $0x134] sm:$0xf]
        %v10715 = vld [vmem:[%s10662 + $0x138] sm:$0xff]
        %v10716 = vld [vmem:[%s10662 + $0x140] sm:$0xf]
        %v10717 = vld [vmem:[%s10662 + $0x144] sm:$0xff]
        %v10718 = vld [vmem:[%s10662 + $0x14c] sm:$0xf]
        %v10719 = vld [vmem:[%s10662 + $0x150] sm:$0xff]
        %v10720 = vld [vmem:[%s10662 + $0x158] sm:$0xf]
        %v10721 = vld [vmem:[%s10662 + $0x15c] sm:$0xff]
        %v10722 = vld [vmem:[%s10662 + $0x164] sm:$0xf]
        %v10723 = vld [vmem:[%s10662 + $0x168] sm:$0xff]
        %v10724 = vld [vmem:[%s10662 + $0x170] sm:$0xf]
        %v10725 = vld [vmem:[%s10662 + $0x174] sm:$0xff]
        %v10726 = vld [vmem:[%s10662 + $0x17c] sm:$0xf]
        %v10727 = vld [vmem:[%s10662 + $0x180] sm:$0xff]
        %v10728 = vld [vmem:[%s10662 + $0x188] sm:$0xf]
        %v10729 = vld [vmem:[%s10662 + $0x18c] sm:$0xff]
        %v10730 = vld [vmem:[%s10662 + $0x194] sm:$0xf]
        %v10731 = vld [vmem:[%s10662 + $0x198] sm:$0xff]
        %v10732 = vld [vmem:[%s10662 + $0x1a0] sm:$0xf]
        %v10733 = vld [vmem:[%s10662 + $0x1a4] sm:$0xff]
        %v10734 = vld [vmem:[%s10662 + $0x1ac] sm:$0xf]
        %v10735 = vld [vmem:[%s10662 + $0x1b0] sm:$0xff]
        %v10736 = vld [vmem:[%s10662 + $0x1b8] sm:$0xf]
        %v10737 = vld [vmem:[%s10662 + $0x1bc] sm:$0xff]
        %v10738 = vld [vmem:[%s10662 + $0x1c4] sm:$0xf]
        %v10739 = vld [vmem:[%s10662 + $0x1c8] sm:$0xff]
        %v10740 = vld [vmem:[%s10662 + $0x1d0] sm:$0xf]
        %v10741 = vld [vmem:[%s10662 + $0x1d4] sm:$0xff]
        %v10742 = vld [vmem:[%s10662 + $0x1dc] sm:$0xf]
        %v10743 = vld [vmem:[%s10662 + $0x1e0] sm:$0xff]
        %v10744 = vld [vmem:[%s10662 + $0x1e8] sm:$0xf]
        %v10745 = vld [vmem:[%s10662 + $0x1ec] sm:$0xff]
        %v10746 = vld [vmem:[%s10662 + $0x1f4] sm:$0xf]
        %v10747 = vld [vmem:[%s10662 + $0x1f8] sm:$0xff]
        %v10748 = vld [vmem:[%s10662 + $0x200] sm:$0xf]
        %v10749 = vld [vmem:[%s10662 + $0x204] sm:$0xff]
        %v10750 = vld [vmem:[%s10662 + $0x20c] sm:$0xf]
        %v10751 = vld [vmem:[%s10662 + $0x210] sm:$0xff]
        %v10752 = vld [vmem:[%s10662 + $0x218] sm:$0xf]
        %v10753 = vld [vmem:[%s10662 + $0x21c] sm:$0xff]
        %v10754 = vld [vmem:[%s10662 + $0x224] sm:$0xf]
        %v10755 = vld [vmem:[%s10662 + $0x228] sm:$0xff]
        %v10756 = vld [vmem:[%s10662 + $0x230] sm:$0xf]
        %v10757 = vld [vmem:[%s10662 + $0x234] sm:$0xff]
        %v10758 = vld [vmem:[%s10662 + $0x23c] sm:$0xf]
        %v10760 = vshrl.u32 %v10653, 16
        %v10762 = vshll.u32 %v10653, 16
        %v10764 = vrot.slane %v10762, 1
        %v10765 = vor.u32 %v10760, %v10764
        %v10767 = vshll.u32 %v10656, 16
        %v10769 = vrot.slane %v10767, 1
        %v10770 = vsel %vm2144, %v10765, %v10769
        %v10772 = vshrl.u32 %v10654, 16
        %v10774 = vshll.u32 %v10654, 16
        %v10776 = vrot.slane %v10774, 1
        %v10777 = vor.u32 %v10772, %v10776
        %v10779 = vshll.u32 %v10657, 16
        %v10781 = vrot.slane %v10779, 1
        %v10782 = vsel %vm2144, %v10777, %v10781
        %v10784 = vshrl.u32 %v10655, 16
        %v10786 = vshll.u32 %v10655, 16
        %v10788 = vrot.slane %v10786, 1
        %v10789 = vor.u32 %v10784, %v10788
        %v10791 = vshll.u32 %v10658, 16
        %v10793 = vrot.slane %v10791, 1
        %v10794 = vsel %vm2144, %v10789, %v10793
        %v10795 = vshrl.u32 %v10656, 16
        %v10797 = vor.u32 %v10795, %v10769
        %v10799 = vshll.u32 %v10659, 16
        %v10801 = vrot.slane %v10799, 1
        %v10802 = vsel %vm2144, %v10797, %v10801
        %v10803 = vshrl.u32 %v10657, 16
        %v10805 = vor.u32 %v10803, %v10781
        %v10807 = vshll.u32 %v10660, 16
        %v10809 = vrot.slane %v10807, 1
        %v10810 = vsel %vm2144, %v10805, %v10809
        %v10811 = vshrl.u32 %v10658, 16
        %v10813 = vor.u32 %v10811, %v10793
        %v10815 = vshll.u32 %v10661, 16
        %v10817 = vrot.slane %v10815, 1
        %v10818 = vsel %vm2144, %v10813, %v10817
        %v10819 = vshrl.u32 %v10659, 16
        %v10821 = vshrl.u32 %v10660, 16
        %v10823 = vshrl.u32 %v10661, 16
        %v10930 = vunpack.c.l.b16 %v10663
        %v10931 = vunpack.c.h.b16 %v10663
        %v10932 = vunpack.c.l.b16 %v10664
        %v10933 = vunpack.c.l.b16 %v10665
        %v10934 = vunpack.c.h.b16 %v10665
        %v10935 = vunpack.c.l.b16 %v10666
        %v10936 = vunpack.c.l.b16 %v10667
        %v10937 = vunpack.c.h.b16 %v10667
        %v10938 = vunpack.c.l.b16 %v10668
        %v10939 = vunpack.c.l.b16 %v10669
        %v10940 = vunpack.c.h.b16 %v10669
        %v10941 = vunpack.c.l.b16 %v10670
        %v10942 = vunpack.c.l.b16 %v10671
        %v10943 = vunpack.c.h.b16 %v10671
        %v10944 = vunpack.c.l.b16 %v10672
        %v10945 = vunpack.c.l.b16 %v10673
        %v10946 = vunpack.c.h.b16 %v10673
        %v10947 = vunpack.c.l.b16 %v10674
        %v10948 = vunpack.c.l.b16 %v10675
        %v10949 = vunpack.c.h.b16 %v10675
        %v10950 = vunpack.c.l.b16 %v10676
        %v10951 = vunpack.c.l.b16 %v10677
        %v10952 = vunpack.c.h.b16 %v10677
        %v10953 = vunpack.c.l.b16 %v10678
        %v10954 = vunpack.c.l.b16 %v10679
        %v10955 = vunpack.c.h.b16 %v10679
        %v10956 = vunpack.c.l.b16 %v10680
        %v10957 = vunpack.c.l.b16 %v10681
        %v10958 = vunpack.c.h.b16 %v10681
        %v10959 = vunpack.c.l.b16 %v10682
        %v10960 = vunpack.c.l.b16 %v10683
        %v10961 = vunpack.c.h.b16 %v10683
        %v10962 = vunpack.c.l.b16 %v10684
        %v10963 = vunpack.c.l.b16 %v10685
        %v10964 = vunpack.c.h.b16 %v10685
        %v10965 = vunpack.c.l.b16 %v10686
        %v10966 = vunpack.c.l.b16 %v10687
        %v10967 = vunpack.c.h.b16 %v10687
        %v10968 = vunpack.c.l.b16 %v10688
        %v10969 = vunpack.c.l.b16 %v10689
        %v10970 = vunpack.c.h.b16 %v10689
        %v10971 = vunpack.c.l.b16 %v10690
        %v10972 = vunpack.c.l.b16 %v10691
        %v10973 = vunpack.c.h.b16 %v10691
        %v10974 = vunpack.c.l.b16 %v10692
        %v10975 = vunpack.c.l.b16 %v10693
        %v10976 = vunpack.c.h.b16 %v10693
        %v10977 = vunpack.c.l.b16 %v10694
        %v10978 = vunpack.c.l.b16 %v10695
        %v10979 = vunpack.c.h.b16 %v10695
        %v10980 = vunpack.c.l.b16 %v10696
        %v10981 = vunpack.c.l.b16 %v10697
        %v10982 = vunpack.c.h.b16 %v10697
        %v10983 = vunpack.c.l.b16 %v10698
        %v10984 = vunpack.c.l.b16 %v10699
        %v10985 = vunpack.c.h.b16 %v10699
        %v10986 = vunpack.c.l.b16 %v10700
        %v10987 = vunpack.c.l.b16 %v10701
        %v10988 = vunpack.c.h.b16 %v10701
        %v10989 = vunpack.c.l.b16 %v10702
        %v10990 = vunpack.c.l.b16 %v10703
        %v10991 = vunpack.c.h.b16 %v10703
        %v10992 = vunpack.c.l.b16 %v10704
        %v10993 = vunpack.c.l.b16 %v10705
        %v10994 = vunpack.c.h.b16 %v10705
        %v10995 = vunpack.c.l.b16 %v10706
        %v10996 = vunpack.c.l.b16 %v10707
        %v10997 = vunpack.c.h.b16 %v10707
        %v10998 = vunpack.c.l.b16 %v10708
        %v10999 = vunpack.c.l.b16 %v10709
        %v11000 = vunpack.c.h.b16 %v10709
        %v11001 = vunpack.c.l.b16 %v10710
        %v11002 = vunpack.c.l.b16 %v10711
        %v11003 = vunpack.c.h.b16 %v10711
        %v11004 = vunpack.c.l.b16 %v10712
        %v11005 = vunpack.c.l.b16 %v10713
        %v11006 = vunpack.c.h.b16 %v10713
        %v11007 = vunpack.c.l.b16 %v10714
        %v11008 = vunpack.c.l.b16 %v10715
        %v11009 = vunpack.c.h.b16 %v10715
        %v11010 = vunpack.c.l.b16 %v10716
        %v11011 = vunpack.c.l.b16 %v10717
        %v11012 = vunpack.c.h.b16 %v10717
        %v11013 = vunpack.c.l.b16 %v10718
        %v11014 = vunpack.c.l.b16 %v10719
        %v11015 = vunpack.c.h.b16 %v10719
        %v11016 = vunpack.c.l.b16 %v10720
        %v11017 = vunpack.c.l.b16 %v10721
        %v11018 = vunpack.c.h.b16 %v10721
        %v11019 = vunpack.c.l.b16 %v10722
        %v11020 = vunpack.c.l.b16 %v10723
        %v11021 = vunpack.c.h.b16 %v10723
        %v11022 = vunpack.c.l.b16 %v10724
        %v11023 = vunpack.c.l.b16 %v10725
        %v11024 = vunpack.c.h.b16 %v10725
        %v11025 = vunpack.c.l.b16 %v10726
        %v11026 = vunpack.c.l.b16 %v10727
        %v11027 = vunpack.c.h.b16 %v10727
        %v11028 = vunpack.c.l.b16 %v10728
        %v11029 = vunpack.c.l.b16 %v10729
        %v11030 = vunpack.c.h.b16 %v10729
        %v11031 = vunpack.c.l.b16 %v10730
        %v11032 = vunpack.c.l.b16 %v10731
        %v11033 = vunpack.c.h.b16 %v10731
        %v11034 = vunpack.c.l.b16 %v10732
        %v11035 = vunpack.c.l.b16 %v10733
        %v11036 = vunpack.c.h.b16 %v10733
        %v11037 = vunpack.c.l.b16 %v10734
        %v11038 = vunpack.c.l.b16 %v10735
        %v11039 = vunpack.c.h.b16 %v10735
        %v11040 = vunpack.c.l.b16 %v10736
        %v11041 = vunpack.c.l.b16 %v10737
        %v11042 = vunpack.c.h.b16 %v10737
        %v11043 = vunpack.c.l.b16 %v10738
        %v11044 = vunpack.c.l.b16 %v10739
        %v11045 = vunpack.c.h.b16 %v10739
        %v11046 = vunpack.c.l.b16 %v10740
        %v11047 = vunpack.c.l.b16 %v10741
        %v11048 = vunpack.c.h.b16 %v10741
        %v11049 = vunpack.c.l.b16 %v10742
        %v11050 = vunpack.c.l.b16 %v10743
        %v11051 = vunpack.c.h.b16 %v10743
        %v11052 = vunpack.c.l.b16 %v10744
        %v11053 = vunpack.c.l.b16 %v10745
        %v11054 = vunpack.c.h.b16 %v10745
        %v11055 = vunpack.c.l.b16 %v10746
        %v11056 = vunpack.c.l.b16 %v10747
        %v11057 = vunpack.c.h.b16 %v10747
        %v11058 = vunpack.c.l.b16 %v10748
        %v11059 = vunpack.c.l.b16 %v10749
        %v11060 = vunpack.c.h.b16 %v10749
        %v11061 = vunpack.c.l.b16 %v10750
        %v11062 = vunpack.c.l.b16 %v10751
        %v11063 = vunpack.c.h.b16 %v10751
        %v11064 = vunpack.c.l.b16 %v10752
        %v11065 = vunpack.c.l.b16 %v10753
        %v11066 = vunpack.c.h.b16 %v10753
        %v11067 = vunpack.c.l.b16 %v10754
        %v11068 = vunpack.c.l.b16 %v10755
        %v11069 = vunpack.c.h.b16 %v10755
        %v11070 = vunpack.c.l.b16 %v10756
        %v11071 = vunpack.c.l.b16 %v10757
        %v11072 = vunpack.c.h.b16 %v10757
        %v11073 = vunpack.c.l.b16 %v10758
        %v11074 = vpack.c.b16 %v10933, %v10930
        %v11075 = vpack.c.b16 %v10934, %v10931
        %v11076 = vpack.c.b16 %v10935, %v10932
        %v11077 = vpack.c.b16 %v10939, %v10936
        %v11078 = vpack.c.b16 %v10940, %v10937
        %v11079 = vpack.c.b16 %v10941, %v10938
        %v11080 = vpack.c.b16 %v10945, %v10942
        %v11081 = vpack.c.b16 %v10946, %v10943
        %v11082 = vpack.c.b16 %v10947, %v10944
        %v11083 = vpack.c.b16 %v10951, %v10948
        %v11084 = vpack.c.b16 %v10952, %v10949
        %v11085 = vpack.c.b16 %v10953, %v10950
        %v11086 = vpack.c.b16 %v10957, %v10954
        %v11087 = vpack.c.b16 %v10958, %v10955
        %v11088 = vpack.c.b16 %v10959, %v10956
        %v11089 = vpack.c.b16 %v10963, %v10960
        %v11090 = vpack.c.b16 %v10964, %v10961
        %v11091 = vpack.c.b16 %v10965, %v10962
        %v11092 = vpack.c.b16 %v10969, %v10966
        %v11093 = vpack.c.b16 %v10970, %v10967
        %v11094 = vpack.c.b16 %v10971, %v10968
        %v11095 = vpack.c.b16 %v10975, %v10972
        %v11096 = vpack.c.b16 %v10976, %v10973
        %v11097 = vpack.c.b16 %v10977, %v10974
        %v11098 = vpack.c.b16 %v10981, %v10978
        %v11099 = vpack.c.b16 %v10982, %v10979
        %v11100 = vpack.c.b16 %v10983, %v10980
        %v11101 = vpack.c.b16 %v10987, %v10984
        %v11102 = vpack.c.b16 %v10988, %v10985
        %v11103 = vpack.c.b16 %v10989, %v10986
        %v11104 = vpack.c.b16 %v10993, %v10990
        %v11105 = vpack.c.b16 %v10994, %v10991
        %v11106 = vpack.c.b16 %v10995, %v10992
        %v11107 = vpack.c.b16 %v10999, %v10996
        %v11108 = vpack.c.b16 %v11000, %v10997
        %v11109 = vpack.c.b16 %v11001, %v10998
        %v11110 = vpack.c.b16 %v11005, %v11002
        %v11111 = vpack.c.b16 %v11006, %v11003
        %v11112 = vpack.c.b16 %v11007, %v11004
        %v11113 = vpack.c.b16 %v11011, %v11008
        %v11114 = vpack.c.b16 %v11012, %v11009
        %v11115 = vpack.c.b16 %v11013, %v11010
        %v11116 = vpack.c.b16 %v11017, %v11014
        %v11117 = vpack.c.b16 %v11018, %v11015
        %v11118 = vpack.c.b16 %v11019, %v11016
        %v11119 = vpack.c.b16 %v11023, %v11020
        %v11120 = vpack.c.b16 %v11024, %v11021
        %v11121 = vpack.c.b16 %v11025, %v11022
        %v11122 = vpack.c.b16 %v11029, %v11026
        %v11123 = vpack.c.b16 %v11030, %v11027
        %v11124 = vpack.c.b16 %v11031, %v11028
        %v11125 = vpack.c.b16 %v11035, %v11032
        %v11126 = vpack.c.b16 %v11036, %v11033
        %v11127 = vpack.c.b16 %v11037, %v11034
        %v11128 = vpack.c.b16 %v11041, %v11038
        %v11129 = vpack.c.b16 %v11042, %v11039
        %v11130 = vpack.c.b16 %v11043, %v11040
        %v11131 = vpack.c.b16 %v11047, %v11044
        %v11132 = vpack.c.b16 %v11048, %v11045
        %v11133 = vpack.c.b16 %v11049, %v11046
        %v11134 = vpack.c.b16 %v11053, %v11050
        %v11135 = vpack.c.b16 %v11054, %v11051
        %v11136 = vpack.c.b16 %v11055, %v11052
        %v11137 = vpack.c.b16 %v11059, %v11056
        %v11138 = vpack.c.b16 %v11060, %v11057
        %v11139 = vpack.c.b16 %v11061, %v11058
        %v11140 = vpack.c.b16 %v11065, %v11062
        %v11141 = vpack.c.b16 %v11066, %v11063
        %v11142 = vpack.c.b16 %v11067, %v11064
        %v11143 = vpack.c.b16 %v11071, %v11068
        %v11144 = vpack.c.b16 %v11072, %v11069
        %v11145 = vpack.c.b16 %v11073, %v11070
        %11218 = vmatpush.bf16.msra.mxu0 %v11095
        %11219 = vmatpush.bf16.msra.mxu0 %v11092
        %11220 = vmatpush.bf16.msra.mxu0 %v11089
        %11221 = vmatpush.bf16.msra.mxu0 %v11086
        %11222 = vmatpush.bf16.msra.mxu0 %v11083
        %11223 = vmatpush.bf16.msra.mxu0 %v11080
        %11224 = vmatpush.bf16.msra.mxu0 %v11077
        %11225 = vmatpush.bf16.msra.mxu0 %v11074
        %11226 = vmatmul.bf16.gmra.mxu0 %v10770
        %v11227 = vpop.f32.mrf.mxu0
        %v11228 = vadd.f32 0.0, %v11227
        %v11229 = vpop.f32.mrf.mxu0
        %v11230 = vadd.f32 0.0, %v11229
        %11231 = vmatmul.bf16.gmra.mxu0 %v10802
        %v11232 = vpop.f32.mrf.mxu0
        %v11233 = vadd.f32 0.0, %v11232
        %v11234 = vpop.f32.mrf.mxu0
        %v11235 = vadd.f32 0.0, %v11234
        %11236 = vmatmul.bf16.gmra.mxu0 %v10819
        %v11237 = vpop.f32.mrf.mxu0
        %v11238 = vadd.f32 0.0, %v11237
        %v11239 = vpop.f32.mrf.mxu0
        %11240 = vdwg.mxu0
        %11241 = vmatpush.bf16.msra.mxu0 %v11119
        %11242 = vmatpush.bf16.msra.mxu0 %v11116
        %11243 = vmatpush.bf16.msra.mxu0 %v11113
        %11244 = vmatpush.bf16.msra.mxu0 %v11110
        %11245 = vmatpush.bf16.msra.mxu0 %v11107
        %11246 = vmatpush.bf16.msra.mxu0 %v11104
        %11247 = vmatpush.bf16.msra.mxu0 %v11101
        %11248 = vmatpush.bf16.msra.mxu0 %v11098
        %11249 = vmatmul.bf16.gmra.mxu0 %v10782
        %v11250 = vpop.f32.mrf.mxu0
        %v11251 = vadd.f32 %v11228, %v11250
        %v11252 = vpop.f32.mrf.mxu0
        %v11253 = vadd.f32 %v11230, %v11252
        %11254 = vmatmul.bf16.gmra.mxu0 %v10810
        %v11255 = vpop.f32.mrf.mxu0
        %v11256 = vadd.f32 %v11233, %v11255
        %v11257 = vpop.f32.mrf.mxu0
        %v11258 = vadd.f32 %v11235, %v11257
        %11259 = vmatmul.bf16.gmra.mxu0 %v10821
        %v11260 = vpop.f32.mrf.mxu0
        %v11261 = vadd.f32 %v11238, %v11260
        %v11262 = vpop.f32.mrf.mxu0
        %11263 = vdwg.mxu0
        %11264 = vmatpush.bf16.msra.mxu0 %v11143
        %11265 = vmatpush.bf16.msra.mxu0 %v11140
        %11266 = vmatpush.bf16.msra.mxu0 %v11137
        %11267 = vmatpush.bf16.msra.mxu0 %v11134
        %11268 = vmatpush.bf16.msra.mxu0 %v11131
        %11269 = vmatpush.bf16.msra.mxu0 %v11128
        %11270 = vmatpush.bf16.msra.mxu0 %v11125
        %11271 = vmatpush.bf16.msra.mxu0 %v11122
        %11272 = vmatmul.bf16.gmra.mxu0 %v10794
        %v11273 = vpop.f32.mrf.mxu0
        %v11274 = vadd.f32 %v11251, %v11273
        %v11275 = vpop.f32.mrf.mxu0
        %v11276 = vadd.f32 %v11253, %v11275
        %11277 = vmatmul.bf16.gmra.mxu0 %v10818
        %v11278 = vpop.f32.mrf.mxu0
        %v11279 = vadd.f32 %v11256, %v11278
        %v11280 = vpop.f32.mrf.mxu0
        %v11281 = vadd.f32 %v11258, %v11280
        %11282 = vmatmul.bf16.gmra.mxu0 %v10823
        %v11283 = vpop.f32.mrf.mxu0
        %v11284 = vadd.f32 %v11261, %v11283
        %v11285 = vpop.f32.mrf.mxu0
        %11286 = vdwg.mxu0
        %11287 = vmatpush.bf16.msra.mxu0 %v11096
        %11288 = vmatpush.bf16.msra.mxu0 %v11093
        %11289 = vmatpush.bf16.msra.mxu0 %v11090
        %11290 = vmatpush.bf16.msra.mxu0 %v11087
        %11291 = vmatpush.bf16.msra.mxu0 %v11084
        %11292 = vmatpush.bf16.msra.mxu0 %v11081
        %11293 = vmatpush.bf16.msra.mxu0 %v11078
        %11294 = vmatpush.bf16.msra.mxu0 %v11075
        %11295 = vmatmul.bf16.gmra.mxu0 %v10770
        %v11296 = vpop.f32.mrf.mxu0
        %v11297 = vadd.f32 0.0, %v11296
        %v11298 = vpop.f32.mrf.mxu0
        %v11299 = vadd.f32 0.0, %v11298
        %11300 = vmatmul.bf16.gmra.mxu0 %v10802
        %v11301 = vpop.f32.mrf.mxu0
        %v11302 = vadd.f32 0.0, %v11301
        %v11303 = vpop.f32.mrf.mxu0
        %v11304 = vadd.f32 0.0, %v11303
        %11305 = vmatmul.bf16.gmra.mxu0 %v10819
        %v11306 = vpop.f32.mrf.mxu0
        %v11307 = vadd.f32 0.0, %v11306
        %v11308 = vpop.f32.mrf.mxu0
        %11309 = vdwg.mxu0
        %11310 = vmatpush.bf16.msra.mxu0 %v11120
        %11311 = vmatpush.bf16.msra.mxu0 %v11117
        %11312 = vmatpush.bf16.msra.mxu0 %v11114
        %11313 = vmatpush.bf16.msra.mxu0 %v11111
        %11314 = vmatpush.bf16.msra.mxu0 %v11108
        %11315 = vmatpush.bf16.msra.mxu0 %v11105
        %11316 = vmatpush.bf16.msra.mxu0 %v11102
        %11317 = vmatpush.bf16.msra.mxu0 %v11099
        %11318 = vmatmul.bf16.gmra.mxu0 %v10782
        %v11319 = vpop.f32.mrf.mxu0
        %v11320 = vadd.f32 %v11297, %v11319
        %v11321 = vpop.f32.mrf.mxu0
        %v11322 = vadd.f32 %v11299, %v11321
        %11323 = vmatmul.bf16.gmra.mxu0 %v10810
        %v11324 = vpop.f32.mrf.mxu0
        %v11325 = vadd.f32 %v11302, %v11324
        %v11326 = vpop.f32.mrf.mxu0
        %v11327 = vadd.f32 %v11304, %v11326
        %11328 = vmatmul.bf16.gmra.mxu0 %v10821
        %v11329 = vpop.f32.mrf.mxu0
        %v11330 = vadd.f32 %v11307, %v11329
        %v11331 = vpop.f32.mrf.mxu0
        %11332 = vdwg.mxu0
        %11333 = vmatpush.bf16.msra.mxu0 %v11144
        %11334 = vmatpush.bf16.msra.mxu0 %v11141
        %11335 = vmatpush.bf16.msra.mxu0 %v11138
        %11336 = vmatpush.bf16.msra.mxu0 %v11135
        %11337 = vmatpush.bf16.msra.mxu0 %v11132
        %11338 = vmatpush.bf16.msra.mxu0 %v11129
        %11339 = vmatpush.bf16.msra.mxu0 %v11126
        %11340 = vmatpush.bf16.msra.mxu0 %v11123
        %11341 = vmatmul.bf16.gmra.mxu0 %v10794
        %v11342 = vpop.f32.mrf.mxu0
        %v11343 = vadd.f32 %v11320, %v11342
        %v11344 = vpop.f32.mrf.mxu0
        %v11345 = vadd.f32 %v11322, %v11344
        %11346 = vmatmul.bf16.gmra.mxu0 %v10818
        %v11347 = vpop.f32.mrf.mxu0
        %v11348 = vadd.f32 %v11325, %v11347
        %v11349 = vpop.f32.mrf.mxu0
        %v11350 = vadd.f32 %v11327, %v11349
        %11351 = vmatmul.bf16.gmra.mxu0 %v10823
        %v11352 = vpop.f32.mrf.mxu0
        %v11353 = vadd.f32 %v11330, %v11352
        %v11354 = vpop.f32.mrf.mxu0
        %11355 = vdwg.mxu0
        %11356 = vmatpush.bf16.msra.mxu0 %v11097
        %11357 = vmatpush.bf16.msra.mxu0 %v11094
        %11358 = vmatpush.bf16.msra.mxu0 %v11091
        %11359 = vmatpush.bf16.msra.mxu0 %v11088
        %11360 = vmatpush.bf16.msra.mxu0 %v11085
        %11361 = vmatpush.bf16.msra.mxu0 %v11082
        %11362 = vmatpush.bf16.msra.mxu0 %v11079
        %11363 = vmatpush.bf16.msra.mxu0 %v11076
        %11364 = vmatmul.bf16.gmra.mxu0 %v10770
        %v11365 = vpop.f32.mrf.mxu0
        %v11366 = vadd.f32 0.0, %v11365
        %v11367 = vpop.f32.mrf.mxu0
        %v11368 = vadd.f32 0.0, %v11367
        %11369 = vmatmul.bf16.gmra.mxu0 %v10802
        %v11370 = vpop.f32.mrf.mxu0
        %v11371 = vadd.f32 0.0, %v11370
        %v11372 = vpop.f32.mrf.mxu0
        %v11373 = vadd.f32 0.0, %v11372
        %11374 = vmatmul.bf16.gmra.mxu0 %v10819
        %v11375 = vpop.f32.mrf.mxu0
        %v11376 = vadd.f32 0.0, %v11375
        %v11377 = vpop.f32.mrf.mxu0
        %11378 = vdwg.mxu0
        %11379 = vmatpush.bf16.msra.mxu0 %v11121
        %11380 = vmatpush.bf16.msra.mxu0 %v11118
        %11381 = vmatpush.bf16.msra.mxu0 %v11115
        %11382 = vmatpush.bf16.msra.mxu0 %v11112
        %11383 = vmatpush.bf16.msra.mxu0 %v11109
        %11384 = vmatpush.bf16.msra.mxu0 %v11106
        %11385 = vmatpush.bf16.msra.mxu0 %v11103
        %11386 = vmatpush.bf16.msra.mxu0 %v11100
        %11387 = vmatmul.bf16.gmra.mxu0 %v10782
        %v11388 = vpop.f32.mrf.mxu0
        %v11389 = vadd.f32 %v11366, %v11388
        %v11390 = vpop.f32.mrf.mxu0
        %v11391 = vadd.f32 %v11368, %v11390
        %11392 = vmatmul.bf16.gmra.mxu0 %v10810
        %v11393 = vpop.f32.mrf.mxu0
        %v11394 = vadd.f32 %v11371, %v11393
        %v11395 = vpop.f32.mrf.mxu0
        %v11396 = vadd.f32 %v11373, %v11395
        %11397 = vmatmul.bf16.gmra.mxu0 %v10821
        %v11398 = vpop.f32.mrf.mxu0
        %v11399 = vadd.f32 %v11376, %v11398
        %v11400 = vpop.f32.mrf.mxu0
        %11401 = vdwg.mxu0
        %11402 = vmatpush.bf16.msra.mxu0 %v11145
        %11403 = vmatpush.bf16.msra.mxu0 %v11142
        %11404 = vmatpush.bf16.msra.mxu0 %v11139
        %11405 = vmatpush.bf16.msra.mxu0 %v11136
        %11406 = vmatpush.bf16.msra.mxu0 %v11133
        %11407 = vmatpush.bf16.msra.mxu0 %v11130
        %11408 = vmatpush.bf16.msra.mxu0 %v11127
        %11409 = vmatpush.bf16.msra.mxu0 %v11124
        %11410 = vmatmul.bf16.gmra.mxu0 %v10794
        %v11411 = vpop.f32.mrf.mxu0
        %v11412 = vadd.f32 %v11389, %v11411
        %v11413 = vpop.f32.mrf.mxu0
        %v11414 = vadd.f32 %v11391, %v11413
        %11415 = vmatmul.bf16.gmra.mxu0 %v10818
        %v11416 = vpop.f32.mrf.mxu0
        %v11417 = vadd.f32 %v11394, %v11416
        %v11418 = vpop.f32.mrf.mxu0
        %v11419 = vadd.f32 %v11396, %v11418
        %11420 = vmatmul.bf16.gmra.mxu0 %v10823
        %v11421 = vpop.f32.mrf.mxu0
        %v11422 = vadd.f32 %v11399, %v11421
        %v11423 = vpop.f32.mrf.mxu0
        %11424 = vdwg.mxu0
        %v11425 = vadd.f32 %v10487, %v11274
        %v11426 = vadd.f32 %v10556, %v11343
        %v11427 = vadd.f32 %v10625, %v11412
        %v11428 = vadd.f32 %v10489, %v11276
        %v11429 = vadd.f32 %v10558, %v11345
        %v11430 = vadd.f32 %v10627, %v11414
        %v11431 = vadd.f32 %v10492, %v11279
        %v11432 = vadd.f32 %v10561, %v11348
        %v11433 = vadd.f32 %v10630, %v11417
        %v11434 = vadd.f32 %v10494, %v11281
        %v11435 = vadd.f32 %v10563, %v11350
        %v11436 = vadd.f32 %v10632, %v11419
        %v11437 = vadd.f32 %v10497, %v11284
        %v11438 = vadd.f32 %v10566, %v11353
        %v11439 = vadd.f32 %v10635, %v11422
        %v11440 = vld [vmem:[#allocation3 + $0x30] sm:$0xfc]
        %v11441 = vld [vmem:[#allocation3 + $0x38] sm:$0xfc]
        %v11442 = vld [vmem:[#allocation3 + $0x40] sm:$0xfc]
        %v11443 = vld [vmem:[#allocation3 + $0x90] sm:$0x7]
        %v11444 = vld [vmem:[#allocation3 + $0x98] sm:$0x7]
        %v11445 = vld [vmem:[#allocation3 + $0xa0] sm:$0x7]
        %v11446 = vpack.c.bf16 %v10641, %v11440
        %v11447 = vpack.c.bf16 %v10642, %v11441
        %v11448 = vpack.c.bf16 %v10643, %v11442
        %v11449 = vpack.c.bf16 %v11443, %v11443
        %v11450 = vpack.c.bf16 %v11444, %v11444
        %v11451 = vpack.c.bf16 %v11445, %v11445
        %s11452 = scalar_lea.vmem %s7, 1728
        %v11453 = vld [vmem:[%s11452] sm:$0xff]
        %v11454 = vld [vmem:[%s11452 + $0x8] sm:$0xf]
        %v11455 = vld [vmem:[%s11452 + $0xc] sm:$0xff]
        %v11456 = vld [vmem:[%s11452 + $0x14] sm:$0xf]
        %v11457 = vld [vmem:[%s11452 + $0x18] sm:$0xff]
        %v11458 = vld [vmem:[%s11452 + $0x20] sm:$0xf]
        %v11459 = vld [vmem:[%s11452 + $0x24] sm:$0xff]
        %v11460 = vld [vmem:[%s11452 + $0x2c] sm:$0xf]
        %v11461 = vld [vmem:[%s11452 + $0x30] sm:$0xff]
        %v11462 = vld [vmem:[%s11452 + $0x38] sm:$0xf]
        %v11463 = vld [vmem:[%s11452 + $0x3c] sm:$0xff]
        %v11464 = vld [vmem:[%s11452 + $0x44] sm:$0xf]
        %v11465 = vld [vmem:[%s11452 + $0x48] sm:$0xff]
        %v11466 = vld [vmem:[%s11452 + $0x50] sm:$0xf]
        %v11467 = vld [vmem:[%s11452 + $0x54] sm:$0xff]
        %v11468 = vld [vmem:[%s11452 + $0x5c] sm:$0xf]
        %v11469 = vld [vmem:[%s11452 + $0x60] sm:$0xff]
        %v11470 = vld [vmem:[%s11452 + $0x68] sm:$0xf]
        %v11471 = vld [vmem:[%s11452 + $0x6c] sm:$0xff]
        %v11472 = vld [vmem:[%s11452 + $0x74] sm:$0xf]
        %v11473 = vld [vmem:[%s11452 + $0x78] sm:$0xff]
        %v11474 = vld [vmem:[%s11452 + $0x80] sm:$0xf]
        %v11475 = vld [vmem:[%s11452 + $0x84] sm:$0xff]
        %v11476 = vld [vmem:[%s11452 + $0x8c] sm:$0xf]
        %v11477 = vld [vmem:[%s11452 + $0x90] sm:$0xff]
        %v11478 = vld [vmem:[%s11452 + $0x98] sm:$0xf]
        %v11479 = vld [vmem:[%s11452 + $0x9c] sm:$0xff]
        %v11480 = vld [vmem:[%s11452 + $0xa4] sm:$0xf]
        %v11481 = vld [vmem:[%s11452 + $0xa8] sm:$0xff]
        %v11482 = vld [vmem:[%s11452 + $0xb0] sm:$0xf]
        %v11483 = vld [vmem:[%s11452 + $0xb4] sm:$0xff]
        %v11484 = vld [vmem:[%s11452 + $0xbc] sm:$0xf]
        %v11485 = vld [vmem:[%s11452 + $0xc0] sm:$0xff]
        %v11486 = vld [vmem:[%s11452 + $0xc8] sm:$0xf]
        %v11487 = vld [vmem:[%s11452 + $0xcc] sm:$0xff]
        %v11488 = vld [vmem:[%s11452 + $0xd4] sm:$0xf]
        %v11489 = vld [vmem:[%s11452 + $0xd8] sm:$0xff]
        %v11490 = vld [vmem:[%s11452 + $0xe0] sm:$0xf]
        %v11491 = vld [vmem:[%s11452 + $0xe4] sm:$0xff]
        %v11492 = vld [vmem:[%s11452 + $0xec] sm:$0xf]
        %v11493 = vld [vmem:[%s11452 + $0xf0] sm:$0xff]
        %v11494 = vld [vmem:[%s11452 + $0xf8] sm:$0xf]
        %v11495 = vld [vmem:[%s11452 + $0xfc] sm:$0xff]
        %v11496 = vld [vmem:[%s11452 + $0x104] sm:$0xf]
        %v11497 = vld [vmem:[%s11452 + $0x108] sm:$0xff]
        %v11498 = vld [vmem:[%s11452 + $0x110] sm:$0xf]
        %v11499 = vld [vmem:[%s11452 + $0x114] sm:$0xff]
        %v11500 = vld [vmem:[%s11452 + $0x11c] sm:$0xf]
        %v11501 = vld [vmem:[%s11452 + $0x120] sm:$0xff]
        %v11502 = vld [vmem:[%s11452 + $0x128] sm:$0xf]
        %v11503 = vld [vmem:[%s11452 + $0x12c] sm:$0xff]
        %v11504 = vld [vmem:[%s11452 + $0x134] sm:$0xf]
        %v11505 = vld [vmem:[%s11452 + $0x138] sm:$0xff]
        %v11506 = vld [vmem:[%s11452 + $0x140] sm:$0xf]
        %v11507 = vld [vmem:[%s11452 + $0x144] sm:$0xff]
        %v11508 = vld [vmem:[%s11452 + $0x14c] sm:$0xf]
        %v11509 = vld [vmem:[%s11452 + $0x150] sm:$0xff]
        %v11510 = vld [vmem:[%s11452 + $0x158] sm:$0xf]
        %v11511 = vld [vmem:[%s11452 + $0x15c] sm:$0xff]
        %v11512 = vld [vmem:[%s11452 + $0x164] sm:$0xf]
        %v11513 = vld [vmem:[%s11452 + $0x168] sm:$0xff]
        %v11514 = vld [vmem:[%s11452 + $0x170] sm:$0xf]
        %v11515 = vld [vmem:[%s11452 + $0x174] sm:$0xff]
        %v11516 = vld [vmem:[%s11452 + $0x17c] sm:$0xf]
        %v11517 = vld [vmem:[%s11452 + $0x180] sm:$0xff]
        %v11518 = vld [vmem:[%s11452 + $0x188] sm:$0xf]
        %v11519 = vld [vmem:[%s11452 + $0x18c] sm:$0xff]
        %v11520 = vld [vmem:[%s11452 + $0x194] sm:$0xf]
        %v11521 = vld [vmem:[%s11452 + $0x198] sm:$0xff]
        %v11522 = vld [vmem:[%s11452 + $0x1a0] sm:$0xf]
        %v11523 = vld [vmem:[%s11452 + $0x1a4] sm:$0xff]
        %v11524 = vld [vmem:[%s11452 + $0x1ac] sm:$0xf]
        %v11525 = vld [vmem:[%s11452 + $0x1b0] sm:$0xff]
        %v11526 = vld [vmem:[%s11452 + $0x1b8] sm:$0xf]
        %v11527 = vld [vmem:[%s11452 + $0x1bc] sm:$0xff]
        %v11528 = vld [vmem:[%s11452 + $0x1c4] sm:$0xf]
        %v11529 = vld [vmem:[%s11452 + $0x1c8] sm:$0xff]
        %v11530 = vld [vmem:[%s11452 + $0x1d0] sm:$0xf]
        %v11531 = vld [vmem:[%s11452 + $0x1d4] sm:$0xff]
        %v11532 = vld [vmem:[%s11452 + $0x1dc] sm:$0xf]
        %v11533 = vld [vmem:[%s11452 + $0x1e0] sm:$0xff]
        %v11534 = vld [vmem:[%s11452 + $0x1e8] sm:$0xf]
        %v11535 = vld [vmem:[%s11452 + $0x1ec] sm:$0xff]
        %v11536 = vld [vmem:[%s11452 + $0x1f4] sm:$0xf]
        %v11537 = vld [vmem:[%s11452 + $0x1f8] sm:$0xff]
        %v11538 = vld [vmem:[%s11452 + $0x200] sm:$0xf]
        %v11539 = vld [vmem:[%s11452 + $0x204] sm:$0xff]
        %v11540 = vld [vmem:[%s11452 + $0x20c] sm:$0xf]
        %v11541 = vld [vmem:[%s11452 + $0x210] sm:$0xff]
        %v11542 = vld [vmem:[%s11452 + $0x218] sm:$0xf]
        %v11543 = vld [vmem:[%s11452 + $0x21c] sm:$0xff]
        %v11544 = vld [vmem:[%s11452 + $0x224] sm:$0xf]
        %v11545 = vld [vmem:[%s11452 + $0x228] sm:$0xff]
        %v11546 = vld [vmem:[%s11452 + $0x230] sm:$0xf]
        %v11547 = vld [vmem:[%s11452 + $0x234] sm:$0xff]
        %v11548 = vld [vmem:[%s11452 + $0x23c] sm:$0xf]
        %v11558 = vrot.slane %v11446, 1
        %v11559 = vrot.slane %v10656, 1
        %v11560 = vsel %vm3452, %v11558, %v11559
        %v11561 = vrot.slane %v11447, 1
        %v11562 = vrot.slane %v10657, 1
        %v11563 = vsel %vm3452, %v11561, %v11562
        %v11564 = vrot.slane %v11448, 1
        %v11565 = vrot.slane %v10658, 1
        %v11566 = vsel %vm3452, %v11564, %v11565
        %v11567 = vrot.slane %v11449, 1
        %v11568 = vsel %vm3452, %v11559, %v11567
        %v11569 = vrot.slane %v11450, 1
        %v11570 = vsel %vm3452, %v11562, %v11569
        %v11571 = vrot.slane %v11451, 1
        %v11572 = vsel %vm3452, %v11565, %v11571
        %v11678 = vunpack.c.l.b16 %v11453
        %v11679 = vunpack.c.h.b16 %v11453
        %v11680 = vunpack.c.l.b16 %v11454
        %v11681 = vunpack.c.l.b16 %v11455
        %v11682 = vunpack.c.h.b16 %v11455
        %v11683 = vunpack.c.l.b16 %v11456
        %v11684 = vunpack.c.l.b16 %v11457
        %v11685 = vunpack.c.h.b16 %v11457
        %v11686 = vunpack.c.l.b16 %v11458
        %v11687 = vunpack.c.l.b16 %v11459
        %v11688 = vunpack.c.h.b16 %v11459
        %v11689 = vunpack.c.l.b16 %v11460
        %v11690 = vunpack.c.l.b16 %v11461
        %v11691 = vunpack.c.h.b16 %v11461
        %v11692 = vunpack.c.l.b16 %v11462
        %v11693 = vunpack.c.l.b16 %v11463
        %v11694 = vunpack.c.h.b16 %v11463
        %v11695 = vunpack.c.l.b16 %v11464
        %v11696 = vunpack.c.l.b16 %v11465
        %v11697 = vunpack.c.h.b16 %v11465
        %v11698 = vunpack.c.l.b16 %v11466
        %v11699 = vunpack.c.l.b16 %v11467
        %v11700 = vunpack.c.h.b16 %v11467
        %v11701 = vunpack.c.l.b16 %v11468
        %v11702 = vunpack.c.l.b16 %v11469
        %v11703 = vunpack.c.h.b16 %v11469
        %v11704 = vunpack.c.l.b16 %v11470
        %v11705 = vunpack.c.l.b16 %v11471
        %v11706 = vunpack.c.h.b16 %v11471
        %v11707 = vunpack.c.l.b16 %v11472
        %v11708 = vunpack.c.l.b16 %v11473
        %v11709 = vunpack.c.h.b16 %v11473
        %v11710 = vunpack.c.l.b16 %v11474
        %v11711 = vunpack.c.l.b16 %v11475
        %v11712 = vunpack.c.h.b16 %v11475
        %v11713 = vunpack.c.l.b16 %v11476
        %v11714 = vunpack.c.l.b16 %v11477
        %v11715 = vunpack.c.h.b16 %v11477
        %v11716 = vunpack.c.l.b16 %v11478
        %v11717 = vunpack.c.l.b16 %v11479
        %v11718 = vunpack.c.h.b16 %v11479
        %v11719 = vunpack.c.l.b16 %v11480
        %v11720 = vunpack.c.l.b16 %v11481
        %v11721 = vunpack.c.h.b16 %v11481
        %v11722 = vunpack.c.l.b16 %v11482
        %v11723 = vunpack.c.l.b16 %v11483
        %v11724 = vunpack.c.h.b16 %v11483
        %v11725 = vunpack.c.l.b16 %v11484
        %v11726 = vunpack.c.l.b16 %v11485
        %v11727 = vunpack.c.h.b16 %v11485
        %v11728 = vunpack.c.l.b16 %v11486
        %v11729 = vunpack.c.l.b16 %v11487
        %v11730 = vunpack.c.h.b16 %v11487
        %v11731 = vunpack.c.l.b16 %v11488
        %v11732 = vunpack.c.l.b16 %v11489
        %v11733 = vunpack.c.h.b16 %v11489
        %v11734 = vunpack.c.l.b16 %v11490
        %v11735 = vunpack.c.l.b16 %v11491
        %v11736 = vunpack.c.h.b16 %v11491
        %v11737 = vunpack.c.l.b16 %v11492
        %v11738 = vunpack.c.l.b16 %v11493
        %v11739 = vunpack.c.h.b16 %v11493
        %v11740 = vunpack.c.l.b16 %v11494
        %v11741 = vunpack.c.l.b16 %v11495
        %v11742 = vunpack.c.h.b16 %v11495
        %v11743 = vunpack.c.l.b16 %v11496
        %v11744 = vunpack.c.l.b16 %v11497
        %v11745 = vunpack.c.h.b16 %v11497
        %v11746 = vunpack.c.l.b16 %v11498
        %v11747 = vunpack.c.l.b16 %v11499
        %v11748 = vunpack.c.h.b16 %v11499
        %v11749 = vunpack.c.l.b16 %v11500
        %v11750 = vunpack.c.l.b16 %v11501
        %v11751 = vunpack.c.h.b16 %v11501
        %v11752 = vunpack.c.l.b16 %v11502
        %v11753 = vunpack.c.l.b16 %v11503
        %v11754 = vunpack.c.h.b16 %v11503
        %v11755 = vunpack.c.l.b16 %v11504
        %v11756 = vunpack.c.l.b16 %v11505
        %v11757 = vunpack.c.h.b16 %v11505
        %v11758 = vunpack.c.l.b16 %v11506
        %v11759 = vunpack.c.l.b16 %v11507
        %v11760 = vunpack.c.h.b16 %v11507
        %v11761 = vunpack.c.l.b16 %v11508
        %v11762 = vunpack.c.l.b16 %v11509
        %v11763 = vunpack.c.h.b16 %v11509
        %v11764 = vunpack.c.l.b16 %v11510
        %v11765 = vunpack.c.l.b16 %v11511
        %v11766 = vunpack.c.h.b16 %v11511
        %v11767 = vunpack.c.l.b16 %v11512
        %v11768 = vunpack.c.l.b16 %v11513
        %v11769 = vunpack.c.h.b16 %v11513
        %v11770 = vunpack.c.l.b16 %v11514
        %v11771 = vunpack.c.l.b16 %v11515
        %v11772 = vunpack.c.h.b16 %v11515
        %v11773 = vunpack.c.l.b16 %v11516
        %v11774 = vunpack.c.l.b16 %v11517
        %v11775 = vunpack.c.h.b16 %v11517
        %v11776 = vunpack.c.l.b16 %v11518
        %v11777 = vunpack.c.l.b16 %v11519
        %v11778 = vunpack.c.h.b16 %v11519
        %v11779 = vunpack.c.l.b16 %v11520
        %v11780 = vunpack.c.l.b16 %v11521
        %v11781 = vunpack.c.h.b16 %v11521
        %v11782 = vunpack.c.l.b16 %v11522
        %v11783 = vunpack.c.l.b16 %v11523
        %v11784 = vunpack.c.h.b16 %v11523
        %v11785 = vunpack.c.l.b16 %v11524
        %v11786 = vunpack.c.l.b16 %v11525
        %v11787 = vunpack.c.h.b16 %v11525
        %v11788 = vunpack.c.l.b16 %v11526
        %v11789 = vunpack.c.l.b16 %v11527
        %v11790 = vunpack.c.h.b16 %v11527
        %v11791 = vunpack.c.l.b16 %v11528
        %v11792 = vunpack.c.l.b16 %v11529
        %v11793 = vunpack.c.h.b16 %v11529
        %v11794 = vunpack.c.l.b16 %v11530
        %v11795 = vunpack.c.l.b16 %v11531
        %v11796 = vunpack.c.h.b16 %v11531
        %v11797 = vunpack.c.l.b16 %v11532
        %v11798 = vunpack.c.l.b16 %v11533
        %v11799 = vunpack.c.h.b16 %v11533
        %v11800 = vunpack.c.l.b16 %v11534
        %v11801 = vunpack.c.l.b16 %v11535
        %v11802 = vunpack.c.h.b16 %v11535
        %v11803 = vunpack.c.l.b16 %v11536
        %v11804 = vunpack.c.l.b16 %v11537
        %v11805 = vunpack.c.h.b16 %v11537
        %v11806 = vunpack.c.l.b16 %v11538
        %v11807 = vunpack.c.l.b16 %v11539
        %v11808 = vunpack.c.h.b16 %v11539
        %v11809 = vunpack.c.l.b16 %v11540
        %v11810 = vunpack.c.l.b16 %v11541
        %v11811 = vunpack.c.h.b16 %v11541
        %v11812 = vunpack.c.l.b16 %v11542
        %v11813 = vunpack.c.l.b16 %v11543
        %v11814 = vunpack.c.h.b16 %v11543
        %v11815 = vunpack.c.l.b16 %v11544
        %v11816 = vunpack.c.l.b16 %v11545
        %v11817 = vunpack.c.h.b16 %v11545
        %v11818 = vunpack.c.l.b16 %v11546
        %v11819 = vunpack.c.l.b16 %v11547
        %v11820 = vunpack.c.h.b16 %v11547
        %v11821 = vunpack.c.l.b16 %v11548
        %v11822 = vpack.c.b16 %v11681, %v11678
        %v11823 = vpack.c.b16 %v11682, %v11679
        %v11824 = vpack.c.b16 %v11683, %v11680
        %v11825 = vpack.c.b16 %v11687, %v11684
        %v11826 = vpack.c.b16 %v11688, %v11685
        %v11827 = vpack.c.b16 %v11689, %v11686
        %v11828 = vpack.c.b16 %v11693, %v11690
        %v11829 = vpack.c.b16 %v11694, %v11691
        %v11830 = vpack.c.b16 %v11695, %v11692
        %v11831 = vpack.c.b16 %v11699, %v11696
        %v11832 = vpack.c.b16 %v11700, %v11697
        %v11833 = vpack.c.b16 %v11701, %v11698
        %v11834 = vpack.c.b16 %v11705, %v11702
        %v11835 = vpack.c.b16 %v11706, %v11703
        %v11836 = vpack.c.b16 %v11707, %v11704
        %v11837 = vpack.c.b16 %v11711, %v11708
        %v11838 = vpack.c.b16 %v11712, %v11709
        %v11839 = vpack.c.b16 %v11713, %v11710
        %v11840 = vpack.c.b16 %v11717, %v11714
        %v11841 = vpack.c.b16 %v11718, %v11715
        %v11842 = vpack.c.b16 %v11719, %v11716
        %v11843 = vpack.c.b16 %v11723, %v11720
        %v11844 = vpack.c.b16 %v11724, %v11721
        %v11845 = vpack.c.b16 %v11725, %v11722
        %v11846 = vpack.c.b16 %v11729, %v11726
        %v11847 = vpack.c.b16 %v11730, %v11727
        %v11848 = vpack.c.b16 %v11731, %v11728
        %v11849 = vpack.c.b16 %v11735, %v11732
        %v11850 = vpack.c.b16 %v11736, %v11733
        %v11851 = vpack.c.b16 %v11737, %v11734
        %v11852 = vpack.c.b16 %v11741, %v11738
        %v11853 = vpack.c.b16 %v11742, %v11739
        %v11854 = vpack.c.b16 %v11743, %v11740
        %v11855 = vpack.c.b16 %v11747, %v11744
        %v11856 = vpack.c.b16 %v11748, %v11745
        %v11857 = vpack.c.b16 %v11749, %v11746
        %v11858 = vpack.c.b16 %v11753, %v11750
        %v11859 = vpack.c.b16 %v11754, %v11751
        %v11860 = vpack.c.b16 %v11755, %v11752
        %v11861 = vpack.c.b16 %v11759, %v11756
        %v11862 = vpack.c.b16 %v11760, %v11757
        %v11863 = vpack.c.b16 %v11761, %v11758
        %v11864 = vpack.c.b16 %v11765, %v11762
        %v11865 = vpack.c.b16 %v11766, %v11763
        %v11866 = vpack.c.b16 %v11767, %v11764
        %v11867 = vpack.c.b16 %v11771, %v11768
        %v11868 = vpack.c.b16 %v11772, %v11769
        %v11869 = vpack.c.b16 %v11773, %v11770
        %v11870 = vpack.c.b16 %v11777, %v11774
        %v11871 = vpack.c.b16 %v11778, %v11775
        %v11872 = vpack.c.b16 %v11779, %v11776
        %v11873 = vpack.c.b16 %v11783, %v11780
        %v11874 = vpack.c.b16 %v11784, %v11781
        %v11875 = vpack.c.b16 %v11785, %v11782
        %v11876 = vpack.c.b16 %v11789, %v11786
        %v11877 = vpack.c.b16 %v11790, %v11787
        %v11878 = vpack.c.b16 %v11791, %v11788
        %v11879 = vpack.c.b16 %v11795, %v11792
        %v11880 = vpack.c.b16 %v11796, %v11793
        %v11881 = vpack.c.b16 %v11797, %v11794
        %v11882 = vpack.c.b16 %v11801, %v11798
        %v11883 = vpack.c.b16 %v11802, %v11799
        %v11884 = vpack.c.b16 %v11803, %v11800
        %v11885 = vpack.c.b16 %v11807, %v11804
        %v11886 = vpack.c.b16 %v11808, %v11805
        %v11887 = vpack.c.b16 %v11809, %v11806
        %v11888 = vpack.c.b16 %v11813, %v11810
        %v11889 = vpack.c.b16 %v11814, %v11811
        %v11890 = vpack.c.b16 %v11815, %v11812
        %v11891 = vpack.c.b16 %v11819, %v11816
        %v11892 = vpack.c.b16 %v11820, %v11817
        %v11893 = vpack.c.b16 %v11821, %v11818
        %11966 = vmatpush.bf16.msra.mxu0 %v11843
        %11967 = vmatpush.bf16.msra.mxu0 %v11840
        %11968 = vmatpush.bf16.msra.mxu0 %v11837
        %11969 = vmatpush.bf16.msra.mxu0 %v11834
        %11970 = vmatpush.bf16.msra.mxu0 %v11831
        %11971 = vmatpush.bf16.msra.mxu0 %v11828
        %11972 = vmatpush.bf16.msra.mxu0 %v11825
        %11973 = vmatpush.bf16.msra.mxu0 %v11822
        %11974 = vmatmul.bf16.gmra.mxu0 %v11560
        %v11975 = vpop.f32.mrf.mxu0
        %v11976 = vadd.f32 0.0, %v11975
        %v11977 = vpop.f32.mrf.mxu0
        %v11978 = vadd.f32 0.0, %v11977
        %11979 = vmatmul.bf16.gmra.mxu0 %v11568
        %v11980 = vpop.f32.mrf.mxu0
        %v11981 = vadd.f32 0.0, %v11980
        %v11982 = vpop.f32.mrf.mxu0
        %v11983 = vadd.f32 0.0, %v11982
        %11984 = vmatmul.bf16.gmra.mxu0 %v11567
        %v11985 = vpop.f32.mrf.mxu0
        %v11986 = vadd.f32 0.0, %v11985
        %v11987 = vpop.f32.mrf.mxu0
        %11988 = vdwg.mxu0
        %11989 = vmatpush.bf16.msra.mxu0 %v11867
        %11990 = vmatpush.bf16.msra.mxu0 %v11864
        %11991 = vmatpush.bf16.msra.mxu0 %v11861
        %11992 = vmatpush.bf16.msra.mxu0 %v11858
        %11993 = vmatpush.bf16.msra.mxu0 %v11855
        %11994 = vmatpush.bf16.msra.mxu0 %v11852
        %11995 = vmatpush.bf16.msra.mxu0 %v11849
        %11996 = vmatpush.bf16.msra.mxu0 %v11846
        %11997 = vmatmul.bf16.gmra.mxu0 %v11563
        %v11998 = vpop.f32.mrf.mxu0
        %v11999 = vadd.f32 %v11976, %v11998
        %v12000 = vpop.f32.mrf.mxu0
        %v12001 = vadd.f32 %v11978, %v12000
        %12002 = vmatmul.bf16.gmra.mxu0 %v11570
        %v12003 = vpop.f32.mrf.mxu0
        %v12004 = vadd.f32 %v11981, %v12003
        %v12005 = vpop.f32.mrf.mxu0
        %v12006 = vadd.f32 %v11983, %v12005
        %12007 = vmatmul.bf16.gmra.mxu0 %v11569
        %v12008 = vpop.f32.mrf.mxu0
        %v12009 = vadd.f32 %v11986, %v12008
        %v12010 = vpop.f32.mrf.mxu0
        %12011 = vdwg.mxu0
        %12012 = vmatpush.bf16.msra.mxu0 %v11891
        %12013 = vmatpush.bf16.msra.mxu0 %v11888
        %12014 = vmatpush.bf16.msra.mxu0 %v11885
        %12015 = vmatpush.bf16.msra.mxu0 %v11882
        %12016 = vmatpush.bf16.msra.mxu0 %v11879
        %12017 = vmatpush.bf16.msra.mxu0 %v11876
        %12018 = vmatpush.bf16.msra.mxu0 %v11873
        %12019 = vmatpush.bf16.msra.mxu0 %v11870
        %12020 = vmatmul.bf16.gmra.mxu0 %v11566
        %v12021 = vpop.f32.mrf.mxu0
        %v12022 = vadd.f32 %v11999, %v12021
        %v12023 = vpop.f32.mrf.mxu0
        %v12024 = vadd.f32 %v12001, %v12023
        %12025 = vmatmul.bf16.gmra.mxu0 %v11572
        %v12026 = vpop.f32.mrf.mxu0
        %v12027 = vadd.f32 %v12004, %v12026
        %v12028 = vpop.f32.mrf.mxu0
        %v12029 = vadd.f32 %v12006, %v12028
        %12030 = vmatmul.bf16.gmra.mxu0 %v11571
        %v12031 = vpop.f32.mrf.mxu0
        %v12032 = vadd.f32 %v12009, %v12031
        %v12033 = vpop.f32.mrf.mxu0
        %12034 = vdwg.mxu0
        %12035 = vmatpush.bf16.msra.mxu0 %v11844
        %12036 = vmatpush.bf16.msra.mxu0 %v11841
        %12037 = vmatpush.bf16.msra.mxu0 %v11838
        %12038 = vmatpush.bf16.msra.mxu0 %v11835
        %12039 = vmatpush.bf16.msra.mxu0 %v11832
        %12040 = vmatpush.bf16.msra.mxu0 %v11829
        %12041 = vmatpush.bf16.msra.mxu0 %v11826
        %12042 = vmatpush.bf16.msra.mxu0 %v11823
        %12043 = vmatmul.bf16.gmra.mxu0 %v11560
        %v12044 = vpop.f32.mrf.mxu0
        %v12045 = vadd.f32 0.0, %v12044
        %v12046 = vpop.f32.mrf.mxu0
        %v12047 = vadd.f32 0.0, %v12046
        %12048 = vmatmul.bf16.gmra.mxu0 %v11568
        %v12049 = vpop.f32.mrf.mxu0
        %v12050 = vadd.f32 0.0, %v12049
        %v12051 = vpop.f32.mrf.mxu0
        %v12052 = vadd.f32 0.0, %v12051
        %12053 = vmatmul.bf16.gmra.mxu0 %v11567
        %v12054 = vpop.f32.mrf.mxu0
        %v12055 = vadd.f32 0.0, %v12054
        %v12056 = vpop.f32.mrf.mxu0
        %12057 = vdwg.mxu0
        %12058 = vmatpush.bf16.msra.mxu0 %v11868
        %12059 = vmatpush.bf16.msra.mxu0 %v11865
        %12060 = vmatpush.bf16.msra.mxu0 %v11862
        %12061 = vmatpush.bf16.msra.mxu0 %v11859
        %12062 = vmatpush.bf16.msra.mxu0 %v11856
        %12063 = vmatpush.bf16.msra.mxu0 %v11853
        %12064 = vmatpush.bf16.msra.mxu0 %v11850
        %12065 = vmatpush.bf16.msra.mxu0 %v11847
        %12066 = vmatmul.bf16.gmra.mxu0 %v11563
        %v12067 = vpop.f32.mrf.mxu0
        %v12068 = vadd.f32 %v12045, %v12067
        %v12069 = vpop.f32.mrf.mxu0
        %v12070 = vadd.f32 %v12047, %v12069
        %12071 = vmatmul.bf16.gmra.mxu0 %v11570
        %v12072 = vpop.f32.mrf.mxu0
        %v12073 = vadd.f32 %v12050, %v12072
        %v12074 = vpop.f32.mrf.mxu0
        %v12075 = vadd.f32 %v12052, %v12074
        %12076 = vmatmul.bf16.gmra.mxu0 %v11569
        %v12077 = vpop.f32.mrf.mxu0
        %v12078 = vadd.f32 %v12055, %v12077
        %v12079 = vpop.f32.mrf.mxu0
        %12080 = vdwg.mxu0
        %12081 = vmatpush.bf16.msra.mxu0 %v11892
        %12082 = vmatpush.bf16.msra.mxu0 %v11889
        %12083 = vmatpush.bf16.msra.mxu0 %v11886
        %12084 = vmatpush.bf16.msra.mxu0 %v11883
        %12085 = vmatpush.bf16.msra.mxu0 %v11880
        %12086 = vmatpush.bf16.msra.mxu0 %v11877
        %12087 = vmatpush.bf16.msra.mxu0 %v11874
        %12088 = vmatpush.bf16.msra.mxu0 %v11871
        %12089 = vmatmul.bf16.gmra.mxu0 %v11566
        %v12090 = vpop.f32.mrf.mxu0
        %v12091 = vadd.f32 %v12068, %v12090
        %v12092 = vpop.f32.mrf.mxu0
        %v12093 = vadd.f32 %v12070, %v12092
        %12094 = vmatmul.bf16.gmra.mxu0 %v11572
        %v12095 = vpop.f32.mrf.mxu0
        %v12096 = vadd.f32 %v12073, %v12095
        %v12097 = vpop.f32.mrf.mxu0
        %v12098 = vadd.f32 %v12075, %v12097
        %12099 = vmatmul.bf16.gmra.mxu0 %v11571
        %v12100 = vpop.f32.mrf.mxu0
        %v12101 = vadd.f32 %v12078, %v12100
        %v12102 = vpop.f32.mrf.mxu0
        %12103 = vdwg.mxu0
        %12104 = vmatpush.bf16.msra.mxu0 %v11845
        %12105 = vmatpush.bf16.msra.mxu0 %v11842
        %12106 = vmatpush.bf16.msra.mxu0 %v11839
        %12107 = vmatpush.bf16.msra.mxu0 %v11836
        %12108 = vmatpush.bf16.msra.mxu0 %v11833
        %12109 = vmatpush.bf16.msra.mxu0 %v11830
        %12110 = vmatpush.bf16.msra.mxu0 %v11827
        %12111 = vmatpush.bf16.msra.mxu0 %v11824
        %12112 = vmatmul.bf16.gmra.mxu0 %v11560
        %v12113 = vpop.f32.mrf.mxu0
        %v12114 = vadd.f32 0.0, %v12113
        %v12115 = vpop.f32.mrf.mxu0
        %v12116 = vadd.f32 0.0, %v12115
        %12117 = vmatmul.bf16.gmra.mxu0 %v11568
        %v12118 = vpop.f32.mrf.mxu0
        %v12119 = vadd.f32 0.0, %v12118
        %v12120 = vpop.f32.mrf.mxu0
        %v12121 = vadd.f32 0.0, %v12120
        %12122 = vmatmul.bf16.gmra.mxu0 %v11567
        %v12123 = vpop.f32.mrf.mxu0
        %v12124 = vadd.f32 0.0, %v12123
        %v12125 = vpop.f32.mrf.mxu0
        %12126 = vdwg.mxu0
        %12127 = vmatpush.bf16.msra.mxu0 %v11869
        %12128 = vmatpush.bf16.msra.mxu0 %v11866
        %12129 = vmatpush.bf16.msra.mxu0 %v11863
        %12130 = vmatpush.bf16.msra.mxu0 %v11860
        %12131 = vmatpush.bf16.msra.mxu0 %v11857
        %12132 = vmatpush.bf16.msra.mxu0 %v11854
        %12133 = vmatpush.bf16.msra.mxu0 %v11851
        %12134 = vmatpush.bf16.msra.mxu0 %v11848
        %12135 = vmatmul.bf16.gmra.mxu0 %v11563
        %v12136 = vpop.f32.mrf.mxu0
        %v12137 = vadd.f32 %v12114, %v12136
        %v12138 = vpop.f32.mrf.mxu0
        %v12139 = vadd.f32 %v12116, %v12138
        %12140 = vmatmul.bf16.gmra.mxu0 %v11570
        %v12141 = vpop.f32.mrf.mxu0
        %v12142 = vadd.f32 %v12119, %v12141
        %v12143 = vpop.f32.mrf.mxu0
        %v12144 = vadd.f32 %v12121, %v12143
        %12145 = vmatmul.bf16.gmra.mxu0 %v11569
        %v12146 = vpop.f32.mrf.mxu0
        %v12147 = vadd.f32 %v12124, %v12146
        %v12148 = vpop.f32.mrf.mxu0
        %12149 = vdwg.mxu0
        %12150 = vmatpush.bf16.msra.mxu0 %v11893
        %12151 = vmatpush.bf16.msra.mxu0 %v11890
        %12152 = vmatpush.bf16.msra.mxu0 %v11887
        %12153 = vmatpush.bf16.msra.mxu0 %v11884
        %12154 = vmatpush.bf16.msra.mxu0 %v11881
        %12155 = vmatpush.bf16.msra.mxu0 %v11878
        %12156 = vmatpush.bf16.msra.mxu0 %v11875
        %12157 = vmatpush.bf16.msra.mxu0 %v11872
        %12158 = vmatmul.bf16.gmra.mxu0 %v11566
        %v12159 = vpop.f32.mrf.mxu0
        %v12160 = vadd.f32 %v12137, %v12159
        %v12161 = vpop.f32.mrf.mxu0
        %v12162 = vadd.f32 %v12139, %v12161
        %12163 = vmatmul.bf16.gmra.mxu0 %v11572
        %v12164 = vpop.f32.mrf.mxu0
        %v12165 = vadd.f32 %v12142, %v12164
        %v12166 = vpop.f32.mrf.mxu0
        %v12167 = vadd.f32 %v12144, %v12166
        %12168 = vmatmul.bf16.gmra.mxu0 %v11571
        %v12169 = vpop.f32.mrf.mxu0
        %v12170 = vadd.f32 %v12147, %v12169
        %v12171 = vpop.f32.mrf.mxu0
        %12172 = vdwg.mxu0
        %v12173 = vadd.f32 %v11425, %v12022
        %v12174 = vadd.f32 %v11426, %v12091
        %v12175 = vadd.f32 %v11427, %v12160
        %v12176 = vadd.f32 %v11428, %v12024
        %v12177 = vadd.f32 %v11429, %v12093
        %v12178 = vadd.f32 %v11430, %v12162
        %v12179 = vadd.f32 %v11431, %v12027
        %v12180 = vadd.f32 %v11432, %v12096
        %v12181 = vadd.f32 %v11433, %v12165
        %v12182 = vadd.f32 %v11434, %v12029
        %v12183 = vadd.f32 %v11435, %v12098
        %v12184 = vadd.f32 %v11436, %v12167
        %v12185 = vadd.f32 %v11437, %v12032
        %v12186 = vadd.f32 %v11438, %v12101
        %v12187 = vadd.f32 %v11439, %v12170
        %v12188 = vld [vmem:[%s8] sm:$0x7]
        %v12190 = vperm.slane %v12188, 0
        %v12191 = vperm.slane %v12188, 1
        %v12192 = vperm.slane %v12188, 2
        %v12196 = vadd.f32 %v12173, %v12190
        %v12197 = vadd.f32 %v12174, %v12191
        %v12198 = vadd.f32 %v12175, %v12192
        %v12199 = vadd.f32 %v12176, %v12190
        %v12200 = vadd.f32 %v12177, %v12191
        %v12201 = vadd.f32 %v12178, %v12192
        %v12202 = vadd.f32 %v12179, %v12190
        %v12203 = vadd.f32 %v12180, %v12191
        %v12204 = vadd.f32 %v12181, %v12192
        %v12205 = vadd.f32 %v12182, %v12190
        %v12206 = vadd.f32 %v12183, %v12191
        %v12207 = vadd.f32 %v12184, %v12192
        %v12208 = vadd.f32 %v12185, %v12190
        %v12209 = vadd.f32 %v12186, %v12191
        %v12210 = vadd.f32 %v12187, %v12192
        %v12211 = vmax.f32 %v12196, 0.0
        %v12212 = vmax.f32 %v12197, 0.0
        %v12213 = vmax.f32 %v12198, 0.0
        %v12214 = vmax.f32 %v12199, 0.0
        %v12215 = vmax.f32 %v12200, 0.0
        %v12216 = vmax.f32 %v12201, 0.0
        %v12217 = vmax.f32 %v12202, 0.0
        %v12218 = vmax.f32 %v12203, 0.0
        %v12219 = vmax.f32 %v12204, 0.0
        %v12220 = vmax.f32 %v12205, 0.0
        %v12221 = vmax.f32 %v12206, 0.0
        %v12222 = vmax.f32 %v12207, 0.0
        %v12223 = vmax.f32 %v12208, 0.0
        %v12224 = vmax.f32 %v12209, 0.0
        %v12225 = vmax.f32 %v12210, 0.0
        %12226 = vst [vmem:[%s325] sm:$0xff] %v12211
        %12227 = vst [vmem:[%s325 + $0x8] sm:$0xff] %v12212
        %12228 = vst [vmem:[%s325 + $0x10] sm:$0xff] %v12213
        %12229 = vst [vmem:[%s325 + $0x18] sm:$0xff] %v12214
        %12230 = vst [vmem:[%s325 + $0x20] sm:$0xff] %v12215
        %12231 = vst [vmem:[%s325 + $0x28] sm:$0xff] %v12216
        %v12241 = vrot.slane %v12217, 1
        %v12242 = vrot.slane %v12220, 1
        %v12243 = vsel %vm1424, %v12241, %v12242
        %v12244 = vrot.slane %v12218, 1
        %v12245 = vrot.slane %v12221, 1
        %v12246 = vsel %vm1424, %v12244, %v12245
        %v12247 = vrot.slane %v12219, 1
        %v12248 = vrot.slane %v12222, 1
        %v12249 = vsel %vm1424, %v12247, %v12248
        %v12250 = vrot.slane %v12223, 1
        %v12251 = vsel %vm1424, %v12242, %v12250
        %v12252 = vrot.slane %v12224, 1
        %v12253 = vsel %vm1424, %v12245, %v12252
        %v12254 = vrot.slane %v12225, 1
        %v12255 = vsel %vm1424, %v12248, %v12254
        %12262 = vst [vmem:[%s325 + $0x30] sm:$0xff] %v12243
        %12263 = vst [vmem:[%s325 + $0x38] sm:$0xff] %v12246
        %12264 = vst [vmem:[%s325 + $0x40] sm:$0xff] %v12249
        %12265 = vst [vmem:[%s325 + $0x48] sm:$0xff] %v12251
        %12266 = vst [vmem:[%s325 + $0x50] sm:$0xff] %v12253
        %12267 = vst [vmem:[%s325 + $0x58] sm:$0xff] %v12255
        %s12268 = sand.u32 %s225, 1
        %s12269 = scalar_lea.sflag [#allocation5], %s12268
        %s12270 = sand.u32 %s225, 1
        %s12271 = smul.addr %s12270, 96
        %s12272 = scalar_lea.vmem [#allocation4], %s12271
        // Predicated region
        $region57: #{deep_cnn_forward.1} parent=55 // pred_check
          %p12273 = pneg %p235
        $region58: #{deep_cnn_forward.1} parent=55 // pred_check_branch
          %12275 = sbr.rel (%p12273) target = $region60
        $region59: #{deep_cnn_forward.1} parent=55 // pred_region
          %12277 = vsyncadd %s12269, 0
          %s12278 = smul.addr %s23, 12
          %s12279 = smul.addr %s12278, 8
          %s12280 = scalar_lea.hbm %s9, %s12279
          %s12281 = sshll.u32 %s12272, 4
          %s12282 = int_to_ptr.vmem [resolvable:$true] %s12281
          %s12283 = sshll.u32 %s12280, 4
          %s12284 = int_to_ptr.hbm [resolvable:$true] %s12283
          %12289 = dma.vmem_to_hbm [thread:$0]  %s12282, 1536, %s12284, %s12269, 384, 384, 24
        $region60: #{deep_cnn_forward.1} parent=55 // pred_fallthru
          _
      $region56: #{deep_cnn_forward.1} parent=5 // pred_fallthru
        _
      %p12290 = scmp.le.s32.totalorder 2, %s18
      // Predicated region
      $region61: #{deep_cnn_forward.1} parent=5 // pred_check
        %p12291 = pneg %p12290
      $region62: #{deep_cnn_forward.1} parent=5 // pred_check_branch
        %12293 = sbr.rel (%p12291) target = $region64
      $region63: #{deep_cnn_forward.1} parent=5 // pred_region
        %s12294 = ssub.s32 %s18, 2
        // Predicated region
        $region65: #{deep_cnn_forward.1} parent=63 // pred_check
          %p12295 = pneg %p241
        $region66: #{deep_cnn_forward.1} parent=63 // pred_check_branch
          %12297 = sbr.rel (%p12295) target = $region68
        $region67: #{deep_cnn_forward.1} parent=63 // pred_region
          %s12298 = sand.u32 %s226, 1
          %s12299 = scalar_lea.sflag [#allocation5], %s12298
          %s12300 = sand.u32 %s226, 1
          %s12301 = smul.addr %s12300, 96
          %s12302 = scalar_lea.vmem [#allocation4], %s12301
          %12304 = dma.done %s12299, 1536
        $region68: #{deep_cnn_forward.1} parent=63 // pred_fallthru
          _
      $region64: #{deep_cnn_forward.1} parent=5 // pred_fallthru
        _
    $region6: #{deep_cnn_forward.1} parent=1 // loop_footer
      %s22 = sadd.s32 1, %s18
    $region7: #{deep_cnn_forward.1} parent=1 // loop_footer_branch
      %17 = sbr.rel target = $region3
    $region8: #{deep_cnn_forward.1} parent=1 // loop_exit
      _
    %12305 = vsyncpa [#allocation5], 1
    %s12306 = scalar_lea.sflag [#allocation5], 1
    %12307 = vsyncpa %s12306, 1

</llo_original>
